<compile_context>
chip_gen: v6e
topology: v6e:2x2x1
jax: 0.10.0
libtpu: 0.0.40
codegen_flags: <defaults>
</compile_context>

<pallas_src>
import math
from functools import partial

import numpy as np

import jax
import jax.numpy as jnp
from jax.experimental import pallas as pl
from jax.experimental.pallas import tpu as pltpu


_BLOCKS = ("s0", "s1", "s2", "s3", "s4", "d1", "d2",
           "c0", "c1", "u2", "u1", "f0", "f1", "f2")
_BLOCK_IO = {
    "s0": (2, 16), "s1": (16, 20), "s2": (20, 24), "s3": (24, 28),
    "s4": (28, 32), "d1": (32, 48), "d2": (48, 64), "c0": (64, 96),
    "c1": (96, 64), "u2": (128, 64), "u1": (112, 48), "f0": (80, 64),
    "f1": (64, 32), "f2": (32, 16),
}
# Channel count of the main (non-skip) operand for the channel-concat blocks.
_SKIP_SPLIT = {"u2": 64, "u1": 64, "f0": 48}


def _round_up(n, m=16):
    return (n + m - 1) // m * m


def _wpack_layout(L):
    """Static row offsets of every weight chunk inside the packed (R,128) array."""
    layout, off = {}, 0
    for name in _BLOCKS:
        cin, _ = _BLOCK_IO[name]
        layout[name] = off
        off += _round_up(5 * cin)
    layout["fc"] = off
    off += _round_up(16)
    layout["U"] = off
    off += _round_up(L + 4)          # nearest-x2 matrix incl. 2-row halo
    return layout, off


def _up_matrix(l_half):
    """(2*l_half+4, l_half) 0/1 matrix: nearest Upsample(x2) plus 2-row zero halo."""
    m = np.zeros((2 * l_half + 4, l_half), np.float32)
    for r in range(2 * l_half):
        m[r + 2, r // 2] = 1.0
    return jnp.asarray(m)


def _pad_rc(a, rows, cols=128):
    return jnp.pad(a, ((0, rows - a.shape[0]), (0, cols - a.shape[1])))


def pack_xps_params(params, L):
    """Fold BN, im2col-reshape and pack ALL weights into two flat arrays.

    Returns (wpack (R,128) bf16, spack (16,128) f32).  Done once outside the
    jitted forward so the fused kernel sees exactly 3 inputs.
    """
    _, n_rows = _wpack_layout(L)
    wrows, srows = [], []
    for name in _BLOCKS:
        W, scale, shift = params[name]                 # W: (5, cin, cout)
        cin, cout = _BLOCK_IO[name]
        Wf = W * scale[0][None, None, :]               # fold eval-mode BN scale
        if name in _SKIP_SPLIT:                        # concat block: main rows, then skip rows
            c1 = _SKIP_SPLIT[name]
            w2d = jnp.concatenate(
                [Wf[:, :c1, :].reshape(5 * c1, cout),
                 Wf[:, c1:, :].reshape(5 * (cin - c1), cout)], axis=0)
        else:
            w2d = Wf.reshape(5 * cin, cout)            # rows in (tap, cin) order
        wrows.append(_pad_rc(w2d, _round_up(5 * cin)))
        srows.append(_pad_rc(shift, 1))
    wrows.append(_pad_rc(params["fc_W"], _round_up(16)))           # 1x1 head
    wrows.append(_pad_rc(_up_matrix(L // 2), _round_up(L + 4)))    # upsample matrix
    srows.append(_pad_rc(params["fc_b"], 1))
    srows.append(jnp.zeros((1, 128), jnp.float32))
    wpack = jnp.concatenate(wrows, axis=0).astype(jnp.bfloat16)
    spack = jnp.concatenate(srows, axis=0).astype(jnp.float32)
    assert wpack.shape == (n_rows, 128), wpack.shape
    return wpack, spack


def _mm(a, b):
    return jnp.dot(a, b, preferred_element_type=jnp.float32)


# ----------------------------------------------------------------------------
# Fused Pallas kernel: the whole XPSModel forward for one batch row.
# ----------------------------------------------------------------------------
def _make_xps_kernel(L, layout, use_strided_pool):
    u_off = layout["U"]
    fc_off = layout["fc"]

    def kernel(x_ref, w_ref, s_ref, o_ref, buf_ref):
        # x_ref : (1, 2, L) input row (NCL);  w_ref : (R, 128) bf16 packed weights
        # s_ref : (16, 128) f32 BN shifts + fc bias;  o_ref : (1, 2, L) output
        # buf_ref : (L, 128) f32 VMEM scratch used by the stride-2 pooling reads.
        if use_strided_pool:
            # Pool scratch is read back full-width (128 lanes); zero it once so
            # the (discarded) lanes >= C never hold uninitialized VMEM.
            buf_ref[...] = jnp.zeros_like(buf_ref)

        def pad2(h):                       # (Lc,C) -> (Lc+4,C): k=5 zero halo
            z = jnp.zeros((2, h.shape[1]), h.dtype)
            return jnp.concatenate([z, h, z], axis=0)

        def pool(h):                       # (Lc,C) -> (Lc//2,C): AvgPool1d(2)
            Lc, C = h.shape
            if use_strided_pool:           # VPU add of two stride-2 sublane reads
                buf_ref[0:Lc, 0:C] = h
                ev = buf_ref[pl.ds(0, Lc // 2, stride=2), :]
                od = buf_ref[pl.ds(1, Lc // 2, stride=2), :]
                return (0.5 * (ev + od))[:, :C]
            # Fallback: 0/1 pooling matrix built in-registers from a 2-D iota
            # (no HBM/VMEM constant; one extra tiny MXU matmul per pool).
            r_i = jax.lax.broadcasted_iota(jnp.int32, (Lc // 2, Lc), 0)
            c_i = jax.lax.broadcasted_iota(jnp.int32, (Lc // 2, Lc), 1)
            pm = jnp.where((c_i == 2 * r_i) | (c_i == 2 * r_i + 1), 0.5, 0.0)
            return _mm(pm.astype(jnp.bfloat16), h.astype(jnp.bfloat16))

        def up(h):                         # (Lc,C) -> (2*Lc+4,C): nearest x2 + halo
            Lc = h.shape[0]
            u = w_ref[u_off:u_off + 2 * Lc + 4, 0:Lc]        # 0/1 bf16, exact
            return _mm(u, h.astype(jnp.bfloat16))

        def block(idx, xp, extra=None):
            # Conv1d(k=5,p=2) + folded-BN shift + ReLU as ONE im2col matmul.
            # xp    : (Lout+4, C1) zero-haloed main input
            # extra : optional (Lout+4, C2) zero-haloed skip input; the channel
            #         concat is realized by the [main-taps ; skip-taps] weight rows.
            name = _BLOCKS[idx]
            cin, cout = _BLOCK_IO[name]
            off = layout[name]
            Lout = xp.shape[0] - 4
            cols = [xp[t:t + Lout, :] for t in range(5)]
            if extra is not None:
                cols += [extra[t:t + Lout, :] for t in range(5)]
            xcat = jnp.concatenate(cols, axis=-1).astype(jnp.bfloat16)
            w = w_ref[off:off + 5 * cin, 0:cout]             # (5*cin, cout) bf16
            shift = s_ref[idx:idx + 1, 0:cout]               # (1, cout) f32
            return jnp.maximum(_mm(xcat, w) + shift, 0.0)

        x = jnp.transpose(x_ref[0])                          # (2,L) -> (L,2)

        # starter
        h = block(0, pad2(x))                                # (L, 16)
        h = block(1, pad2(h))                                # (L, 20)
        h = block(2, pad2(pool(h)))                          # (L/2, 24)
        h = block(3, pad2(pool(h)))                          # (L/4, 28)
        starter = block(4, pad2(pool(h)))                    # (L/8, 32)
        # pass_down1 / pass_down2
        pass1 = block(5, pad2(pool(starter)))                # (L/16, 48)
        pass2 = block(6, pad2(pool(pass1)))                  # (L/32, 64)
        # code
        h = block(7, pad2(pool(pass2)))                      # (L/64, 96)
        h = block(8, up(h))                                  # (L/32, 64)
        # pass_up2 / pass_up1 / finisher (skip concats via split weights)
        h = block(9, up(h), extra=up(pass2))                 # (L/16, 64)
        h = block(10, up(h), extra=up(pass1))                # (L/8, 48)
        h = block(11, up(h), extra=up(starter))              # (L/4, 64)
        h = block(12, up(h))                                 # (L/2, 32)
        h = block(13, up(h))                                 # (L, 16)

        # fused 1x1-conv head + sigmoid (EUP)
        wfc = w_ref[fc_off:fc_off + 16, 0:2]
        bfc = s_ref[14:15, 0:2]
        z = _mm(h.astype(jnp.bfloat16), wfc) + bfc           # (L, 2) f32
        y = 1.0 / (1.0 + jnp.exp(-z))
        o_ref[0] = jnp.transpose(y)                          # lane-dense (2,L) store

    return kernel


# ----------------------------------------------------------------------------
# Pallas wrapper: one pallas_call for the whole network
# ----------------------------------------------------------------------------
def xps_forward_pallas(x_ncl, wpack, spack, use_strided_pool=True):
    """Fused XPSModel forward. x_ncl: (B, 2, L) f32 with L % 64 == 0."""
    B, c_in, L = x_ncl.shape
    assert c_in == 2, "XPSModel expects 2 input channels"
    assert L % 64 == 0 and L >= 64, "sequence length must be a multiple of 64"
    layout, n_rows = _wpack_layout(L)
    assert wpack.shape == (n_rows, 128) and spack.shape == (16, 128)

    kernel = _make_xps_kernel(L, layout, use_strided_pool)
    return pl.pallas_call(
        kernel,
        out_shape=jax.ShapeDtypeStruct((B, 2, L), jnp.float32),
        grid=(B,),
        in_specs=[
            pl.BlockSpec((1, 2, L), lambda b: (b, 0, 0)),
            pl.BlockSpec((n_rows, 128), lambda b: (0, 0)),    # grid-invariant params
            pl.BlockSpec((16, 128), lambda b: (0, 0)),        # grid-invariant shifts
        ],
        out_specs=pl.BlockSpec((1, 2, L), lambda b: (b, 0, 0)),
        scratch_shapes=[pltpu.VMEM((L, 128), jnp.float32)],   # pool scratch
        compiler_params=pltpu.CompilerParams(
            dimension_semantics=("parallel",)),    # v7x: one batch row per TC
    )(x_ncl, wpack, spack)


def _strided_sublane_reads_ok():
    """Probe: compile + run a tiny kernel using stride-2 sublane ref reads."""
    try:
        def k(x_ref, o_ref):
            o_ref[...] = (x_ref[pl.ds(0, 4, stride=2), :]
                          + x_ref[pl.ds(1, 4, stride=2), :])

        f = pl.pallas_call(
            k,
            out_shape=jax.ShapeDtypeStruct((4, 128), jnp.float32),
            grid=(1,),
            in_specs=[pl.BlockSpec((8, 128), lambda i: (0, 0))],
            out_specs=pl.BlockSpec((4, 128), lambda i: (0, 0)),
        )
        xp = jnp.arange(8 * 128, dtype=jnp.float32).reshape(8, 128)
        yp = jax.block_until_ready(f(xp))
        return bool(jnp.allclose(yp, xp[0::2] + xp[1::2]))
    except Exception:   # fall back to the in-kernel iota pooling matrix
        return False


# ----------------------------------------------------------------------------
# Pure-JAX reference (validation only; no Pallas)
# ----------------------------------------------------------------------------
def _conv_bn_relu_ref(x, W, scale, shift):
    pad = (W.shape[0] - 1) // 2
    y = jax.lax.conv_general_dilated(
        x, W, window_strides=(1,), padding=((pad, pad),),
        dimension_numbers=("NWC", "WIO", "NWC"),
        preferred_element_type=jnp.float32,
        precision=jax.lax.Precision.HIGHEST)
    return jnp.maximum(y * scale + shift, 0.0)


def _avg_pool_ref(x):
    B, L, C = x.shape
    return x.reshape(B, L // 2, 2, C).mean(axis=2)


def _upsample_ref(x):
    return jnp.repeat(x, 2, axis=1)


def xps_forward_ref(x_ncl, params):
    p = params
    x = jnp.transpose(x_ncl, (0, 2, 1))
    h = _conv_bn_relu_ref(x, *p["s0"])
    h = _conv_bn_relu_ref(h, *p["s1"])
    h = _conv_bn_relu_ref(_avg_pool_ref(h), *p["s2"])
    h = _conv_bn_relu_ref(_avg_pool_ref(h), *p["s3"])
    starter = _conv_bn_relu_ref(_avg_pool_ref(h), *p["s4"])
    pass1 = _conv_bn_relu_ref(_avg_pool_ref(starter), *p["d1"])
    pass2 = _conv_bn_relu_ref(_avg_pool_ref(pass1), *p["d2"])
    h = _conv_bn_relu_ref(_avg_pool_ref(pass2), *p["c0"])
    h = _conv_bn_relu_ref(_upsample_ref(h), *p["c1"])
    h = jnp.concatenate([h, pass2], axis=-1)
    h = _conv_bn_relu_ref(_upsample_ref(h), *p["u2"])
    h = jnp.concatenate([h, pass1], axis=-1)
    h = _conv_bn_relu_ref(_upsample_ref(h), *p["u1"])
    h = jnp.concatenate([h, starter], axis=-1)
    h = _conv_bn_relu_ref(_upsample_ref(h), *p["f0"])
    h = _conv_bn_relu_ref(_upsample_ref(h), *p["f1"])
    h = _conv_bn_relu_ref(_upsample_ref(h), *p["f2"])
    y = jax.nn.sigmoid(jnp.einsum("blc,co->blo", h, p["fc_W"],
                                  precision=jax.lax.Precision.HIGHEST)
                       + p["fc_b"])
    return jnp.transpose(y, (0, 2, 1))


# ----------------------------------------------------------------------------
# Deterministic synthetic parameters (same shapes as the nn.Module)
# ----------------------------------------------------------------------------
def init_block_params(key, cin, cout, k=5, eps=1e-5):
    ks = jax.random.split(key, 6)
    W = jax.random.normal(ks[0], (k, cin, cout), jnp.float32) / math.sqrt(k * cin)
    bias = 0.05 * jax.random.normal(ks[1], (cout,), jnp.float32)
    gamma = 1.0 + 0.1 * jax.random.normal(ks[2], (cout,), jnp.float32)
    beta = 0.1 * jax.random.normal(ks[3], (cout,), jnp.float32)
    rmean = 0.1 * jax.random.normal(ks[4], (cout,), jnp.float32)
    rvar = 1.0 + 0.1 * jnp.abs(jax.random.normal(ks[5], (cout,), jnp.float32))
    scale = gamma / jnp.sqrt(rvar + eps)               # eval-mode BN fold
    shift = (bias - rmean) * scale + beta
    return W, scale.reshape(1, cout), shift.reshape(1, cout)


def init_xps_params(key):
    keys = jax.random.split(key, len(_BLOCKS) + 2)
    params = {}
    for name, k in zip(_BLOCKS, keys[:len(_BLOCKS)]):
        cin, cout = _BLOCK_IO[name]
        params[name] = init_block_params(k, cin, cout)
    params["fc_W"] = jax.random.normal(keys[-2], (16, 2), jnp.float32) / math.sqrt(16.0)
    params["fc_b"] = (0.05 * jax.random.normal(keys[-1], (2,), jnp.float32)
                      ).reshape(1, 2)
    return params


@partial(jax.jit, static_argnames=("use_strided_pool",))
def _pallas_fwd(x, wpack, spack, use_strided_pool):
    return xps_forward_pallas(x, wpack, spack, use_strided_pool)


@jax.jit
def _ref_fwd(x, params):
    return xps_forward_ref(x, params)


# ----------------------------------------------------------------------------
if __name__ == "__main__":
    B, C, L = 2, 2, 128                                   # L divisible by 64
    x = jax.random.normal(jax.random.PRNGKey(0), (B, C, L), jnp.float32)
    params = init_xps_params(jax.random.PRNGKey(42))
    wpack, spack = pack_xps_params(params, L)             # one-time pre-pack

    use_strided = _strided_sublane_reads_ok()
    out = jax.block_until_ready(
        _pallas_fwd(x, wpack, spack, use_strided_pool=use_strided))
    assert out.shape == (B, 2, L), out.shape
    assert bool(jnp.all(jnp.isfinite(out)))
    assert bool(jnp.all((out >= 0.0) & (out <= 1.0)))

    ref = jax.block_until_ready(_ref_fwd(x, params))
    # bf16 matmul operands (review item 5) -> ~1e-2 worst-case drift; a halo /
    # one-row misalignment bug would show as O(1e-1) error, so 3e-2 still catches it.
    err = float(jnp.max(jnp.abs(out - ref)))
    assert err < 3e-2, f"max abs err vs reference: {err}"

    print("KERNEL_OK")
</pallas_src>

<mosaic_0001>
module attributes {stable_mosaic.version = 11 : i64} {
  func.func @k(%arg0: i32, %arg1: memref<8x128xf32, #tpu.memory_space<vmem>>, %arg2: memref<4x128xf32, #tpu.memory_space<vmem>>) attributes {dimension_semantics = [#tpu.dimension_semantics<arbitrary>], iteration_bounds = array<i64: 1>, scalar_prefetch = 0 : i64, scratch_operands = 0 : i64, tpu.core_type = #tpu.core_type<tc>, window_params = [{pipeline_mode = #tpu.pipeline_mode<synchronous>, transform_indices = @transform_0, window_bounds = array<i64: 8, 128>}, {pipeline_mode = #tpu.pipeline_mode<synchronous>, transform_indices = @transform_1, window_bounds = array<i64: 4, 128>}]} {
    %c0 = arith.constant 0 : index
    %c0_0 = arith.constant 0 : index
    %0 = tpu.strided_load %arg1[%c0, %c0_0] {strides = array<i32: 2, 1>} : memref<8x128xf32, #tpu.memory_space<vmem>>, vector<4x128xf32>
    %c1 = arith.constant 1 : index
    %c0_1 = arith.constant 0 : index
    %1 = tpu.strided_load %arg1[%c1, %c0_1] {strides = array<i32: 2, 1>} : memref<8x128xf32, #tpu.memory_space<vmem>>, vector<4x128xf32>
    %2 = arith.addf %0, %1 : vector<4x128xf32>
    %c0_2 = arith.constant 0 : index
    %c0_3 = arith.constant 0 : index
    %3 = vector.load %arg2[%c0_2, %c0_3] : memref<4x128xf32, #tpu.memory_space<vmem>>, vector<4x128xf32>
    tpu.vector_store %arg2[%c0_2, %c0_3], %2 {strides = array<i32>} : memref<4x128xf32, #tpu.memory_space<vmem>>, vector<4x128xf32>,
    return
  }
  func.func @transform_0(%arg0: i32) -> (i32, i32) {
    %c0_i32 = arith.constant 0 : i32
    %c0_i32_0 = arith.constant 0 : i32
    %c0_i32_1 = arith.constant 0 : i32
    return %c0_i32, %c0_i32_0 : i32, i32
  }
  func.func @transform_1(%arg0: i32) -> (i32, i32) {
    %c0_i32 = arith.constant 0 : i32
    %c0_i32_0 = arith.constant 0 : i32
    %c0_i32_1 = arith.constant 0 : i32
    return %c0_i32, %c0_i32_0 : i32, i32
  }
}

module attributes {stable_mosaic.version = 11 : i64} {
  func.func @kernel(%arg0: i32, %arg1: memref<1x2x128xf32, #tpu.memory_space<vmem>>, %arg2: memref<3920x128xbf16, #tpu.memory_space<vmem>>, %arg3: memref<16x128xf32, #tpu.memory_space<vmem>>, %arg4: memref<1x2x128xf32, #tpu.memory_space<vmem>>, %arg5: memref<128x128xf32, #tpu.memory_space<vmem>>) attributes {dimension_semantics = [#tpu.dimension_semantics<parallel>], iteration_bounds = array<i64: 2>, scalar_prefetch = 0 : i64, scratch_operands = 1 : i64, tpu.core_type = #tpu.core_type<tc>, window_params = [{transform_indices = @transform_0, window_bounds = array<i64: 1, 2, 128>}, {pipeline_mode = #tpu.pipeline_mode<synchronous>, transform_indices = @transform_1, window_bounds = array<i64: 3920, 128>}, {pipeline_mode = #tpu.pipeline_mode<synchronous>, transform_indices = @transform_2, window_bounds = array<i64: 16, 128>}, {transform_indices = @transform_3, window_bounds = array<i64: 1, 2, 128>}]} {
    %c0 = arith.constant 0 : index
    %c0_0 = arith.constant 0 : index
    %c0_1 = arith.constant 0 : index
    %0 = vector.load %arg1[%c0, %c0_0, %c0_1] : memref<1x2x128xf32, #tpu.memory_space<vmem>>, vector<1x2x128xf32>
    %1 = vector.shape_cast %0 : vector<1x2x128xf32> to vector<2x128xf32>
    %2 = tpu.transpose %1, [1, 0] : vector<2x128xf32> -> vector<128x2xf32>
    %cst = arith.constant 0.000000e+00 : f32
    %3 = vector.broadcast %cst : f32 to vector<2x2xf32>
    %4 = tpu.concatenate %3, %2, %3 in 0 : vector<2x2xf32>, vector<128x2xf32>, vector<2x2xf32> -> vector<132x2xf32>
    %5 = vector.extract_strided_slice %4 {offsets = [0, 0], sizes = [128, 2], strides = [1, 1]} : vector<132x2xf32> to vector<128x2xf32>
    %6 = vector.extract_strided_slice %4 {offsets = [1, 0], sizes = [128, 2], strides = [1, 1]} : vector<132x2xf32> to vector<128x2xf32>
    %7 = vector.extract_strided_slice %4 {offsets = [2, 0], sizes = [128, 2], strides = [1, 1]} : vector<132x2xf32> to vector<128x2xf32>
    %8 = vector.extract_strided_slice %4 {offsets = [3, 0], sizes = [128, 2], strides = [1, 1]} : vector<132x2xf32> to vector<128x2xf32>
    %9 = vector.extract_strided_slice %4 {offsets = [4, 0], sizes = [128, 2], strides = [1, 1]} : vector<132x2xf32> to vector<128x2xf32>
    %10 = tpu.concatenate %5, %6, %7, %8, %9 in 1 : vector<128x2xf32>, vector<128x2xf32>, vector<128x2xf32>, vector<128x2xf32>, vector<128x2xf32> -> vector<128x10xf32>
    %11 = arith.truncf %10 : vector<128x10xf32> to vector<128x10xbf16>
    %c0_2 = arith.constant 0 : index
    %c0_3 = arith.constant 0 : index
    %12 = vector.load %arg2[%c0_2, %c0_3] : memref<3920x128xbf16, #tpu.memory_space<vmem>>, vector<10x16xbf16>
    %c0_4 = arith.constant 0 : index
    %c0_5 = arith.constant 0 : index
    %13 = vector.load %arg3[%c0_4, %c0_5] : memref<16x128xf32, #tpu.memory_space<vmem>>, vector<1x16xf32>
    %cst_6 = arith.constant dense<0.000000e+00> : vector<128x16xf32>
    %14 = tpu.matmul %11, %12, %cst_6 {dimension_numbers = #tpu.dot_dimension_numbers<[1], [0], [0], [1], [0, 0, 1, 1], [], []>} : vector<128x10xbf16>, vector<10x16xbf16>, vector<128x16xf32> -> vector<128x16xf32>
    %15 = vector.broadcast %13 : vector<1x16xf32> to vector<128x16xf32>
    %16 = arith.addf %14, %15 : vector<128x16xf32>
    %cst_7 = arith.constant 0.000000e+00 : f32
    %17 = vector.broadcast %cst_7 : f32 to vector<128x16xf32>
    %18 = arith.maximumf %16, %17 : vector<128x16xf32>
    %cst_8 = arith.constant 0.000000e+00 : f32
    %19 = vector.broadcast %cst_8 : f32 to vector<2x16xf32>
    %20 = tpu.concatenate %19, %18, %19 in 0 : vector<2x16xf32>, vector<128x16xf32>, vector<2x16xf32> -> vector<132x16xf32>
    %21 = vector.extract_strided_slice %20 {offsets = [0, 0], sizes = [128, 16], strides = [1, 1]} : vector<132x16xf32> to vector<128x16xf32>
    %22 = vector.extract_strided_slice %20 {offsets = [1, 0], sizes = [128, 16], strides = [1, 1]} : vector<132x16xf32> to vector<128x16xf32>
    %23 = vector.extract_strided_slice %20 {offsets = [2, 0], sizes = [128, 16], strides = [1, 1]} : vector<132x16xf32> to vector<128x16xf32>
    %24 = vector.extract_strided_slice %20 {offsets = [3, 0], sizes = [128, 16], strides = [1, 1]} : vector<132x16xf32> to vector<128x16xf32>
    %25 = vector.extract_strided_slice %20 {offsets = [4, 0], sizes = [128, 16], strides = [1, 1]} : vector<132x16xf32> to vector<128x16xf32>
    %26 = tpu.concatenate %21, %22, %23, %24, %25 in 1 : vector<128x16xf32>, vector<128x16xf32>, vector<128x16xf32>, vector<128x16xf32>, vector<128x16xf32> -> vector<128x80xf32>
    %27 = arith.truncf %26 : vector<128x80xf32> to vector<128x80xbf16>
    %c16 = arith.constant 16 : index
    %c0_9 = arith.constant 0 : index
    %28 = vector.load %arg2[%c16, %c0_9] : memref<3920x128xbf16, #tpu.memory_space<vmem>>, vector<80x20xbf16>
    %c1 = arith.constant 1 : index
    %c0_10 = arith.constant 0 : index
    %29 = vector.load %arg3[%c1, %c0_10] : memref<16x128xf32, #tpu.memory_space<vmem>>, vector<1x20xf32>
    %cst_11 = arith.constant dense<0.000000e+00> : vector<128x20xf32>
    %30 = tpu.matmul %27, %28, %cst_11 {dimension_numbers = #tpu.dot_dimension_numbers<[1], [0], [0], [1], [0, 0, 1, 1], [], []>} : vector<128x80xbf16>, vector<80x20xbf16>, vector<128x20xf32> -> vector<128x20xf32>
    %31 = vector.broadcast %29 : vector<1x20xf32> to vector<128x20xf32>
    %32 = arith.addf %30, %31 : vector<128x20xf32>
    %cst_12 = arith.constant 0.000000e+00 : f32
    %33 = vector.broadcast %cst_12 : f32 to vector<128x20xf32>
    %34 = arith.maximumf %32, %33 : vector<128x20xf32>
    %35 = tpu.iota {dimensions = array<i32: 0>} : vector<64x128xi32>
    %36 = tpu.iota {dimensions = array<i32: 1>} : vector<64x128xi32>
    %c2_i32 = arith.constant 2 : i32
    %37 = vector.broadcast %c2_i32 : i32 to vector<64x128xi32>
    %38 = arith.muli %37, %35 : vector<64x128xi32>
    %39 = arith.cmpi eq, %36, %38 : vector<64x128xi32>
    %c2_i32_13 = arith.constant 2 : i32
    %40 = vector.broadcast %c2_i32_13 : i32 to vector<64x128xi32>
    %41 = arith.muli %40, %35 : vector<64x128xi32>
    %c1_i32 = arith.constant 1 : i32
    %42 = vector.broadcast %c1_i32 : i32 to vector<64x128xi32>
    %43 = arith.addi %41, %42 : vector<64x128xi32>
    %44 = arith.cmpi eq, %36, %43 : vector<64x128xi32>
    %45 = arith.ori %39, %44 : vector<64x128xi1>
    %cst_14 = arith.constant 5.000000e-01 : f32
    %cst_15 = arith.constant 0.000000e+00 : f32
    %46 = vector.broadcast %cst_14 : f32 to vector<64x128xf32>
    %47 = vector.broadcast %cst_15 : f32 to vector<64x128xf32>
    %48 = arith.select %45, %46, %47 : vector<64x128xi1>, vector<64x128xf32>
    %49 = arith.truncf %48 : vector<64x128xf32> to vector<64x128xbf16>
    %50 = arith.truncf %34 : vector<128x20xf32> to vector<128x20xbf16>
    %cst_16 = arith.constant dense<0.000000e+00> : vector<64x20xf32>
    %51 = tpu.matmul %49, %50, %cst_16 {dimension_numbers = #tpu.dot_dimension_numbers<[1], [0], [0], [1], [0, 0, 1, 1], [], []>} : vector<64x128xbf16>, vector<128x20xbf16>, vector<64x20xf32> -> vector<64x20xf32>
    %cst_17 = arith.constant 0.000000e+00 : f32
    %52 = vector.broadcast %cst_17 : f32 to vector<2x20xf32>
    %53 = tpu.concatenate %52, %51, %52 in 0 : vector<2x20xf32>, vector<64x20xf32>, vector<2x20xf32> -> vector<68x20xf32>
    %54 = vector.extract_strided_slice %53 {offsets = [0, 0], sizes = [64, 20], strides = [1, 1]} : vector<68x20xf32> to vector<64x20xf32>
    %55 = vector.extract_strided_slice %53 {offsets = [1, 0], sizes = [64, 20], strides = [1, 1]} : vector<68x20xf32> to vector<64x20xf32>
    %56 = vector.extract_strided_slice %53 {offsets = [2, 0], sizes = [64, 20], strides = [1, 1]} : vector<68x20xf32> to vector<64x20xf32>
    %57 = vector.extract_strided_slice %53 {offsets = [3, 0], sizes = [64, 20], strides = [1, 1]} : vector<68x20xf32> to vector<64x20xf32>
    %58 = vector.extract_strided_slice %53 {offsets = [4, 0], sizes = [64, 20], strides = [1, 1]} : vector<68x20xf32> to vector<64x20xf32>
    %59 = tpu.concatenate %54, %55, %56, %57, %58 in 1 : vector<64x20xf32>, vector<64x20xf32>, vector<64x20xf32>, vector<64x20xf32>, vector<64x20xf32> -> vector<64x100xf32>
    %60 = arith.truncf %59 : vector<64x100xf32> to vector<64x100xbf16>
    %c96 = arith.constant 96 : index
    %c0_18 = arith.constant 0 : index
    %61 = vector.load %arg2[%c96, %c0_18] : memref<3920x128xbf16, #tpu.memory_space<vmem>>, vector<100x24xbf16>
    %c2 = arith.constant 2 : index
    %c0_19 = arith.constant 0 : index
    %62 = vector.load %arg3[%c2, %c0_19] : memref<16x128xf32, #tpu.memory_space<vmem>>, vector<1x24xf32>
    %cst_20 = arith.constant dense<0.000000e+00> : vector<64x24xf32>
    %63 = tpu.matmul %60, %61, %cst_20 {dimension_numbers = #tpu.dot_dimension_numbers<[1], [0], [0], [1], [0, 0, 1, 1], [], []>} : vector<64x100xbf16>, vector<100x24xbf16>, vector<64x24xf32> -> vector<64x24xf32>
    %64 = vector.broadcast %62 : vector<1x24xf32> to vector<64x24xf32>
    %65 = arith.addf %63, %64 : vector<64x24xf32>
    %cst_21 = arith.constant 0.000000e+00 : f32
    %66 = vector.broadcast %cst_21 : f32 to vector<64x24xf32>
    %67 = arith.maximumf %65, %66 : vector<64x24xf32>
    %68 = tpu.iota {dimensions = array<i32: 0>} : vector<32x64xi32>
    %69 = tpu.iota {dimensions = array<i32: 1>} : vector<32x64xi32>
    %c2_i32_22 = arith.constant 2 : i32
    %70 = vector.broadcast %c2_i32_22 : i32 to vector<32x64xi32>
    %71 = arith.muli %70, %68 : vector<32x64xi32>
    %72 = arith.cmpi eq, %69, %71 : vector<32x64xi32>
    %c2_i32_23 = arith.constant 2 : i32
    %73 = vector.broadcast %c2_i32_23 : i32 to vector<32x64xi32>
    %74 = arith.muli %73, %68 : vector<32x64xi32>
    %c1_i32_24 = arith.constant 1 : i32
    %75 = vector.broadcast %c1_i32_24 : i32 to vector<32x64xi32>
    %76 = arith.addi %74, %75 : vector<32x64xi32>
    %77 = arith.cmpi eq, %69, %76 : vector<32x64xi32>
    %78 = arith.ori %72, %77 : vector<32x64xi1>
    %cst_25 = arith.constant 5.000000e-01 : f32
    %cst_26 = arith.constant 0.000000e+00 : f32
    %79 = vector.broadcast %cst_25 : f32 to vector<32x64xf32>
    %80 = vector.broadcast %cst_26 : f32 to vector<32x64xf32>
    %81 = arith.select %78, %79, %80 : vector<32x64xi1>, vector<32x64xf32>
    %82 = arith.truncf %81 : vector<32x64xf32> to vector<32x64xbf16>
    %83 = arith.truncf %67 : vector<64x24xf32> to vector<64x24xbf16>
    %cst_27 = arith.constant dense<0.000000e+00> : vector<32x24xf32>
    %84 = tpu.matmul %82, %83, %cst_27 {dimension_numbers = #tpu.dot_dimension_numbers<[1], [0], [0], [1], [0, 0, 1, 1], [], []>} : vector<32x64xbf16>, vector<64x24xbf16>, vector<32x24xf32> -> vector<32x24xf32>
    %cst_28 = arith.constant 0.000000e+00 : f32
    %85 = vector.broadcast %cst_28 : f32 to vector<2x24xf32>
    %86 = tpu.concatenate %85, %84, %85 in 0 : vector<2x24xf32>, vector<32x24xf32>, vector<2x24xf32> -> vector<36x24xf32>
    %87 = vector.extract_strided_slice %86 {offsets = [0, 0], sizes = [32, 24], strides = [1, 1]} : vector<36x24xf32> to vector<32x24xf32>
    %88 = vector.extract_strided_slice %86 {offsets = [1, 0], sizes = [32, 24], strides = [1, 1]} : vector<36x24xf32> to vector<32x24xf32>
    %89 = vector.extract_strided_slice %86 {offsets = [2, 0], sizes = [32, 24], strides = [1, 1]} : vector<36x24xf32> to vector<32x24xf32>
    %90 = vector.extract_strided_slice %86 {offsets = [3, 0], sizes = [32, 24], strides = [1, 1]} : vector<36x24xf32> to vector<32x24xf32>
    %91 = vector.extract_strided_slice %86 {offsets = [4, 0], sizes = [32, 24], strides = [1, 1]} : vector<36x24xf32> to vector<32x24xf32>
    %92 = tpu.concatenate %87, %88, %89, %90, %91 in 1 : vector<32x24xf32>, vector<32x24xf32>, vector<32x24xf32>, vector<32x24xf32>, vector<32x24xf32> -> vector<32x120xf32>
    %93 = arith.truncf %92 : vector<32x120xf32> to vector<32x120xbf16>
    %c208 = arith.constant 208 : index
    %c0_29 = arith.constant 0 : index
    %94 = vector.load %arg2[%c208, %c0_29] : memref<3920x128xbf16, #tpu.memory_space<vmem>>, vector<120x28xbf16>
    %c3 = arith.constant 3 : index
    %c0_30 = arith.constant 0 : index
    %95 = vector.load %arg3[%c3, %c0_30] : memref<16x128xf32, #tpu.memory_space<vmem>>, vector<1x28xf32>
    %cst_31 = arith.constant dense<0.000000e+00> : vector<32x28xf32>
    %96 = tpu.matmul %93, %94, %cst_31 {dimension_numbers = #tpu.dot_dimension_numbers<[1], [0], [0], [1], [0, 0, 1, 1], [], []>} : vector<32x120xbf16>, vector<120x28xbf16>, vector<32x28xf32> -> vector<32x28xf32>
    %97 = vector.broadcast %95 : vector<1x28xf32> to vector<32x28xf32>
    %98 = arith.addf %96, %97 : vector<32x28xf32>
    %cst_32 = arith.constant 0.000000e+00 : f32
    %99 = vector.broadcast %cst_32 : f32 to vector<32x28xf32>
    %100 = arith.maximumf %98, %99 : vector<32x28xf32>
    %101 = tpu.iota {dimensions = array<i32: 0>} : vector<16x32xi32>
    %102 = tpu.iota {dimensions = array<i32: 1>} : vector<16x32xi32>
    %c2_i32_33 = arith.constant 2 : i32
    %103 = vector.broadcast %c2_i32_33 : i32 to vector<16x32xi32>
    %104 = arith.muli %103, %101 : vector<16x32xi32>
    %105 = arith.cmpi eq, %102, %104 : vector<16x32xi32>
    %c2_i32_34 = arith.constant 2 : i32
    %106 = vector.broadcast %c2_i32_34 : i32 to vector<16x32xi32>
    %107 = arith.muli %106, %101 : vector<16x32xi32>
    %c1_i32_35 = arith.constant 1 : i32
    %108 = vector.broadcast %c1_i32_35 : i32 to vector<16x32xi32>
    %109 = arith.addi %107, %108 : vector<16x32xi32>
    %110 = arith.cmpi eq, %102, %109 : vector<16x32xi32>
    %111 = arith.ori %105, %110 : vector<16x32xi1>
    %cst_36 = arith.constant 5.000000e-01 : f32
    %cst_37 = arith.constant 0.000000e+00 : f32
    %112 = vector.broadcast %cst_36 : f32 to vector<16x32xf32>
    %113 = vector.broadcast %cst_37 : f32 to vector<16x32xf32>
    %114 = arith.select %111, %112, %113 : vector<16x32xi1>, vector<16x32xf32>
    %115 = arith.truncf %114 : vector<16x32xf32> to vector<16x32xbf16>
    %116 = arith.truncf %100 : vector<32x28xf32> to vector<32x28xbf16>
    %cst_38 = arith.constant dense<0.000000e+00> : vector<16x28xf32>
    %117 = tpu.matmul %115, %116, %cst_38 {dimension_numbers = #tpu.dot_dimension_numbers<[1], [0], [0], [1], [0, 0, 1, 1], [], []>} : vector<16x32xbf16>, vector<32x28xbf16>, vector<16x28xf32> -> vector<16x28xf32>
    %cst_39 = arith.constant 0.000000e+00 : f32
    %118 = vector.broadcast %cst_39 : f32 to vector<2x28xf32>
    %119 = tpu.concatenate %118, %117, %118 in 0 : vector<2x28xf32>, vector<16x28xf32>, vector<2x28xf32> -> vector<20x28xf32>
    %120 = vector.extract_strided_slice %119 {offsets = [0, 0], sizes = [16, 28], strides = [1, 1]} : vector<20x28xf32> to vector<16x28xf32>
    %121 = vector.extract_strided_slice %119 {offsets = [1, 0], sizes = [16, 28], strides = [1, 1]} : vector<20x28xf32> to vector<16x28xf32>
    %122 = vector.extract_strided_slice %119 {offsets = [2, 0], sizes = [16, 28], strides = [1, 1]} : vector<20x28xf32> to vector<16x28xf32>
    %123 = vector.extract_strided_slice %119 {offsets = [3, 0], sizes = [16, 28], strides = [1, 1]} : vector<20x28xf32> to vector<16x28xf32>
    %124 = vector.extract_strided_slice %119 {offsets = [4, 0], sizes = [16, 28], strides = [1, 1]} : vector<20x28xf32> to vector<16x28xf32>
    %125 = tpu.concatenate %120, %121, %122, %123, %124 in 1 : vector<16x28xf32>, vector<16x28xf32>, vector<16x28xf32>, vector<16x28xf32>, vector<16x28xf32> -> vector<16x140xf32>
    %126 = arith.truncf %125 : vector<16x140xf32> to vector<16x140xbf16>
    %c336 = arith.constant 336 : index
    %c0_40 = arith.constant 0 : index
    %127 = vector.load %arg2[%c336, %c0_40] : memref<3920x128xbf16, #tpu.memory_space<vmem>>, vector<140x32xbf16>
    %c4 = arith.constant 4 : index
    %c0_41 = arith.constant 0 : index
    %128 = vector.load %arg3[%c4, %c0_41] : memref<16x128xf32, #tpu.memory_space<vmem>>, vector<1x32xf32>
    %cst_42 = arith.constant dense<0.000000e+00> : vector<16x32xf32>
    %129 = tpu.matmul %126, %127, %cst_42 {dimension_numbers = #tpu.dot_dimension_numbers<[1], [0], [0], [1], [0, 0, 1, 1], [], []>} : vector<16x140xbf16>, vector<140x32xbf16>, vector<16x32xf32> -> vector<16x32xf32>
    %130 = vector.broadcast %128 : vector<1x32xf32> to vector<16x32xf32>
    %131 = arith.addf %129, %130 : vector<16x32xf32>
    %cst_43 = arith.constant 0.000000e+00 : f32
    %132 = vector.broadcast %cst_43 : f32 to vector<16x32xf32>
    %133 = arith.maximumf %131, %132 : vector<16x32xf32>
    %134 = tpu.iota {dimensions = array<i32: 0>} : vector<8x16xi32>
    %135 = tpu.iota {dimensions = array<i32: 1>} : vector<8x16xi32>
    %c2_i32_44 = arith.constant 2 : i32
    %136 = vector.broadcast %c2_i32_44 : i32 to vector<8x16xi32>
    %137 = arith.muli %136, %134 : vector<8x16xi32>
    %138 = arith.cmpi eq, %135, %137 : vector<8x16xi32>
    %c2_i32_45 = arith.constant 2 : i32
    %139 = vector.broadcast %c2_i32_45 : i32 to vector<8x16xi32>
    %140 = arith.muli %139, %134 : vector<8x16xi32>
    %c1_i32_46 = arith.constant 1 : i32
    %141 = vector.broadcast %c1_i32_46 : i32 to vector<8x16xi32>
    %142 = arith.addi %140, %141 : vector<8x16xi32>
    %143 = arith.cmpi eq, %135, %142 : vector<8x16xi32>
    %144 = arith.ori %138, %143 : vector<8x16xi1>
    %cst_47 = arith.constant 5.000000e-01 : f32
    %cst_48 = arith.constant 0.000000e+00 : f32
    %145 = vector.broadcast %cst_47 : f32 to vector<8x16xf32>
    %146 = vector.broadcast %cst_48 : f32 to vector<8x16xf32>
    %147 = arith.select %144, %145, %146 : vector<8x16xi1>, vector<8x16xf32>
    %148 = arith.truncf %147 : vector<8x16xf32> to vector<8x16xbf16>
    %149 = arith.truncf %133 : vector<16x32xf32> to vector<16x32xbf16>
    %cst_49 = arith.constant dense<0.000000e+00> : vector<8x32xf32>
    %150 = tpu.matmul %148, %149, %cst_49 {dimension_numbers = #tpu.dot_dimension_numbers<[1], [0], [0], [1], [0, 0, 1, 1], [], []>} : vector<8x16xbf16>, vector<16x32xbf16>, vector<8x32xf32> -> vector<8x32xf32>
    %cst_50 = arith.constant 0.000000e+00 : f32
    %151 = vector.broadcast %cst_50 : f32 to vector<2x32xf32>
    %152 = tpu.concatenate %151, %150, %151 in 0 : vector<2x32xf32>, vector<8x32xf32>, vector<2x32xf32> -> vector<12x32xf32>
    %153 = vector.extract_strided_slice %152 {offsets = [0, 0], sizes = [8, 32], strides = [1, 1]} : vector<12x32xf32> to vector<8x32xf32>
    %154 = vector.extract_strided_slice %152 {offsets = [1, 0], sizes = [8, 32], strides = [1, 1]} : vector<12x32xf32> to vector<8x32xf32>
    %155 = vector.extract_strided_slice %152 {offsets = [2, 0], sizes = [8, 32], strides = [1, 1]} : vector<12x32xf32> to vector<8x32xf32>
    %156 = vector.extract_strided_slice %152 {offsets = [3, 0], sizes = [8, 32], strides = [1, 1]} : vector<12x32xf32> to vector<8x32xf32>
    %157 = vector.extract_strided_slice %152 {offsets = [4, 0], sizes = [8, 32], strides = [1, 1]} : vector<12x32xf32> to vector<8x32xf32>
    %158 = tpu.concatenate %153, %154, %155, %156, %157 in 1 : vector<8x32xf32>, vector<8x32xf32>, vector<8x32xf32>, vector<8x32xf32>, vector<8x32xf32> -> vector<8x160xf32>
    %159 = arith.truncf %158 : vector<8x160xf32> to vector<8x160xbf16>
    %c480 = arith.constant 480 : index
    %c0_51 = arith.constant 0 : index
    %160 = vector.load %arg2[%c480, %c0_51] : memref<3920x128xbf16, #tpu.memory_space<vmem>>, vector<160x48xbf16>
    %c5 = arith.constant 5 : index
    %c0_52 = arith.constant 0 : index
    %161 = vector.load %arg3[%c5, %c0_52] : memref<16x128xf32, #tpu.memory_space<vmem>>, vector<1x48xf32>
    %cst_53 = arith.constant dense<0.000000e+00> : vector<8x48xf32>
    %162 = tpu.matmul %159, %160, %cst_53 {dimension_numbers = #tpu.dot_dimension_numbers<[1], [0], [0], [1], [0, 0, 1, 1], [], []>} : vector<8x160xbf16>, vector<160x48xbf16>, vector<8x48xf32> -> vector<8x48xf32>
    %163 = vector.broadcast %161 : vector<1x48xf32> to vector<8x48xf32>
    %164 = arith.addf %162, %163 : vector<8x48xf32>
    %cst_54 = arith.constant 0.000000e+00 : f32
    %165 = vector.broadcast %cst_54 : f32 to vector<8x48xf32>
    %166 = arith.maximumf %164, %165 : vector<8x48xf32>
    %167 = tpu.iota {dimensions = array<i32: 0>} : vector<4x8xi32>
    %168 = tpu.iota {dimensions = array<i32: 1>} : vector<4x8xi32>
    %c2_i32_55 = arith.constant 2 : i32
    %169 = vector.broadcast %c2_i32_55 : i32 to vector<4x8xi32>
    %170 = arith.muli %169, %167 : vector<4x8xi32>
    %171 = arith.cmpi eq, %168, %170 : vector<4x8xi32>
    %c2_i32_56 = arith.constant 2 : i32
    %172 = vector.broadcast %c2_i32_56 : i32 to vector<4x8xi32>
    %173 = arith.muli %172, %167 : vector<4x8xi32>
    %c1_i32_57 = arith.constant 1 : i32
    %174 = vector.broadcast %c1_i32_57 : i32 to vector<4x8xi32>
    %175 = arith.addi %173, %174 : vector<4x8xi32>
    %176 = arith.cmpi eq, %168, %175 : vector<4x8xi32>
    %177 = arith.ori %171, %176 : vector<4x8xi1>
    %cst_58 = arith.constant 5.000000e-01 : f32
    %cst_59 = arith.constant 0.000000e+00 : f32
    %178 = vector.broadcast %cst_58 : f32 to vector<4x8xf32>
    %179 = vector.broadcast %cst_59 : f32 to vector<4x8xf32>
    %180 = arith.select %177, %178, %179 : vector<4x8xi1>, vector<4x8xf32>
    %181 = arith.truncf %180 : vector<4x8xf32> to vector<4x8xbf16>
    %182 = arith.truncf %166 : vector<8x48xf32> to vector<8x48xbf16>
    %cst_60 = arith.constant dense<0.000000e+00> : vector<4x48xf32>
    %183 = tpu.matmul %181, %182, %cst_60 {dimension_numbers = #tpu.dot_dimension_numbers<[1], [0], [0], [1], [0, 0, 1, 1], [], []>} : vector<4x8xbf16>, vector<8x48xbf16>, vector<4x48xf32> -> vector<4x48xf32>
    %cst_61 = arith.constant 0.000000e+00 : f32
    %184 = vector.broadcast %cst_61 : f32 to vector<2x48xf32>
    %185 = tpu.concatenate %184, %183, %184 in 0 : vector<2x48xf32>, vector<4x48xf32>, vector<2x48xf32> -> vector<8x48xf32>
    %186 = vector.extract_strided_slice %185 {offsets = [0, 0], sizes = [4, 48], strides = [1, 1]} : vector<8x48xf32> to vector<4x48xf32>
    %187 = vector.extract_strided_slice %185 {offsets = [1, 0], sizes = [4, 48], strides = [1, 1]} : vector<8x48xf32> to vector<4x48xf32>
    %188 = vector.extract_strided_slice %185 {offsets = [2, 0], sizes = [4, 48], strides = [1, 1]} : vector<8x48xf32> to vector<4x48xf32>
    %189 = vector.extract_strided_slice %185 {offsets = [3, 0], sizes = [4, 48], strides = [1, 1]} : vector<8x48xf32> to vector<4x48xf32>
    %190 = vector.extract_strided_slice %185 {offsets = [4, 0], sizes = [4, 48], strides = [1, 1]} : vector<8x48xf32> to vector<4x48xf32>
    %191 = tpu.concatenate %186, %187, %188, %189, %190 in 1 : vector<4x48xf32>, vector<4x48xf32>, vector<4x48xf32>, vector<4x48xf32>, vector<4x48xf32> -> vector<4x240xf32>
    %192 = arith.truncf %191 : vector<4x240xf32> to vector<4x240xbf16>
    %c640 = arith.constant 640 : index
    %c0_62 = arith.constant 0 : index
    %193 = vector.load %arg2[%c640, %c0_62] : memref<3920x128xbf16, #tpu.memory_space<vmem>>, vector<240x64xbf16>
    %c6 = arith.constant 6 : index
    %c0_63 = arith.constant 0 : index
    %194 = vector.load %arg3[%c6, %c0_63] : memref<16x128xf32, #tpu.memory_space<vmem>>, vector<1x64xf32>
    %cst_64 = arith.constant dense<0.000000e+00> : vector<4x64xf32>
    %195 = tpu.matmul %192, %193, %cst_64 {dimension_numbers = #tpu.dot_dimension_numbers<[1], [0], [0], [1], [0, 0, 1, 1], [], []>} : vector<4x240xbf16>, vector<240x64xbf16>, vector<4x64xf32> -> vector<4x64xf32>
    %196 = vector.broadcast %194 : vector<1x64xf32> to vector<4x64xf32>
    %197 = arith.addf %195, %196 : vector<4x64xf32>
    %cst_65 = arith.constant 0.000000e+00 : f32
    %198 = vector.broadcast %cst_65 : f32 to vector<4x64xf32>
    %199 = arith.maximumf %197, %198 : vector<4x64xf32>
    %200 = tpu.iota {dimensions = array<i32: 0>} : vector<2x4xi32>
    %201 = tpu.iota {dimensions = array<i32: 1>} : vector<2x4xi32>
    %c2_i32_66 = arith.constant 2 : i32
    %202 = vector.broadcast %c2_i32_66 : i32 to vector<2x4xi32>
    %203 = arith.muli %202, %200 : vector<2x4xi32>
    %204 = arith.cmpi eq, %201, %203 : vector<2x4xi32>
    %c2_i32_67 = arith.constant 2 : i32
    %205 = vector.broadcast %c2_i32_67 : i32 to vector<2x4xi32>
    %206 = arith.muli %205, %200 : vector<2x4xi32>
    %c1_i32_68 = arith.constant 1 : i32
    %207 = vector.broadcast %c1_i32_68 : i32 to vector<2x4xi32>
    %208 = arith.addi %206, %207 : vector<2x4xi32>
    %209 = arith.cmpi eq, %201, %208 : vector<2x4xi32>
    %210 = arith.ori %204, %209 : vector<2x4xi1>
    %cst_69 = arith.constant 5.000000e-01 : f32
    %cst_70 = arith.constant 0.000000e+00 : f32
    %211 = vector.broadcast %cst_69 : f32 to vector<2x4xf32>
    %212 = vector.broadcast %cst_70 : f32 to vector<2x4xf32>
    %213 = arith.select %210, %211, %212 : vector<2x4xi1>, vector<2x4xf32>
    %214 = arith.truncf %213 : vector<2x4xf32> to vector<2x4xbf16>
    %215 = arith.truncf %199 : vector<4x64xf32> to vector<4x64xbf16>
    %cst_71 = arith.constant dense<0.000000e+00> : vector<2x64xf32>
    %216 = tpu.matmul %214, %215, %cst_71 {dimension_numbers = #tpu.dot_dimension_numbers<[1], [0], [0], [1], [0, 0, 1, 1], [], []>} : vector<2x4xbf16>, vector<4x64xbf16>, vector<2x64xf32> -> vector<2x64xf32>
    %cst_72 = arith.constant 0.000000e+00 : f32
    %217 = vector.broadcast %cst_72 : f32 to vector<2x64xf32>
    %218 = tpu.concatenate %217, %216, %217 in 0 : vector<2x64xf32>, vector<2x64xf32>, vector<2x64xf32> -> vector<6x64xf32>
    %219 = vector.extract_strided_slice %218 {offsets = [0, 0], sizes = [2, 64], strides = [1, 1]} : vector<6x64xf32> to vector<2x64xf32>
    %220 = vector.extract_strided_slice %218 {offsets = [1, 0], sizes = [2, 64], strides = [1, 1]} : vector<6x64xf32> to vector<2x64xf32>
    %221 = vector.extract_strided_slice %218 {offsets = [2, 0], sizes = [2, 64], strides = [1, 1]} : vector<6x64xf32> to vector<2x64xf32>
    %222 = vector.extract_strided_slice %218 {offsets = [3, 0], sizes = [2, 64], strides = [1, 1]} : vector<6x64xf32> to vector<2x64xf32>
    %223 = vector.extract_strided_slice %218 {offsets = [4, 0], sizes = [2, 64], strides = [1, 1]} : vector<6x64xf32> to vector<2x64xf32>
    %224 = tpu.concatenate %219, %220, %221, %222, %223 in 1 : vector<2x64xf32>, vector<2x64xf32>, vector<2x64xf32>, vector<2x64xf32>, vector<2x64xf32> -> vector<2x320xf32>
    %225 = arith.truncf %224 : vector<2x320xf32> to vector<2x320xbf16>
    %c880 = arith.constant 880 : index
    %c0_73 = arith.constant 0 : index
    %226 = vector.load %arg2[%c880, %c0_73] : memref<3920x128xbf16, #tpu.memory_space<vmem>>, vector<320x96xbf16>
    %c7 = arith.constant 7 : index
    %c0_74 = arith.constant 0 : index
    %227 = vector.load %arg3[%c7, %c0_74] : memref<16x128xf32, #tpu.memory_space<vmem>>, vector<1x96xf32>
    %cst_75 = arith.constant dense<0.000000e+00> : vector<2x96xf32>
    %228 = tpu.matmul %225, %226, %cst_75 {dimension_numbers = #tpu.dot_dimension_numbers<[1], [0], [0], [1], [0, 0, 1, 1], [], []>} : vector<2x320xbf16>, vector<320x96xbf16>, vector<2x96xf32> -> vector<2x96xf32>
    %229 = vector.broadcast %227 : vector<1x96xf32> to vector<2x96xf32>
    %230 = arith.addf %228, %229 : vector<2x96xf32>
    %cst_76 = arith.constant 0.000000e+00 : f32
    %231 = vector.broadcast %cst_76 : f32 to vector<2x96xf32>
    %232 = arith.maximumf %230, %231 : vector<2x96xf32>
    %c3776 = arith.constant 3776 : index
    %c0_77 = arith.constant 0 : index
    %233 = vector.load %arg2[%c3776, %c0_77] : memref<3920x128xbf16, #tpu.memory_space<vmem>>, vector<8x2xbf16>
    %234 = arith.truncf %232 : vector<2x96xf32> to vector<2x96xbf16>
    %cst_78 = arith.constant dense<0.000000e+00> : vector<8x96xf32>
    %235 = tpu.matmul %233, %234, %cst_78 {dimension_numbers = #tpu.dot_dimension_numbers<[1], [0], [0], [1], [0, 0, 1, 1], [], []>} : vector<8x2xbf16>, vector<2x96xbf16>, vector<8x96xf32> -> vector<8x96xf32>
    %236 = vector.extract_strided_slice %235 {offsets = [0, 0], sizes = [4, 96], strides = [1, 1]} : vector<8x96xf32> to vector<4x96xf32>
    %237 = vector.extract_strided_slice %235 {offsets = [1, 0], sizes = [4, 96], strides = [1, 1]} : vector<8x96xf32> to vector<4x96xf32>
    %238 = vector.extract_strided_slice %235 {offsets = [2, 0], sizes = [4, 96], strides = [1, 1]} : vector<8x96xf32> to vector<4x96xf32>
    %239 = vector.extract_strided_slice %235 {offsets = [3, 0], sizes = [4, 96], strides = [1, 1]} : vector<8x96xf32> to vector<4x96xf32>
    %240 = vector.extract_strided_slice %235 {offsets = [4, 0], sizes = [4, 96], strides = [1, 1]} : vector<8x96xf32> to vector<4x96xf32>
    %241 = tpu.concatenate %236, %237, %238, %239, %240 in 1 : vector<4x96xf32>, vector<4x96xf32>, vector<4x96xf32>, vector<4x96xf32>, vector<4x96xf32> -> vector<4x480xf32>
    %242 = arith.truncf %241 : vector<4x480xf32> to vector<4x480xbf16>
    %c1200 = arith.constant 1200 : index
    %c0_79 = arith.constant 0 : index
    %243 = vector.load %arg2[%c1200, %c0_79] : memref<3920x128xbf16, #tpu.memory_space<vmem>>, vector<480x64xbf16>
    %c8 = arith.constant 8 : index
    %c0_80 = arith.constant 0 : index
    %244 = vector.load %arg3[%c8, %c0_80] : memref<16x128xf32, #tpu.memory_space<vmem>>, vector<1x64xf32>
    %cst_81 = arith.constant dense<0.000000e+00> : vector<4x64xf32>
    %245 = tpu.matmul %242, %243, %cst_81 {dimension_numbers = #tpu.dot_dimension_numbers<[1], [0], [0], [1], [0, 0, 1, 1], [], []>} : vector<4x480xbf16>, vector<480x64xbf16>, vector<4x64xf32> -> vector<4x64xf32>
    %246 = vector.broadcast %244 : vector<1x64xf32> to vector<4x64xf32>
    %247 = arith.addf %245, %246 : vector<4x64xf32>
    %cst_82 = arith.constant 0.000000e+00 : f32
    %248 = vector.broadcast %cst_82 : f32 to vector<4x64xf32>
    %249 = arith.maximumf %247, %248 : vector<4x64xf32>
    %c3776_83 = arith.constant 3776 : index
    %c0_84 = arith.constant 0 : index
    %250 = vector.load %arg2[%c3776_83, %c0_84] : memref<3920x128xbf16, #tpu.memory_space<vmem>>, vector<12x4xbf16>
    %251 = arith.truncf %249 : vector<4x64xf32> to vector<4x64xbf16>
    %cst_85 = arith.constant dense<0.000000e+00> : vector<12x64xf32>
    %252 = tpu.matmul %250, %251, %cst_85 {dimension_numbers = #tpu.dot_dimension_numbers<[1], [0], [0], [1], [0, 0, 1, 1], [], []>} : vector<12x4xbf16>, vector<4x64xbf16>, vector<12x64xf32> -> vector<12x64xf32>
    %c3776_86 = arith.constant 3776 : index
    %c0_87 = arith.constant 0 : index
    %253 = vector.load %arg2[%c3776_86, %c0_87] : memref<3920x128xbf16, #tpu.memory_space<vmem>>, vector<12x4xbf16>
    %254 = arith.truncf %199 : vector<4x64xf32> to vector<4x64xbf16>
    %cst_88 = arith.constant dense<0.000000e+00> : vector<12x64xf32>
    %255 = tpu.matmul %253, %254, %cst_88 {dimension_numbers = #tpu.dot_dimension_numbers<[1], [0], [0], [1], [0, 0, 1, 1], [], []>} : vector<12x4xbf16>, vector<4x64xbf16>, vector<12x64xf32> -> vector<12x64xf32>
    %256 = vector.extract_strided_slice %252 {offsets = [0, 0], sizes = [8, 64], strides = [1, 1]} : vector<12x64xf32> to vector<8x64xf32>
    %257 = vector.extract_strided_slice %252 {offsets = [1, 0], sizes = [8, 64], strides = [1, 1]} : vector<12x64xf32> to vector<8x64xf32>
    %258 = vector.extract_strided_slice %252 {offsets = [2, 0], sizes = [8, 64], strides = [1, 1]} : vector<12x64xf32> to vector<8x64xf32>
    %259 = vector.extract_strided_slice %252 {offsets = [3, 0], sizes = [8, 64], strides = [1, 1]} : vector<12x64xf32> to vector<8x64xf32>
    %260 = vector.extract_strided_slice %252 {offsets = [4, 0], sizes = [8, 64], strides = [1, 1]} : vector<12x64xf32> to vector<8x64xf32>
    %261 = vector.extract_strided_slice %255 {offsets = [0, 0], sizes = [8, 64], strides = [1, 1]} : vector<12x64xf32> to vector<8x64xf32>
    %262 = vector.extract_strided_slice %255 {offsets = [1, 0], sizes = [8, 64], strides = [1, 1]} : vector<12x64xf32> to vector<8x64xf32>
    %263 = vector.extract_strided_slice %255 {offsets = [2, 0], sizes = [8, 64], strides = [1, 1]} : vector<12x64xf32> to vector<8x64xf32>
    %264 = vector.extract_strided_slice %255 {offsets = [3, 0], sizes = [8, 64], strides = [1, 1]} : vector<12x64xf32> to vector<8x64xf32>
    %265 = vector.extract_strided_slice %255 {offsets = [4, 0], sizes = [8, 64], strides = [1, 1]} : vector<12x64xf32> to vector<8x64xf32>
    %266 = tpu.concatenate %256, %257, %258, %259, %260, %261, %262, %263, %264, %265 in 1 : vector<8x64xf32>, vector<8x64xf32>, vector<8x64xf32>, vector<8x64xf32>, vector<8x64xf32>, vector<8x64xf32>, vector<8x64xf32>, vector<8x64xf32>, vector<8x64xf32>, vector<8x64xf32> -> vector<8x640xf32>
    %267 = arith.truncf %266 : vector<8x640xf32> to vector<8x640xbf16>
    %c1680 = arith.constant 1680 : index
    %c0_89 = arith.constant 0 : index
    %268 = vector.load %arg2[%c1680, %c0_89] : memref<3920x128xbf16, #tpu.memory_space<vmem>>, vector<640x64xbf16>
    %c9 = arith.constant 9 : index
    %c0_90 = arith.constant 0 : index
    %269 = vector.load %arg3[%c9, %c0_90] : memref<16x128xf32, #tpu.memory_space<vmem>>, vector<1x64xf32>
    %cst_91 = arith.constant dense<0.000000e+00> : vector<8x64xf32>
    %270 = tpu.matmul %267, %268, %cst_91 {dimension_numbers = #tpu.dot_dimension_numbers<[1], [0], [0], [1], [0, 0, 1, 1], [], []>} : vector<8x640xbf16>, vector<640x64xbf16>, vector<8x64xf32> -> vector<8x64xf32>
    %271 = vector.broadcast %269 : vector<1x64xf32> to vector<8x64xf32>
    %272 = arith.addf %270, %271 : vector<8x64xf32>
    %cst_92 = arith.constant 0.000000e+00 : f32
    %273 = vector.broadcast %cst_92 : f32 to vector<8x64xf32>
    %274 = arith.maximumf %272, %273 : vector<8x64xf32>
    %c3776_93 = arith.constant 3776 : index
    %c0_94 = arith.constant 0 : index
    %275 = vector.load %arg2[%c3776_93, %c0_94] : memref<3920x128xbf16, #tpu.memory_space<vmem>>, vector<20x8xbf16>
    %276 = arith.truncf %274 : vector<8x64xf32> to vector<8x64xbf16>
    %cst_95 = arith.constant dense<0.000000e+00> : vector<20x64xf32>
    %277 = tpu.matmul %275, %276, %cst_95 {dimension_numbers = #tpu.dot_dimension_numbers<[1], [0], [0], [1], [0, 0, 1, 1], [], []>} : vector<20x8xbf16>, vector<8x64xbf16>, vector<20x64xf32> -> vector<20x64xf32>
    %c3776_96 = arith.constant 3776 : index
    %c0_97 = arith.constant 0 : index
    %278 = vector.load %arg2[%c3776_96, %c0_97] : memref<3920x128xbf16, #tpu.memory_space<vmem>>, vector<20x8xbf16>
    %279 = arith.truncf %166 : vector<8x48xf32> to vector<8x48xbf16>
    %cst_98 = arith.constant dense<0.000000e+00> : vector<20x48xf32>
    %280 = tpu.matmul %278, %279, %cst_98 {dimension_numbers = #tpu.dot_dimension_numbers<[1], [0], [0], [1], [0, 0, 1, 1], [], []>} : vector<20x8xbf16>, vector<8x48xbf16>, vector<20x48xf32> -> vector<20x48xf32>
    %281 = vector.extract_strided_slice %277 {offsets = [0, 0], sizes = [16, 64], strides = [1, 1]} : vector<20x64xf32> to vector<16x64xf32>
    %282 = vector.extract_strided_slice %277 {offsets = [1, 0], sizes = [16, 64], strides = [1, 1]} : vector<20x64xf32> to vector<16x64xf32>
    %283 = vector.extract_strided_slice %277 {offsets = [2, 0], sizes = [16, 64], strides = [1, 1]} : vector<20x64xf32> to vector<16x64xf32>
    %284 = vector.extract_strided_slice %277 {offsets = [3, 0], sizes = [16, 64], strides = [1, 1]} : vector<20x64xf32> to vector<16x64xf32>
    %285 = vector.extract_strided_slice %277 {offsets = [4, 0], sizes = [16, 64], strides = [1, 1]} : vector<20x64xf32> to vector<16x64xf32>
    %286 = vector.extract_strided_slice %280 {offsets = [0, 0], sizes = [16, 48], strides = [1, 1]} : vector<20x48xf32> to vector<16x48xf32>
    %287 = vector.extract_strided_slice %280 {offsets = [1, 0], sizes = [16, 48], strides = [1, 1]} : vector<20x48xf32> to vector<16x48xf32>
    %288 = vector.extract_strided_slice %280 {offsets = [2, 0], sizes = [16, 48], strides = [1, 1]} : vector<20x48xf32> to vector<16x48xf32>
    %289 = vector.extract_strided_slice %280 {offsets = [3, 0], sizes = [16, 48], strides = [1, 1]} : vector<20x48xf32> to vector<16x48xf32>
    %290 = vector.extract_strided_slice %280 {offsets = [4, 0], sizes = [16, 48], strides = [1, 1]} : vector<20x48xf32> to vector<16x48xf32>
    %291 = tpu.concatenate %281, %282, %283, %284, %285, %286, %287, %288, %289, %290 in 1 : vector<16x64xf32>, vector<16x64xf32>, vector<16x64xf32>, vector<16x64xf32>, vector<16x64xf32>, vector<16x48xf32>, vector<16x48xf32>, vector<16x48xf32>, vector<16x48xf32>, vector<16x48xf32> -> vector<16x560xf32>
    %292 = arith.truncf %291 : vector<16x560xf32> to vector<16x560xbf16>
    %c2320 = arith.constant 2320 : index
    %c0_99 = arith.constant 0 : index
    %293 = vector.load %arg2[%c2320, %c0_99] : memref<3920x128xbf16, #tpu.memory_space<vmem>>, vector<560x48xbf16>
    %c10 = arith.constant 10 : index
    %c0_100 = arith.constant 0 : index
    %294 = vector.load %arg3[%c10, %c0_100] : memref<16x128xf32, #tpu.memory_space<vmem>>, vector<1x48xf32>
    %cst_101 = arith.constant dense<0.000000e+00> : vector<16x48xf32>
    %295 = tpu.matmul %292, %293, %cst_101 {dimension_numbers = #tpu.dot_dimension_numbers<[1], [0], [0], [1], [0, 0, 1, 1], [], []>} : vector<16x560xbf16>, vector<560x48xbf16>, vector<16x48xf32> -> vector<16x48xf32>
    %296 = vector.broadcast %294 : vector<1x48xf32> to vector<16x48xf32>
    %297 = arith.addf %295, %296 : vector<16x48xf32>
    %cst_102 = arith.constant 0.000000e+00 : f32
    %298 = vector.broadcast %cst_102 : f32 to vector<16x48xf32>
    %299 = arith.maximumf %297, %298 : vector<16x48xf32>
    %c3776_103 = arith.constant 3776 : index
    %c0_104 = arith.constant 0 : index
    %300 = vector.load %arg2[%c3776_103, %c0_104] : memref<3920x128xbf16, #tpu.memory_space<vmem>>, vector<36x16xbf16>
    %301 = arith.truncf %299 : vector<16x48xf32> to vector<16x48xbf16>
    %cst_105 = arith.constant dense<0.000000e+00> : vector<36x48xf32>
    %302 = tpu.matmul %300, %301, %cst_105 {dimension_numbers = #tpu.dot_dimension_numbers<[1], [0], [0], [1], [0, 0, 1, 1], [], []>} : vector<36x16xbf16>, vector<16x48xbf16>, vector<36x48xf32> -> vector<36x48xf32>
    %c3776_106 = arith.constant 3776 : index
    %c0_107 = arith.constant 0 : index
    %303 = vector.load %arg2[%c3776_106, %c0_107] : memref<3920x128xbf16, #tpu.memory_space<vmem>>, vector<36x16xbf16>
    %304 = arith.truncf %133 : vector<16x32xf32> to vector<16x32xbf16>
    %cst_108 = arith.constant dense<0.000000e+00> : vector<36x32xf32>
    %305 = tpu.matmul %303, %304, %cst_108 {dimension_numbers = #tpu.dot_dimension_numbers<[1], [0], [0], [1], [0, 0, 1, 1], [], []>} : vector<36x16xbf16>, vector<16x32xbf16>, vector<36x32xf32> -> vector<36x32xf32>
    %306 = vector.extract_strided_slice %302 {offsets = [0, 0], sizes = [32, 48], strides = [1, 1]} : vector<36x48xf32> to vector<32x48xf32>
    %307 = vector.extract_strided_slice %302 {offsets = [1, 0], sizes = [32, 48], strides = [1, 1]} : vector<36x48xf32> to vector<32x48xf32>
    %308 = vector.extract_strided_slice %302 {offsets = [2, 0], sizes = [32, 48], strides = [1, 1]} : vector<36x48xf32> to vector<32x48xf32>
    %309 = vector.extract_strided_slice %302 {offsets = [3, 0], sizes = [32, 48], strides = [1, 1]} : vector<36x48xf32> to vector<32x48xf32>
    %310 = vector.extract_strided_slice %302 {offsets = [4, 0], sizes = [32, 48], strides = [1, 1]} : vector<36x48xf32> to vector<32x48xf32>
    %311 = vector.extract_strided_slice %305 {offsets = [0, 0], sizes = [32, 32], strides = [1, 1]} : vector<36x32xf32> to vector<32x32xf32>
    %312 = vector.extract_strided_slice %305 {offsets = [1, 0], sizes = [32, 32], strides = [1, 1]} : vector<36x32xf32> to vector<32x32xf32>
    %313 = vector.extract_strided_slice %305 {offsets = [2, 0], sizes = [32, 32], strides = [1, 1]} : vector<36x32xf32> to vector<32x32xf32>
    %314 = vector.extract_strided_slice %305 {offsets = [3, 0], sizes = [32, 32], strides = [1, 1]} : vector<36x32xf32> to vector<32x32xf32>
    %315 = vector.extract_strided_slice %305 {offsets = [4, 0], sizes = [32, 32], strides = [1, 1]} : vector<36x32xf32> to vector<32x32xf32>
    %316 = tpu.concatenate %306, %307, %308, %309, %310, %311, %312, %313, %314, %315 in 1 : vector<32x48xf32>, vector<32x48xf32>, vector<32x48xf32>, vector<32x48xf32>, vector<32x48xf32>, vector<32x32xf32>, vector<32x32xf32>, vector<32x32xf32>, vector<32x32xf32>, vector<32x32xf32> -> vector<32x400xf32>
    %317 = arith.truncf %316 : vector<32x400xf32> to vector<32x400xbf16>
    %c2880 = arith.constant 2880 : index
    %c0_109 = arith.constant 0 : index
    %318 = vector.load %arg2[%c2880, %c0_109] : memref<3920x128xbf16, #tpu.memory_space<vmem>>, vector<400x64xbf16>
    %c11 = arith.constant 11 : index
    %c0_110 = arith.constant 0 : index
    %319 = vector.load %arg3[%c11, %c0_110] : memref<16x128xf32, #tpu.memory_space<vmem>>, vector<1x64xf32>
    %cst_111 = arith.constant dense<0.000000e+00> : vector<32x64xf32>
    %320 = tpu.matmul %317, %318, %cst_111 {dimension_numbers = #tpu.dot_dimension_numbers<[1], [0], [0], [1], [0, 0, 1, 1], [], []>} : vector<32x400xbf16>, vector<400x64xbf16>, vector<32x64xf32> -> vector<32x64xf32>
    %321 = vector.broadcast %319 : vector<1x64xf32> to vector<32x64xf32>
    %322 = arith.addf %320, %321 : vector<32x64xf32>
    %cst_112 = arith.constant 0.000000e+00 : f32
    %323 = vector.broadcast %cst_112 : f32 to vector<32x64xf32>
    %324 = arith.maximumf %322, %323 : vector<32x64xf32>
    %c3776_113 = arith.constant 3776 : index
    %c0_114 = arith.constant 0 : index
    %325 = vector.load %arg2[%c3776_113, %c0_114] : memref<3920x128xbf16, #tpu.memory_space<vmem>>, vector<68x32xbf16>
    %326 = arith.truncf %324 : vector<32x64xf32> to vector<32x64xbf16>
    %cst_115 = arith.constant dense<0.000000e+00> : vector<68x64xf32>
    %327 = tpu.matmul %325, %326, %cst_115 {dimension_numbers = #tpu.dot_dimension_numbers<[1], [0], [0], [1], [0, 0, 1, 1], [], []>} : vector<68x32xbf16>, vector<32x64xbf16>, vector<68x64xf32> -> vector<68x64xf32>
    %328 = vector.extract_strided_slice %327 {offsets = [0, 0], sizes = [64, 64], strides = [1, 1]} : vector<68x64xf32> to vector<64x64xf32>
    %329 = vector.extract_strided_slice %327 {offsets = [1, 0], sizes = [64, 64], strides = [1, 1]} : vector<68x64xf32> to vector<64x64xf32>
    %330 = vector.extract_strided_slice %327 {offsets = [2, 0], sizes = [64, 64], strides = [1, 1]} : vector<68x64xf32> to vector<64x64xf32>
    %331 = vector.extract_strided_slice %327 {offsets = [3, 0], sizes = [64, 64], strides = [1, 1]} : vector<68x64xf32> to vector<64x64xf32>
    %332 = vector.extract_strided_slice %327 {offsets = [4, 0], sizes = [64, 64], strides = [1, 1]} : vector<68x64xf32> to vector<64x64xf32>
    %333 = tpu.concatenate %328, %329, %330, %331, %332 in 1 : vector<64x64xf32>, vector<64x64xf32>, vector<64x64xf32>, vector<64x64xf32>, vector<64x64xf32> -> vector<64x320xf32>
    %334 = arith.truncf %333 : vector<64x320xf32> to vector<64x320xbf16>
    %c3280 = arith.constant 3280 : index
    %c0_116 = arith.constant 0 : index
    %335 = vector.load %arg2[%c3280, %c0_116] : memref<3920x128xbf16, #tpu.memory_space<vmem>>, vector<320x32xbf16>
    %c12 = arith.constant 12 : index
    %c0_117 = arith.constant 0 : index
    %336 = vector.load %arg3[%c12, %c0_117] : memref<16x128xf32, #tpu.memory_space<vmem>>, vector<1x32xf32>
    %cst_118 = arith.constant dense<0.000000e+00> : vector<64x32xf32>
    %337 = tpu.matmul %334, %335, %cst_118 {dimension_numbers = #tpu.dot_dimension_numbers<[1], [0], [0], [1], [0, 0, 1, 1], [], []>} : vector<64x320xbf16>, vector<320x32xbf16>, vector<64x32xf32> -> vector<64x32xf32>
    %338 = vector.broadcast %336 : vector<1x32xf32> to vector<64x32xf32>
    %339 = arith.addf %337, %338 : vector<64x32xf32>
    %cst_119 = arith.constant 0.000000e+00 : f32
    %340 = vector.broadcast %cst_119 : f32 to vector<64x32xf32>
    %341 = arith.maximumf %339, %340 : vector<64x32xf32>
    %c3776_120 = arith.constant 3776 : index
    %c0_121 = arith.constant 0 : index
    %342 = vector.load %arg2[%c3776_120, %c0_121] : memref<3920x128xbf16, #tpu.memory_space<vmem>>, vector<132x64xbf16>
    %343 = arith.truncf %341 : vector<64x32xf32> to vector<64x32xbf16>
    %cst_122 = arith.constant dense<0.000000e+00> : vector<132x32xf32>
    %344 = tpu.matmul %342, %343, %cst_122 {dimension_numbers = #tpu.dot_dimension_numbers<[1], [0], [0], [1], [0, 0, 1, 1], [], []>} : vector<132x64xbf16>, vector<64x32xbf16>, vector<132x32xf32> -> vector<132x32xf32>
    %345 = vector.extract_strided_slice %344 {offsets = [0, 0], sizes = [128, 32], strides = [1, 1]} : vector<132x32xf32> to vector<128x32xf32>
    %346 = vector.extract_strided_slice %344 {offsets = [1, 0], sizes = [128, 32], strides = [1, 1]} : vector<132x32xf32> to vector<128x32xf32>
    %347 = vector.extract_strided_slice %344 {offsets = [2, 0], sizes = [128, 32], strides = [1, 1]} : vector<132x32xf32> to vector<128x32xf32>
    %348 = vector.extract_strided_slice %344 {offsets = [3, 0], sizes = [128, 32], strides = [1, 1]} : vector<132x32xf32> to vector<128x32xf32>
    %349 = vector.extract_strided_slice %344 {offsets = [4, 0], sizes = [128, 32], strides = [1, 1]} : vector<132x32xf32> to vector<128x32xf32>
    %350 = tpu.concatenate %345, %346, %347, %348, %349 in 1 : vector<128x32xf32>, vector<128x32xf32>, vector<128x32xf32>, vector<128x32xf32>, vector<128x32xf32> -> vector<128x160xf32>
    %351 = arith.truncf %350 : vector<128x160xf32> to vector<128x160xbf16>
    %c3600 = arith.constant 3600 : index
    %c0_123 = arith.constant 0 : index
    %352 = vector.load %arg2[%c3600, %c0_123] : memref<3920x128xbf16, #tpu.memory_space<vmem>>, vector<160x16xbf16>
    %c13 = arith.constant 13 : index
    %c0_124 = arith.constant 0 : index
    %353 = vector.load %arg3[%c13, %c0_124] : memref<16x128xf32, #tpu.memory_space<vmem>>, vector<1x16xf32>
    %cst_125 = arith.constant dense<0.000000e+00> : vector<128x16xf32>
    %354 = tpu.matmul %351, %352, %cst_125 {dimension_numbers = #tpu.dot_dimension_numbers<[1], [0], [0], [1], [0, 0, 1, 1], [], []>} : vector<128x160xbf16>, vector<160x16xbf16>, vector<128x16xf32> -> vector<128x16xf32>
    %355 = vector.broadcast %353 : vector<1x16xf32> to vector<128x16xf32>
    %356 = arith.addf %354, %355 : vector<128x16xf32>
    %cst_126 = arith.constant 0.000000e+00 : f32
    %357 = vector.broadcast %cst_126 : f32 to vector<128x16xf32>
    %358 = arith.maximumf %356, %357 : vector<128x16xf32>
    %c3760 = arith.constant 3760 : index
    %c0_127 = arith.constant 0 : index
    %359 = vector.load %arg2[%c3760, %c0_127] : memref<3920x128xbf16, #tpu.memory_space<vmem>>, vector<16x2xbf16>
    %c14 = arith.constant 14 : index
    %c0_128 = arith.constant 0 : index
    %360 = vector.load %arg3[%c14, %c0_128] : memref<16x128xf32, #tpu.memory_space<vmem>>, vector<1x2xf32>
    %361 = arith.truncf %358 : vector<128x16xf32> to vector<128x16xbf16>
    %cst_129 = arith.constant dense<0.000000e+00> : vector<128x2xf32>
    %362 = tpu.matmul %361, %359, %cst_129 {dimension_numbers = #tpu.dot_dimension_numbers<[1], [0], [0], [1], [0, 0, 1, 1], [], []>} : vector<128x16xbf16>, vector<16x2xbf16>, vector<128x2xf32> -> vector<128x2xf32>
    %363 = vector.broadcast %360 : vector<1x2xf32> to vector<128x2xf32>
    %364 = arith.addf %362, %363 : vector<128x2xf32>
    %cst_130 = arith.constant 0.000000e+00 : f32
    %365 = vector.broadcast %cst_130 : f32 to vector<128x2xf32>
    %366 = arith.subf %365, %364 : vector<128x2xf32>
    %367 = math.exp %366 : vector<128x2xf32>
    %cst_131 = arith.constant 1.000000e+00 : f32
    %368 = vector.broadcast %cst_131 : f32 to vector<128x2xf32>
    %369 = arith.addf %368, %367 : vector<128x2xf32>
    %cst_132 = arith.constant 1.000000e+00 : f32
    %370 = vector.broadcast %cst_132 : f32 to vector<128x2xf32>
    %371 = arith.divf %370, %369 : vector<128x2xf32>
    %372 = tpu.transpose %371, [1, 0] : vector<128x2xf32> -> vector<2x128xf32>
    %c0_133 = arith.constant 0 : index
    %c0_134 = arith.constant 0 : index
    %c0_135 = arith.constant 0 : index
    %373 = vector.load %arg4[%c0_133, %c0_134, %c0_135] : memref<1x2x128xf32, #tpu.memory_space<vmem>>, vector<1x2x128xf32>
    %374 = vector.shape_cast %373 : vector<1x2x128xf32> to vector<2x128xf32>
    %375 = vector.shape_cast %372 : vector<2x128xf32> to vector<1x2x128xf32>
    tpu.vector_store %arg4[%c0_133, %c0_134, %c0_135], %375 {strides = array<i32>} : memref<1x2x128xf32, #tpu.memory_space<vmem>>, vector<1x2x128xf32>,
    return
  }
  func.func @transform_0(%arg0: i32) -> (i32, i32, i32) {
    %c0_i32 = arith.constant 0 : i32
    %c0_i32_0 = arith.constant 0 : i32
    %c0_i32_1 = arith.constant 0 : i32
    return %arg0, %c0_i32, %c0_i32_0 : i32, i32, i32
  }
  func.func @transform_1(%arg0: i32) -> (i32, i32) {
    %c0_i32 = arith.constant 0 : i32
    %c0_i32_0 = arith.constant 0 : i32
    %c0_i32_1 = arith.constant 0 : i32
    return %c0_i32, %c0_i32_0 : i32, i32
  }
  func.func @transform_2(%arg0: i32) -> (i32, i32) {
    %c0_i32 = arith.constant 0 : i32
    %c0_i32_0 = arith.constant 0 : i32
    %c0_i32_1 = arith.constant 0 : i32
    return %c0_i32, %c0_i32_0 : i32, i32
  }
  func.func @transform_3(%arg0: i32) -> (i32, i32, i32) {
    %c0_i32 = arith.constant 0 : i32
    %c0_i32_0 = arith.constant 0 : i32
    %c0_i32_1 = arith.constant 0 : i32
    return %arg0, %c0_i32, %c0_i32_0 : i32, i32, i32
  }
}

</mosaic_0001>

<llo_original>
// kernel: tpu_custom_call.1
$region0: #{tpu_custom_call.1}
  #allocation0 [shape = 'u32[]', space=smem, size = 0x4, offset = 0x4, fixed_abs, tag = 'smem constant byte address 0x4 - core index']
  #allocation1 [shape = 'u32[144,128]{1,0:T(1,128)}', space=vmem, size = 0x12000, scoped, tag = 'internal scratch']
  %s0 = inlined_call_operand.hbm [shape: f32[8,128], index: 0, kind: input, shape index: {}]
  %s1 = inlined_call_operand.hbm [shape: f32[4,128], index: 1, kind: output, shape index: {}]
  %s2 = sld [smem:[#allocation0]]
  $region18: #{tpu_custom_call.1} parent=0
    _
  %s4 = ssub.s32 1, %s2
  %s5 = scalar_select 0, %s4, %s2
  $region1: #{tpu_custom_call.1} parent=0
    #allocation2 [shape = 'u8[4096]{0}', space=vmem, size = 0x1000, scoped, tag = 'input window, operand 0, single buffered']
    #allocation3 [shape = 's32[1]{0}', space=sflag, size = 0x4, scoped, tag = 'scoped memory for tpu_custom_call.1']
    #allocation4 [shape = 's32[1]{0}', space=sflag, size = 0x4, scoped, tag = 'scoped memory for tpu_custom_call.1']
    #allocation5 [shape = 'u8[2048]{0}', space=vmem, size = 0x800, scoped, tag = 'output window, operand 0, single buffered']
    %6 = vsyncpa [#allocation3], 0
    %7 = vsyncpa [#allocation4], 0
    // Predicated region
    $region2: #{tpu_custom_call.1} parent=1 // pred_check
      _
    $region3: #{tpu_custom_call.1} parent=1 // pred_check_branch
      %9 = sbr.rel (0) target = $region5
    $region4: #{tpu_custom_call.1} parent=1 // pred_region
      %s11 = ssub.s32 128, 128
      %12 = vsyncadd [#allocation3], %s11
      %s14 = sshll.u32 [#allocation2], 4
      %s15 = int_to_ptr.vmem [resolvable:$true] %s14
      %17 = dma.hbm_to_vmem [thread:$0]  %s0, 128, %s15, [#allocation3]
    $region5: #{tpu_custom_call.1} parent=1 // pred_fallthru
      _
    // Predicated region
    $region6: #{tpu_custom_call.1} parent=1 // pred_check
      _
    $region7: #{tpu_custom_call.1} parent=1 // pred_check_branch
      %19 = sbr.rel (0) target = $region9
    $region8: #{tpu_custom_call.1} parent=1 // pred_region
      %20 = dma.done [#allocation3], 128
    $region9: #{tpu_custom_call.1} parent=1 // pred_fallthru
      _
    %v21 = vld [vmem:[#allocation2] ss:$2 sm:$0xf]
    %s22 = scalar_lea.vmem [#allocation2], 1
    %v23 = vld [vmem:[%s22] ss:$2 sm:$0xf]
    %v24 = vadd.f32 %v21, %v23
    %25 = vst [vmem:[#allocation5] sm:$0xf] %v24
    // Predicated region
    $region10: #{tpu_custom_call.1} parent=1 // pred_check
      _
    $region11: #{tpu_custom_call.1} parent=1 // pred_check_branch
      %27 = sbr.rel (0) target = $region13
    $region12: #{tpu_custom_call.1} parent=1 // pred_region
      %s29 = ssub.s32 64, 64
      %30 = vsyncadd [#allocation4], %s29
      %s32 = sshll.u32 [#allocation5], 4
      %s33 = int_to_ptr.vmem [resolvable:$true] %s32
      %35 = dma.vmem_to_hbm [thread:$0]  %s33, 64, %s1, [#allocation4]
    $region13: #{tpu_custom_call.1} parent=1 // pred_fallthru
      _
    // Predicated region
    $region14: #{tpu_custom_call.1} parent=1 // pred_check
      _
    $region15: #{tpu_custom_call.1} parent=1 // pred_check_branch
      %37 = sbr.rel (0) target = $region17
    $region16: #{tpu_custom_call.1} parent=1 // pred_region
      %38 = dma.done [#allocation4], 64
    $region17: #{tpu_custom_call.1} parent=1 // pred_fallthru
      _
    %39 = vsyncpa [#allocation3], 1
    %40 = vsyncpa [#allocation4], 1

// kernel: _pallas_fwd.1
$region0: #{_pallas_fwd.1}
  #allocation0 [shape = 'u32[]', space=smem, size = 0x4, offset = 0x4, fixed_abs, tag = 'smem constant byte address 0x4 - core index']
  #allocation1 [shape = 'u32[144,128]{1,0:T(1,128)}', space=vmem, size = 0x12000, scoped, tag = 'internal scratch']
  #allocation2 [shape = 'f32[128,128]{1,0:T(8,128)}', space=vmem, size = 0x10000, scoped, tag = 'scratch operand']
  %s0 = inlined_call_operand.hbm [shape: f32[2,2,128], index: 0, kind: input, shape index: {}]
  %s1 = inlined_call_operand.hbm [shape: bf16[3920,128], index: 1, kind: input, shape index: {}]
  %s2 = inlined_call_operand.hbm [shape: f32[16,128], index: 2, kind: input, shape index: {}]
  %s3 = inlined_call_operand.hbm [shape: f32[2,2,128], index: 3, kind: output, shape index: {}]
  %s4 = sld [smem:[#allocation0]]
  $region57: #{_pallas_fwd.1} parent=0
    _
  %s6 = ssub.s32 1, %s4
  %s7 = scalar_select 0, %s6, %s4
  $region1: #{_pallas_fwd.1} parent=0
    #allocation3 [shape = 'u8[2048]{0}', space=vmem, size = 0x800, scoped, tag = 'input window, operand 0']
    #allocation4 [shape = 's32[2]{0}', space=sflag, size = 0x8, scoped, tag = 'scoped memory for _pallas_fwd.1']
    #allocation5 [shape = 's32[2]{0}', space=sflag, size = 0x8, scoped, tag = 'scoped memory for _pallas_fwd.1']
    #allocation6 [shape = 'u8[1003520]{0}', space=vmem, size = 0xf5000, scoped, tag = 'input window, operand 1, single buffered']
    #allocation7 [shape = 's32[1]{0}', space=sflag, size = 0x4, scoped, tag = 'scoped memory for _pallas_fwd.1']
    #allocation8 [shape = 'u8[8192]{0}', space=vmem, size = 0x2000, scoped, tag = 'input window, operand 2, single buffered']
    #allocation9 [shape = 'u8[2048]{0}', space=vmem, size = 0x800, scoped, tag = 'output window, operand 0']
    %8 = vsyncpa [#allocation4], 0
    %s9 = scalar_lea.sflag [#allocation4], 1
    %10 = vsyncpa %s9, 0
    %11 = vsyncpa [#allocation7], 0
    %12 = vsyncpa [#allocation5], 0
    %s13 = scalar_lea.sflag [#allocation5], 1
    %14 = vsyncpa %s13, 0
    loop: start=0, step=1, limit=4
    $region2: #{_pallas_fwd.1} parent=1 // loop_pre_header
      _
    $region3: #{_pallas_fwd.1} parent=1 // loop_header
      %s16 = sphi 0, %s20
      %p17 = scmp.ge.s32.totalorder %s16, 4
      %s26 = sphi 0, %s28
      %s29 = sphi 0, %s26
      %s30 = sphi 0, %s29
      %s46 = sphi 0, %s30
      %s50 = sphi 0, %s50
      %s52 = sphi 0, %s50
      %s53 = sphi 0, %s52
      %s67 = sphi 0, %s53
      %s71 = sphi 0, %s71
      %s73 = sphi 0, %s71
      %s74 = sphi 0, %s73
      %s88 = sphi 0, %s74
      %s94 = sphi 0, %s96
      %s97 = sphi 0, %s94
      %s98 = sphi 0, %s97
      %s114 = sphi 0, %s98
    $region4: #{_pallas_fwd.1} parent=1 // loop_header_branch
      %19 = sbr.rel (%p17) target = $region8
    $region5: #{_pallas_fwd.1} parent=1 // loop_body
      %s21 = ssub.s32 %s16, 1
      %s22 = ssub.s32 %s16, 2
      %s23 = sadd.s32 %s16, 1
      %s24 = ssub.s32 %s16, %s23
      %p25 = scmp.eq.s32.totalorder %s24, 0
      %s27 = sadd.s32 %s26, 1
      %s28 = scalar_select %p25, %s26, %s27
      %p31 = pneg %p25
      %p32 = scmp.eq.s32.totalorder %s16, 1
      %p33 = por %p31, %p32
      %p34 = scmp.ne.s32.totalorder %s26, %s29
      %p35 = scmp.eq.s32.totalorder %s16, 0
      %p36 = por %p34, %p35
      %p37 = scmp.ne.s32.totalorder %s26, %s29
      %p38 = scmp.eq.s32.totalorder %s21, 1
      %p39 = por %p37, %p38
      %p40 = scmp.ne.s32.totalorder %s29, %s30
      %p41 = scmp.eq.s32.totalorder %s21, 0
      %p42 = por %p40, %p41
      %p43 = scmp.ne.s32.totalorder %s29, %s30
      %p44 = scmp.eq.s32.totalorder %s22, 1
      %p45 = por %p43, %p44
      %p47 = scmp.ne.s32.totalorder %s30, %s46
      %p48 = scmp.eq.s32.totalorder %s22, 0
      %p49 = por %p47, %p48
      %s51 = sadd.s32 %s50, 1
      %p54 = scmp.eq.s32.totalorder %s16, 1
      %p55 = scmp.ne.s32.totalorder %s50, %s52
      %p56 = scmp.eq.s32.totalorder %s16, 0
      %p57 = por %p55, %p56
      %p58 = scmp.ne.s32.totalorder %s50, %s52
      %p59 = scmp.eq.s32.totalorder %s21, 1
      %p60 = por %p58, %p59
      %p61 = scmp.ne.s32.totalorder %s52, %s53
      %p62 = scmp.eq.s32.totalorder %s21, 0
      %p63 = por %p61, %p62
      %p64 = scmp.ne.s32.totalorder %s52, %s53
      %p65 = scmp.eq.s32.totalorder %s22, 1
      %p66 = por %p64, %p65
      %p68 = scmp.ne.s32.totalorder %s53, %s67
      %p69 = scmp.eq.s32.totalorder %s22, 0
      %p70 = por %p68, %p69
      %s72 = sadd.s32 %s71, 1
      %p75 = scmp.eq.s32.totalorder %s16, 1
      %p76 = scmp.ne.s32.totalorder %s71, %s73
      %p77 = scmp.eq.s32.totalorder %s16, 0
      %p78 = por %p76, %p77
      %p79 = scmp.ne.s32.totalorder %s71, %s73
      %p80 = scmp.eq.s32.totalorder %s21, 1
      %p81 = por %p79, %p80
      %p82 = scmp.ne.s32.totalorder %s73, %s74
      %p83 = scmp.eq.s32.totalorder %s21, 0
      %p84 = por %p82, %p83
      %p85 = scmp.ne.s32.totalorder %s73, %s74
      %p86 = scmp.eq.s32.totalorder %s22, 1
      %p87 = por %p85, %p86
      %p89 = scmp.ne.s32.totalorder %s74, %s88
      %p90 = scmp.eq.s32.totalorder %s22, 0
      %p91 = por %p89, %p90
      %s92 = ssub.s32 %s16, %s23
      %p93 = scmp.eq.s32.totalorder %s92, 0
      %s95 = sadd.s32 %s94, 1
      %s96 = scalar_select %p93, %s94, %s95
      %p99 = pneg %p93
      %p100 = scmp.eq.s32.totalorder %s16, 1
      %p101 = por %p99, %p100
      %p102 = scmp.ne.s32.totalorder %s94, %s97
      %p103 = scmp.eq.s32.totalorder %s16, 0
      %p104 = por %p102, %p103
      %p105 = scmp.ne.s32.totalorder %s94, %s97
      %p106 = scmp.eq.s32.totalorder %s21, 1
      %p107 = por %p105, %p106
      %p108 = scmp.ne.s32.totalorder %s97, %s98
      %p109 = scmp.eq.s32.totalorder %s21, 0
      %p110 = por %p108, %p109
      %p111 = scmp.ne.s32.totalorder %s97, %s98
      %p112 = scmp.eq.s32.totalorder %s22, 1
      %p113 = por %p111, %p112
      %p115 = scmp.ne.s32.totalorder %s98, %s114
      %p116 = scmp.eq.s32.totalorder %s22, 0
      %p117 = por %p115, %p116
      %p118 = scmp.le.s32.totalorder 1, %s16
      %p119 = scmp.lt.s32.totalorder %s16, 3
      %p120 = pnand %p118, %p119
      %p121 = pneg %p120
      // Predicated region
      $region9: #{_pallas_fwd.1} parent=5 // pred_check
        _
      $region10: #{_pallas_fwd.1} parent=5 // pred_check_branch
        %123 = sbr.rel (%p120) target = $region12
      $region11: #{_pallas_fwd.1} parent=5 // pred_region
        %s124 = ssub.s32 %s16, 1
        // Predicated region
        $region13: #{_pallas_fwd.1} parent=11 // pred_check
          %p125 = pneg %p63
        $region14: #{_pallas_fwd.1} parent=11 // pred_check_branch
          %127 = sbr.rel (%p125) target = $region16
        $region15: #{_pallas_fwd.1} parent=11 // pred_region
          %s129 = ssub.s32 31360, 31360
          %130 = vsyncadd [#allocation7], %s129
          %s131 = sshll.u32 [#allocation6], 4
          %s132 = int_to_ptr.vmem [resolvable:$true] %s131
          %137 = dma.hbm_to_vmem [thread:$0]  %s1, 31360, %s132, [#allocation7], 64, 64, 4
        $region16: #{_pallas_fwd.1} parent=11 // pred_fallthru
          _
        // Predicated region
        $region17: #{_pallas_fwd.1} parent=11 // pred_check
          %p138 = pneg %p84
        $region18: #{_pallas_fwd.1} parent=11 // pred_check_branch
          %140 = sbr.rel (%p138) target = $region20
        $region19: #{_pallas_fwd.1} parent=11 // pred_region
          %s142 = ssub.s32 256, 256
          %143 = vsyncadd [#allocation7], %s142
          %s144 = sshll.u32 [#allocation8], 4
          %s145 = int_to_ptr.vmem [resolvable:$true] %s144
          %150 = dma.hbm_to_vmem [thread:$0]  %s2, 256, %s145, [#allocation7], 128, 128, 8
        $region20: #{_pallas_fwd.1} parent=11 // pred_fallthru
          _
      $region12: #{_pallas_fwd.1} parent=5 // pred_fallthru
        _
      %p151 = scmp.lt.s32.totalorder %s16, 2
      // Predicated region
      $region21: #{_pallas_fwd.1} parent=5 // pred_check
        %p152 = pneg %p151
      $region22: #{_pallas_fwd.1} parent=5 // pred_check_branch
        %154 = sbr.rel (%p152) target = $region24
      $region23: #{_pallas_fwd.1} parent=5 // pred_region
        // Predicated region
        $region25: #{_pallas_fwd.1} parent=23 // pred_check
          %p155 = pneg %p36
        $region26: #{_pallas_fwd.1} parent=23 // pred_check_branch
          %157 = sbr.rel (%p155) target = $region28
        $region27: #{_pallas_fwd.1} parent=23 // pred_region
          %s158 = sand.u32 %s26, 1
          %s159 = scalar_lea.sflag [#allocation4], %s158
          %s160 = sand.u32 %s26, 1
          %s161 = smul.addr %s160, 2
          %s162 = scalar_lea.vmem [#allocation3], %s161
          %s164 = ssub.s32 32, 32
          %165 = vsyncadd %s159, %s164
          %s166 = smul.addr %s16, 32
          %s167 = scalar_lea.hbm %s0, %s166
          %s169 = sshll.u32 %s162, 4
          %s170 = int_to_ptr.vmem [resolvable:$true] %s169
          %172 = dma.hbm_to_vmem [thread:$0]  %s167, 32, %s170, %s159
        $region28: #{_pallas_fwd.1} parent=23 // pred_fallthru
          _
      $region24: #{_pallas_fwd.1} parent=5 // pred_fallthru
        _
      %p173 = scmp.le.s32.totalorder 1, %s16
      %p174 = scmp.lt.s32.totalorder %s16, 3
      %p175 = pnand %p173, %p174
      %p176 = pneg %p175
      // Predicated region
      $region29: #{_pallas_fwd.1} parent=5 // pred_check
        _
      $region30: #{_pallas_fwd.1} parent=5 // pred_check_branch
        %178 = sbr.rel (%p175) target = $region32
      $region31: #{_pallas_fwd.1} parent=5 // pred_region
        %s179 = ssub.s32 %s16, 1
        %s180 = sand.u32 %s29, 1
        %s181 = scalar_lea.sflag [#allocation4], %s180
        %s182 = sand.u32 %s29, 1
        %s183 = smul.addr %s182, 2
        %s184 = scalar_lea.vmem [#allocation3], %s183
        // Predicated region
        $region33: #{_pallas_fwd.1} parent=31 // pred_check
          %p185 = pneg %p42
        $region34: #{_pallas_fwd.1} parent=31 // pred_check_branch
          %187 = sbr.rel (%p185) target = $region36
        $region35: #{_pallas_fwd.1} parent=31 // pred_region
          %188 = dma.done %s181, 32
        $region36: #{_pallas_fwd.1} parent=31 // pred_fallthru
          _
        // Predicated region
        $region37: #{_pallas_fwd.1} parent=31 // pred_check
          %p189 = pneg %p63
        $region38: #{_pallas_fwd.1} parent=31 // pred_check_branch
          %191 = sbr.rel (%p189) target = $region40
        $region39: #{_pallas_fwd.1} parent=31 // pred_region
          %192 = dma.done [#allocation7], 31360
        $region40: #{_pallas_fwd.1} parent=31 // pred_fallthru
          _
        // Predicated region
        $region41: #{_pallas_fwd.1} parent=31 // pred_check
          %p193 = pneg %p84
        $region42: #{_pallas_fwd.1} parent=31 // pred_check_branch
          %195 = sbr.rel (%p193) target = $region44
        $region43: #{_pallas_fwd.1} parent=31 // pred_region
          %196 = dma.done [#allocation7], 256
        $region44: #{_pallas_fwd.1} parent=31 // pred_fallthru
          _
        %s197 = sand.u32 %s29, 1
        %s198 = scalar_lea.sflag [#allocation4], %s197
        %s199 = sand.u32 %s29, 1
        %s200 = smul.addr %s199, 2
        %s201 = scalar_lea.vmem [#allocation3], %s200
        %p202 = pneg %p42
        %p203 = pneg %p39
        %p204 = pneg %p63
        %p205 = pneg %p60
        %p206 = pneg %p84
        %p207 = pneg %p81
        %p208 = pneg %p110
        %p209 = pneg %p107
        %s210 = sand.u32 %s97, 1
        %s211 = scalar_lea.sflag [#allocation5], %s210
        %s212 = sand.u32 %s97, 1
        %s213 = smul.addr %s212, 2
        %s214 = scalar_lea.vmem [#allocation9], %s213
        %v216 = vld [vmem:[%s184] sm:$0x3]
        %217 = vxpose.xlu0.b32.start [1/16] %v216, 128
        %218 = vxpose.xlu0.b32.cont [2/16] 0.0, 128
        %219 = vxpose.xlu0.b32.cont [3/16] 0.0, 128
        %220 = vxpose.xlu0.b32.cont [4/16] 0.0, 128
        %221 = vxpose.xlu0.b32.cont [5/16] 0.0, 128
        %222 = vxpose.xlu0.b32.cont [6/16] 0.0, 128
        %223 = vxpose.xlu0.b32.cont [7/16] 0.0, 128
        %224 = vxpose.xlu0.b32.cont [8/16] 0.0, 128
        %225 = vxpose.xlu0.b32.cont [9/16] 0.0, 128
        %226 = vxpose.xlu0.b32.cont [10/16] 0.0, 128
        %227 = vxpose.xlu0.b32.cont [11/16] 0.0, 128
        %228 = vxpose.xlu0.b32.cont [12/16] 0.0, 128
        %229 = vxpose.xlu0.b32.cont [13/16] 0.0, 128
        %230 = vxpose.xlu0.b32.cont [14/16] 0.0, 128
        %231 = vxpose.xlu0.b32.cont [15/16] 0.0, 128
        %232 = vxpose.xlu0.b32.end [16/16] 0.0, 128
        %v233 = vpop.trf.xlu0
        %v234 = vpop.trf.xlu0
        %v235 = vpop.trf.xlu0
        %v236 = vpop.trf.xlu0
        %v237 = vpop.trf.xlu0
        %v238 = vpop.trf.xlu0
        %v239 = vpop.trf.xlu0
        %v240 = vpop.trf.xlu0
        %v241 = vpop.trf.xlu0
        %v242 = vpop.trf.xlu0
        %v243 = vpop.trf.xlu0
        %v244 = vpop.trf.xlu0
        %v245 = vpop.trf.xlu0
        %v246 = vpop.trf.xlu0
        %v247 = vpop.trf.xlu0
        %v248 = vpop.trf.xlu0
        %vm265 = vcmask 1041408
        %v266 = vrot.slane %v233, 6
        %v267 = vrot.slane %v234, 6
        %v268 = vsel %vm265, %v266, %v267
        %v269 = vrot.slane %v235, 6
        %v270 = vsel %vm265, %v267, %v269
        %v271 = vrot.slane %v236, 6
        %v272 = vsel %vm265, %v269, %v271
        %v273 = vrot.slane %v237, 6
        %v274 = vsel %vm265, %v271, %v273
        %v275 = vrot.slane %v238, 6
        %v276 = vsel %vm265, %v273, %v275
        %v277 = vrot.slane %v239, 6
        %v278 = vsel %vm265, %v275, %v277
        %v279 = vrot.slane %v240, 6
        %v280 = vsel %vm265, %v277, %v279
        %v281 = vrot.slane %v241, 6
        %v282 = vsel %vm265, %v279, %v281
        %v283 = vrot.slane %v242, 6
        %v284 = vsel %vm265, %v281, %v283
        %v285 = vrot.slane %v243, 6
        %v286 = vsel %vm265, %v283, %v285
        %v287 = vrot.slane %v244, 6
        %v288 = vsel %vm265, %v285, %v287
        %v289 = vrot.slane %v245, 6
        %v290 = vsel %vm265, %v287, %v289
        %v291 = vrot.slane %v246, 6
        %v292 = vsel %vm265, %v289, %v291
        %v293 = vrot.slane %v247, 6
        %v294 = vsel %vm265, %v291, %v293
        %v295 = vrot.slane %v248, 6
        %v296 = vsel %vm265, %v293, %v295
        %v314 = vsel %vm265, 0.0, %v266
        %v315 = vsel %vm265, %v295, 0.0
        %vm318 = vcmask 1046528
        %v319 = vrot.slane %v314, 1
        %v320 = vrot.slane %v268, 1
        %v321 = vsel %vm318, %v319, %v320
        %v322 = vrot.slane %v270, 1
        %v323 = vsel %vm318, %v320, %v322
        %v324 = vrot.slane %v272, 1
        %v325 = vsel %vm318, %v322, %v324
        %v326 = vrot.slane %v274, 1
        %v327 = vsel %vm318, %v324, %v326
        %v328 = vrot.slane %v276, 1
        %v329 = vsel %vm318, %v326, %v328
        %v330 = vrot.slane %v278, 1
        %v331 = vsel %vm318, %v328, %v330
        %v332 = vrot.slane %v280, 1
        %v333 = vsel %vm318, %v330, %v332
        %v334 = vrot.slane %v282, 1
        %v335 = vsel %vm318, %v332, %v334
        %v336 = vrot.slane %v284, 1
        %v337 = vsel %vm318, %v334, %v336
        %v338 = vrot.slane %v286, 1
        %v339 = vsel %vm318, %v336, %v338
        %v340 = vrot.slane %v288, 1
        %v341 = vsel %vm318, %v338, %v340
        %v342 = vrot.slane %v290, 1
        %v343 = vsel %vm318, %v340, %v342
        %v344 = vrot.slane %v292, 1
        %v345 = vsel %vm318, %v342, %v344
        %v346 = vrot.slane %v294, 1
        %v347 = vsel %vm318, %v344, %v346
        %v348 = vrot.slane %v296, 1
        %v349 = vsel %vm318, %v346, %v348
        %v350 = vrot.slane %v315, 1
        %v351 = vsel %vm318, %v348, %v350
        %352 = vrot.lane.b32.xlu0 %v321, 2
        %v353 = vpop.permute.xlu0 %352
        %354 = vrot.lane.b32.xlu0 %v323, 2
        %v355 = vpop.permute.xlu0 %354
        %356 = vrot.lane.b32.xlu0 %v325, 2
        %v357 = vpop.permute.xlu0 %356
        %358 = vrot.lane.b32.xlu0 %v327, 2
        %v359 = vpop.permute.xlu0 %358
        %360 = vrot.lane.b32.xlu0 %v329, 2
        %v361 = vpop.permute.xlu0 %360
        %362 = vrot.lane.b32.xlu0 %v331, 2
        %v363 = vpop.permute.xlu0 %362
        %364 = vrot.lane.b32.xlu0 %v333, 2
        %v365 = vpop.permute.xlu0 %364
        %366 = vrot.lane.b32.xlu0 %v335, 2
        %v367 = vpop.permute.xlu0 %366
        %368 = vrot.lane.b32.xlu0 %v337, 2
        %v369 = vpop.permute.xlu0 %368
        %370 = vrot.lane.b32.xlu0 %v339, 2
        %v371 = vpop.permute.xlu0 %370
        %372 = vrot.lane.b32.xlu0 %v341, 2
        %v373 = vpop.permute.xlu0 %372
        %374 = vrot.lane.b32.xlu0 %v343, 2
        %v375 = vpop.permute.xlu0 %374
        %376 = vrot.lane.b32.xlu0 %v345, 2
        %v377 = vpop.permute.xlu0 %376
        %378 = vrot.lane.b32.xlu0 %v347, 2
        %v379 = vpop.permute.xlu0 %378
        %380 = vrot.lane.b32.xlu0 %v349, 2
        %v381 = vpop.permute.xlu0 %380
        %382 = vrot.lane.b32.xlu0 %v351, 2
        %v383 = vpop.permute.xlu0 %382
        %vm400 = vcmask 1045504
        %v401 = vrot.slane %v314, 2
        %v402 = vrot.slane %v268, 2
        %v403 = vsel %vm400, %v401, %v402
        %v404 = vrot.slane %v270, 2
        %v405 = vsel %vm400, %v402, %v404
        %v406 = vrot.slane %v272, 2
        %v407 = vsel %vm400, %v404, %v406
        %v408 = vrot.slane %v274, 2
        %v409 = vsel %vm400, %v406, %v408
        %v410 = vrot.slane %v276, 2
        %v411 = vsel %vm400, %v408, %v410
        %v412 = vrot.slane %v278, 2
        %v413 = vsel %vm400, %v410, %v412
        %v414 = vrot.slane %v280, 2
        %v415 = vsel %vm400, %v412, %v414
        %v416 = vrot.slane %v282, 2
        %v417 = vsel %vm400, %v414, %v416
        %v418 = vrot.slane %v284, 2
        %v419 = vsel %vm400, %v416, %v418
        %v420 = vrot.slane %v286, 2
        %v421 = vsel %vm400, %v418, %v420
        %v422 = vrot.slane %v288, 2
        %v423 = vsel %vm400, %v420, %v422
        %v424 = vrot.slane %v290, 2
        %v425 = vsel %vm400, %v422, %v424
        %v426 = vrot.slane %v292, 2
        %v427 = vsel %vm400, %v424, %v426
        %v428 = vrot.slane %v294, 2
        %v429 = vsel %vm400, %v426, %v428
        %v430 = vrot.slane %v296, 2
        %v431 = vsel %vm400, %v428, %v430
        %v432 = vrot.slane %v315, 2
        %v433 = vsel %vm400, %v430, %v432
        %434 = vrot.lane.b32.xlu0 %v403, 4
        %v435 = vpop.permute.xlu0 %434
        %436 = vrot.lane.b32.xlu0 %v405, 4
        %v437 = vpop.permute.xlu0 %436
        %438 = vrot.lane.b32.xlu0 %v407, 4
        %v439 = vpop.permute.xlu0 %438
        %440 = vrot.lane.b32.xlu0 %v409, 4
        %v441 = vpop.permute.xlu0 %440
        %442 = vrot.lane.b32.xlu0 %v411, 4
        %v443 = vpop.permute.xlu0 %442
        %444 = vrot.lane.b32.xlu0 %v413, 4
        %v445 = vpop.permute.xlu0 %444
        %446 = vrot.lane.b32.xlu0 %v415, 4
        %v447 = vpop.permute.xlu0 %446
        %448 = vrot.lane.b32.xlu0 %v417, 4
        %v449 = vpop.permute.xlu0 %448
        %450 = vrot.lane.b32.xlu0 %v419, 4
        %v451 = vpop.permute.xlu0 %450
        %452 = vrot.lane.b32.xlu0 %v421, 4
        %v453 = vpop.permute.xlu0 %452
        %454 = vrot.lane.b32.xlu0 %v423, 4
        %v455 = vpop.permute.xlu0 %454
        %456 = vrot.lane.b32.xlu0 %v425, 4
        %v457 = vpop.permute.xlu0 %456
        %458 = vrot.lane.b32.xlu0 %v427, 4
        %v459 = vpop.permute.xlu0 %458
        %460 = vrot.lane.b32.xlu0 %v429, 4
        %v461 = vpop.permute.xlu0 %460
        %462 = vrot.lane.b32.xlu0 %v431, 4
        %v463 = vpop.permute.xlu0 %462
        %464 = vrot.lane.b32.xlu0 %v433, 4
        %v465 = vpop.permute.xlu0 %464
        %vm482 = vcmask 1044480
        %v483 = vrot.slane %v314, 3
        %v484 = vrot.slane %v268, 3
        %v485 = vsel %vm482, %v483, %v484
        %v486 = vrot.slane %v270, 3
        %v487 = vsel %vm482, %v484, %v486
        %v488 = vrot.slane %v272, 3
        %v489 = vsel %vm482, %v486, %v488
        %v490 = vrot.slane %v274, 3
        %v491 = vsel %vm482, %v488, %v490
        %v492 = vrot.slane %v276, 3
        %v493 = vsel %vm482, %v490, %v492
        %v494 = vrot.slane %v278, 3
        %v495 = vsel %vm482, %v492, %v494
        %v496 = vrot.slane %v280, 3
        %v497 = vsel %vm482, %v494, %v496
        %v498 = vrot.slane %v282, 3
        %v499 = vsel %vm482, %v496, %v498
        %v500 = vrot.slane %v284, 3
        %v501 = vsel %vm482, %v498, %v500
        %v502 = vrot.slane %v286, 3
        %v503 = vsel %vm482, %v500, %v502
        %v504 = vrot.slane %v288, 3
        %v505 = vsel %vm482, %v502, %v504
        %v506 = vrot.slane %v290, 3
        %v507 = vsel %vm482, %v504, %v506
        %v508 = vrot.slane %v292, 3
        %v509 = vsel %vm482, %v506, %v508
        %v510 = vrot.slane %v294, 3
        %v511 = vsel %vm482, %v508, %v510
        %v512 = vrot.slane %v296, 3
        %v513 = vsel %vm482, %v510, %v512
        %v514 = vrot.slane %v315, 3
        %v515 = vsel %vm482, %v512, %v514
        %516 = vrot.lane.b32.xlu0 %v485, 6
        %v517 = vpop.permute.xlu0 %516
        %518 = vrot.lane.b32.xlu0 %v487, 6
        %v519 = vpop.permute.xlu0 %518
        %520 = vrot.lane.b32.xlu0 %v489, 6
        %v521 = vpop.permute.xlu0 %520
        %522 = vrot.lane.b32.xlu0 %v491, 6
        %v523 = vpop.permute.xlu0 %522
        %524 = vrot.lane.b32.xlu0 %v493, 6
        %v525 = vpop.permute.xlu0 %524
        %526 = vrot.lane.b32.xlu0 %v495, 6
        %v527 = vpop.permute.xlu0 %526
        %528 = vrot.lane.b32.xlu0 %v497, 6
        %v529 = vpop.permute.xlu0 %528
        %530 = vrot.lane.b32.xlu0 %v499, 6
        %v531 = vpop.permute.xlu0 %530
        %532 = vrot.lane.b32.xlu0 %v501, 6
        %v533 = vpop.permute.xlu0 %532
        %534 = vrot.lane.b32.xlu0 %v503, 6
        %v535 = vpop.permute.xlu0 %534
        %536 = vrot.lane.b32.xlu0 %v505, 6
        %v537 = vpop.permute.xlu0 %536
        %538 = vrot.lane.b32.xlu0 %v507, 6
        %v539 = vpop.permute.xlu0 %538
        %540 = vrot.lane.b32.xlu0 %v509, 6
        %v541 = vpop.permute.xlu0 %540
        %542 = vrot.lane.b32.xlu0 %v511, 6
        %v543 = vpop.permute.xlu0 %542
        %544 = vrot.lane.b32.xlu0 %v513, 6
        %v545 = vpop.permute.xlu0 %544
        %546 = vrot.lane.b32.xlu0 %v515, 6
        %v547 = vpop.permute.xlu0 %546
        %vm564 = vcmask 1043456
        %v565 = vrot.slane %v314, 4
        %v566 = vrot.slane %v268, 4
        %v567 = vsel %vm564, %v565, %v566
        %v568 = vrot.slane %v270, 4
        %v569 = vsel %vm564, %v566, %v568
        %v570 = vrot.slane %v272, 4
        %v571 = vsel %vm564, %v568, %v570
        %v572 = vrot.slane %v274, 4
        %v573 = vsel %vm564, %v570, %v572
        %v574 = vrot.slane %v276, 4
        %v575 = vsel %vm564, %v572, %v574
        %v576 = vrot.slane %v278, 4
        %v577 = vsel %vm564, %v574, %v576
        %v578 = vrot.slane %v280, 4
        %v579 = vsel %vm564, %v576, %v578
        %v580 = vrot.slane %v282, 4
        %v581 = vsel %vm564, %v578, %v580
        %v582 = vrot.slane %v284, 4
        %v583 = vsel %vm564, %v580, %v582
        %v584 = vrot.slane %v286, 4
        %v585 = vsel %vm564, %v582, %v584
        %v586 = vrot.slane %v288, 4
        %v587 = vsel %vm564, %v584, %v586
        %v588 = vrot.slane %v290, 4
        %v589 = vsel %vm564, %v586, %v588
        %v590 = vrot.slane %v292, 4
        %v591 = vsel %vm564, %v588, %v590
        %v592 = vrot.slane %v294, 4
        %v593 = vsel %vm564, %v590, %v592
        %v594 = vrot.slane %v296, 4
        %v595 = vsel %vm564, %v592, %v594
        %v596 = vrot.slane %v315, 4
        %v597 = vsel %vm564, %v594, %v596
        %598 = vrot.lane.b32.xlu0 %v567, 8
        %v599 = vpop.permute.xlu0 %598
        %600 = vrot.lane.b32.xlu0 %v569, 8
        %v601 = vpop.permute.xlu0 %600
        %602 = vrot.lane.b32.xlu0 %v571, 8
        %v603 = vpop.permute.xlu0 %602
        %604 = vrot.lane.b32.xlu0 %v573, 8
        %v605 = vpop.permute.xlu0 %604
        %606 = vrot.lane.b32.xlu0 %v575, 8
        %v607 = vpop.permute.xlu0 %606
        %608 = vrot.lane.b32.xlu0 %v577, 8
        %v609 = vpop.permute.xlu0 %608
        %610 = vrot.lane.b32.xlu0 %v579, 8
        %v611 = vpop.permute.xlu0 %610
        %612 = vrot.lane.b32.xlu0 %v581, 8
        %v613 = vpop.permute.xlu0 %612
        %614 = vrot.lane.b32.xlu0 %v583, 8
        %v615 = vpop.permute.xlu0 %614
        %616 = vrot.lane.b32.xlu0 %v585, 8
        %v617 = vpop.permute.xlu0 %616
        %618 = vrot.lane.b32.xlu0 %v587, 8
        %v619 = vpop.permute.xlu0 %618
        %620 = vrot.lane.b32.xlu0 %v589, 8
        %v621 = vpop.permute.xlu0 %620
        %622 = vrot.lane.b32.xlu0 %v591, 8
        %v623 = vpop.permute.xlu0 %622
        %624 = vrot.lane.b32.xlu0 %v593, 8
        %v625 = vpop.permute.xlu0 %624
        %626 = vrot.lane.b32.xlu0 %v595, 8
        %v627 = vpop.permute.xlu0 %626
        %628 = vrot.lane.b32.xlu0 %v597, 8
        %v629 = vpop.permute.xlu0 %628
        %vm646 = vcmask 15360
        %v647 = vsel %vm646, %v314, %v353
        %v648 = vsel %vm646, %v268, %v355
        %v649 = vsel %vm646, %v270, %v357
        %v650 = vsel %vm646, %v272, %v359
        %v651 = vsel %vm646, %v274, %v361
        %v652 = vsel %vm646, %v276, %v363
        %v653 = vsel %vm646, %v278, %v365
        %v654 = vsel %vm646, %v280, %v367
        %v655 = vsel %vm646, %v282, %v369
        %v656 = vsel %vm646, %v284, %v371
        %v657 = vsel %vm646, %v286, %v373
        %v658 = vsel %vm646, %v288, %v375
        %v659 = vsel %vm646, %v290, %v377
        %v660 = vsel %vm646, %v292, %v379
        %v661 = vsel %vm646, %v294, %v381
        %v662 = vsel %vm646, %v296, %v383
        %vm663 = vcmask 31744
        %v664 = vsel %vm663, %v647, %v435
        %v665 = vsel %vm663, %v648, %v437
        %v666 = vsel %vm663, %v649, %v439
        %v667 = vsel %vm663, %v650, %v441
        %v668 = vsel %vm663, %v651, %v443
        %v669 = vsel %vm663, %v652, %v445
        %v670 = vsel %vm663, %v653, %v447
        %v671 = vsel %vm663, %v654, %v449
        %v672 = vsel %vm663, %v655, %v451
        %v673 = vsel %vm663, %v656, %v453
        %v674 = vsel %vm663, %v657, %v455
        %v675 = vsel %vm663, %v658, %v457
        %v676 = vsel %vm663, %v659, %v459
        %v677 = vsel %vm663, %v660, %v461
        %v678 = vsel %vm663, %v661, %v463
        %v679 = vsel %vm663, %v662, %v465
        %vm680 = vcmask 48128
        %v681 = vsel %vm680, %v664, %v517
        %v682 = vsel %vm680, %v665, %v519
        %v683 = vsel %vm680, %v666, %v521
        %v684 = vsel %vm680, %v667, %v523
        %v685 = vsel %vm680, %v668, %v525
        %v686 = vsel %vm680, %v669, %v527
        %v687 = vsel %vm680, %v670, %v529
        %v688 = vsel %vm680, %v671, %v531
        %v689 = vsel %vm680, %v672, %v533
        %v690 = vsel %vm680, %v673, %v535
        %v691 = vsel %vm680, %v674, %v537
        %v692 = vsel %vm680, %v675, %v539
        %v693 = vsel %vm680, %v676, %v541
        %v694 = vsel %vm680, %v677, %v543
        %v695 = vsel %vm680, %v678, %v545
        %v696 = vsel %vm680, %v679, %v547
        %vm697 = vcmask 64512
        %v698 = vsel %vm697, %v681, %v599
        %v699 = vsel %vm697, %v682, %v601
        %v700 = vsel %vm697, %v683, %v603
        %v701 = vsel %vm697, %v684, %v605
        %v702 = vsel %vm697, %v685, %v607
        %v703 = vsel %vm697, %v686, %v609
        %v704 = vsel %vm697, %v687, %v611
        %v705 = vsel %vm697, %v688, %v613
        %v706 = vsel %vm697, %v689, %v615
        %v707 = vsel %vm697, %v690, %v617
        %v708 = vsel %vm697, %v691, %v619
        %v709 = vsel %vm697, %v692, %v621
        %v710 = vsel %vm697, %v693, %v623
        %v711 = vsel %vm697, %v694, %v625
        %v712 = vsel %vm697, %v695, %v627
        %v713 = vsel %vm697, %v696, %v629
        %v714 = vpack.c.bf16 %v699, %v698
        %v715 = vpack.c.bf16 %v701, %v700
        %v716 = vpack.c.bf16 %v703, %v702
        %v717 = vpack.c.bf16 %v705, %v704
        %v718 = vpack.c.bf16 %v707, %v706
        %v719 = vpack.c.bf16 %v709, %v708
        %v720 = vpack.c.bf16 %v711, %v710
        %v721 = vpack.c.bf16 %v713, %v712
        %v722 = vld [vmem:[#allocation6] sm:$0xf]
        %v723 = vld [vmem:[#allocation6 + $0x4] sm:$0x1]
        %v724 = vld [vmem:[#allocation8] sm:$0x1]
        %v725 = vlaneseq
        %v726 = vshrl.u32 %v725, 7
        %v727 = vsub.s32 0, %v726
        %v728 = vrot.slane %v724, %v727
        %v731 = vunpack.c.l.b16 %v722
        %v732 = vunpack.c.l.b16 %v723
        %v733 = vpack.c.b16 %v732, %v731
        %vm734 = vcmask 80896
        %v736 = vsel %vm734, %v714, 0
        %v739 = vsel %vm734, %v715, 0
        %v742 = vsel %vm734, %v716, 0
        %v745 = vsel %vm734, %v717, 0
        %v748 = vsel %vm734, %v718, 0
        %v751 = vsel %vm734, %v719, 0
        %v754 = vsel %vm734, %v720, 0
        %v757 = vsel %vm734, %v721, 0
        %v760 = vsel %vm482, %v733, 0
        %762 = vmatprep.subr.bf16.mxu0 0
        %763 = vmatpush1.bf16.msra.mxu0 0
        %764 = vmatprep.subr.bf16.mxu0 0
        %765 = vmatpush1.bf16.msra.mxu0 0
        %766 = vmatprep.subr.bf16.mxu0 0
        %767 = vmatpush1.bf16.msra.mxu0 0
        %768 = vmatprep.subr.bf16.mxu0 0
        %769 = vmatpush1.bf16.msra.mxu0 0
        %770 = vmatprep.subr.bf16.mxu0 0
        %771 = vmatpush1.bf16.msra.mxu0 0
        %772 = vmatprep.subr.bf16.mxu0 0
        %773 = vmatpush1.bf16.msra.mxu0 0
        %774 = vmatprep.subr.bf16.mxu0 0
        %775 = vmatpush1.bf16.msra.mxu0 0
        %776 = vmatprep.subr.bf16.mxu0 0
        %777 = vmatpush1.bf16.msra.mxu0 %v760
        %778 = vmatprep.subr.bf16.mxu0 0
        %779 = vmatpush2.bf16.msra.mxu0 0
        %780 = vmatprep.subr.bf16.mxu0 0
        %781 = vmatpush2.bf16.msra.mxu0 0
        %782 = vmatprep.subr.bf16.mxu0 0
        %783 = vmatpush2.bf16.msra.mxu0 0
        %784 = vmatprep.subr.bf16.mxu0 0
        %785 = vmatpush2.bf16.msra.mxu0 0
        %786 = vmatprep.subr.bf16.mxu0 0
        %787 = vmatpush2.bf16.msra.mxu0 0
        %788 = vmatprep.subr.bf16.mxu0 0
        %789 = vmatpush2.bf16.msra.mxu0 0
        %790 = vmatprep.subr.bf16.mxu0 0
        %791 = vmatpush2.bf16.msra.mxu0 0
        %792 = vmatprep.subr.bf16.mxu0 0
        %793 = vmatpush2.bf16.msra.mxu0 0
        %794 = vmatprep.mubr.bf16.mxu0 0
        %795 = vmatmul.mubr.bf16.gmra.mxu0 %v736
        %v796 = vpop.f32.mrf.mxu0
        %v797 = vadd.f32 %v728, %v796
        %v798 = vpop.f32.mrf.mxu0
        %v799 = vpop.f32.mrf.mxu0
        %v800 = vadd.f32 %v728, %v799
        %v801 = vpop.f32.mrf.mxu0
        %802 = vmatprep.mubr.bf16.mxu0 0
        %803 = vmatmul.mubr.bf16.gmra.mxu0 %v739
        %v804 = vpop.f32.mrf.mxu0
        %v805 = vadd.f32 %v728, %v804
        %v806 = vpop.f32.mrf.mxu0
        %v807 = vpop.f32.mrf.mxu0
        %v808 = vadd.f32 %v728, %v807
        %v809 = vpop.f32.mrf.mxu0
        %810 = vmatprep.mubr.bf16.mxu0 0
        %811 = vmatmul.mubr.bf16.gmra.mxu0 %v742
        %v812 = vpop.f32.mrf.mxu0
        %v813 = vadd.f32 %v728, %v812
        %v814 = vpop.f32.mrf.mxu0
        %v815 = vpop.f32.mrf.mxu0
        %v816 = vadd.f32 %v728, %v815
        %v817 = vpop.f32.mrf.mxu0
        %818 = vmatprep.mubr.bf16.mxu0 0
        %819 = vmatmul.mubr.bf16.gmra.mxu0 %v745
        %v820 = vpop.f32.mrf.mxu0
        %v821 = vadd.f32 %v728, %v820
        %v822 = vpop.f32.mrf.mxu0
        %v823 = vpop.f32.mrf.mxu0
        %v824 = vadd.f32 %v728, %v823
        %v825 = vpop.f32.mrf.mxu0
        %826 = vmatprep.mubr.bf16.mxu0 0
        %827 = vmatmul.mubr.bf16.gmra.mxu0 %v748
        %v828 = vpop.f32.mrf.mxu0
        %v829 = vadd.f32 %v728, %v828
        %v830 = vpop.f32.mrf.mxu0
        %v831 = vpop.f32.mrf.mxu0
        %v832 = vadd.f32 %v728, %v831
        %v833 = vpop.f32.mrf.mxu0
        %834 = vmatprep.mubr.bf16.mxu0 0
        %835 = vmatmul.mubr.bf16.gmra.mxu0 %v751
        %v836 = vpop.f32.mrf.mxu0
        %v837 = vadd.f32 %v728, %v836
        %v838 = vpop.f32.mrf.mxu0
        %v839 = vpop.f32.mrf.mxu0
        %v840 = vadd.f32 %v728, %v839
        %v841 = vpop.f32.mrf.mxu0
        %842 = vmatprep.mubr.bf16.mxu0 0
        %843 = vmatmul.mubr.bf16.gmra.mxu0 %v754
        %v844 = vpop.f32.mrf.mxu0
        %v845 = vadd.f32 %v728, %v844
        %v846 = vpop.f32.mrf.mxu0
        %v847 = vpop.f32.mrf.mxu0
        %v848 = vadd.f32 %v728, %v847
        %v849 = vpop.f32.mrf.mxu0
        %850 = vmatprep.mubr.bf16.mxu0 0
        %851 = vmatmul.mubr.bf16.gmra.mxu0 %v757
        %v852 = vpop.f32.mrf.mxu0
        %v853 = vadd.f32 %v728, %v852
        %v854 = vpop.f32.mrf.mxu0
        %v855 = vpop.f32.mrf.mxu0
        %v856 = vadd.f32 %v728, %v855
        %v857 = vpop.f32.mrf.mxu0
        %858 = vdwg.mxu0
        %v859 = vmax.f32 %v797, 0.0
        %v860 = vmax.f32 %v800, 0.0
        %v861 = vmax.f32 %v805, 0.0
        %v862 = vmax.f32 %v808, 0.0
        %v863 = vmax.f32 %v813, 0.0
        %v864 = vmax.f32 %v816, 0.0
        %v865 = vmax.f32 %v821, 0.0
        %v866 = vmax.f32 %v824, 0.0
        %v867 = vmax.f32 %v829, 0.0
        %v868 = vmax.f32 %v832, 0.0
        %v869 = vmax.f32 %v837, 0.0
        %v870 = vmax.f32 %v840, 0.0
        %v871 = vmax.f32 %v845, 0.0
        %v872 = vmax.f32 %v848, 0.0
        %v873 = vmax.f32 %v853, 0.0
        %v874 = vmax.f32 %v856, 0.0
        %v891 = vrot.slane %v859, 6
        %v892 = vrot.slane %v860, 6
        %v893 = vsel %vm265, %v891, %v892
        %v894 = vrot.slane %v861, 6
        %v895 = vsel %vm265, %v892, %v894
        %v896 = vrot.slane %v862, 6
        %v897 = vsel %vm265, %v894, %v896
        %v898 = vrot.slane %v863, 6
        %v899 = vsel %vm265, %v896, %v898
        %v900 = vrot.slane %v864, 6
        %v901 = vsel %vm265, %v898, %v900
        %v902 = vrot.slane %v865, 6
        %v903 = vsel %vm265, %v900, %v902
        %v904 = vrot.slane %v866, 6
        %v905 = vsel %vm265, %v902, %v904
        %v906 = vrot.slane %v867, 6
        %v907 = vsel %vm265, %v904, %v906
        %v908 = vrot.slane %v868, 6
        %v909 = vsel %vm265, %v906, %v908
        %v910 = vrot.slane %v869, 6
        %v911 = vsel %vm265, %v908, %v910
        %v912 = vrot.slane %v870, 6
        %v913 = vsel %vm265, %v910, %v912
        %v914 = vrot.slane %v871, 6
        %v915 = vsel %vm265, %v912, %v914
        %v916 = vrot.slane %v872, 6
        %v917 = vsel %vm265, %v914, %v916
        %v918 = vrot.slane %v873, 6
        %v919 = vsel %vm265, %v916, %v918
        %v920 = vrot.slane %v874, 6
        %v921 = vsel %vm265, %v918, %v920
        %v939 = vsel %vm265, 0.0, %v891
        %v940 = vsel %vm265, %v920, 0.0
        %v943 = vrot.slane %v939, 1
        %v944 = vrot.slane %v893, 1
        %v945 = vsel %vm318, %v943, %v944
        %v946 = vrot.slane %v895, 1
        %v947 = vsel %vm318, %v944, %v946
        %v948 = vrot.slane %v897, 1
        %v949 = vsel %vm318, %v946, %v948
        %v950 = vrot.slane %v899, 1
        %v951 = vsel %vm318, %v948, %v950
        %v952 = vrot.slane %v901, 1
        %v953 = vsel %vm318, %v950, %v952
        %v954 = vrot.slane %v903, 1
        %v955 = vsel %vm318, %v952, %v954
        %v956 = vrot.slane %v905, 1
        %v957 = vsel %vm318, %v954, %v956
        %v958 = vrot.slane %v907, 1
        %v959 = vsel %vm318, %v956, %v958
        %v960 = vrot.slane %v909, 1
        %v961 = vsel %vm318, %v958, %v960
        %v962 = vrot.slane %v911, 1
        %v963 = vsel %vm318, %v960, %v962
        %v964 = vrot.slane %v913, 1
        %v965 = vsel %vm318, %v962, %v964
        %v966 = vrot.slane %v915, 1
        %v967 = vsel %vm318, %v964, %v966
        %v968 = vrot.slane %v917, 1
        %v969 = vsel %vm318, %v966, %v968
        %v970 = vrot.slane %v919, 1
        %v971 = vsel %vm318, %v968, %v970
        %v972 = vrot.slane %v921, 1
        %v973 = vsel %vm318, %v970, %v972
        %v974 = vrot.slane %v940, 1
        %v975 = vsel %vm318, %v972, %v974
        %976 = vrot.lane.b32.xlu0 %v945, 16
        %v977 = vpop.permute.xlu0 %976
        %978 = vrot.lane.b32.xlu0 %v947, 16
        %v979 = vpop.permute.xlu0 %978
        %980 = vrot.lane.b32.xlu0 %v949, 16
        %v981 = vpop.permute.xlu0 %980
        %982 = vrot.lane.b32.xlu0 %v951, 16
        %v983 = vpop.permute.xlu0 %982
        %984 = vrot.lane.b32.xlu0 %v953, 16
        %v985 = vpop.permute.xlu0 %984
        %986 = vrot.lane.b32.xlu0 %v955, 16
        %v987 = vpop.permute.xlu0 %986
        %988 = vrot.lane.b32.xlu0 %v957, 16
        %v989 = vpop.permute.xlu0 %988
        %990 = vrot.lane.b32.xlu0 %v959, 16
        %v991 = vpop.permute.xlu0 %990
        %992 = vrot.lane.b32.xlu0 %v961, 16
        %v993 = vpop.permute.xlu0 %992
        %994 = vrot.lane.b32.xlu0 %v963, 16
        %v995 = vpop.permute.xlu0 %994
        %996 = vrot.lane.b32.xlu0 %v965, 16
        %v997 = vpop.permute.xlu0 %996
        %998 = vrot.lane.b32.xlu0 %v967, 16
        %v999 = vpop.permute.xlu0 %998
        %1000 = vrot.lane.b32.xlu0 %v969, 16
        %v1001 = vpop.permute.xlu0 %1000
        %1002 = vrot.lane.b32.xlu0 %v971, 16
        %v1003 = vpop.permute.xlu0 %1002
        %1004 = vrot.lane.b32.xlu0 %v973, 16
        %v1005 = vpop.permute.xlu0 %1004
        %1006 = vrot.lane.b32.xlu0 %v975, 16
        %v1007 = vpop.permute.xlu0 %1006
        %v1024 = vrot.slane %v939, 2
        %v1025 = vrot.slane %v893, 2
        %v1026 = vsel %vm400, %v1024, %v1025
        %v1027 = vrot.slane %v895, 2
        %v1028 = vsel %vm400, %v1025, %v1027
        %v1029 = vrot.slane %v897, 2
        %v1030 = vsel %vm400, %v1027, %v1029
        %v1031 = vrot.slane %v899, 2
        %v1032 = vsel %vm400, %v1029, %v1031
        %v1033 = vrot.slane %v901, 2
        %v1034 = vsel %vm400, %v1031, %v1033
        %v1035 = vrot.slane %v903, 2
        %v1036 = vsel %vm400, %v1033, %v1035
        %v1037 = vrot.slane %v905, 2
        %v1038 = vsel %vm400, %v1035, %v1037
        %v1039 = vrot.slane %v907, 2
        %v1040 = vsel %vm400, %v1037, %v1039
        %v1041 = vrot.slane %v909, 2
        %v1042 = vsel %vm400, %v1039, %v1041
        %v1043 = vrot.slane %v911, 2
        %v1044 = vsel %vm400, %v1041, %v1043
        %v1045 = vrot.slane %v913, 2
        %v1046 = vsel %vm400, %v1043, %v1045
        %v1047 = vrot.slane %v915, 2
        %v1048 = vsel %vm400, %v1045, %v1047
        %v1049 = vrot.slane %v917, 2
        %v1050 = vsel %vm400, %v1047, %v1049
        %v1051 = vrot.slane %v919, 2
        %v1052 = vsel %vm400, %v1049, %v1051
        %v1053 = vrot.slane %v921, 2
        %v1054 = vsel %vm400, %v1051, %v1053
        %v1055 = vrot.slane %v940, 2
        %v1056 = vsel %vm400, %v1053, %v1055
        %1057 = vrot.lane.b32.xlu0 %v1026, 32
        %v1058 = vpop.permute.xlu0 %1057
        %1059 = vrot.lane.b32.xlu0 %v1028, 32
        %v1060 = vpop.permute.xlu0 %1059
        %1061 = vrot.lane.b32.xlu0 %v1030, 32
        %v1062 = vpop.permute.xlu0 %1061
        %1063 = vrot.lane.b32.xlu0 %v1032, 32
        %v1064 = vpop.permute.xlu0 %1063
        %1065 = vrot.lane.b32.xlu0 %v1034, 32
        %v1066 = vpop.permute.xlu0 %1065
        %1067 = vrot.lane.b32.xlu0 %v1036, 32
        %v1068 = vpop.permute.xlu0 %1067
        %1069 = vrot.lane.b32.xlu0 %v1038, 32
        %v1070 = vpop.permute.xlu0 %1069
        %1071 = vrot.lane.b32.xlu0 %v1040, 32
        %v1072 = vpop.permute.xlu0 %1071
        %1073 = vrot.lane.b32.xlu0 %v1042, 32
        %v1074 = vpop.permute.xlu0 %1073
        %1075 = vrot.lane.b32.xlu0 %v1044, 32
        %v1076 = vpop.permute.xlu0 %1075
        %1077 = vrot.lane.b32.xlu0 %v1046, 32
        %v1078 = vpop.permute.xlu0 %1077
        %1079 = vrot.lane.b32.xlu0 %v1048, 32
        %v1080 = vpop.permute.xlu0 %1079
        %1081 = vrot.lane.b32.xlu0 %v1050, 32
        %v1082 = vpop.permute.xlu0 %1081
        %1083 = vrot.lane.b32.xlu0 %v1052, 32
        %v1084 = vpop.permute.xlu0 %1083
        %1085 = vrot.lane.b32.xlu0 %v1054, 32
        %v1086 = vpop.permute.xlu0 %1085
        %1087 = vrot.lane.b32.xlu0 %v1056, 32
        %v1088 = vpop.permute.xlu0 %1087
        %v1105 = vrot.slane %v939, 3
        %v1106 = vrot.slane %v893, 3
        %v1107 = vsel %vm482, %v1105, %v1106
        %v1108 = vrot.slane %v895, 3
        %v1109 = vsel %vm482, %v1106, %v1108
        %v1110 = vrot.slane %v897, 3
        %v1111 = vsel %vm482, %v1108, %v1110
        %v1112 = vrot.slane %v899, 3
        %v1113 = vsel %vm482, %v1110, %v1112
        %v1114 = vrot.slane %v901, 3
        %v1115 = vsel %vm482, %v1112, %v1114
        %v1116 = vrot.slane %v903, 3
        %v1117 = vsel %vm482, %v1114, %v1116
        %v1118 = vrot.slane %v905, 3
        %v1119 = vsel %vm482, %v1116, %v1118
        %v1120 = vrot.slane %v907, 3
        %v1121 = vsel %vm482, %v1118, %v1120
        %v1122 = vrot.slane %v909, 3
        %v1123 = vsel %vm482, %v1120, %v1122
        %v1124 = vrot.slane %v911, 3
        %v1125 = vsel %vm482, %v1122, %v1124
        %v1126 = vrot.slane %v913, 3
        %v1127 = vsel %vm482, %v1124, %v1126
        %v1128 = vrot.slane %v915, 3
        %v1129 = vsel %vm482, %v1126, %v1128
        %v1130 = vrot.slane %v917, 3
        %v1131 = vsel %vm482, %v1128, %v1130
        %v1132 = vrot.slane %v919, 3
        %v1133 = vsel %vm482, %v1130, %v1132
        %v1134 = vrot.slane %v921, 3
        %v1135 = vsel %vm482, %v1132, %v1134
        %v1136 = vrot.slane %v940, 3
        %v1137 = vsel %vm482, %v1134, %v1136
        %1138 = vrot.lane.b32.xlu0 %v1107, 48
        %v1139 = vpop.permute.xlu0 %1138
        %1140 = vrot.lane.b32.xlu0 %v1109, 48
        %v1141 = vpop.permute.xlu0 %1140
        %1142 = vrot.lane.b32.xlu0 %v1111, 48
        %v1143 = vpop.permute.xlu0 %1142
        %1144 = vrot.lane.b32.xlu0 %v1113, 48
        %v1145 = vpop.permute.xlu0 %1144
        %1146 = vrot.lane.b32.xlu0 %v1115, 48
        %v1147 = vpop.permute.xlu0 %1146
        %1148 = vrot.lane.b32.xlu0 %v1117, 48
        %v1149 = vpop.permute.xlu0 %1148
        %1150 = vrot.lane.b32.xlu0 %v1119, 48
        %v1151 = vpop.permute.xlu0 %1150
        %1152 = vrot.lane.b32.xlu0 %v1121, 48
        %v1153 = vpop.permute.xlu0 %1152
        %1154 = vrot.lane.b32.xlu0 %v1123, 48
        %v1155 = vpop.permute.xlu0 %1154
        %1156 = vrot.lane.b32.xlu0 %v1125, 48
        %v1157 = vpop.permute.xlu0 %1156
        %1158 = vrot.lane.b32.xlu0 %v1127, 48
        %v1159 = vpop.permute.xlu0 %1158
        %1160 = vrot.lane.b32.xlu0 %v1129, 48
        %v1161 = vpop.permute.xlu0 %1160
        %1162 = vrot.lane.b32.xlu0 %v1131, 48
        %v1163 = vpop.permute.xlu0 %1162
        %1164 = vrot.lane.b32.xlu0 %v1133, 48
        %v1165 = vpop.permute.xlu0 %1164
        %1166 = vrot.lane.b32.xlu0 %v1135, 48
        %v1167 = vpop.permute.xlu0 %1166
        %1168 = vrot.lane.b32.xlu0 %v1137, 48
        %v1169 = vpop.permute.xlu0 %1168
        %v1186 = vrot.slane %v939, 4
        %v1187 = vrot.slane %v893, 4
        %v1188 = vsel %vm564, %v1186, %v1187
        %v1189 = vrot.slane %v895, 4
        %v1190 = vsel %vm564, %v1187, %v1189
        %v1191 = vrot.slane %v897, 4
        %v1192 = vsel %vm564, %v1189, %v1191
        %v1193 = vrot.slane %v899, 4
        %v1194 = vsel %vm564, %v1191, %v1193
        %v1195 = vrot.slane %v901, 4
        %v1196 = vsel %vm564, %v1193, %v1195
        %v1197 = vrot.slane %v903, 4
        %v1198 = vsel %vm564, %v1195, %v1197
        %v1199 = vrot.slane %v905, 4
        %v1200 = vsel %vm564, %v1197, %v1199
        %v1201 = vrot.slane %v907, 4
        %v1202 = vsel %vm564, %v1199, %v1201
        %v1203 = vrot.slane %v909, 4
        %v1204 = vsel %vm564, %v1201, %v1203
        %v1205 = vrot.slane %v911, 4
        %v1206 = vsel %vm564, %v1203, %v1205
        %v1207 = vrot.slane %v913, 4
        %v1208 = vsel %vm564, %v1205, %v1207
        %v1209 = vrot.slane %v915, 4
        %v1210 = vsel %vm564, %v1207, %v1209
        %v1211 = vrot.slane %v917, 4
        %v1212 = vsel %vm564, %v1209, %v1211
        %v1213 = vrot.slane %v919, 4
        %v1214 = vsel %vm564, %v1211, %v1213
        %v1215 = vrot.slane %v921, 4
        %v1216 = vsel %vm564, %v1213, %v1215
        %v1217 = vrot.slane %v940, 4
        %v1218 = vsel %vm564, %v1215, %v1217
        %1219 = vrot.lane.b32.xlu0 %v1188, 64
        %v1220 = vpop.permute.xlu0 %1219
        %1221 = vrot.lane.b32.xlu0 %v1190, 64
        %v1222 = vpop.permute.xlu0 %1221
        %1223 = vrot.lane.b32.xlu0 %v1192, 64
        %v1224 = vpop.permute.xlu0 %1223
        %1225 = vrot.lane.b32.xlu0 %v1194, 64
        %v1226 = vpop.permute.xlu0 %1225
        %1227 = vrot.lane.b32.xlu0 %v1196, 64
        %v1228 = vpop.permute.xlu0 %1227
        %1229 = vrot.lane.b32.xlu0 %v1198, 64
        %v1230 = vpop.permute.xlu0 %1229
        %1231 = vrot.lane.b32.xlu0 %v1200, 64
        %v1232 = vpop.permute.xlu0 %1231
        %1233 = vrot.lane.b32.xlu0 %v1202, 64
        %v1234 = vpop.permute.xlu0 %1233
        %1235 = vrot.lane.b32.xlu0 %v1204, 64
        %v1236 = vpop.permute.xlu0 %1235
        %1237 = vrot.lane.b32.xlu0 %v1206, 64
        %v1238 = vpop.permute.xlu0 %1237
        %1239 = vrot.lane.b32.xlu0 %v1208, 64
        %v1240 = vpop.permute.xlu0 %1239
        %1241 = vrot.lane.b32.xlu0 %v1210, 64
        %v1242 = vpop.permute.xlu0 %1241
        %1243 = vrot.lane.b32.xlu0 %v1212, 64
        %v1244 = vpop.permute.xlu0 %1243
        %1245 = vrot.lane.b32.xlu0 %v1214, 64
        %v1246 = vpop.permute.xlu0 %1245
        %1247 = vrot.lane.b32.xlu0 %v1216, 64
        %v1248 = vpop.permute.xlu0 %1247
        %1249 = vrot.lane.b32.xlu0 %v1218, 64
        %v1250 = vpop.permute.xlu0 %1249
        %vm1267 = vcmask 130048
        %v1268 = vsel %vm1267, %v939, %v977
        %v1269 = vsel %vm1267, %v893, %v979
        %v1270 = vsel %vm1267, %v895, %v981
        %v1271 = vsel %vm1267, %v897, %v983
        %v1272 = vsel %vm1267, %v899, %v985
        %v1273 = vsel %vm1267, %v901, %v987
        %v1274 = vsel %vm1267, %v903, %v989
        %v1275 = vsel %vm1267, %v905, %v991
        %v1276 = vsel %vm1267, %v907, %v993
        %v1277 = vsel %vm1267, %v909, %v995
        %v1278 = vsel %vm1267, %v911, %v997
        %v1279 = vsel %vm1267, %v913, %v999
        %v1280 = vsel %vm1267, %v915, %v1001
        %v1281 = vsel %vm1267, %v917, %v1003
        %v1282 = vsel %vm1267, %v919, %v1005
        %v1283 = vsel %vm1267, %v921, %v1007
        %vm1284 = vcmask 261120
        %v1285 = vsel %vm1284, %v1268, %v1058
        %v1286 = vsel %vm1284, %v1269, %v1060
        %v1287 = vsel %vm1284, %v1270, %v1062
        %v1288 = vsel %vm1284, %v1271, %v1064
        %v1289 = vsel %vm1284, %v1272, %v1066
        %v1290 = vsel %vm1284, %v1273, %v1068
        %v1291 = vsel %vm1284, %v1274, %v1070
        %v1292 = vsel %vm1284, %v1275, %v1072
        %v1293 = vsel %vm1284, %v1276, %v1074
        %v1294 = vsel %vm1284, %v1277, %v1076
        %v1295 = vsel %vm1284, %v1278, %v1078
        %v1296 = vsel %vm1284, %v1279, %v1080
        %v1297 = vsel %vm1284, %v1280, %v1082
        %v1298 = vsel %vm1284, %v1281, %v1084
        %v1299 = vsel %vm1284, %v1282, %v1086
        %v1300 = vsel %vm1284, %v1283, %v1088
        %vm1301 = vcmask 392192
        %v1302 = vsel %vm1301, %v1285, %v1139
        %v1303 = vsel %vm1301, %v1286, %v1141
        %v1304 = vsel %vm1301, %v1287, %v1143
        %v1305 = vsel %vm1301, %v1288, %v1145
        %v1306 = vsel %vm1301, %v1289, %v1147
        %v1307 = vsel %vm1301, %v1290, %v1149
        %v1308 = vsel %vm1301, %v1291, %v1151
        %v1309 = vsel %vm1301, %v1292, %v1153
        %v1310 = vsel %vm1301, %v1293, %v1155
        %v1311 = vsel %vm1301, %v1294, %v1157
        %v1312 = vsel %vm1301, %v1295, %v1159
        %v1313 = vsel %vm1301, %v1296, %v1161
        %v1314 = vsel %vm1301, %v1297, %v1163
        %v1315 = vsel %vm1301, %v1298, %v1165
        %v1316 = vsel %vm1301, %v1299, %v1167
        %v1317 = vsel %vm1301, %v1300, %v1169
        %vm1318 = vcmask 523264
        %v1319 = vsel %vm1318, %v1302, %v1220
        %v1320 = vsel %vm1318, %v1303, %v1222
        %v1321 = vsel %vm1318, %v1304, %v1224
        %v1322 = vsel %vm1318, %v1305, %v1226
        %v1323 = vsel %vm1318, %v1306, %v1228
        %v1324 = vsel %vm1318, %v1307, %v1230
        %v1325 = vsel %vm1318, %v1308, %v1232
        %v1326 = vsel %vm1318, %v1309, %v1234
        %v1327 = vsel %vm1318, %v1310, %v1236
        %v1328 = vsel %vm1318, %v1311, %v1238
        %v1329 = vsel %vm1318, %v1312, %v1240
        %v1330 = vsel %vm1318, %v1313, %v1242
        %v1331 = vsel %vm1318, %v1314, %v1244
        %v1332 = vsel %vm1318, %v1315, %v1246
        %v1333 = vsel %vm1318, %v1316, %v1248
        %v1334 = vsel %vm1318, %v1317, %v1250
        %v1335 = vpack.c.bf16 %v1320, %v1319
        %v1336 = vpack.c.bf16 %v1322, %v1321
        %v1337 = vpack.c.bf16 %v1324, %v1323
        %v1338 = vpack.c.bf16 %v1326, %v1325
        %v1339 = vpack.c.bf16 %v1328, %v1327
        %v1340 = vpack.c.bf16 %v1330, %v1329
        %v1341 = vpack.c.bf16 %v1332, %v1331
        %v1342 = vpack.c.bf16 %v1334, %v1333
        %v1343 = vld [vmem:[#allocation6 + $0x8] sm:$0xf]
        %v1344 = vld [vmem:[#allocation6 + $0xc] sm:$0xf]
        %v1345 = vld [vmem:[#allocation6 + $0x10] sm:$0xf]
        %v1346 = vld [vmem:[#allocation6 + $0x14] sm:$0xf]
        %v1347 = vld [vmem:[#allocation6 + $0x18] sm:$0xf]
        %v1348 = vld [vmem:[#allocation6 + $0x1c] sm:$0xf]
        %v1349 = vld [vmem:[#allocation6 + $0x20] sm:$0xf]
        %v1350 = vld [vmem:[#allocation6 + $0x24] sm:$0xf]
        %v1351 = vld [vmem:[#allocation6 + $0x28] sm:$0xf]
        %v1352 = vld [vmem:[#allocation6 + $0x2c] sm:$0xf]
        %v1353 = vld [vmem:[#allocation8 + $0x1] sm:$0x1]
        %v1354 = vlaneseq
        %v1355 = vshrl.u32 %v1354, 7
        %v1356 = vsub.s32 0, %v1355
        %v1357 = vrot.slane %v1353, %v1356
        %v1368 = vunpack.c.l.b16 %v1343
        %v1369 = vunpack.c.l.b16 %v1344
        %v1370 = vunpack.c.l.b16 %v1345
        %v1371 = vunpack.c.l.b16 %v1346
        %v1372 = vunpack.c.l.b16 %v1347
        %v1373 = vunpack.c.l.b16 %v1348
        %v1374 = vunpack.c.l.b16 %v1349
        %v1375 = vunpack.c.l.b16 %v1350
        %v1376 = vunpack.c.l.b16 %v1351
        %v1377 = vunpack.c.l.b16 %v1352
        %v1378 = vpack.c.b16 %v1369, %v1368
        %v1379 = vpack.c.b16 %v1371, %v1370
        %v1380 = vpack.c.b16 %v1373, %v1372
        %v1381 = vpack.c.b16 %v1375, %v1374
        %v1382 = vpack.c.b16 %v1377, %v1376
        %vm1388 = vcmask 654336
        %v1390 = vsel %vm1388, %v1335, 0
        %v1393 = vsel %vm1388, %v1336, 0
        %v1396 = vsel %vm1388, %v1337, 0
        %v1399 = vsel %vm1388, %v1338, 0
        %v1402 = vsel %vm1388, %v1339, 0
        %v1405 = vsel %vm1388, %v1340, 0
        %v1408 = vsel %vm1388, %v1341, 0
        %v1411 = vsel %vm1388, %v1342, 0
        %1413 = vmatprep.subr.bf16.mxu0 0
        %1414 = vmatpush1.bf16.msra.mxu0 0
        %1415 = vmatprep.subr.bf16.mxu0 0
        %1416 = vmatpush1.bf16.msra.mxu0 0
        %1417 = vmatprep.subr.bf16.mxu0 0
        %1418 = vmatpush1.bf16.msra.mxu0 0
        %1419 = vmatprep.subr.bf16.mxu0 0
        %1420 = vmatpush1.bf16.msra.mxu0 %v1382
        %1421 = vmatprep.subr.bf16.mxu0 0
        %1422 = vmatpush1.bf16.msra.mxu0 %v1381
        %1423 = vmatprep.subr.bf16.mxu0 0
        %1424 = vmatpush1.bf16.msra.mxu0 %v1380
        %1425 = vmatprep.subr.bf16.mxu0 0
        %1426 = vmatpush1.bf16.msra.mxu0 %v1379
        %1427 = vmatprep.subr.bf16.mxu0 0
        %1428 = vmatpush1.bf16.msra.mxu0 %v1378
        %1429 = vmatprep.subr.bf16.mxu0 0
        %1430 = vmatpush2.bf16.msra.mxu0 0
        %1431 = vmatprep.subr.bf16.mxu0 0
        %1432 = vmatpush2.bf16.msra.mxu0 0
        %1433 = vmatprep.subr.bf16.mxu0 0
        %1434 = vmatpush2.bf16.msra.mxu0 0
        %1435 = vmatprep.subr.bf16.mxu0 0
        %1436 = vmatpush2.bf16.msra.mxu0 0
        %1437 = vmatprep.subr.bf16.mxu0 0
        %1438 = vmatpush2.bf16.msra.mxu0 0
        %1439 = vmatprep.subr.bf16.mxu0 0
        %1440 = vmatpush2.bf16.msra.mxu0 0
        %1441 = vmatprep.subr.bf16.mxu0 0
        %1442 = vmatpush2.bf16.msra.mxu0 0
        %1443 = vmatprep.subr.bf16.mxu0 0
        %1444 = vmatpush2.bf16.msra.mxu0 0
        %1445 = vmatprep.mubr.bf16.mxu0 0
        %1446 = vmatmul.mubr.bf16.gmra.mxu0 %v1390
        %v1447 = vpop.f32.mrf.mxu0
        %v1448 = vadd.f32 %v1357, %v1447
        %v1449 = vpop.f32.mrf.mxu0
        %v1450 = vpop.f32.mrf.mxu0
        %v1451 = vadd.f32 %v1357, %v1450
        %v1452 = vpop.f32.mrf.mxu0
        %1453 = vmatprep.mubr.bf16.mxu0 0
        %1454 = vmatmul.mubr.bf16.gmra.mxu0 %v1393
        %v1455 = vpop.f32.mrf.mxu0
        %v1456 = vadd.f32 %v1357, %v1455
        %v1457 = vpop.f32.mrf.mxu0
        %v1458 = vpop.f32.mrf.mxu0
        %v1459 = vadd.f32 %v1357, %v1458
        %v1460 = vpop.f32.mrf.mxu0
        %1461 = vmatprep.mubr.bf16.mxu0 0
        %1462 = vmatmul.mubr.bf16.gmra.mxu0 %v1396
        %v1463 = vpop.f32.mrf.mxu0
        %v1464 = vadd.f32 %v1357, %v1463
        %v1465 = vpop.f32.mrf.mxu0
        %v1466 = vpop.f32.mrf.mxu0
        %v1467 = vadd.f32 %v1357, %v1466
        %v1468 = vpop.f32.mrf.mxu0
        %1469 = vmatprep.mubr.bf16.mxu0 0
        %1470 = vmatmul.mubr.bf16.gmra.mxu0 %v1399
        %v1471 = vpop.f32.mrf.mxu0
        %v1472 = vadd.f32 %v1357, %v1471
        %v1473 = vpop.f32.mrf.mxu0
        %v1474 = vpop.f32.mrf.mxu0
        %v1475 = vadd.f32 %v1357, %v1474
        %v1476 = vpop.f32.mrf.mxu0
        %1477 = vmatprep.mubr.bf16.mxu0 0
        %1478 = vmatmul.mubr.bf16.gmra.mxu0 %v1402
        %v1479 = vpop.f32.mrf.mxu0
        %v1480 = vadd.f32 %v1357, %v1479
        %v1481 = vpop.f32.mrf.mxu0
        %v1482 = vpop.f32.mrf.mxu0
        %v1483 = vadd.f32 %v1357, %v1482
        %v1484 = vpop.f32.mrf.mxu0
        %1485 = vmatprep.mubr.bf16.mxu0 0
        %1486 = vmatmul.mubr.bf16.gmra.mxu0 %v1405
        %v1487 = vpop.f32.mrf.mxu0
        %v1488 = vadd.f32 %v1357, %v1487
        %v1489 = vpop.f32.mrf.mxu0
        %v1490 = vpop.f32.mrf.mxu0
        %v1491 = vadd.f32 %v1357, %v1490
        %v1492 = vpop.f32.mrf.mxu0
        %1493 = vmatprep.mubr.bf16.mxu0 0
        %1494 = vmatmul.mubr.bf16.gmra.mxu0 %v1408
        %v1495 = vpop.f32.mrf.mxu0
        %v1496 = vadd.f32 %v1357, %v1495
        %v1497 = vpop.f32.mrf.mxu0
        %v1498 = vpop.f32.mrf.mxu0
        %v1499 = vadd.f32 %v1357, %v1498
        %v1500 = vpop.f32.mrf.mxu0
        %1501 = vmatprep.mubr.bf16.mxu0 0
        %1502 = vmatmul.mubr.bf16.gmra.mxu0 %v1411
        %v1503 = vpop.f32.mrf.mxu0
        %v1504 = vadd.f32 %v1357, %v1503
        %v1505 = vpop.f32.mrf.mxu0
        %v1506 = vpop.f32.mrf.mxu0
        %v1507 = vadd.f32 %v1357, %v1506
        %v1508 = vpop.f32.mrf.mxu0
        %1509 = vdwg.mxu0
        %v1510 = vmax.f32 %v1448, 0.0
        %v1511 = vmax.f32 %v1451, 0.0
        %v1512 = vmax.f32 %v1456, 0.0
        %v1513 = vmax.f32 %v1459, 0.0
        %v1514 = vmax.f32 %v1464, 0.0
        %v1515 = vmax.f32 %v1467, 0.0
        %v1516 = vmax.f32 %v1472, 0.0
        %v1517 = vmax.f32 %v1475, 0.0
        %v1518 = vmax.f32 %v1480, 0.0
        %v1519 = vmax.f32 %v1483, 0.0
        %v1520 = vmax.f32 %v1488, 0.0
        %v1521 = vmax.f32 %v1491, 0.0
        %v1522 = vmax.f32 %v1496, 0.0
        %v1523 = vmax.f32 %v1499, 0.0
        %v1524 = vmax.f32 %v1504, 0.0
        %v1525 = vmax.f32 %v1507, 0.0
        %v1526 = vlaneseq
        %v1527 = vshrl.u32 %v1526, 7
        %v1528 = vadd.s32 %v1527, 8
        %v1529 = vadd.s32 %v1527, 16
        %v1530 = vadd.s32 %v1527, 24
        %v1531 = vadd.s32 %v1527, 32
        %v1532 = vadd.s32 %v1527, 40
        %v1533 = vadd.s32 %v1527, 48
        %v1534 = vadd.s32 %v1527, 56
        %v1535 = vlaneseq
        %v1536 = vand.u32 %v1535, 127
        %v1537 = vmul.u32 %v1527, 2
        %v1538 = vmul.u32 %v1528, 2
        %v1539 = vmul.u32 %v1529, 2
        %v1540 = vmul.u32 %v1530, 2
        %v1541 = vmul.u32 %v1531, 2
        %v1542 = vmul.u32 %v1532, 2
        %v1543 = vmul.u32 %v1533, 2
        %v1544 = vmul.u32 %v1534, 2
        %vm1545 = vcmp.eq.s32.totalorder %v1536, %v1537
        %vm1546 = vcmp.eq.s32.totalorder %v1536, %v1538
        %vm1547 = vcmp.eq.s32.totalorder %v1536, %v1539
        %vm1548 = vcmp.eq.s32.totalorder %v1536, %v1540
        %vm1549 = vcmp.eq.s32.totalorder %v1536, %v1541
        %vm1550 = vcmp.eq.s32.totalorder %v1536, %v1542
        %vm1551 = vcmp.eq.s32.totalorder %v1536, %v1543
        %vm1552 = vcmp.eq.s32.totalorder %v1536, %v1544
        %v1553 = vadd.s32 %v1537, 1
        %v1554 = vadd.s32 %v1538, 1
        %v1555 = vadd.s32 %v1539, 1
        %v1556 = vadd.s32 %v1540, 1
        %v1557 = vadd.s32 %v1541, 1
        %v1558 = vadd.s32 %v1542, 1
        %v1559 = vadd.s32 %v1543, 1
        %v1560 = vadd.s32 %v1544, 1
        %vm1561 = vcmp.eq.s32.totalorder %v1536, %v1553
        %vm1562 = vcmp.eq.s32.totalorder %v1536, %v1554
        %vm1563 = vcmp.eq.s32.totalorder %v1536, %v1555
        %vm1564 = vcmp.eq.s32.totalorder %v1536, %v1556
        %vm1565 = vcmp.eq.s32.totalorder %v1536, %v1557
        %vm1566 = vcmp.eq.s32.totalorder %v1536, %v1558
        %vm1567 = vcmp.eq.s32.totalorder %v1536, %v1559
        %vm1568 = vcmp.eq.s32.totalorder %v1536, %v1560
        %vm1569 = vmor %vm1545, %vm1561
        %vm1570 = vmor %vm1546, %vm1562
        %vm1571 = vmor %vm1547, %vm1563
        %vm1572 = vmor %vm1548, %vm1564
        %vm1573 = vmor %vm1549, %vm1565
        %vm1574 = vmor %vm1550, %vm1566
        %vm1575 = vmor %vm1551, %vm1567
        %vm1576 = vmor %vm1552, %vm1568
        %v1577 = vsel %vm1569, 0.5, 0.0
        %v1578 = vsel %vm1570, 0.5, 0.0
        %v1579 = vsel %vm1571, 0.5, 0.0
        %v1580 = vsel %vm1572, 0.5, 0.0
        %v1581 = vsel %vm1573, 0.5, 0.0
        %v1582 = vsel %vm1574, 0.5, 0.0
        %v1583 = vsel %vm1575, 0.5, 0.0
        %v1584 = vsel %vm1576, 0.5, 0.0
        %v1585 = vpack.c.bf16 %v1578, %v1577
        %v1586 = vpack.c.bf16 %v1580, %v1579
        %v1587 = vpack.c.bf16 %v1582, %v1581
        %v1588 = vpack.c.bf16 %v1584, %v1583
        %v1589 = vpack.c.bf16 %v1511, %v1510
        %v1590 = vpack.c.bf16 %v1513, %v1512
        %v1591 = vpack.c.bf16 %v1515, %v1514
        %v1592 = vpack.c.bf16 %v1517, %v1516
        %v1593 = vpack.c.bf16 %v1519, %v1518
        %v1594 = vpack.c.bf16 %v1521, %v1520
        %v1595 = vpack.c.bf16 %v1523, %v1522
        %v1596 = vpack.c.bf16 %v1525, %v1524
        %1597 = vmatprep.subr.bf16.mxu0 0
        %1598 = vmatpush1.bf16.msra.mxu0 %v1596
        %1599 = vmatprep.subr.bf16.mxu0 0
        %1600 = vmatpush1.bf16.msra.mxu0 %v1595
        %1601 = vmatprep.subr.bf16.mxu0 0
        %1602 = vmatpush1.bf16.msra.mxu0 %v1594
        %1603 = vmatprep.subr.bf16.mxu0 0
        %1604 = vmatpush1.bf16.msra.mxu0 %v1593
        %1605 = vmatprep.subr.bf16.mxu0 0
        %1606 = vmatpush1.bf16.msra.mxu0 %v1592
        %1607 = vmatprep.subr.bf16.mxu0 0
        %1608 = vmatpush1.bf16.msra.mxu0 %v1591
        %1609 = vmatprep.subr.bf16.mxu0 0
        %1610 = vmatpush1.bf16.msra.mxu0 %v1590
        %1611 = vmatprep.subr.bf16.mxu0 0
        %1612 = vmatpush1.bf16.msra.mxu0 %v1589
        %1613 = vmatprep.subr.bf16.mxu0 0
        %1614 = vmatpush2.bf16.msra.mxu0 0
        %1615 = vmatprep.subr.bf16.mxu0 0
        %1616 = vmatpush2.bf16.msra.mxu0 0
        %1617 = vmatprep.subr.bf16.mxu0 0
        %1618 = vmatpush2.bf16.msra.mxu0 0
        %1619 = vmatprep.subr.bf16.mxu0 0
        %1620 = vmatpush2.bf16.msra.mxu0 0
        %1621 = vmatprep.subr.bf16.mxu0 0
        %1622 = vmatpush2.bf16.msra.mxu0 0
        %1623 = vmatprep.subr.bf16.mxu0 0
        %1624 = vmatpush2.bf16.msra.mxu0 0
        %1625 = vmatprep.subr.bf16.mxu0 0
        %1626 = vmatpush2.bf16.msra.mxu0 0
        %1627 = vmatprep.subr.bf16.mxu0 0
        %1628 = vmatpush2.bf16.msra.mxu0 0
        %1629 = vmatprep.mubr.bf16.mxu0 0
        %1630 = vmatmul.mubr.bf16.gmra.mxu0 %v1585
        %v1631 = vpop.f32.mrf.mxu0
        %v1632 = vadd.f32 0.0, %v1631
        %v1633 = vpop.f32.mrf.mxu0
        %v1634 = vpop.f32.mrf.mxu0
        %v1635 = vadd.f32 0.0, %v1634
        %v1636 = vpop.f32.mrf.mxu0
        %1637 = vmatprep.mubr.bf16.mxu0 0
        %1638 = vmatmul.mubr.bf16.gmra.mxu0 %v1586
        %v1639 = vpop.f32.mrf.mxu0
        %v1640 = vadd.f32 0.0, %v1639
        %v1641 = vpop.f32.mrf.mxu0
        %v1642 = vpop.f32.mrf.mxu0
        %v1643 = vadd.f32 0.0, %v1642
        %v1644 = vpop.f32.mrf.mxu0
        %1645 = vmatprep.mubr.bf16.mxu0 0
        %1646 = vmatmul.mubr.bf16.gmra.mxu0 %v1587
        %v1647 = vpop.f32.mrf.mxu0
        %v1648 = vadd.f32 0.0, %v1647
        %v1649 = vpop.f32.mrf.mxu0
        %v1650 = vpop.f32.mrf.mxu0
        %v1651 = vadd.f32 0.0, %v1650
        %v1652 = vpop.f32.mrf.mxu0
        %1653 = vmatprep.mubr.bf16.mxu0 0
        %1654 = vmatmul.mubr.bf16.gmra.mxu0 %v1588
        %v1655 = vpop.f32.mrf.mxu0
        %v1656 = vadd.f32 0.0, %v1655
        %v1657 = vpop.f32.mrf.mxu0
        %v1658 = vpop.f32.mrf.mxu0
        %v1659 = vadd.f32 0.0, %v1658
        %v1660 = vpop.f32.mrf.mxu0
        %1661 = vdwg.mxu0
        %v1670 = vrot.slane %v1632, 6
        %v1671 = vrot.slane %v1635, 6
        %v1672 = vsel %vm265, %v1670, %v1671
        %v1673 = vrot.slane %v1640, 6
        %v1674 = vsel %vm265, %v1671, %v1673
        %v1675 = vrot.slane %v1643, 6
        %v1676 = vsel %vm265, %v1673, %v1675
        %v1677 = vrot.slane %v1648, 6
        %v1678 = vsel %vm265, %v1675, %v1677
        %v1679 = vrot.slane %v1651, 6
        %v1680 = vsel %vm265, %v1677, %v1679
        %v1681 = vrot.slane %v1656, 6
        %v1682 = vsel %vm265, %v1679, %v1681
        %v1683 = vrot.slane %v1659, 6
        %v1684 = vsel %vm265, %v1681, %v1683
        %v1694 = vsel %vm265, 0.0, %v1670
        %v1695 = vsel %vm265, %v1683, 0.0
        %v1698 = vrot.slane %v1694, 1
        %v1699 = vrot.slane %v1672, 1
        %v1700 = vsel %vm318, %v1698, %v1699
        %v1701 = vrot.slane %v1674, 1
        %v1702 = vsel %vm318, %v1699, %v1701
        %v1703 = vrot.slane %v1676, 1
        %v1704 = vsel %vm318, %v1701, %v1703
        %v1705 = vrot.slane %v1678, 1
        %v1706 = vsel %vm318, %v1703, %v1705
        %v1707 = vrot.slane %v1680, 1
        %v1708 = vsel %vm318, %v1705, %v1707
        %v1709 = vrot.slane %v1682, 1
        %v1710 = vsel %vm318, %v1707, %v1709
        %v1711 = vrot.slane %v1684, 1
        %v1712 = vsel %vm318, %v1709, %v1711
        %v1713 = vrot.slane %v1695, 1
        %v1714 = vsel %vm318, %v1711, %v1713
        %1715 = vrot.lane.b32.xlu0 %v1700, 20
        %v1716 = vpop.permute.xlu0 %1715
        %1717 = vrot.lane.b32.xlu0 %v1702, 20
        %v1718 = vpop.permute.xlu0 %1717
        %1719 = vrot.lane.b32.xlu0 %v1704, 20
        %v1720 = vpop.permute.xlu0 %1719
        %1721 = vrot.lane.b32.xlu0 %v1706, 20
        %v1722 = vpop.permute.xlu0 %1721
        %1723 = vrot.lane.b32.xlu0 %v1708, 20
        %v1724 = vpop.permute.xlu0 %1723
        %1725 = vrot.lane.b32.xlu0 %v1710, 20
        %v1726 = vpop.permute.xlu0 %1725
        %1727 = vrot.lane.b32.xlu0 %v1712, 20
        %v1728 = vpop.permute.xlu0 %1727
        %1729 = vrot.lane.b32.xlu0 %v1714, 20
        %v1730 = vpop.permute.xlu0 %1729
        %v1739 = vrot.slane %v1694, 2
        %v1740 = vrot.slane %v1672, 2
        %v1741 = vsel %vm400, %v1739, %v1740
        %v1742 = vrot.slane %v1674, 2
        %v1743 = vsel %vm400, %v1740, %v1742
        %v1744 = vrot.slane %v1676, 2
        %v1745 = vsel %vm400, %v1742, %v1744
        %v1746 = vrot.slane %v1678, 2
        %v1747 = vsel %vm400, %v1744, %v1746
        %v1748 = vrot.slane %v1680, 2
        %v1749 = vsel %vm400, %v1746, %v1748
        %v1750 = vrot.slane %v1682, 2
        %v1751 = vsel %vm400, %v1748, %v1750
        %v1752 = vrot.slane %v1684, 2
        %v1753 = vsel %vm400, %v1750, %v1752
        %v1754 = vrot.slane %v1695, 2
        %v1755 = vsel %vm400, %v1752, %v1754
        %1756 = vrot.lane.b32.xlu0 %v1741, 40
        %v1757 = vpop.permute.xlu0 %1756
        %1758 = vrot.lane.b32.xlu0 %v1743, 40
        %v1759 = vpop.permute.xlu0 %1758
        %1760 = vrot.lane.b32.xlu0 %v1745, 40
        %v1761 = vpop.permute.xlu0 %1760
        %1762 = vrot.lane.b32.xlu0 %v1747, 40
        %v1763 = vpop.permute.xlu0 %1762
        %1764 = vrot.lane.b32.xlu0 %v1749, 40
        %v1765 = vpop.permute.xlu0 %1764
        %1766 = vrot.lane.b32.xlu0 %v1751, 40
        %v1767 = vpop.permute.xlu0 %1766
        %1768 = vrot.lane.b32.xlu0 %v1753, 40
        %v1769 = vpop.permute.xlu0 %1768
        %1770 = vrot.lane.b32.xlu0 %v1755, 40
        %v1771 = vpop.permute.xlu0 %1770
        %v1780 = vrot.slane %v1694, 3
        %v1781 = vrot.slane %v1672, 3
        %v1782 = vsel %vm482, %v1780, %v1781
        %v1783 = vrot.slane %v1674, 3
        %v1784 = vsel %vm482, %v1781, %v1783
        %v1785 = vrot.slane %v1676, 3
        %v1786 = vsel %vm482, %v1783, %v1785
        %v1787 = vrot.slane %v1678, 3
        %v1788 = vsel %vm482, %v1785, %v1787
        %v1789 = vrot.slane %v1680, 3
        %v1790 = vsel %vm482, %v1787, %v1789
        %v1791 = vrot.slane %v1682, 3
        %v1792 = vsel %vm482, %v1789, %v1791
        %v1793 = vrot.slane %v1684, 3
        %v1794 = vsel %vm482, %v1791, %v1793
        %v1795 = vrot.slane %v1695, 3
        %v1796 = vsel %vm482, %v1793, %v1795
        %1797 = vrot.lane.b32.xlu0 %v1782, 60
        %v1798 = vpop.permute.xlu0 %1797
        %1799 = vrot.lane.b32.xlu0 %v1784, 60
        %v1800 = vpop.permute.xlu0 %1799
        %1801 = vrot.lane.b32.xlu0 %v1786, 60
        %v1802 = vpop.permute.xlu0 %1801
        %1803 = vrot.lane.b32.xlu0 %v1788, 60
        %v1804 = vpop.permute.xlu0 %1803
        %1805 = vrot.lane.b32.xlu0 %v1790, 60
        %v1806 = vpop.permute.xlu0 %1805
        %1807 = vrot.lane.b32.xlu0 %v1792, 60
        %v1808 = vpop.permute.xlu0 %1807
        %1809 = vrot.lane.b32.xlu0 %v1794, 60
        %v1810 = vpop.permute.xlu0 %1809
        %1811 = vrot.lane.b32.xlu0 %v1796, 60
        %v1812 = vpop.permute.xlu0 %1811
        %v1821 = vrot.slane %v1694, 4
        %v1822 = vrot.slane %v1672, 4
        %v1823 = vsel %vm564, %v1821, %v1822
        %v1824 = vrot.slane %v1674, 4
        %v1825 = vsel %vm564, %v1822, %v1824
        %v1826 = vrot.slane %v1676, 4
        %v1827 = vsel %vm564, %v1824, %v1826
        %v1828 = vrot.slane %v1678, 4
        %v1829 = vsel %vm564, %v1826, %v1828
        %v1830 = vrot.slane %v1680, 4
        %v1831 = vsel %vm564, %v1828, %v1830
        %v1832 = vrot.slane %v1682, 4
        %v1833 = vsel %vm564, %v1830, %v1832
        %v1834 = vrot.slane %v1684, 4
        %v1835 = vsel %vm564, %v1832, %v1834
        %v1836 = vrot.slane %v1695, 4
        %v1837 = vsel %vm564, %v1834, %v1836
        %1838 = vrot.lane.b32.xlu0 %v1823, 80
        %v1839 = vpop.permute.xlu0 %1838
        %1840 = vrot.lane.b32.xlu0 %v1825, 80
        %v1841 = vpop.permute.xlu0 %1840
        %1842 = vrot.lane.b32.xlu0 %v1827, 80
        %v1843 = vpop.permute.xlu0 %1842
        %1844 = vrot.lane.b32.xlu0 %v1829, 80
        %v1845 = vpop.permute.xlu0 %1844
        %1846 = vrot.lane.b32.xlu0 %v1831, 80
        %v1847 = vpop.permute.xlu0 %1846
        %1848 = vrot.lane.b32.xlu0 %v1833, 80
        %v1849 = vpop.permute.xlu0 %1848
        %1850 = vrot.lane.b32.xlu0 %v1835, 80
        %v1851 = vpop.permute.xlu0 %1850
        %1852 = vrot.lane.b32.xlu0 %v1837, 80
        %v1853 = vpop.permute.xlu0 %1852
        %vm1862 = vcmask 162816
        %v1863 = vsel %vm1862, %v1694, %v1716
        %v1864 = vsel %vm1862, %v1672, %v1718
        %v1865 = vsel %vm1862, %v1674, %v1720
        %v1866 = vsel %vm1862, %v1676, %v1722
        %v1867 = vsel %vm1862, %v1678, %v1724
        %v1868 = vsel %vm1862, %v1680, %v1726
        %v1869 = vsel %vm1862, %v1682, %v1728
        %v1870 = vsel %vm1862, %v1684, %v1730
        %vm1871 = vcmask 326656
        %v1872 = vsel %vm1871, %v1863, %v1757
        %v1873 = vsel %vm1871, %v1864, %v1759
        %v1874 = vsel %vm1871, %v1865, %v1761
        %v1875 = vsel %vm1871, %v1866, %v1763
        %v1876 = vsel %vm1871, %v1867, %v1765
        %v1877 = vsel %vm1871, %v1868, %v1767
        %v1878 = vsel %vm1871, %v1869, %v1769
        %v1879 = vsel %vm1871, %v1870, %v1771
        %vm1880 = vcmask 490496
        %v1881 = vsel %vm1880, %v1872, %v1798
        %v1882 = vsel %vm1880, %v1873, %v1800
        %v1883 = vsel %vm1880, %v1874, %v1802
        %v1884 = vsel %vm1880, %v1875, %v1804
        %v1885 = vsel %vm1880, %v1876, %v1806
        %v1886 = vsel %vm1880, %v1877, %v1808
        %v1887 = vsel %vm1880, %v1878, %v1810
        %v1888 = vsel %vm1880, %v1879, %v1812
        %v1889 = vsel %vm1388, %v1881, %v1839
        %v1890 = vsel %vm1388, %v1882, %v1841
        %v1891 = vsel %vm1388, %v1883, %v1843
        %v1892 = vsel %vm1388, %v1884, %v1845
        %v1893 = vsel %vm1388, %v1885, %v1847
        %v1894 = vsel %vm1388, %v1886, %v1849
        %v1895 = vsel %vm1388, %v1887, %v1851
        %v1896 = vsel %vm1388, %v1888, %v1853
        %v1897 = vpack.c.bf16 %v1890, %v1889
        %v1898 = vpack.c.bf16 %v1892, %v1891
        %v1899 = vpack.c.bf16 %v1894, %v1893
        %v1900 = vpack.c.bf16 %v1896, %v1895
        %v1901 = vld [vmem:[#allocation6 + $0x30] sm:$0xf]
        %v1902 = vld [vmem:[#allocation6 + $0x34] sm:$0xf]
        %v1903 = vld [vmem:[#allocation6 + $0x38] sm:$0xf]
        %v1904 = vld [vmem:[#allocation6 + $0x3c] sm:$0xf]
        %v1905 = vld [vmem:[#allocation6 + $0x40] sm:$0xf]
        %v1906 = vld [vmem:[#allocation6 + $0x44] sm:$0xf]
        %v1907 = vld [vmem:[#allocation6 + $0x48] sm:$0xf]
        %v1908 = vld [vmem:[#allocation6 + $0x4c] sm:$0xf]
        %v1909 = vld [vmem:[#allocation6 + $0x50] sm:$0xf]
        %v1910 = vld [vmem:[#allocation6 + $0x54] sm:$0xf]
        %v1911 = vld [vmem:[#allocation6 + $0x58] sm:$0xf]
        %v1912 = vld [vmem:[#allocation6 + $0x5c] sm:$0xf]
        %v1913 = vld [vmem:[#allocation6 + $0x60] sm:$0x3]
        %v1914 = vld [vmem:[#allocation8 + $0x2] sm:$0x1]
        %v1915 = vlaneseq
        %v1916 = vshrl.u32 %v1915, 7
        %v1917 = vsub.s32 0, %v1916
        %v1918 = vrot.slane %v1914, %v1917
        %v1932 = vunpack.c.l.b16 %v1901
        %v1933 = vunpack.c.l.b16 %v1902
        %v1934 = vunpack.c.l.b16 %v1903
        %v1935 = vunpack.c.l.b16 %v1904
        %v1936 = vunpack.c.l.b16 %v1905
        %v1937 = vunpack.c.l.b16 %v1906
        %v1938 = vunpack.c.l.b16 %v1907
        %v1939 = vunpack.c.l.b16 %v1908
        %v1940 = vunpack.c.l.b16 %v1909
        %v1941 = vunpack.c.l.b16 %v1910
        %v1942 = vunpack.c.l.b16 %v1911
        %v1943 = vunpack.c.l.b16 %v1912
        %v1944 = vunpack.c.l.b16 %v1913
        %v1945 = vpack.c.b16 %v1933, %v1932
        %v1946 = vpack.c.b16 %v1935, %v1934
        %v1947 = vpack.c.b16 %v1937, %v1936
        %v1948 = vpack.c.b16 %v1939, %v1938
        %v1949 = vpack.c.b16 %v1941, %v1940
        %v1950 = vpack.c.b16 %v1943, %v1942
        %v1951 = vpack.c.b16 %v1944, %v1944
        %vm1958 = vcmask 818176
        %v1960 = vsel %vm1958, %v1897, 0
        %v1963 = vsel %vm1958, %v1898, 0
        %v1966 = vsel %vm1958, %v1899, 0
        %v1969 = vsel %vm1958, %v1900, 0
        %v1972 = vsel %vm265, %v1951, 0
        %1974 = vmatprep.subr.bf16.mxu0 0
        %1975 = vmatpush1.bf16.msra.mxu0 0
        %1976 = vmatprep.subr.bf16.mxu0 0
        %1977 = vmatpush1.bf16.msra.mxu0 %v1972
        %1978 = vmatprep.subr.bf16.mxu0 0
        %1979 = vmatpush1.bf16.msra.mxu0 %v1950
        %1980 = vmatprep.subr.bf16.mxu0 0
        %1981 = vmatpush1.bf16.msra.mxu0 %v1949
        %1982 = vmatprep.subr.bf16.mxu0 0
        %1983 = vmatpush1.bf16.msra.mxu0 %v1948
        %1984 = vmatprep.subr.bf16.mxu0 0
        %1985 = vmatpush1.bf16.msra.mxu0 %v1947
        %1986 = vmatprep.subr.bf16.mxu0 0
        %1987 = vmatpush1.bf16.msra.mxu0 %v1946
        %1988 = vmatprep.subr.bf16.mxu0 0
        %1989 = vmatpush1.bf16.msra.mxu0 %v1945
        %1990 = vmatprep.subr.bf16.mxu0 0
        %1991 = vmatpush2.bf16.msra.mxu0 0
        %1992 = vmatprep.subr.bf16.mxu0 0
        %1993 = vmatpush2.bf16.msra.mxu0 0
        %1994 = vmatprep.subr.bf16.mxu0 0
        %1995 = vmatpush2.bf16.msra.mxu0 0
        %1996 = vmatprep.subr.bf16.mxu0 0
        %1997 = vmatpush2.bf16.msra.mxu0 0
        %1998 = vmatprep.subr.bf16.mxu0 0
        %1999 = vmatpush2.bf16.msra.mxu0 0
        %2000 = vmatprep.subr.bf16.mxu0 0
        %2001 = vmatpush2.bf16.msra.mxu0 0
        %2002 = vmatprep.subr.bf16.mxu0 0
        %2003 = vmatpush2.bf16.msra.mxu0 0
        %2004 = vmatprep.subr.bf16.mxu0 0
        %2005 = vmatpush2.bf16.msra.mxu0 0
        %2006 = vmatprep.mubr.bf16.mxu0 0
        %2007 = vmatmul.mubr.bf16.gmra.mxu0 %v1960
        %v2008 = vpop.f32.mrf.mxu0
        %v2009 = vadd.f32 %v1918, %v2008
        %v2010 = vpop.f32.mrf.mxu0
        %v2011 = vpop.f32.mrf.mxu0
        %v2012 = vadd.f32 %v1918, %v2011
        %v2013 = vpop.f32.mrf.mxu0
        %2014 = vmatprep.mubr.bf16.mxu0 0
        %2015 = vmatmul.mubr.bf16.gmra.mxu0 %v1963
        %v2016 = vpop.f32.mrf.mxu0
        %v2017 = vadd.f32 %v1918, %v2016
        %v2018 = vpop.f32.mrf.mxu0
        %v2019 = vpop.f32.mrf.mxu0
        %v2020 = vadd.f32 %v1918, %v2019
        %v2021 = vpop.f32.mrf.mxu0
        %2022 = vmatprep.mubr.bf16.mxu0 0
        %2023 = vmatmul.mubr.bf16.gmra.mxu0 %v1966
        %v2024 = vpop.f32.mrf.mxu0
        %v2025 = vadd.f32 %v1918, %v2024
        %v2026 = vpop.f32.mrf.mxu0
        %v2027 = vpop.f32.mrf.mxu0
        %v2028 = vadd.f32 %v1918, %v2027
        %v2029 = vpop.f32.mrf.mxu0
        %2030 = vmatprep.mubr.bf16.mxu0 0
        %2031 = vmatmul.mubr.bf16.gmra.mxu0 %v1969
        %v2032 = vpop.f32.mrf.mxu0
        %v2033 = vadd.f32 %v1918, %v2032
        %v2034 = vpop.f32.mrf.mxu0
        %v2035 = vpop.f32.mrf.mxu0
        %v2036 = vadd.f32 %v1918, %v2035
        %v2037 = vpop.f32.mrf.mxu0
        %2038 = vdwg.mxu0
        %v2039 = vmax.f32 %v2009, 0.0
        %v2040 = vmax.f32 %v2012, 0.0
        %v2041 = vmax.f32 %v2017, 0.0
        %v2042 = vmax.f32 %v2020, 0.0
        %v2043 = vmax.f32 %v2025, 0.0
        %v2044 = vmax.f32 %v2028, 0.0
        %v2045 = vmax.f32 %v2033, 0.0
        %v2046 = vmax.f32 %v2036, 0.0
        %v2047 = vpack.c.bf16 %v2040, %v2039
        %v2048 = vpack.c.bf16 %v2042, %v2041
        %v2049 = vpack.c.bf16 %v2044, %v2043
        %v2050 = vpack.c.bf16 %v2046, %v2045
        %v2052 = vsel %vm1318, %v1585, 0
        %v2055 = vsel %vm1318, %v1586, 0
        %2057 = vmatprep.subr.bf16.mxu0 0
        %2058 = vmatpush1.bf16.msra.mxu0 0
        %2059 = vmatprep.subr.bf16.mxu0 0
        %2060 = vmatpush1.bf16.msra.mxu0 0
        %2061 = vmatprep.subr.bf16.mxu0 0
        %2062 = vmatpush1.bf16.msra.mxu0 0
        %2063 = vmatprep.subr.bf16.mxu0 0
        %2064 = vmatpush1.bf16.msra.mxu0 0
        %2065 = vmatprep.subr.bf16.mxu0 0
        %2066 = vmatpush1.bf16.msra.mxu0 %v2050
        %2067 = vmatprep.subr.bf16.mxu0 0
        %2068 = vmatpush1.bf16.msra.mxu0 %v2049
        %2069 = vmatprep.subr.bf16.mxu0 0
        %2070 = vmatpush1.bf16.msra.mxu0 %v2048
        %2071 = vmatprep.subr.bf16.mxu0 0
        %2072 = vmatpush1.bf16.msra.mxu0 %v2047
        %2073 = vmatprep.subr.bf16.mxu0 0
        %2074 = vmatpush2.bf16.msra.mxu0 0
        %2075 = vmatprep.subr.bf16.mxu0 0
        %2076 = vmatpush2.bf16.msra.mxu0 0
        %2077 = vmatprep.subr.bf16.mxu0 0
        %2078 = vmatpush2.bf16.msra.mxu0 0
        %2079 = vmatprep.subr.bf16.mxu0 0
        %2080 = vmatpush2.bf16.msra.mxu0 0
        %2081 = vmatprep.subr.bf16.mxu0 0
        %2082 = vmatpush2.bf16.msra.mxu0 0
        %2083 = vmatprep.subr.bf16.mxu0 0
        %2084 = vmatpush2.bf16.msra.mxu0 0
        %2085 = vmatprep.subr.bf16.mxu0 0
        %2086 = vmatpush2.bf16.msra.mxu0 0
        %2087 = vmatprep.subr.bf16.mxu0 0
        %2088 = vmatpush2.bf16.msra.mxu0 0
        %2089 = vmatprep.mubr.bf16.mxu0 0
        %2090 = vmatmul.mubr.bf16.gmra.mxu0 %v2052
        %v2091 = vpop.f32.mrf.mxu0
        %v2092 = vadd.f32 0.0, %v2091
        %v2093 = vpop.f32.mrf.mxu0
        %v2094 = vpop.f32.mrf.mxu0
        %v2095 = vadd.f32 0.0, %v2094
        %v2096 = vpop.f32.mrf.mxu0
        %2097 = vmatprep.mubr.bf16.mxu0 0
        %2098 = vmatmul.mubr.bf16.gmra.mxu0 %v2055
        %v2099 = vpop.f32.mrf.mxu0
        %v2100 = vadd.f32 0.0, %v2099
        %v2101 = vpop.f32.mrf.mxu0
        %v2102 = vpop.f32.mrf.mxu0
        %v2103 = vadd.f32 0.0, %v2102
        %v2104 = vpop.f32.mrf.mxu0
        %2105 = vdwg.mxu0
        %v2110 = vrot.slane %v2092, 6
        %v2111 = vrot.slane %v2095, 6
        %v2112 = vsel %vm265, %v2110, %v2111
        %v2113 = vrot.slane %v2100, 6
        %v2114 = vsel %vm265, %v2111, %v2113
        %v2115 = vrot.slane %v2103, 6
        %v2116 = vsel %vm265, %v2113, %v2115
        %v2122 = vsel %vm265, 0.0, %v2110
        %v2123 = vsel %vm265, %v2115, 0.0
        %v2126 = vrot.slane %v2122, 1
        %v2127 = vrot.slane %v2112, 1
        %v2128 = vsel %vm318, %v2126, %v2127
        %v2129 = vrot.slane %v2114, 1
        %v2130 = vsel %vm318, %v2127, %v2129
        %v2131 = vrot.slane %v2116, 1
        %v2132 = vsel %vm318, %v2129, %v2131
        %v2133 = vrot.slane %v2123, 1
        %v2134 = vsel %vm318, %v2131, %v2133
        %2135 = vrot.lane.b32.xlu0 %v2128, 24
        %v2136 = vpop.permute.xlu0 %2135
        %2137 = vrot.lane.b32.xlu0 %v2130, 24
        %v2138 = vpop.permute.xlu0 %2137
        %2139 = vrot.lane.b32.xlu0 %v2132, 24
        %v2140 = vpop.permute.xlu0 %2139
        %2141 = vrot.lane.b32.xlu0 %v2134, 24
        %v2142 = vpop.permute.xlu0 %2141
        %v2147 = vrot.slane %v2122, 2
        %v2148 = vrot.slane %v2112, 2
        %v2149 = vsel %vm400, %v2147, %v2148
        %v2150 = vrot.slane %v2114, 2
        %v2151 = vsel %vm400, %v2148, %v2150
        %v2152 = vrot.slane %v2116, 2
        %v2153 = vsel %vm400, %v2150, %v2152
        %v2154 = vrot.slane %v2123, 2
        %v2155 = vsel %vm400, %v2152, %v2154
        %2156 = vrot.lane.b32.xlu0 %v2149, 48
        %v2157 = vpop.permute.xlu0 %2156
        %2158 = vrot.lane.b32.xlu0 %v2151, 48
        %v2159 = vpop.permute.xlu0 %2158
        %2160 = vrot.lane.b32.xlu0 %v2153, 48
        %v2161 = vpop.permute.xlu0 %2160
        %2162 = vrot.lane.b32.xlu0 %v2155, 48
        %v2163 = vpop.permute.xlu0 %2162
        %v2168 = vrot.slane %v2122, 3
        %v2169 = vrot.slane %v2112, 3
        %v2170 = vsel %vm482, %v2168, %v2169
        %v2171 = vrot.slane %v2114, 3
        %v2172 = vsel %vm482, %v2169, %v2171
        %v2173 = vrot.slane %v2116, 3
        %v2174 = vsel %vm482, %v2171, %v2173
        %v2175 = vrot.slane %v2123, 3
        %v2176 = vsel %vm482, %v2173, %v2175
        %2177 = vrot.lane.b32.xlu0 %v2170, 72
        %v2178 = vpop.permute.xlu0 %2177
        %2179 = vrot.lane.b32.xlu0 %v2172, 72
        %v2180 = vpop.permute.xlu0 %2179
        %2181 = vrot.lane.b32.xlu0 %v2174, 72
        %v2182 = vpop.permute.xlu0 %2181
        %2183 = vrot.lane.b32.xlu0 %v2176, 72
        %v2184 = vpop.permute.xlu0 %2183
        %v2189 = vrot.slane %v2122, 4
        %v2190 = vrot.slane %v2112, 4
        %v2191 = vsel %vm564, %v2189, %v2190
        %v2192 = vrot.slane %v2114, 4
        %v2193 = vsel %vm564, %v2190, %v2192
        %v2194 = vrot.slane %v2116, 4
        %v2195 = vsel %vm564, %v2192, %v2194
        %v2196 = vrot.slane %v2123, 4
        %v2197 = vsel %vm564, %v2194, %v2196
        %2198 = vrot.lane.b32.xlu0 %v2191, 96
        %v2199 = vpop.permute.xlu0 %2198
        %2200 = vrot.lane.b32.xlu0 %v2193, 96
        %v2201 = vpop.permute.xlu0 %2200
        %2202 = vrot.lane.b32.xlu0 %v2195, 96
        %v2203 = vpop.permute.xlu0 %2202
        %2204 = vrot.lane.b32.xlu0 %v2197, 96
        %v2205 = vpop.permute.xlu0 %2204
        %vm2210 = vcmask 195584
        %v2211 = vsel %vm2210, %v2122, %v2136
        %v2212 = vsel %vm2210, %v2112, %v2138
        %v2213 = vsel %vm2210, %v2114, %v2140
        %v2214 = vsel %vm2210, %v2116, %v2142
        %v2215 = vsel %vm1301, %v2211, %v2157
        %v2216 = vsel %vm1301, %v2212, %v2159
        %v2217 = vsel %vm1301, %v2213, %v2161
        %v2218 = vsel %vm1301, %v2214, %v2163
        %vm2219 = vcmask 588800
        %v2220 = vsel %vm2219, %v2215, %v2178
        %v2221 = vsel %vm2219, %v2216, %v2180
        %v2222 = vsel %vm2219, %v2217, %v2182
        %v2223 = vsel %vm2219, %v2218, %v2184
        %vm2224 = vcmask 785408
        %v2225 = vsel %vm2224, %v2220, %v2199
        %v2226 = vsel %vm2224, %v2221, %v2201
        %v2227 = vsel %vm2224, %v2222, %v2203
        %v2228 = vsel %vm2224, %v2223, %v2205
        %v2229 = vpack.c.bf16 %v2226, %v2225
        %v2230 = vpack.c.bf16 %v2228, %v2227
        %v2231 = vld [vmem:[#allocation6 + $0x68] sm:$0xf]
        %v2232 = vld [vmem:[#allocation6 + $0x6c] sm:$0xf]
        %v2233 = vld [vmem:[#allocation6 + $0x70] sm:$0xf]
        %v2234 = vld [vmem:[#allocation6 + $0x74] sm:$0xf]
        %v2235 = vld [vmem:[#allocation6 + $0x78] sm:$0xf]
        %v2236 = vld [vmem:[#allocation6 + $0x7c] sm:$0xf]
        %v2237 = vld [vmem:[#allocation6 + $0x80] sm:$0xf]
        %v2238 = vld [vmem:[#allocation6 + $0x84] sm:$0xf]
        %v2239 = vld [vmem:[#allocation6 + $0x88] sm:$0xf]
        %v2240 = vld [vmem:[#allocation6 + $0x8c] sm:$0xf]
        %v2241 = vld [vmem:[#allocation6 + $0x90] sm:$0xf]
        %v2242 = vld [vmem:[#allocation6 + $0x94] sm:$0xf]
        %v2243 = vld [vmem:[#allocation6 + $0x98] sm:$0xf]
        %v2244 = vld [vmem:[#allocation6 + $0x9c] sm:$0xf]
        %v2245 = vld [vmem:[#allocation6 + $0xa0] sm:$0xf]
        %v2246 = vld [vmem:[#allocation8 + $0x3] sm:$0x1]
        %v2247 = vlaneseq
        %v2248 = vshrl.u32 %v2247, 7
        %v2249 = vsub.s32 0, %v2248
        %v2250 = vrot.slane %v2246, %v2249
        %v2266 = vunpack.c.l.b16 %v2231
        %v2267 = vunpack.c.l.b16 %v2232
        %v2268 = vunpack.c.l.b16 %v2233
        %v2269 = vunpack.c.l.b16 %v2234
        %v2270 = vunpack.c.l.b16 %v2235
        %v2271 = vunpack.c.l.b16 %v2236
        %v2272 = vunpack.c.l.b16 %v2237
        %v2273 = vunpack.c.l.b16 %v2238
        %v2274 = vunpack.c.l.b16 %v2239
        %v2275 = vunpack.c.l.b16 %v2240
        %v2276 = vunpack.c.l.b16 %v2241
        %v2277 = vunpack.c.l.b16 %v2242
        %v2278 = vunpack.c.l.b16 %v2243
        %v2279 = vunpack.c.l.b16 %v2244
        %v2280 = vunpack.c.l.b16 %v2245
        %v2281 = vpack.c.b16 %v2267, %v2266
        %v2282 = vpack.c.b16 %v2269, %v2268
        %v2283 = vpack.c.b16 %v2271, %v2270
        %v2284 = vpack.c.b16 %v2273, %v2272
        %v2285 = vpack.c.b16 %v2275, %v2274
        %v2286 = vpack.c.b16 %v2277, %v2276
        %v2287 = vpack.c.b16 %v2279, %v2278
        %v2288 = vpack.c.b16 %v2280, %v2280
        %vm2296 = vcmask 982016
        %v2298 = vsel %vm2296, %v2229, 0
        %v2301 = vsel %vm2296, %v2230, 0
        %v2304 = vsel %vm564, %v2288, 0
        %2306 = vmatprep.subr.bf16.mxu0 0
        %2307 = vmatpush1.bf16.msra.mxu0 %v2304
        %2308 = vmatprep.subr.bf16.mxu0 0
        %2309 = vmatpush1.bf16.msra.mxu0 %v2287
        %2310 = vmatprep.subr.bf16.mxu0 0
        %2311 = vmatpush1.bf16.msra.mxu0 %v2286
        %2312 = vmatprep.subr.bf16.mxu0 0
        %2313 = vmatpush1.bf16.msra.mxu0 %v2285
        %2314 = vmatprep.subr.bf16.mxu0 0
        %2315 = vmatpush1.bf16.msra.mxu0 %v2284
        %2316 = vmatprep.subr.bf16.mxu0 0
        %2317 = vmatpush1.bf16.msra.mxu0 %v2283
        %2318 = vmatprep.subr.bf16.mxu0 0
        %2319 = vmatpush1.bf16.msra.mxu0 %v2282
        %2320 = vmatprep.subr.bf16.mxu0 0
        %2321 = vmatpush1.bf16.msra.mxu0 %v2281
        %2322 = vmatprep.subr.bf16.mxu0 0
        %2323 = vmatpush2.bf16.msra.mxu0 0
        %2324 = vmatprep.subr.bf16.mxu0 0
        %2325 = vmatpush2.bf16.msra.mxu0 0
        %2326 = vmatprep.subr.bf16.mxu0 0
        %2327 = vmatpush2.bf16.msra.mxu0 0
        %2328 = vmatprep.subr.bf16.mxu0 0
        %2329 = vmatpush2.bf16.msra.mxu0 0
        %2330 = vmatprep.subr.bf16.mxu0 0
        %2331 = vmatpush2.bf16.msra.mxu0 0
        %2332 = vmatprep.subr.bf16.mxu0 0
        %2333 = vmatpush2.bf16.msra.mxu0 0
        %2334 = vmatprep.subr.bf16.mxu0 0
        %2335 = vmatpush2.bf16.msra.mxu0 0
        %2336 = vmatprep.subr.bf16.mxu0 0
        %2337 = vmatpush2.bf16.msra.mxu0 0
        %2338 = vmatprep.mubr.bf16.mxu0 0
        %2339 = vmatmul.mubr.bf16.gmra.mxu0 %v2298
        %v2340 = vpop.f32.mrf.mxu0
        %v2341 = vadd.f32 %v2250, %v2340
        %v2342 = vpop.f32.mrf.mxu0
        %v2343 = vpop.f32.mrf.mxu0
        %v2344 = vadd.f32 %v2250, %v2343
        %v2345 = vpop.f32.mrf.mxu0
        %2346 = vmatprep.mubr.bf16.mxu0 0
        %2347 = vmatmul.mubr.bf16.gmra.mxu0 %v2301
        %v2348 = vpop.f32.mrf.mxu0
        %v2349 = vadd.f32 %v2250, %v2348
        %v2350 = vpop.f32.mrf.mxu0
        %v2351 = vpop.f32.mrf.mxu0
        %v2352 = vadd.f32 %v2250, %v2351
        %v2353 = vpop.f32.mrf.mxu0
        %2354 = vdwg.mxu0
        %v2355 = vmax.f32 %v2341, 0.0
        %v2356 = vmax.f32 %v2344, 0.0
        %v2357 = vmax.f32 %v2349, 0.0
        %v2358 = vmax.f32 %v2352, 0.0
        %v2359 = vpack.c.bf16 %v2356, %v2355
        %v2360 = vpack.c.bf16 %v2358, %v2357
        %v2361 = vsel %vm1284, %v1585, 0
        %2363 = vmatprep.subr.bf16.mxu0 0
        %2364 = vmatpush1.bf16.msra.mxu0 0
        %2365 = vmatprep.subr.bf16.mxu0 0
        %2366 = vmatpush1.bf16.msra.mxu0 0
        %2367 = vmatprep.subr.bf16.mxu0 0
        %2368 = vmatpush1.bf16.msra.mxu0 0
        %2369 = vmatprep.subr.bf16.mxu0 0
        %2370 = vmatpush1.bf16.msra.mxu0 0
        %2371 = vmatprep.subr.bf16.mxu0 0
        %2372 = vmatpush1.bf16.msra.mxu0 0
        %2373 = vmatprep.subr.bf16.mxu0 0
        %2374 = vmatpush1.bf16.msra.mxu0 0
        %2375 = vmatprep.subr.bf16.mxu0 0
        %2376 = vmatpush1.bf16.msra.mxu0 %v2360
        %2377 = vmatprep.subr.bf16.mxu0 0
        %2378 = vmatpush1.bf16.msra.mxu0 %v2359
        %2379 = vmatprep.subr.bf16.mxu0 0
        %2380 = vmatpush2.bf16.msra.mxu0 0
        %2381 = vmatprep.subr.bf16.mxu0 0
        %2382 = vmatpush2.bf16.msra.mxu0 0
        %2383 = vmatprep.subr.bf16.mxu0 0
        %2384 = vmatpush2.bf16.msra.mxu0 0
        %2385 = vmatprep.subr.bf16.mxu0 0
        %2386 = vmatpush2.bf16.msra.mxu0 0
        %2387 = vmatprep.subr.bf16.mxu0 0
        %2388 = vmatpush2.bf16.msra.mxu0 0
        %2389 = vmatprep.subr.bf16.mxu0 0
        %2390 = vmatpush2.bf16.msra.mxu0 0
        %2391 = vmatprep.subr.bf16.mxu0 0
        %2392 = vmatpush2.bf16.msra.mxu0 0
        %2393 = vmatprep.subr.bf16.mxu0 0
        %2394 = vmatpush2.bf16.msra.mxu0 0
        %2395 = vmatprep.mubr.bf16.mxu0 0
        %2396 = vmatmul.mubr.bf16.gmra.mxu0 %v2361
        %v2397 = vpop.f32.mrf.mxu0
        %v2398 = vadd.f32 0.0, %v2397
        %v2399 = vpop.f32.mrf.mxu0
        %v2400 = vpop.f32.mrf.mxu0
        %v2401 = vadd.f32 0.0, %v2400
        %v2402 = vpop.f32.mrf.mxu0
        %2403 = vdwg.mxu0
        %v2406 = vrot.slane %v2398, 6
        %v2407 = vrot.slane %v2401, 6
        %v2408 = vsel %vm265, %v2406, %v2407
        %v2412 = vsel %vm265, 0.0, %v2406
        %v2413 = vsel %vm265, %v2407, 0.0
        %v2416 = vrot.slane %v2412, 1
        %v2417 = vrot.slane %v2408, 1
        %v2418 = vsel %vm318, %v2416, %v2417
        %v2419 = vrot.slane %v2413, 1
        %v2420 = vsel %vm318, %v2417, %v2419
        %2421 = vrot.lane.b32.xlu0 %v2418, 28
        %v2422 = vpop.permute.xlu0 %2421
        %2423 = vrot.lane.b32.xlu0 %v2420, 28
        %v2424 = vpop.permute.xlu0 %2423
        %v2427 = vrot.slane %v2412, 2
        %v2428 = vrot.slane %v2408, 2
        %v2429 = vsel %vm400, %v2427, %v2428
        %v2430 = vrot.slane %v2413, 2
        %v2431 = vsel %vm400, %v2428, %v2430
        %2432 = vrot.lane.b32.xlu0 %v2429, 56
        %v2433 = vpop.permute.xlu0 %2432
        %2434 = vrot.lane.b32.xlu0 %v2431, 56
        %v2435 = vpop.permute.xlu0 %2434
        %v2438 = vrot.slane %v2412, 3
        %v2439 = vrot.slane %v2408, 3
        %v2440 = vsel %vm482, %v2438, %v2439
        %v2441 = vrot.slane %v2413, 3
        %v2442 = vsel %vm482, %v2439, %v2441
        %2443 = vrot.lane.b32.xlu0 %v2440, 84
        %v2444 = vpop.permute.xlu0 %2443
        %2445 = vrot.lane.b32.xlu0 %v2442, 84
        %v2446 = vpop.permute.xlu0 %2445
        %v2449 = vrot.slane %v2412, 4
        %v2450 = vrot.slane %v2408, 4
        %v2451 = vsel %vm564, %v2449, %v2450
        %v2452 = vrot.slane %v2413, 4
        %v2453 = vsel %vm564, %v2450, %v2452
        %2454 = vrot.lane.b32.xlu0 %v2451, 112
        %v2455 = vpop.permute.xlu0 %2454
        %2456 = vrot.lane.b32.xlu0 %v2453, 112
        %v2457 = vpop.permute.xlu0 %2456
        %vm2460 = vcmask 228352
        %v2461 = vsel %vm2460, %v2412, %v2422
        %v2462 = vsel %vm2460, %v2408, %v2424
        %vm2463 = vcmask 457728
        %v2464 = vsel %vm2463, %v2461, %v2433
        %v2465 = vsel %vm2463, %v2462, %v2435
        %vm2466 = vcmask 687104
        %v2467 = vsel %vm2466, %v2464, %v2444
        %v2468 = vsel %vm2466, %v2465, %v2446
        %vm2469 = vcmask 916480
        %v2470 = vsel %vm2469, %v2467, %v2455
        %v2471 = vsel %vm2469, %v2468, %v2457
        %v2472 = vpack.c.bf16 %v2471, %v2470
        %v2473 = vpack.c.bf16 %v2457, %v2455
        %v2474 = vld [vmem:[#allocation6 + $0xa8] sm:$0xf]
        %v2475 = vld [vmem:[#allocation6 + $0xac] sm:$0xf]
        %v2476 = vld [vmem:[#allocation6 + $0xb0] sm:$0xf]
        %v2477 = vld [vmem:[#allocation6 + $0xb4] sm:$0xf]
        %v2478 = vld [vmem:[#allocation6 + $0xb8] sm:$0xf]
        %v2479 = vld [vmem:[#allocation6 + $0xbc] sm:$0xf]
        %v2480 = vld [vmem:[#allocation6 + $0xc0] sm:$0xf]
        %v2481 = vld [vmem:[#allocation6 + $0xc4] sm:$0xf]
        %v2482 = vld [vmem:[#allocation6 + $0xc8] sm:$0xf]
        %v2483 = vld [vmem:[#allocation6 + $0xcc] sm:$0xf]
        %v2484 = vld [vmem:[#allocation6 + $0xd0] sm:$0xf]
        %v2485 = vld [vmem:[#allocation6 + $0xd4] sm:$0xf]
        %v2486 = vld [vmem:[#allocation6 + $0xd8] sm:$0xf]
        %v2487 = vld [vmem:[#allocation6 + $0xdc] sm:$0xf]
        %v2488 = vld [vmem:[#allocation6 + $0xe0] sm:$0xf]
        %v2489 = vld [vmem:[#allocation6 + $0xe4] sm:$0xf]
        %v2490 = vld [vmem:[#allocation6 + $0xe8] sm:$0xf]
        %v2491 = vld [vmem:[#allocation6 + $0xec] sm:$0x3]
        %v2492 = vld [vmem:[#allocation8 + $0x4] sm:$0x1]
        %v2493 = vlaneseq
        %v2494 = vshrl.u32 %v2493, 7
        %v2495 = vsub.s32 0, %v2494
        %v2496 = vrot.slane %v2492, %v2495
        %v2515 = vunpack.c.l.b16 %v2474
        %v2516 = vunpack.c.l.b16 %v2475
        %v2517 = vunpack.c.l.b16 %v2476
        %v2518 = vunpack.c.l.b16 %v2477
        %v2519 = vunpack.c.l.b16 %v2478
        %v2520 = vunpack.c.l.b16 %v2479
        %v2521 = vunpack.c.l.b16 %v2480
        %v2522 = vunpack.c.l.b16 %v2481
        %v2523 = vunpack.c.l.b16 %v2482
        %v2524 = vunpack.c.l.b16 %v2483
        %v2525 = vunpack.c.l.b16 %v2484
        %v2526 = vunpack.c.l.b16 %v2485
        %v2527 = vunpack.c.l.b16 %v2486
        %v2528 = vunpack.c.l.b16 %v2487
        %v2529 = vunpack.c.l.b16 %v2488
        %v2530 = vunpack.c.l.b16 %v2489
        %v2531 = vunpack.c.l.b16 %v2490
        %v2532 = vunpack.c.l.b16 %v2491
        %v2533 = vpack.c.b16 %v2516, %v2515
        %v2534 = vpack.c.b16 %v2518, %v2517
        %v2535 = vpack.c.b16 %v2520, %v2519
        %v2536 = vpack.c.b16 %v2522, %v2521
        %v2537 = vpack.c.b16 %v2524, %v2523
        %v2538 = vpack.c.b16 %v2526, %v2525
        %v2539 = vpack.c.b16 %v2528, %v2527
        %v2540 = vpack.c.b16 %v2530, %v2529
        %v2541 = vpack.c.b16 %v2532, %v2531
        %vm2550 = vcmask 97280
        %v2552 = vsel %vm2550, %v2473, 0
        %v2555 = vsel %vm400, %v2541, 0
        %2557 = vmatprep.subr.bf16.mxu0 0
        %2558 = vmatpush1.bf16.msra.mxu0 %v2540
        %2559 = vmatprep.subr.bf16.mxu0 0
        %2560 = vmatpush1.bf16.msra.mxu0 %v2539
        %2561 = vmatprep.subr.bf16.mxu0 0
        %2562 = vmatpush1.bf16.msra.mxu0 %v2538
        %2563 = vmatprep.subr.bf16.mxu0 0
        %2564 = vmatpush1.bf16.msra.mxu0 %v2537
        %2565 = vmatprep.subr.bf16.mxu0 0
        %2566 = vmatpush1.bf16.msra.mxu0 %v2536
        %2567 = vmatprep.subr.bf16.mxu0 0
        %2568 = vmatpush1.bf16.msra.mxu0 %v2535
        %2569 = vmatprep.subr.bf16.mxu0 0
        %2570 = vmatpush1.bf16.msra.mxu0 %v2534
        %2571 = vmatprep.subr.bf16.mxu0 0
        %2572 = vmatpush1.bf16.msra.mxu0 %v2533
        %2573 = vmatprep.subr.bf16.mxu0 0
        %2574 = vmatpush2.bf16.msra.mxu0 0
        %2575 = vmatprep.subr.bf16.mxu0 0
        %2576 = vmatpush2.bf16.msra.mxu0 0
        %2577 = vmatprep.subr.bf16.mxu0 0
        %2578 = vmatpush2.bf16.msra.mxu0 0
        %2579 = vmatprep.subr.bf16.mxu0 0
        %2580 = vmatpush2.bf16.msra.mxu0 0
        %2581 = vmatprep.subr.bf16.mxu0 0
        %2582 = vmatpush2.bf16.msra.mxu0 0
        %2583 = vmatprep.subr.bf16.mxu0 0
        %2584 = vmatpush2.bf16.msra.mxu0 0
        %2585 = vmatprep.subr.bf16.mxu0 0
        %2586 = vmatpush2.bf16.msra.mxu0 0
        %2587 = vmatprep.subr.bf16.mxu0 0
        %2588 = vmatpush2.bf16.msra.mxu0 %v2555
        %2589 = vmatprep.mubr.bf16.mxu0 %v2552
        %2590 = vmatmul.mubr.bf16.gmra.mxu0 %v2472
        %v2591 = vpop.f32.mrf.mxu0
        %v2592 = vadd.f32 %v2496, %v2591
        %v2593 = vpop.f32.mrf.mxu0
        %v2594 = vpop.f32.mrf.mxu0
        %v2595 = vadd.f32 %v2496, %v2594
        %v2596 = vpop.f32.mrf.mxu0
        %2597 = vdwg.mxu0
        %v2598 = vmax.f32 %v2592, 0.0
        %v2599 = vmax.f32 %v2595, 0.0
        %v2600 = vpack.c.bf16 %v1577, %v1577
        %v2601 = vpack.c.bf16 %v2599, %v2598
        %v2603 = vsel %vm1267, %v2600, 0
        %2605 = vmatprep.subr.bf16.mxu0 0
        %2606 = vmatpush1.bf16.msra.mxu0 0
        %2607 = vmatprep.subr.bf16.mxu0 0
        %2608 = vmatpush1.bf16.msra.mxu0 0
        %2609 = vmatprep.subr.bf16.mxu0 0
        %2610 = vmatpush1.bf16.msra.mxu0 0
        %2611 = vmatprep.subr.bf16.mxu0 0
        %2612 = vmatpush1.bf16.msra.mxu0 0
        %2613 = vmatprep.subr.bf16.mxu0 0
        %2614 = vmatpush1.bf16.msra.mxu0 0
        %2615 = vmatprep.subr.bf16.mxu0 0
        %2616 = vmatpush1.bf16.msra.mxu0 0
        %2617 = vmatprep.subr.bf16.mxu0 0
        %2618 = vmatpush1.bf16.msra.mxu0 0
        %2619 = vmatprep.subr.bf16.mxu0 0
        %2620 = vmatpush1.bf16.msra.mxu0 %v2601
        %2621 = vmatprep.subr.bf16.mxu0 0
        %2622 = vmatpush2.bf16.msra.mxu0 0
        %2623 = vmatprep.subr.bf16.mxu0 0
        %2624 = vmatpush2.bf16.msra.mxu0 0
        %2625 = vmatprep.subr.bf16.mxu0 0
        %2626 = vmatpush2.bf16.msra.mxu0 0
        %2627 = vmatprep.subr.bf16.mxu0 0
        %2628 = vmatpush2.bf16.msra.mxu0 0
        %2629 = vmatprep.subr.bf16.mxu0 0
        %2630 = vmatpush2.bf16.msra.mxu0 0
        %2631 = vmatprep.subr.bf16.mxu0 0
        %2632 = vmatpush2.bf16.msra.mxu0 0
        %2633 = vmatprep.subr.bf16.mxu0 0
        %2634 = vmatpush2.bf16.msra.mxu0 0
        %2635 = vmatprep.subr.bf16.mxu0 0
        %2636 = vmatpush2.bf16.msra.mxu0 0
        %2637 = vmatprep.mubr.bf16.mxu0 0
        %2638 = vmatmul.mubr.bf16.gmra.mxu0 %v2603
        %v2639 = vpop.f32.mrf.mxu0
        %v2640 = vadd.f32 0.0, %v2639
        %v2641 = vpop.f32.mrf.mxu0
        %v2642 = vpop.f32.mrf.mxu0
        %v2643 = vpop.f32.mrf.mxu0
        %2644 = vdwg.mxu0
        %v2646 = vrot.slane %v2640, 6
        %v2648 = vsel %vm265, 0.0, %v2646
        %v2649 = vsel %vm265, %v2646, 0.0
        %v2652 = vrot.slane %v2648, 1
        %v2653 = vrot.slane %v2649, 1
        %v2654 = vsel %vm318, %v2652, %v2653
        %2655 = vrot.lane.b32.xlu0 %v2654, 32
        %v2656 = vpop.permute.xlu0 %2655
        %v2658 = vrot.slane %v2648, 2
        %v2659 = vrot.slane %v2649, 2
        %v2660 = vsel %vm400, %v2658, %v2659
        %2661 = vrot.lane.b32.xlu0 %v2660, 64
        %v2662 = vpop.permute.xlu0 %2661
        %v2664 = vrot.slane %v2648, 3
        %v2665 = vrot.slane %v2649, 3
        %v2666 = vsel %vm482, %v2664, %v2665
        %2667 = vrot.lane.b32.xlu0 %v2666, 96
        %v2668 = vpop.permute.xlu0 %2667
        %v2670 = vrot.slane %v2648, 4
        %v2671 = vrot.slane %v2649, 4
        %v2672 = vsel %vm564, %v2670, %v2671
        %v2674 = vsel %vm1284, %v2648, %v2656
        %v2675 = vsel %vm1318, %v2674, %v2662
        %v2676 = vsel %vm2224, %v2675, %v2668
        %v2677 = vpack.c.bf16 %v2676, %v2676
        %v2678 = vpack.c.bf16 %v2672, %v2672
        %v2679 = vld [vmem:[#allocation6 + $0xf0] sm:$0xf]
        %v2680 = vld [vmem:[#allocation6 + $0xf4] sm:$0xf]
        %v2681 = vld [vmem:[#allocation6 + $0xf8] sm:$0xf]
        %v2682 = vld [vmem:[#allocation6 + $0xfc] sm:$0xf]
        %v2683 = vld [vmem:[#allocation6 + $0x100] sm:$0xf]
        %v2684 = vld [vmem:[#allocation6 + $0x104] sm:$0xf]
        %v2685 = vld [vmem:[#allocation6 + $0x108] sm:$0xf]
        %v2686 = vld [vmem:[#allocation6 + $0x10c] sm:$0xf]
        %v2687 = vld [vmem:[#allocation6 + $0x110] sm:$0xf]
        %v2688 = vld [vmem:[#allocation6 + $0x114] sm:$0xf]
        %v2689 = vld [vmem:[#allocation6 + $0x118] sm:$0xf]
        %v2690 = vld [vmem:[#allocation6 + $0x11c] sm:$0xf]
        %v2691 = vld [vmem:[#allocation6 + $0x120] sm:$0xf]
        %v2692 = vld [vmem:[#allocation6 + $0x124] sm:$0xf]
        %v2693 = vld [vmem:[#allocation6 + $0x128] sm:$0xf]
        %v2694 = vld [vmem:[#allocation6 + $0x12c] sm:$0xf]
        %v2695 = vld [vmem:[#allocation6 + $0x130] sm:$0xf]
        %v2696 = vld [vmem:[#allocation6 + $0x134] sm:$0xf]
        %v2697 = vld [vmem:[#allocation6 + $0x138] sm:$0xf]
        %v2698 = vld [vmem:[#allocation6 + $0x13c] sm:$0xf]
        %v2699 = vld [vmem:[#allocation8 + $0x5] sm:$0x1]
        %v2700 = vlaneseq
        %v2701 = vshrl.u32 %v2700, 7
        %v2702 = vsub.s32 0, %v2701
        %v2703 = vrot.slane %v2699, %v2702
        %v2724 = vunpack.c.l.b16 %v2679
        %v2725 = vunpack.c.l.b16 %v2680
        %v2726 = vunpack.c.l.b16 %v2681
        %v2727 = vunpack.c.l.b16 %v2682
        %v2728 = vunpack.c.l.b16 %v2683
        %v2729 = vunpack.c.l.b16 %v2684
        %v2730 = vunpack.c.l.b16 %v2685
        %v2731 = vunpack.c.l.b16 %v2686
        %v2732 = vunpack.c.l.b16 %v2687
        %v2733 = vunpack.c.l.b16 %v2688
        %v2734 = vunpack.c.l.b16 %v2689
        %v2735 = vunpack.c.l.b16 %v2690
        %v2736 = vunpack.c.l.b16 %v2691
        %v2737 = vunpack.c.l.b16 %v2692
        %v2738 = vunpack.c.l.b16 %v2693
        %v2739 = vunpack.c.l.b16 %v2694
        %v2740 = vunpack.c.l.b16 %v2695
        %v2741 = vunpack.c.l.b16 %v2696
        %v2742 = vunpack.c.l.b16 %v2697
        %v2743 = vunpack.c.l.b16 %v2698
        %v2744 = vpack.c.b16 %v2725, %v2724
        %v2745 = vpack.c.b16 %v2727, %v2726
        %v2746 = vpack.c.b16 %v2729, %v2728
        %v2747 = vpack.c.b16 %v2731, %v2730
        %v2748 = vpack.c.b16 %v2733, %v2732
        %v2749 = vpack.c.b16 %v2735, %v2734
        %v2750 = vpack.c.b16 %v2737, %v2736
        %v2751 = vpack.c.b16 %v2739, %v2738
        %v2752 = vpack.c.b16 %v2741, %v2740
        %v2753 = vpack.c.b16 %v2743, %v2742
        %v2765 = vsel %vm1284, %v2678, 0
        %2767 = vmatprep.subr.bf16.mxu0 0
        %2768 = vmatpush1.bf16.msra.mxu0 %v2751
        %2769 = vmatprep.subr.bf16.mxu0 0
        %2770 = vmatpush1.bf16.msra.mxu0 %v2750
        %2771 = vmatprep.subr.bf16.mxu0 0
        %2772 = vmatpush1.bf16.msra.mxu0 %v2749
        %2773 = vmatprep.subr.bf16.mxu0 0
        %2774 = vmatpush1.bf16.msra.mxu0 %v2748
        %2775 = vmatprep.subr.bf16.mxu0 0
        %2776 = vmatpush1.bf16.msra.mxu0 %v2747
        %2777 = vmatprep.subr.bf16.mxu0 0
        %2778 = vmatpush1.bf16.msra.mxu0 %v2746
        %2779 = vmatprep.subr.bf16.mxu0 0
        %2780 = vmatpush1.bf16.msra.mxu0 %v2745
        %2781 = vmatprep.subr.bf16.mxu0 0
        %2782 = vmatpush1.bf16.msra.mxu0 %v2744
        %2783 = vmatprep.subr.bf16.mxu0 0
        %2784 = vmatpush2.bf16.msra.mxu0 0
        %2785 = vmatprep.subr.bf16.mxu0 0
        %2786 = vmatpush2.bf16.msra.mxu0 0
        %2787 = vmatprep.subr.bf16.mxu0 0
        %2788 = vmatpush2.bf16.msra.mxu0 0
        %2789 = vmatprep.subr.bf16.mxu0 0
        %2790 = vmatpush2.bf16.msra.mxu0 0
        %2791 = vmatprep.subr.bf16.mxu0 0
        %2792 = vmatpush2.bf16.msra.mxu0 0
        %2793 = vmatprep.subr.bf16.mxu0 0
        %2794 = vmatpush2.bf16.msra.mxu0 0
        %2795 = vmatprep.subr.bf16.mxu0 0
        %2796 = vmatpush2.bf16.msra.mxu0 %v2753
        %2797 = vmatprep.subr.bf16.mxu0 0
        %2798 = vmatpush2.bf16.msra.mxu0 %v2752
        %2799 = vmatprep.mubr.bf16.mxu0 %v2765
        %2800 = vmatmul.mubr.bf16.gmra.mxu0 %v2677
        %v2801 = vpop.f32.mrf.mxu0
        %v2802 = vadd.f32 %v2703, %v2801
        %v2803 = vpop.f32.mrf.mxu0
        %v2804 = vpop.f32.mrf.mxu0
        %v2805 = vpop.f32.mrf.mxu0
        %2806 = vdwg.mxu0
        %v2807 = vmax.f32 %v2802, 0.0
        %v2808 = vpack.c.bf16 %v2807, %v2807
        %v2809 = vsel %vm697, %v2600, 0
        %v2812 = vsel %vm564, %v2808, 0
        %2814 = vmatprep.subr.bf16.mxu0 0
        %2815 = vmatpush1.bf16.msra.mxu0 0
        %2816 = vmatprep.subr.bf16.mxu0 0
        %2817 = vmatpush1.bf16.msra.mxu0 0
        %2818 = vmatprep.subr.bf16.mxu0 0
        %2819 = vmatpush1.bf16.msra.mxu0 0
        %2820 = vmatprep.subr.bf16.mxu0 0
        %2821 = vmatpush1.bf16.msra.mxu0 0
        %2822 = vmatprep.subr.bf16.mxu0 0
        %2823 = vmatpush1.bf16.msra.mxu0 0
        %2824 = vmatprep.subr.bf16.mxu0 0
        %2825 = vmatpush1.bf16.msra.mxu0 0
        %2826 = vmatprep.subr.bf16.mxu0 0
        %2827 = vmatpush1.bf16.msra.mxu0 0
        %2828 = vmatprep.subr.bf16.mxu0 0
        %2829 = vmatpush1.bf16.msra.mxu0 %v2812
        %2830 = vmatprep.subr.bf16.mxu0 0
        %2831 = vmatpush2.bf16.msra.mxu0 0
        %2832 = vmatprep.subr.bf16.mxu0 0
        %2833 = vmatpush2.bf16.msra.mxu0 0
        %2834 = vmatprep.subr.bf16.mxu0 0
        %2835 = vmatpush2.bf16.msra.mxu0 0
        %2836 = vmatprep.subr.bf16.mxu0 0
        %2837 = vmatpush2.bf16.msra.mxu0 0
        %2838 = vmatprep.subr.bf16.mxu0 0
        %2839 = vmatpush2.bf16.msra.mxu0 0
        %2840 = vmatprep.subr.bf16.mxu0 0
        %2841 = vmatpush2.bf16.msra.mxu0 0
        %2842 = vmatprep.subr.bf16.mxu0 0
        %2843 = vmatpush2.bf16.msra.mxu0 0
        %2844 = vmatprep.subr.bf16.mxu0 0
        %2845 = vmatpush2.bf16.msra.mxu0 0
        %2846 = vmatprep.mubr.bf16.mxu0 0
        %2847 = vmatmul.mubr.bf16.gmra.mxu0 %v2809
        %v2848 = vpop.f32.mrf.mxu0
        %v2849 = vadd.f32 0.0, %v2848
        %v2850 = vpop.f32.mrf.mxu0
        %v2851 = vpop.f32.mrf.mxu0
        %v2852 = vpop.f32.mrf.mxu0
        %2853 = vdwg.mxu0
        %v2855 = vrot.slane %v2849, 6
        %v2857 = vsel %vm265, 0.0, %v2855
        %v2858 = vsel %vm400, %v2857, 0.0
        %v2860 = vrot.slane %v2858, 1
        %2861 = vrot.lane.b32.xlu0 %v2860, 48
        %v2862 = vpop.permute.xlu0 %2861
        %v2864 = vrot.slane %v2858, 2
        %2865 = vrot.lane.b32.xlu0 %v2864, 96
        %v2866 = vpop.permute.xlu0 %2865
        %v2868 = vrot.slane %v2858, 3
        %2869 = vrot.lane.b32.xlu0 %v2868, 16
        %v2870 = vpop.permute.xlu0 %2869
        %v2872 = vrot.slane %v2858, 4
        %2873 = vrot.lane.b32.xlu0 %v2872, 64
        %v2874 = vpop.permute.xlu0 %2873
        %v2876 = vsel %vm1301, %v2858, %v2862
        %v2877 = vsel %vm2224, %v2876, %v2866
        %v2878 = vsel %vm1267, %v2866, %v2870
        %v2879 = vsel %vm1318, %v2878, %v2874
        %v2880 = vpack.c.bf16 %v2877, %v2877
        %v2881 = vpack.c.bf16 %v2879, %v2879
        %v2882 = vld [vmem:[#allocation6 + $0x140] sm:$0xf]
        %v2883 = vld [vmem:[#allocation6 + $0x144] sm:$0xf]
        %v2884 = vld [vmem:[#allocation6 + $0x148] sm:$0xf]
        %v2885 = vld [vmem:[#allocation6 + $0x14c] sm:$0xf]
        %v2886 = vld [vmem:[#allocation6 + $0x150] sm:$0xf]
        %v2887 = vld [vmem:[#allocation6 + $0x154] sm:$0xf]
        %v2888 = vld [vmem:[#allocation6 + $0x158] sm:$0xf]
        %v2889 = vld [vmem:[#allocation6 + $0x15c] sm:$0xf]
        %v2890 = vld [vmem:[#allocation6 + $0x160] sm:$0xf]
        %v2891 = vld [vmem:[#allocation6 + $0x164] sm:$0xf]
        %v2892 = vld [vmem:[#allocation6 + $0x168] sm:$0xf]
        %v2893 = vld [vmem:[#allocation6 + $0x16c] sm:$0xf]
        %v2894 = vld [vmem:[#allocation6 + $0x170] sm:$0xf]
        %v2895 = vld [vmem:[#allocation6 + $0x174] sm:$0xf]
        %v2896 = vld [vmem:[#allocation6 + $0x178] sm:$0xf]
        %v2897 = vld [vmem:[#allocation6 + $0x17c] sm:$0xf]
        %v2898 = vld [vmem:[#allocation6 + $0x180] sm:$0xf]
        %v2899 = vld [vmem:[#allocation6 + $0x184] sm:$0xf]
        %v2900 = vld [vmem:[#allocation6 + $0x188] sm:$0xf]
        %v2901 = vld [vmem:[#allocation6 + $0x18c] sm:$0xf]
        %v2902 = vld [vmem:[#allocation6 + $0x190] sm:$0xf]
        %v2903 = vld [vmem:[#allocation6 + $0x194] sm:$0xf]
        %v2904 = vld [vmem:[#allocation6 + $0x198] sm:$0xf]
        %v2905 = vld [vmem:[#allocation6 + $0x19c] sm:$0xf]
        %v2906 = vld [vmem:[#allocation6 + $0x1a0] sm:$0xf]
        %v2907 = vld [vmem:[#allocation6 + $0x1a4] sm:$0xf]
        %v2908 = vld [vmem:[#allocation6 + $0x1a8] sm:$0xf]
        %v2909 = vld [vmem:[#allocation6 + $0x1ac] sm:$0xf]
        %v2910 = vld [vmem:[#allocation6 + $0x1b0] sm:$0xf]
        %v2911 = vld [vmem:[#allocation6 + $0x1b4] sm:$0xf]
        %v2912 = vld [vmem:[#allocation8 + $0x6] sm:$0x1]
        %v2913 = vlaneseq
        %v2914 = vshrl.u32 %v2913, 7
        %v2915 = vsub.s32 0, %v2914
        %v2916 = vrot.slane %v2912, %v2915
        %v2947 = vunpack.c.l.b16 %v2882
        %v2948 = vunpack.c.l.b16 %v2883
        %v2949 = vunpack.c.l.b16 %v2884
        %v2950 = vunpack.c.l.b16 %v2885
        %v2951 = vunpack.c.l.b16 %v2886
        %v2952 = vunpack.c.l.b16 %v2887
        %v2953 = vunpack.c.l.b16 %v2888
        %v2954 = vunpack.c.l.b16 %v2889
        %v2955 = vunpack.c.l.b16 %v2890
        %v2956 = vunpack.c.l.b16 %v2891
        %v2957 = vunpack.c.l.b16 %v2892
        %v2958 = vunpack.c.l.b16 %v2893
        %v2959 = vunpack.c.l.b16 %v2894
        %v2960 = vunpack.c.l.b16 %v2895
        %v2961 = vunpack.c.l.b16 %v2896
        %v2962 = vunpack.c.l.b16 %v2897
        %v2963 = vunpack.c.l.b16 %v2898
        %v2964 = vunpack.c.l.b16 %v2899
        %v2965 = vunpack.c.l.b16 %v2900
        %v2966 = vunpack.c.l.b16 %v2901
        %v2967 = vunpack.c.l.b16 %v2902
        %v2968 = vunpack.c.l.b16 %v2903
        %v2969 = vunpack.c.l.b16 %v2904
        %v2970 = vunpack.c.l.b16 %v2905
        %v2971 = vunpack.c.l.b16 %v2906
        %v2972 = vunpack.c.l.b16 %v2907
        %v2973 = vunpack.c.l.b16 %v2908
        %v2974 = vunpack.c.l.b16 %v2909
        %v2975 = vunpack.c.l.b16 %v2910
        %v2976 = vunpack.c.l.b16 %v2911
        %v2977 = vpack.c.b16 %v2948, %v2947
        %v2978 = vpack.c.b16 %v2950, %v2949
        %v2979 = vpack.c.b16 %v2952, %v2951
        %v2980 = vpack.c.b16 %v2954, %v2953
        %v2981 = vpack.c.b16 %v2956, %v2955
        %v2982 = vpack.c.b16 %v2958, %v2957
        %v2983 = vpack.c.b16 %v2960, %v2959
        %v2984 = vpack.c.b16 %v2962, %v2961
        %v2985 = vpack.c.b16 %v2964, %v2963
        %v2986 = vpack.c.b16 %v2966, %v2965
        %v2987 = vpack.c.b16 %v2968, %v2967
        %v2988 = vpack.c.b16 %v2970, %v2969
        %v2989 = vpack.c.b16 %v2972, %v2971
        %v2990 = vpack.c.b16 %v2974, %v2973
        %v2991 = vpack.c.b16 %v2976, %v2975
        %v3008 = vsel %vm2469, %v2881, 0
        %3010 = vmatprep.subr.bf16.mxu0 0
        %3011 = vmatpush1.bf16.msra.mxu0 %v2984
        %3012 = vmatprep.subr.bf16.mxu0 0
        %3013 = vmatpush1.bf16.msra.mxu0 %v2983
        %3014 = vmatprep.subr.bf16.mxu0 0
        %3015 = vmatpush1.bf16.msra.mxu0 %v2982
        %3016 = vmatprep.subr.bf16.mxu0 0
        %3017 = vmatpush1.bf16.msra.mxu0 %v2981
        %3018 = vmatprep.subr.bf16.mxu0 0
        %3019 = vmatpush1.bf16.msra.mxu0 %v2980
        %3020 = vmatprep.subr.bf16.mxu0 0
        %3021 = vmatpush1.bf16.msra.mxu0 %v2979
        %3022 = vmatprep.subr.bf16.mxu0 0
        %3023 = vmatpush1.bf16.msra.mxu0 %v2978
        %3024 = vmatprep.subr.bf16.mxu0 0
        %3025 = vmatpush1.bf16.msra.mxu0 %v2977
        %3026 = vmatprep.subr.bf16.mxu0 0
        %3027 = vmatpush2.bf16.msra.mxu0 0
        %3028 = vmatprep.subr.bf16.mxu0 0
        %3029 = vmatpush2.bf16.msra.mxu0 %v2991
        %3030 = vmatprep.subr.bf16.mxu0 0
        %3031 = vmatpush2.bf16.msra.mxu0 %v2990
        %3032 = vmatprep.subr.bf16.mxu0 0
        %3033 = vmatpush2.bf16.msra.mxu0 %v2989
        %3034 = vmatprep.subr.bf16.mxu0 0
        %3035 = vmatpush2.bf16.msra.mxu0 %v2988
        %3036 = vmatprep.subr.bf16.mxu0 0
        %3037 = vmatpush2.bf16.msra.mxu0 %v2987
        %3038 = vmatprep.subr.bf16.mxu0 0
        %3039 = vmatpush2.bf16.msra.mxu0 %v2986
        %3040 = vmatprep.subr.bf16.mxu0 0
        %3041 = vmatpush2.bf16.msra.mxu0 %v2985
        %3042 = vmatprep.mubr.bf16.mxu0 %v3008
        %3043 = vmatmul.mubr.bf16.gmra.mxu0 %v2880
        %v3044 = vpop.f32.mrf.mxu0
        %v3045 = vadd.f32 %v2916, %v3044
        %v3046 = vpop.f32.mrf.mxu0
        %v3047 = vpop.f32.mrf.mxu0
        %v3048 = vpop.f32.mrf.mxu0
        %3049 = vdwg.mxu0
        %v3050 = vmax.f32 %v3045, 0.0
        %v3051 = vpack.c.bf16 %v3050, %v3050
        %v3052 = vsel %vm663, %v2600, 0
        %v3055 = vsel %vm265, %v3051, 0
        %3057 = vmatprep.subr.bf16.mxu0 0
        %3058 = vmatpush1.bf16.msra.mxu0 0
        %3059 = vmatprep.subr.bf16.mxu0 0
        %3060 = vmatpush1.bf16.msra.mxu0 0
        %3061 = vmatprep.subr.bf16.mxu0 0
        %3062 = vmatpush1.bf16.msra.mxu0 0
        %3063 = vmatprep.subr.bf16.mxu0 0
        %3064 = vmatpush1.bf16.msra.mxu0 0
        %3065 = vmatprep.subr.bf16.mxu0 0
        %3066 = vmatpush1.bf16.msra.mxu0 0
        %3067 = vmatprep.subr.bf16.mxu0 0
        %3068 = vmatpush1.bf16.msra.mxu0 0
        %3069 = vmatprep.subr.bf16.mxu0 0
        %3070 = vmatpush1.bf16.msra.mxu0 0
        %3071 = vmatprep.subr.bf16.mxu0 0
        %3072 = vmatpush1.bf16.msra.mxu0 %v3055
        %3073 = vmatprep.subr.bf16.mxu0 0
        %3074 = vmatpush2.bf16.msra.mxu0 0
        %3075 = vmatprep.subr.bf16.mxu0 0
        %3076 = vmatpush2.bf16.msra.mxu0 0
        %3077 = vmatprep.subr.bf16.mxu0 0
        %3078 = vmatpush2.bf16.msra.mxu0 0
        %3079 = vmatprep.subr.bf16.mxu0 0
        %3080 = vmatpush2.bf16.msra.mxu0 0
        %3081 = vmatprep.subr.bf16.mxu0 0
        %3082 = vmatpush2.bf16.msra.mxu0 0
        %3083 = vmatprep.subr.bf16.mxu0 0
        %3084 = vmatpush2.bf16.msra.mxu0 0
        %3085 = vmatprep.subr.bf16.mxu0 0
        %3086 = vmatpush2.bf16.msra.mxu0 0
        %3087 = vmatprep.subr.bf16.mxu0 0
        %3088 = vmatpush2.bf16.msra.mxu0 0
        %3089 = vmatprep.mubr.bf16.mxu0 0
        %3090 = vmatmul.mubr.bf16.gmra.mxu0 %v3052
        %v3091 = vpop.f32.mrf.mxu0
        %v3092 = vadd.f32 0.0, %v3091
        %v3093 = vpop.f32.mrf.mxu0
        %v3094 = vpop.f32.mrf.mxu0
        %v3095 = vpop.f32.mrf.mxu0
        %3096 = vdwg.mxu0
        %v3098 = vrot.slane %v3092, 6
        %v3100 = vsel %vm265, 0.0, %v3098
        %v3101 = vsel %vm564, %v3100, 0.0
        %v3103 = vrot.slane %v3101, 1
        %3104 = vrot.lane.b32.xlu0 %v3103, 64
        %v3105 = vpop.permute.xlu0 %3104
        %v3107 = vrot.slane %v3101, 2
        %v3109 = vrot.slane %v3101, 3
        %3110 = vrot.lane.b32.xlu0 %v3109, 64
        %v3111 = vpop.permute.xlu0 %3110
        %v3113 = vrot.slane %v3101, 4
        %v3115 = vsel %vm1318, %v3101, %v3105
        %v3116 = vsel %vm1318, %v3107, %v3111
        %v3117 = vpack.c.bf16 %v3115, %v3115
        %v3118 = vpack.c.bf16 %v3116, %v3116
        %v3119 = vpack.c.bf16 %v3113, %v3113
        %v3120 = vld [vmem:[#allocation6 + $0x1b8] sm:$0xf]
        %v3121 = vld [vmem:[#allocation6 + $0x1bc] sm:$0xf]
        %v3122 = vld [vmem:[#allocation6 + $0x1c0] sm:$0xf]
        %v3123 = vld [vmem:[#allocation6 + $0x1c4] sm:$0xf]
        %v3124 = vld [vmem:[#allocation6 + $0x1c8] sm:$0xf]
        %v3125 = vld [vmem:[#allocation6 + $0x1cc] sm:$0xf]
        %v3126 = vld [vmem:[#allocation6 + $0x1d0] sm:$0xf]
        %v3127 = vld [vmem:[#allocation6 + $0x1d4] sm:$0xf]
        %v3128 = vld [vmem:[#allocation6 + $0x1d8] sm:$0xf]
        %v3129 = vld [vmem:[#allocation6 + $0x1dc] sm:$0xf]
        %v3130 = vld [vmem:[#allocation6 + $0x1e0] sm:$0xf]
        %v3131 = vld [vmem:[#allocation6 + $0x1e4] sm:$0xf]
        %v3132 = vld [vmem:[#allocation6 + $0x1e8] sm:$0xf]
        %v3133 = vld [vmem:[#allocation6 + $0x1ec] sm:$0xf]
        %v3134 = vld [vmem:[#allocation6 + $0x1f0] sm:$0xf]
        %v3135 = vld [vmem:[#allocation6 + $0x1f4] sm:$0xf]
        %v3136 = vld [vmem:[#allocation6 + $0x1f8] sm:$0xf]
        %v3137 = vld [vmem:[#allocation6 + $0x1fc] sm:$0xf]
        %v3138 = vld [vmem:[#allocation6 + $0x200] sm:$0xf]
        %v3139 = vld [vmem:[#allocation6 + $0x204] sm:$0xf]
        %v3140 = vld [vmem:[#allocation6 + $0x208] sm:$0xf]
        %v3141 = vld [vmem:[#allocation6 + $0x20c] sm:$0xf]
        %v3142 = vld [vmem:[#allocation6 + $0x210] sm:$0xf]
        %v3143 = vld [vmem:[#allocation6 + $0x214] sm:$0xf]
        %v3144 = vld [vmem:[#allocation6 + $0x218] sm:$0xf]
        %v3145 = vld [vmem:[#allocation6 + $0x21c] sm:$0xf]
        %v3146 = vld [vmem:[#allocation6 + $0x220] sm:$0xf]
        %v3147 = vld [vmem:[#allocation6 + $0x224] sm:$0xf]
        %v3148 = vld [vmem:[#allocation6 + $0x228] sm:$0xf]
        %v3149 = vld [vmem:[#allocation6 + $0x22c] sm:$0xf]
        %v3150 = vld [vmem:[#allocation6 + $0x230] sm:$0xf]
        %v3151 = vld [vmem:[#allocation6 + $0x234] sm:$0xf]
        %v3152 = vld [vmem:[#allocation6 + $0x238] sm:$0xf]
        %v3153 = vld [vmem:[#allocation6 + $0x23c] sm:$0xf]
        %v3154 = vld [vmem:[#allocation6 + $0x240] sm:$0xf]
        %v3155 = vld [vmem:[#allocation6 + $0x244] sm:$0xf]
        %v3156 = vld [vmem:[#allocation6 + $0x248] sm:$0xf]
        %v3157 = vld [vmem:[#allocation6 + $0x24c] sm:$0xf]
        %v3158 = vld [vmem:[#allocation6 + $0x250] sm:$0xf]
        %v3159 = vld [vmem:[#allocation6 + $0x254] sm:$0xf]
        %v3160 = vld [vmem:[#allocation8 + $0x7] sm:$0x1]
        %v3161 = vlaneseq
        %v3162 = vshrl.u32 %v3161, 7
        %v3163 = vsub.s32 0, %v3162
        %v3164 = vrot.slane %v3160, %v3163
        %v3205 = vunpack.c.l.b16 %v3120
        %v3206 = vunpack.c.l.b16 %v3121
        %v3207 = vunpack.c.l.b16 %v3122
        %v3208 = vunpack.c.l.b16 %v3123
        %v3209 = vunpack.c.l.b16 %v3124
        %v3210 = vunpack.c.l.b16 %v3125
        %v3211 = vunpack.c.l.b16 %v3126
        %v3212 = vunpack.c.l.b16 %v3127
        %v3213 = vunpack.c.l.b16 %v3128
        %v3214 = vunpack.c.l.b16 %v3129
        %v3215 = vunpack.c.l.b16 %v3130
        %v3216 = vunpack.c.l.b16 %v3131
        %v3217 = vunpack.c.l.b16 %v3132
        %v3218 = vunpack.c.l.b16 %v3133
        %v3219 = vunpack.c.l.b16 %v3134
        %v3220 = vunpack.c.l.b16 %v3135
        %v3221 = vunpack.c.l.b16 %v3136
        %v3222 = vunpack.c.l.b16 %v3137
        %v3223 = vunpack.c.l.b16 %v3138
        %v3224 = vunpack.c.l.b16 %v3139
        %v3225 = vunpack.c.l.b16 %v3140
        %v3226 = vunpack.c.l.b16 %v3141
        %v3227 = vunpack.c.l.b16 %v3142
        %v3228 = vunpack.c.l.b16 %v3143
        %v3229 = vunpack.c.l.b16 %v3144
        %v3230 = vunpack.c.l.b16 %v3145
        %v3231 = vunpack.c.l.b16 %v3146
        %v3232 = vunpack.c.l.b16 %v3147
        %v3233 = vunpack.c.l.b16 %v3148
        %v3234 = vunpack.c.l.b16 %v3149
        %v3235 = vunpack.c.l.b16 %v3150
        %v3236 = vunpack.c.l.b16 %v3151
        %v3237 = vunpack.c.l.b16 %v3152
        %v3238 = vunpack.c.l.b16 %v3153
        %v3239 = vunpack.c.l.b16 %v3154
        %v3240 = vunpack.c.l.b16 %v3155
        %v3241 = vunpack.c.l.b16 %v3156
        %v3242 = vunpack.c.l.b16 %v3157
        %v3243 = vunpack.c.l.b16 %v3158
        %v3244 = vunpack.c.l.b16 %v3159
        %v3245 = vpack.c.b16 %v3206, %v3205
        %v3246 = vpack.c.b16 %v3208, %v3207
        %v3247 = vpack.c.b16 %v3210, %v3209
        %v3248 = vpack.c.b16 %v3212, %v3211
        %v3249 = vpack.c.b16 %v3214, %v3213
        %v3250 = vpack.c.b16 %v3216, %v3215
        %v3251 = vpack.c.b16 %v3218, %v3217
        %v3252 = vpack.c.b16 %v3220, %v3219
        %v3253 = vpack.c.b16 %v3222, %v3221
        %v3254 = vpack.c.b16 %v3224, %v3223
        %v3255 = vpack.c.b16 %v3226, %v3225
        %v3256 = vpack.c.b16 %v3228, %v3227
        %v3257 = vpack.c.b16 %v3230, %v3229
        %v3258 = vpack.c.b16 %v3232, %v3231
        %v3259 = vpack.c.b16 %v3234, %v3233
        %v3260 = vpack.c.b16 %v3236, %v3235
        %v3261 = vpack.c.b16 %v3238, %v3237
        %v3262 = vpack.c.b16 %v3240, %v3239
        %v3263 = vpack.c.b16 %v3242, %v3241
        %v3264 = vpack.c.b16 %v3244, %v3243
        %v3286 = vsel %vm1318, %v3119, 0
        %3288 = vmatprep.subr.bf16.mxu0 0
        %3289 = vmatpush1.bf16.msra.mxu0 %v3252
        %3290 = vmatprep.subr.bf16.mxu0 0
        %3291 = vmatpush1.bf16.msra.mxu0 %v3251
        %3292 = vmatprep.subr.bf16.mxu0 0
        %3293 = vmatpush1.bf16.msra.mxu0 %v3250
        %3294 = vmatprep.subr.bf16.mxu0 0
        %3295 = vmatpush1.bf16.msra.mxu0 %v3249
        %3296 = vmatprep.subr.bf16.mxu0 0
        %3297 = vmatpush1.bf16.msra.mxu0 %v3248
        %3298 = vmatprep.subr.bf16.mxu0 0
        %3299 = vmatpush1.bf16.msra.mxu0 %v3247
        %3300 = vmatprep.subr.bf16.mxu0 0
        %3301 = vmatpush1.bf16.msra.mxu0 %v3246
        %3302 = vmatprep.subr.bf16.mxu0 0
        %3303 = vmatpush1.bf16.msra.mxu0 %v3245
        %3304 = vmatprep.subr.bf16.mxu0 0
        %3305 = vmatpush2.bf16.msra.mxu0 %v3260
        %3306 = vmatprep.subr.bf16.mxu0 0
        %3307 = vmatpush2.bf16.msra.mxu0 %v3259
        %3308 = vmatprep.subr.bf16.mxu0 0
        %3309 = vmatpush2.bf16.msra.mxu0 %v3258
        %3310 = vmatprep.subr.bf16.mxu0 0
        %3311 = vmatpush2.bf16.msra.mxu0 %v3257
        %3312 = vmatprep.subr.bf16.mxu0 0
        %3313 = vmatpush2.bf16.msra.mxu0 %v3256
        %3314 = vmatprep.subr.bf16.mxu0 0
        %3315 = vmatpush2.bf16.msra.mxu0 %v3255
        %3316 = vmatprep.subr.bf16.mxu0 0
        %3317 = vmatpush2.bf16.msra.mxu0 %v3254
        %3318 = vmatprep.subr.bf16.mxu0 0
        %3319 = vmatpush2.bf16.msra.mxu0 %v3253
        %3320 = vmatprep.mubr.bf16.mxu0 %v3118
        %3321 = vmatmul.mubr.bf16.gmra.mxu0 %v3117
        %v3322 = vpop.f32.mrf.mxu0
        %v3323 = vadd.f32 %v3164, %v3322
        %v3324 = vpop.f32.mrf.mxu0
        %v3325 = vpop.f32.mrf.mxu0
        %v3326 = vpop.f32.mrf.mxu0
        %3327 = vdwg.mxu0
        %3328 = vmatprep.subr.bf16.mxu0 0
        %3329 = vmatpush1.bf16.msra.mxu0 0
        %3330 = vmatprep.subr.bf16.mxu0 0
        %3331 = vmatpush1.bf16.msra.mxu0 0
        %3332 = vmatprep.subr.bf16.mxu0 0
        %3333 = vmatpush1.bf16.msra.mxu0 0
        %3334 = vmatprep.subr.bf16.mxu0 0
        %3335 = vmatpush1.bf16.msra.mxu0 0
        %3336 = vmatprep.subr.bf16.mxu0 0
        %3337 = vmatpush1.bf16.msra.mxu0 %v3264
        %3338 = vmatprep.subr.bf16.mxu0 0
        %3339 = vmatpush1.bf16.msra.mxu0 %v3263
        %3340 = vmatprep.subr.bf16.mxu0 0
        %3341 = vmatpush1.bf16.msra.mxu0 %v3262
        %3342 = vmatprep.subr.bf16.mxu0 0
        %3343 = vmatpush1.bf16.msra.mxu0 %v3261
        %3344 = vmatprep.subr.bf16.mxu0 0
        %3345 = vmatpush2.bf16.msra.mxu0 0
        %3346 = vmatprep.subr.bf16.mxu0 0
        %3347 = vmatpush2.bf16.msra.mxu0 0
        %3348 = vmatprep.subr.bf16.mxu0 0
        %3349 = vmatpush2.bf16.msra.mxu0 0
        %3350 = vmatprep.subr.bf16.mxu0 0
        %3351 = vmatpush2.bf16.msra.mxu0 0
        %3352 = vmatprep.subr.bf16.mxu0 0
        %3353 = vmatpush2.bf16.msra.mxu0 0
        %3354 = vmatprep.subr.bf16.mxu0 0
        %3355 = vmatpush2.bf16.msra.mxu0 0
        %3356 = vmatprep.subr.bf16.mxu0 0
        %3357 = vmatpush2.bf16.msra.mxu0 0
        %3358 = vmatprep.subr.bf16.mxu0 0
        %3359 = vmatpush2.bf16.msra.mxu0 0
        %3360 = vmatprep.mubr.bf16.mxu0 0
        %3361 = vmatmul.mubr.bf16.gmra.mxu0 %v3286
        %v3362 = vpop.f32.mrf.mxu0
        %v3363 = vadd.f32 %v3323, %v3362
        %v3364 = vpop.f32.mrf.mxu0
        %v3365 = vpop.f32.mrf.mxu0
        %v3366 = vpop.f32.mrf.mxu0
        %3367 = vdwg.mxu0
        %v3368 = vmax.f32 %v3363, 0.0
        %v3369 = vld [vmem:[#allocation6 + $0x760] sm:$0xf]
        %v3370 = vpack.c.bf16 %v3368, %v3368
        %v3372 = vsel %vm646, %v3369, 0
        %vm3374 = vcmask 1040384
        %v3376 = vsel %vm3374, %v3370, 0
        %3378 = vmatprep.subr.bf16.mxu0 0
        %3379 = vmatpush1.bf16.msra.mxu0 0
        %3380 = vmatprep.subr.bf16.mxu0 0
        %3381 = vmatpush1.bf16.msra.mxu0 0
        %3382 = vmatprep.subr.bf16.mxu0 0
        %3383 = vmatpush1.bf16.msra.mxu0 0
        %3384 = vmatprep.subr.bf16.mxu0 0
        %3385 = vmatpush1.bf16.msra.mxu0 0
        %3386 = vmatprep.subr.bf16.mxu0 0
        %3387 = vmatpush1.bf16.msra.mxu0 0
        %3388 = vmatprep.subr.bf16.mxu0 0
        %3389 = vmatpush1.bf16.msra.mxu0 0
        %3390 = vmatprep.subr.bf16.mxu0 0
        %3391 = vmatpush1.bf16.msra.mxu0 0
        %3392 = vmatprep.subr.bf16.mxu0 0
        %3393 = vmatpush1.bf16.msra.mxu0 %v3376
        %3394 = vmatprep.subr.bf16.mxu0 0
        %3395 = vmatpush2.bf16.msra.mxu0 0
        %3396 = vmatprep.subr.bf16.mxu0 0
        %3397 = vmatpush2.bf16.msra.mxu0 0
        %3398 = vmatprep.subr.bf16.mxu0 0
        %3399 = vmatpush2.bf16.msra.mxu0 0
        %3400 = vmatprep.subr.bf16.mxu0 0
        %3401 = vmatpush2.bf16.msra.mxu0 0
        %3402 = vmatprep.subr.bf16.mxu0 0
        %3403 = vmatpush2.bf16.msra.mxu0 0
        %3404 = vmatprep.subr.bf16.mxu0 0
        %3405 = vmatpush2.bf16.msra.mxu0 0
        %3406 = vmatprep.subr.bf16.mxu0 0
        %3407 = vmatpush2.bf16.msra.mxu0 0
        %3408 = vmatprep.subr.bf16.mxu0 0
        %3409 = vmatpush2.bf16.msra.mxu0 0
        %3410 = vmatprep.mubr.bf16.mxu0 0
        %3411 = vmatmul.mubr.bf16.gmra.mxu0 %v3372
        %v3412 = vpop.f32.mrf.mxu0
        %v3413 = vadd.f32 0.0, %v3412
        %v3414 = vpop.f32.mrf.mxu0
        %v3415 = vpop.f32.mrf.mxu0
        %v3416 = vpop.f32.mrf.mxu0
        %3417 = vdwg.mxu0
        %v3419 = vrot.slane %v3413, 1
        %3420 = vrot.lane.b32.xlu0 %v3419, 96
        %v3421 = vpop.permute.xlu0 %3420
        %v3423 = vrot.slane %v3413, 2
        %3424 = vrot.lane.b32.xlu0 %v3423, 64
        %v3425 = vpop.permute.xlu0 %3424
        %v3427 = vrot.slane %v3413, 3
        %3428 = vrot.lane.b32.xlu0 %v3427, 32
        %v3429 = vpop.permute.xlu0 %3428
        %v3431 = vrot.slane %v3413, 4
        %v3433 = vsel %vm2224, %v3413, %v3421
        %v3434 = vsel %vm1318, %v3421, %v3425
        %v3435 = vsel %vm1284, %v3425, %v3429
        %v3436 = vpack.c.bf16 %v3433, %v3433
        %v3437 = vpack.c.bf16 %v3434, %v3434
        %v3438 = vpack.c.bf16 %v3435, %v3435
        %v3439 = vpack.c.bf16 %v3431, %v3431
        %v3440 = vld [vmem:[#allocation6 + $0x258] sm:$0xf]
        %v3441 = vld [vmem:[#allocation6 + $0x25c] sm:$0xf]
        %v3442 = vld [vmem:[#allocation6 + $0x260] sm:$0xf]
        %v3443 = vld [vmem:[#allocation6 + $0x264] sm:$0xf]
        %v3444 = vld [vmem:[#allocation6 + $0x268] sm:$0xf]
        %v3445 = vld [vmem:[#allocation6 + $0x26c] sm:$0xf]
        %v3446 = vld [vmem:[#allocation6 + $0x270] sm:$0xf]
        %v3447 = vld [vmem:[#allocation6 + $0x274] sm:$0xf]
        %v3448 = vld [vmem:[#allocation6 + $0x278] sm:$0xf]
        %v3449 = vld [vmem:[#allocation6 + $0x27c] sm:$0xf]
        %v3450 = vld [vmem:[#allocation6 + $0x280] sm:$0xf]
        %v3451 = vld [vmem:[#allocation6 + $0x284] sm:$0xf]
        %v3452 = vld [vmem:[#allocation6 + $0x288] sm:$0xf]
        %v3453 = vld [vmem:[#allocation6 + $0x28c] sm:$0xf]
        %v3454 = vld [vmem:[#allocation6 + $0x290] sm:$0xf]
        %v3455 = vld [vmem:[#allocation6 + $0x294] sm:$0xf]
        %v3456 = vld [vmem:[#allocation6 + $0x298] sm:$0xf]
        %v3457 = vld [vmem:[#allocation6 + $0x29c] sm:$0xf]
        %v3458 = vld [vmem:[#allocation6 + $0x2a0] sm:$0xf]
        %v3459 = vld [vmem:[#allocation6 + $0x2a4] sm:$0xf]
        %v3460 = vld [vmem:[#allocation6 + $0x2a8] sm:$0xf]
        %v3461 = vld [vmem:[#allocation6 + $0x2ac] sm:$0xf]
        %v3462 = vld [vmem:[#allocation6 + $0x2b0] sm:$0xf]
        %v3463 = vld [vmem:[#allocation6 + $0x2b4] sm:$0xf]
        %v3464 = vld [vmem:[#allocation6 + $0x2b8] sm:$0xf]
        %v3465 = vld [vmem:[#allocation6 + $0x2bc] sm:$0xf]
        %v3466 = vld [vmem:[#allocation6 + $0x2c0] sm:$0xf]
        %v3467 = vld [vmem:[#allocation6 + $0x2c4] sm:$0xf]
        %v3468 = vld [vmem:[#allocation6 + $0x2c8] sm:$0xf]
        %v3469 = vld [vmem:[#allocation6 + $0x2cc] sm:$0xf]
        %v3470 = vld [vmem:[#allocation6 + $0x2d0] sm:$0xf]
        %v3471 = vld [vmem:[#allocation6 + $0x2d4] sm:$0xf]
        %v3472 = vld [vmem:[#allocation6 + $0x2d8] sm:$0xf]
        %v3473 = vld [vmem:[#allocation6 + $0x2dc] sm:$0xf]
        %v3474 = vld [vmem:[#allocation6 + $0x2e0] sm:$0xf]
        %v3475 = vld [vmem:[#allocation6 + $0x2e4] sm:$0xf]
        %v3476 = vld [vmem:[#allocation6 + $0x2e8] sm:$0xf]
        %v3477 = vld [vmem:[#allocation6 + $0x2ec] sm:$0xf]
        %v3478 = vld [vmem:[#allocation6 + $0x2f0] sm:$0xf]
        %v3479 = vld [vmem:[#allocation6 + $0x2f4] sm:$0xf]
        %v3480 = vld [vmem:[#allocation6 + $0x2f8] sm:$0xf]
        %v3481 = vld [vmem:[#allocation6 + $0x2fc] sm:$0xf]
        %v3482 = vld [vmem:[#allocation6 + $0x300] sm:$0xf]
        %v3483 = vld [vmem:[#allocation6 + $0x304] sm:$0xf]
        %v3484 = vld [vmem:[#allocation6 + $0x308] sm:$0xf]
        %v3485 = vld [vmem:[#allocation6 + $0x30c] sm:$0xf]
        %v3486 = vld [vmem:[#allocation6 + $0x310] sm:$0xf]
        %v3487 = vld [vmem:[#allocation6 + $0x314] sm:$0xf]
        %v3488 = vld [vmem:[#allocation6 + $0x318] sm:$0xf]
        %v3489 = vld [vmem:[#allocation6 + $0x31c] sm:$0xf]
        %v3490 = vld [vmem:[#allocation6 + $0x320] sm:$0xf]
        %v3491 = vld [vmem:[#allocation6 + $0x324] sm:$0xf]
        %v3492 = vld [vmem:[#allocation6 + $0x328] sm:$0xf]
        %v3493 = vld [vmem:[#allocation6 + $0x32c] sm:$0xf]
        %v3494 = vld [vmem:[#allocation6 + $0x330] sm:$0xf]
        %v3495 = vld [vmem:[#allocation6 + $0x334] sm:$0xf]
        %v3496 = vld [vmem:[#allocation6 + $0x338] sm:$0xf]
        %v3497 = vld [vmem:[#allocation6 + $0x33c] sm:$0xf]
        %v3498 = vld [vmem:[#allocation6 + $0x340] sm:$0xf]
        %v3499 = vld [vmem:[#allocation6 + $0x344] sm:$0xf]
        %v3500 = vld [vmem:[#allocation8 + $0x8] sm:$0x1]
        %v3501 = vlaneseq
        %v3502 = vshrl.u32 %v3501, 7
        %v3503 = vsub.s32 0, %v3502
        %v3504 = vrot.slane %v3500, %v3503
        %v3565 = vunpack.c.l.b16 %v3440
        %v3566 = vunpack.c.l.b16 %v3441
        %v3567 = vunpack.c.l.b16 %v3442
        %v3568 = vunpack.c.l.b16 %v3443
        %v3569 = vunpack.c.l.b16 %v3444
        %v3570 = vunpack.c.l.b16 %v3445
        %v3571 = vunpack.c.l.b16 %v3446
        %v3572 = vunpack.c.l.b16 %v3447
        %v3573 = vunpack.c.l.b16 %v3448
        %v3574 = vunpack.c.l.b16 %v3449
        %v3575 = vunpack.c.l.b16 %v3450
        %v3576 = vunpack.c.l.b16 %v3451
        %v3577 = vunpack.c.l.b16 %v3452
        %v3578 = vunpack.c.l.b16 %v3453
        %v3579 = vunpack.c.l.b16 %v3454
        %v3580 = vunpack.c.l.b16 %v3455
        %v3581 = vunpack.c.l.b16 %v3456
        %v3582 = vunpack.c.l.b16 %v3457
        %v3583 = vunpack.c.l.b16 %v3458
        %v3584 = vunpack.c.l.b16 %v3459
        %v3585 = vunpack.c.l.b16 %v3460
        %v3586 = vunpack.c.l.b16 %v3461
        %v3587 = vunpack.c.l.b16 %v3462
        %v3588 = vunpack.c.l.b16 %v3463
        %v3589 = vunpack.c.l.b16 %v3464
        %v3590 = vunpack.c.l.b16 %v3465
        %v3591 = vunpack.c.l.b16 %v3466
        %v3592 = vunpack.c.l.b16 %v3467
        %v3593 = vunpack.c.l.b16 %v3468
        %v3594 = vunpack.c.l.b16 %v3469
        %v3595 = vunpack.c.l.b16 %v3470
        %v3596 = vunpack.c.l.b16 %v3471
        %v3597 = vunpack.c.l.b16 %v3472
        %v3598 = vunpack.c.l.b16 %v3473
        %v3599 = vunpack.c.l.b16 %v3474
        %v3600 = vunpack.c.l.b16 %v3475
        %v3601 = vunpack.c.l.b16 %v3476
        %v3602 = vunpack.c.l.b16 %v3477
        %v3603 = vunpack.c.l.b16 %v3478
        %v3604 = vunpack.c.l.b16 %v3479
        %v3605 = vunpack.c.l.b16 %v3480
        %v3606 = vunpack.c.l.b16 %v3481
        %v3607 = vunpack.c.l.b16 %v3482
        %v3608 = vunpack.c.l.b16 %v3483
        %v3609 = vunpack.c.l.b16 %v3484
        %v3610 = vunpack.c.l.b16 %v3485
        %v3611 = vunpack.c.l.b16 %v3486
        %v3612 = vunpack.c.l.b16 %v3487
        %v3613 = vunpack.c.l.b16 %v3488
        %v3614 = vunpack.c.l.b16 %v3489
        %v3615 = vunpack.c.l.b16 %v3490
        %v3616 = vunpack.c.l.b16 %v3491
        %v3617 = vunpack.c.l.b16 %v3492
        %v3618 = vunpack.c.l.b16 %v3493
        %v3619 = vunpack.c.l.b16 %v3494
        %v3620 = vunpack.c.l.b16 %v3495
        %v3621 = vunpack.c.l.b16 %v3496
        %v3622 = vunpack.c.l.b16 %v3497
        %v3623 = vunpack.c.l.b16 %v3498
        %v3624 = vunpack.c.l.b16 %v3499
        %v3625 = vpack.c.b16 %v3566, %v3565
        %v3626 = vpack.c.b16 %v3568, %v3567
        %v3627 = vpack.c.b16 %v3570, %v3569
        %v3628 = vpack.c.b16 %v3572, %v3571
        %v3629 = vpack.c.b16 %v3574, %v3573
        %v3630 = vpack.c.b16 %v3576, %v3575
        %v3631 = vpack.c.b16 %v3578, %v3577
        %v3632 = vpack.c.b16 %v3580, %v3579
        %v3633 = vpack.c.b16 %v3582, %v3581
        %v3634 = vpack.c.b16 %v3584, %v3583
        %v3635 = vpack.c.b16 %v3586, %v3585
        %v3636 = vpack.c.b16 %v3588, %v3587
        %v3637 = vpack.c.b16 %v3590, %v3589
        %v3638 = vpack.c.b16 %v3592, %v3591
        %v3639 = vpack.c.b16 %v3594, %v3593
        %v3640 = vpack.c.b16 %v3596, %v3595
        %v3641 = vpack.c.b16 %v3598, %v3597
        %v3642 = vpack.c.b16 %v3600, %v3599
        %v3643 = vpack.c.b16 %v3602, %v3601
        %v3644 = vpack.c.b16 %v3604, %v3603
        %v3645 = vpack.c.b16 %v3606, %v3605
        %v3646 = vpack.c.b16 %v3608, %v3607
        %v3647 = vpack.c.b16 %v3610, %v3609
        %v3648 = vpack.c.b16 %v3612, %v3611
        %v3649 = vpack.c.b16 %v3614, %v3613
        %v3650 = vpack.c.b16 %v3616, %v3615
        %v3651 = vpack.c.b16 %v3618, %v3617
        %v3652 = vpack.c.b16 %v3620, %v3619
        %v3653 = vpack.c.b16 %v3622, %v3621
        %v3654 = vpack.c.b16 %v3624, %v3623
        %v3686 = vsel %vm2224, %v3439, 0
        %3688 = vmatprep.subr.bf16.mxu0 0
        %3689 = vmatpush1.bf16.msra.mxu0 %v3632
        %3690 = vmatprep.subr.bf16.mxu0 0
        %3691 = vmatpush1.bf16.msra.mxu0 %v3631
        %3692 = vmatprep.subr.bf16.mxu0 0
        %3693 = vmatpush1.bf16.msra.mxu0 %v3630
        %3694 = vmatprep.subr.bf16.mxu0 0
        %3695 = vmatpush1.bf16.msra.mxu0 %v3629
        %3696 = vmatprep.subr.bf16.mxu0 0
        %3697 = vmatpush1.bf16.msra.mxu0 %v3628
        %3698 = vmatprep.subr.bf16.mxu0 0
        %3699 = vmatpush1.bf16.msra.mxu0 %v3627
        %3700 = vmatprep.subr.bf16.mxu0 0
        %3701 = vmatpush1.bf16.msra.mxu0 %v3626
        %3702 = vmatprep.subr.bf16.mxu0 0
        %3703 = vmatpush1.bf16.msra.mxu0 %v3625
        %3704 = vmatprep.subr.bf16.mxu0 0
        %3705 = vmatpush2.bf16.msra.mxu0 %v3640
        %3706 = vmatprep.subr.bf16.mxu0 0
        %3707 = vmatpush2.bf16.msra.mxu0 %v3639
        %3708 = vmatprep.subr.bf16.mxu0 0
        %3709 = vmatpush2.bf16.msra.mxu0 %v3638
        %3710 = vmatprep.subr.bf16.mxu0 0
        %3711 = vmatpush2.bf16.msra.mxu0 %v3637
        %3712 = vmatprep.subr.bf16.mxu0 0
        %3713 = vmatpush2.bf16.msra.mxu0 %v3636
        %3714 = vmatprep.subr.bf16.mxu0 0
        %3715 = vmatpush2.bf16.msra.mxu0 %v3635
        %3716 = vmatprep.subr.bf16.mxu0 0
        %3717 = vmatpush2.bf16.msra.mxu0 %v3634
        %3718 = vmatprep.subr.bf16.mxu0 0
        %3719 = vmatpush2.bf16.msra.mxu0 %v3633
        %3720 = vmatprep.mubr.bf16.mxu0 %v3437
        %3721 = vmatmul.mubr.bf16.gmra.mxu0 %v3436
        %v3722 = vpop.f32.mrf.mxu0
        %v3723 = vadd.f32 %v3504, %v3722
        %v3724 = vpop.f32.mrf.mxu0
        %v3725 = vpop.f32.mrf.mxu0
        %v3726 = vpop.f32.mrf.mxu0
        %3727 = vdwg.mxu0
        %3728 = vmatprep.subr.bf16.mxu0 0
        %3729 = vmatpush1.bf16.msra.mxu0 %v3648
        %3730 = vmatprep.subr.bf16.mxu0 0
        %3731 = vmatpush1.bf16.msra.mxu0 %v3647
        %3732 = vmatprep.subr.bf16.mxu0 0
        %3733 = vmatpush1.bf16.msra.mxu0 %v3646
        %3734 = vmatprep.subr.bf16.mxu0 0
        %3735 = vmatpush1.bf16.msra.mxu0 %v3645
        %3736 = vmatprep.subr.bf16.mxu0 0
        %3737 = vmatpush1.bf16.msra.mxu0 %v3644
        %3738 = vmatprep.subr.bf16.mxu0 0
        %3739 = vmatpush1.bf16.msra.mxu0 %v3643
        %3740 = vmatprep.subr.bf16.mxu0 0
        %3741 = vmatpush1.bf16.msra.mxu0 %v3642
        %3742 = vmatprep.subr.bf16.mxu0 0
        %3743 = vmatpush1.bf16.msra.mxu0 %v3641
        %3744 = vmatprep.subr.bf16.mxu0 0
        %3745 = vmatpush2.bf16.msra.mxu0 0
        %3746 = vmatprep.subr.bf16.mxu0 0
        %3747 = vmatpush2.bf16.msra.mxu0 0
        %3748 = vmatprep.subr.bf16.mxu0 0
        %3749 = vmatpush2.bf16.msra.mxu0 %v3654
        %3750 = vmatprep.subr.bf16.mxu0 0
        %3751 = vmatpush2.bf16.msra.mxu0 %v3653
        %3752 = vmatprep.subr.bf16.mxu0 0
        %3753 = vmatpush2.bf16.msra.mxu0 %v3652
        %3754 = vmatprep.subr.bf16.mxu0 0
        %3755 = vmatpush2.bf16.msra.mxu0 %v3651
        %3756 = vmatprep.subr.bf16.mxu0 0
        %3757 = vmatpush2.bf16.msra.mxu0 %v3650
        %3758 = vmatprep.subr.bf16.mxu0 0
        %3759 = vmatpush2.bf16.msra.mxu0 %v3649
        %3760 = vmatprep.mubr.bf16.mxu0 %v3686
        %3761 = vmatmul.mubr.bf16.gmra.mxu0 %v3438
        %v3762 = vpop.f32.mrf.mxu0
        %v3763 = vadd.f32 %v3723, %v3762
        %v3764 = vpop.f32.mrf.mxu0
        %v3765 = vpop.f32.mrf.mxu0
        %v3766 = vpop.f32.mrf.mxu0
        %3767 = vdwg.mxu0
        %v3768 = vmax.f32 %v3763, 0.0
        %v3769 = vld [vmem:[#allocation6 + $0x760] sm:$0xf]
        %v3770 = vld [vmem:[#allocation6 + $0x764] sm:$0x3]
        %v3771 = vpack.c.bf16 %v3768, %v3768
        %v3774 = vunpack.c.l.b16 %v3769
        %v3775 = vunpack.c.l.b16 %v3770
        %v3776 = vpack.c.b16 %v3775, %v3774
        %v3778 = vsel %vm663, %v3776, 0
        %v3781 = vsel %vm265, %v3771, 0
        %3783 = vmatprep.subr.bf16.mxu0 0
        %3784 = vmatpush1.bf16.msra.mxu0 0
        %3785 = vmatprep.subr.bf16.mxu0 0
        %3786 = vmatpush1.bf16.msra.mxu0 0
        %3787 = vmatprep.subr.bf16.mxu0 0
        %3788 = vmatpush1.bf16.msra.mxu0 0
        %3789 = vmatprep.subr.bf16.mxu0 0
        %3790 = vmatpush1.bf16.msra.mxu0 0
        %3791 = vmatprep.subr.bf16.mxu0 0
        %3792 = vmatpush1.bf16.msra.mxu0 0
        %3793 = vmatprep.subr.bf16.mxu0 0
        %3794 = vmatpush1.bf16.msra.mxu0 0
        %3795 = vmatprep.subr.bf16.mxu0 0
        %3796 = vmatpush1.bf16.msra.mxu0 0
        %3797 = vmatprep.subr.bf16.mxu0 0
        %3798 = vmatpush1.bf16.msra.mxu0 %v3781
        %3799 = vmatprep.subr.bf16.mxu0 0
        %3800 = vmatpush2.bf16.msra.mxu0 0
        %3801 = vmatprep.subr.bf16.mxu0 0
        %3802 = vmatpush2.bf16.msra.mxu0 0
        %3803 = vmatprep.subr.bf16.mxu0 0
        %3804 = vmatpush2.bf16.msra.mxu0 0
        %3805 = vmatprep.subr.bf16.mxu0 0
        %3806 = vmatpush2.bf16.msra.mxu0 0
        %3807 = vmatprep.subr.bf16.mxu0 0
        %3808 = vmatpush2.bf16.msra.mxu0 0
        %3809 = vmatprep.subr.bf16.mxu0 0
        %3810 = vmatpush2.bf16.msra.mxu0 0
        %3811 = vmatprep.subr.bf16.mxu0 0
        %3812 = vmatpush2.bf16.msra.mxu0 0
        %3813 = vmatprep.subr.bf16.mxu0 0
        %3814 = vmatpush2.bf16.msra.mxu0 0
        %3815 = vmatprep.mubr.bf16.mxu0 0
        %3816 = vmatmul.mubr.bf16.gmra.mxu0 %v3778
        %v3817 = vpop.f32.mrf.mxu0
        %v3818 = vadd.f32 0.0, %v3817
        %v3819 = vpop.f32.mrf.mxu0
        %v3820 = vpop.f32.mrf.mxu0
        %v3821 = vadd.f32 0.0, %v3820
        %v3822 = vpop.f32.mrf.mxu0
        %3823 = vdwg.mxu0
        %3824 = vmatprep.subr.bf16.mxu0 0
        %3825 = vmatpush1.bf16.msra.mxu0 0
        %3826 = vmatprep.subr.bf16.mxu0 0
        %3827 = vmatpush1.bf16.msra.mxu0 0
        %3828 = vmatprep.subr.bf16.mxu0 0
        %3829 = vmatpush1.bf16.msra.mxu0 0
        %3830 = vmatprep.subr.bf16.mxu0 0
        %3831 = vmatpush1.bf16.msra.mxu0 0
        %3832 = vmatprep.subr.bf16.mxu0 0
        %3833 = vmatpush1.bf16.msra.mxu0 0
        %3834 = vmatprep.subr.bf16.mxu0 0
        %3835 = vmatpush1.bf16.msra.mxu0 0
        %3836 = vmatprep.subr.bf16.mxu0 0
        %3837 = vmatpush1.bf16.msra.mxu0 0
        %3838 = vmatprep.subr.bf16.mxu0 0
        %3839 = vmatpush1.bf16.msra.mxu0 %v3055
        %3840 = vmatprep.subr.bf16.mxu0 0
        %3841 = vmatpush2.bf16.msra.mxu0 0
        %3842 = vmatprep.subr.bf16.mxu0 0
        %3843 = vmatpush2.bf16.msra.mxu0 0
        %3844 = vmatprep.subr.bf16.mxu0 0
        %3845 = vmatpush2.bf16.msra.mxu0 0
        %3846 = vmatprep.subr.bf16.mxu0 0
        %3847 = vmatpush2.bf16.msra.mxu0 0
        %3848 = vmatprep.subr.bf16.mxu0 0
        %3849 = vmatpush2.bf16.msra.mxu0 0
        %3850 = vmatprep.subr.bf16.mxu0 0
        %3851 = vmatpush2.bf16.msra.mxu0 0
        %3852 = vmatprep.subr.bf16.mxu0 0
        %3853 = vmatpush2.bf16.msra.mxu0 0
        %3854 = vmatprep.subr.bf16.mxu0 0
        %3855 = vmatpush2.bf16.msra.mxu0 0
        %3856 = vmatprep.mubr.bf16.mxu0 0
        %3857 = vmatmul.mubr.bf16.gmra.mxu0 %v3778
        %v3858 = vpop.f32.mrf.mxu0
        %v3859 = vadd.f32 0.0, %v3858
        %v3860 = vpop.f32.mrf.mxu0
        %v3861 = vpop.f32.mrf.mxu0
        %v3862 = vadd.f32 0.0, %v3861
        %v3863 = vpop.f32.mrf.mxu0
        %3864 = vdwg.mxu0
        %v3867 = vrot.slane %v3818, 1
        %v3868 = vrot.slane %v3821, 1
        %v3869 = vsel %vm318, %v3867, %v3868
        %3870 = vrot.lane.b32.xlu0 %v3869, 64
        %v3871 = vpop.permute.xlu0 %3870
        %v3873 = vrot.slane %v3818, 2
        %v3874 = vrot.slane %v3821, 2
        %v3875 = vsel %vm400, %v3873, %v3874
        %v3877 = vrot.slane %v3818, 3
        %v3878 = vrot.slane %v3821, 3
        %v3879 = vsel %vm482, %v3877, %v3878
        %3880 = vrot.lane.b32.xlu0 %v3879, 64
        %v3881 = vpop.permute.xlu0 %3880
        %v3883 = vrot.slane %v3818, 4
        %v3884 = vrot.slane %v3821, 4
        %v3885 = vsel %vm564, %v3883, %v3884
        %3888 = vrot.lane.b32.xlu0 %v3859, 64
        %v3889 = vpop.permute.xlu0 %3888
        %v3892 = vrot.slane %v3859, 1
        %v3893 = vrot.slane %v3862, 1
        %v3894 = vsel %vm318, %v3892, %v3893
        %v3896 = vrot.slane %v3859, 2
        %v3897 = vrot.slane %v3862, 2
        %v3898 = vsel %vm400, %v3896, %v3897
        %3899 = vrot.lane.b32.xlu0 %v3898, 64
        %v3900 = vpop.permute.xlu0 %3899
        %v3902 = vrot.slane %v3859, 3
        %v3903 = vrot.slane %v3862, 3
        %v3904 = vsel %vm482, %v3902, %v3903
        %v3906 = vrot.slane %v3859, 4
        %v3907 = vrot.slane %v3862, 4
        %v3908 = vsel %vm564, %v3906, %v3907
        %3909 = vrot.lane.b32.xlu0 %v3908, 64
        %v3910 = vpop.permute.xlu0 %3909
        %v3912 = vsel %vm1318, %v3818, %v3871
        %v3913 = vsel %vm1318, %v3875, %v3881
        %v3914 = vsel %vm1318, %v3885, %v3889
        %v3915 = vsel %vm1318, %v3894, %v3900
        %v3916 = vsel %vm1318, %v3904, %v3910
        %v3917 = vpack.c.bf16 %v3912, %v3912
        %v3918 = vpack.c.bf16 %v3913, %v3913
        %v3919 = vpack.c.bf16 %v3914, %v3914
        %v3920 = vpack.c.bf16 %v3915, %v3915
        %v3921 = vpack.c.bf16 %v3916, %v3916
        %v3922 = vld [vmem:[#allocation6 + $0x348] sm:$0xf]
        %v3923 = vld [vmem:[#allocation6 + $0x34c] sm:$0xf]
        %v3924 = vld [vmem:[#allocation6 + $0x350] sm:$0xf]
        %v3925 = vld [vmem:[#allocation6 + $0x354] sm:$0xf]
        %v3926 = vld [vmem:[#allocation6 + $0x358] sm:$0xf]
        %v3927 = vld [vmem:[#allocation6 + $0x35c] sm:$0xf]
        %v3928 = vld [vmem:[#allocation6 + $0x360] sm:$0xf]
        %v3929 = vld [vmem:[#allocation6 + $0x364] sm:$0xf]
        %v3930 = vld [vmem:[#allocation6 + $0x368] sm:$0xf]
        %v3931 = vld [vmem:[#allocation6 + $0x36c] sm:$0xf]
        %v3932 = vld [vmem:[#allocation6 + $0x370] sm:$0xf]
        %v3933 = vld [vmem:[#allocation6 + $0x374] sm:$0xf]
        %v3934 = vld [vmem:[#allocation6 + $0x378] sm:$0xf]
        %v3935 = vld [vmem:[#allocation6 + $0x37c] sm:$0xf]
        %v3936 = vld [vmem:[#allocation6 + $0x380] sm:$0xf]
        %v3937 = vld [vmem:[#allocation6 + $0x384] sm:$0xf]
        %v3938 = vld [vmem:[#allocation6 + $0x388] sm:$0xf]
        %v3939 = vld [vmem:[#allocation6 + $0x38c] sm:$0xf]
        %v3940 = vld [vmem:[#allocation6 + $0x390] sm:$0xf]
        %v3941 = vld [vmem:[#allocation6 + $0x394] sm:$0xf]
        %v3942 = vld [vmem:[#allocation6 + $0x398] sm:$0xf]
        %v3943 = vld [vmem:[#allocation6 + $0x39c] sm:$0xf]
        %v3944 = vld [vmem:[#allocation6 + $0x3a0] sm:$0xf]
        %v3945 = vld [vmem:[#allocation6 + $0x3a4] sm:$0xf]
        %v3946 = vld [vmem:[#allocation6 + $0x3a8] sm:$0xf]
        %v3947 = vld [vmem:[#allocation6 + $0x3ac] sm:$0xf]
        %v3948 = vld [vmem:[#allocation6 + $0x3b0] sm:$0xf]
        %v3949 = vld [vmem:[#allocation6 + $0x3b4] sm:$0xf]
        %v3950 = vld [vmem:[#allocation6 + $0x3b8] sm:$0xf]
        %v3951 = vld [vmem:[#allocation6 + $0x3bc] sm:$0xf]
        %v3952 = vld [vmem:[#allocation6 + $0x3c0] sm:$0xf]
        %v3953 = vld [vmem:[#allocation6 + $0x3c4] sm:$0xf]
        %v3954 = vld [vmem:[#allocation6 + $0x3c8] sm:$0xf]
        %v3955 = vld [vmem:[#allocation6 + $0x3cc] sm:$0xf]
        %v3956 = vld [vmem:[#allocation6 + $0x3d0] sm:$0xf]
        %v3957 = vld [vmem:[#allocation6 + $0x3d4] sm:$0xf]
        %v3958 = vld [vmem:[#allocation6 + $0x3d8] sm:$0xf]
        %v3959 = vld [vmem:[#allocation6 + $0x3dc] sm:$0xf]
        %v3960 = vld [vmem:[#allocation6 + $0x3e0] sm:$0xf]
        %v3961 = vld [vmem:[#allocation6 + $0x3e4] sm:$0xf]
        %v3962 = vld [vmem:[#allocation6 + $0x3e8] sm:$0xf]
        %v3963 = vld [vmem:[#allocation6 + $0x3ec] sm:$0xf]
        %v3964 = vld [vmem:[#allocation6 + $0x3f0] sm:$0xf]
        %v3965 = vld [vmem:[#allocation6 + $0x3f4] sm:$0xf]
        %v3966 = vld [vmem:[#allocation6 + $0x3f8] sm:$0xf]
        %v3967 = vld [vmem:[#allocation6 + $0x3fc] sm:$0xf]
        %v3968 = vld [vmem:[#allocation6 + $0x400] sm:$0xf]
        %v3969 = vld [vmem:[#allocation6 + $0x404] sm:$0xf]
        %v3970 = vld [vmem:[#allocation6 + $0x408] sm:$0xf]
        %v3971 = vld [vmem:[#allocation6 + $0x40c] sm:$0xf]
        %v3972 = vld [vmem:[#allocation6 + $0x410] sm:$0xf]
        %v3973 = vld [vmem:[#allocation6 + $0x414] sm:$0xf]
        %v3974 = vld [vmem:[#allocation6 + $0x418] sm:$0xf]
        %v3975 = vld [vmem:[#allocation6 + $0x41c] sm:$0xf]
        %v3976 = vld [vmem:[#allocation6 + $0x420] sm:$0xf]
        %v3977 = vld [vmem:[#allocation6 + $0x424] sm:$0xf]
        %v3978 = vld [vmem:[#allocation6 + $0x428] sm:$0xf]
        %v3979 = vld [vmem:[#allocation6 + $0x42c] sm:$0xf]
        %v3980 = vld [vmem:[#allocation6 + $0x430] sm:$0xf]
        %v3981 = vld [vmem:[#allocation6 + $0x434] sm:$0xf]
        %v3982 = vld [vmem:[#allocation6 + $0x438] sm:$0xf]
        %v3983 = vld [vmem:[#allocation6 + $0x43c] sm:$0xf]
        %v3984 = vld [vmem:[#allocation6 + $0x440] sm:$0xf]
        %v3985 = vld [vmem:[#allocation6 + $0x444] sm:$0xf]
        %v3986 = vld [vmem:[#allocation6 + $0x448] sm:$0xf]
        %v3987 = vld [vmem:[#allocation6 + $0x44c] sm:$0xf]
        %v3988 = vld [vmem:[#allocation6 + $0x450] sm:$0xf]
        %v3989 = vld [vmem:[#allocation6 + $0x454] sm:$0xf]
        %v3990 = vld [vmem:[#allocation6 + $0x458] sm:$0xf]
        %v3991 = vld [vmem:[#allocation6 + $0x45c] sm:$0xf]
        %v3992 = vld [vmem:[#allocation6 + $0x460] sm:$0xf]
        %v3993 = vld [vmem:[#allocation6 + $0x464] sm:$0xf]
        %v3994 = vld [vmem:[#allocation6 + $0x468] sm:$0xf]
        %v3995 = vld [vmem:[#allocation6 + $0x46c] sm:$0xf]
        %v3996 = vld [vmem:[#allocation6 + $0x470] sm:$0xf]
        %v3997 = vld [vmem:[#allocation6 + $0x474] sm:$0xf]
        %v3998 = vld [vmem:[#allocation6 + $0x478] sm:$0xf]
        %v3999 = vld [vmem:[#allocation6 + $0x47c] sm:$0xf]
        %v4000 = vld [vmem:[#allocation6 + $0x480] sm:$0xf]
        %v4001 = vld [vmem:[#allocation6 + $0x484] sm:$0xf]
        %v4002 = vld [vmem:[#allocation8 + $0x9] sm:$0x1]
        %v4003 = vlaneseq
        %v4004 = vshrl.u32 %v4003, 7
        %v4005 = vsub.s32 0, %v4004
        %v4006 = vrot.slane %v4002, %v4005
        %v4087 = vunpack.c.l.b16 %v3922
        %v4088 = vunpack.c.l.b16 %v3923
        %v4089 = vunpack.c.l.b16 %v3924
        %v4090 = vunpack.c.l.b16 %v3925
        %v4091 = vunpack.c.l.b16 %v3926
        %v4092 = vunpack.c.l.b16 %v3927
        %v4093 = vunpack.c.l.b16 %v3928
        %v4094 = vunpack.c.l.b16 %v3929
        %v4095 = vunpack.c.l.b16 %v3930
        %v4096 = vunpack.c.l.b16 %v3931
        %v4097 = vunpack.c.l.b16 %v3932
        %v4098 = vunpack.c.l.b16 %v3933
        %v4099 = vunpack.c.l.b16 %v3934
        %v4100 = vunpack.c.l.b16 %v3935
        %v4101 = vunpack.c.l.b16 %v3936
        %v4102 = vunpack.c.l.b16 %v3937
        %v4103 = vunpack.c.l.b16 %v3938
        %v4104 = vunpack.c.l.b16 %v3939
        %v4105 = vunpack.c.l.b16 %v3940
        %v4106 = vunpack.c.l.b16 %v3941
        %v4107 = vunpack.c.l.b16 %v3942
        %v4108 = vunpack.c.l.b16 %v3943
        %v4109 = vunpack.c.l.b16 %v3944
        %v4110 = vunpack.c.l.b16 %v3945
        %v4111 = vunpack.c.l.b16 %v3946
        %v4112 = vunpack.c.l.b16 %v3947
        %v4113 = vunpack.c.l.b16 %v3948
        %v4114 = vunpack.c.l.b16 %v3949
        %v4115 = vunpack.c.l.b16 %v3950
        %v4116 = vunpack.c.l.b16 %v3951
        %v4117 = vunpack.c.l.b16 %v3952
        %v4118 = vunpack.c.l.b16 %v3953
        %v4119 = vunpack.c.l.b16 %v3954
        %v4120 = vunpack.c.l.b16 %v3955
        %v4121 = vunpack.c.l.b16 %v3956
        %v4122 = vunpack.c.l.b16 %v3957
        %v4123 = vunpack.c.l.b16 %v3958
        %v4124 = vunpack.c.l.b16 %v3959
        %v4125 = vunpack.c.l.b16 %v3960
        %v4126 = vunpack.c.l.b16 %v3961
        %v4127 = vunpack.c.l.b16 %v3962
        %v4128 = vunpack.c.l.b16 %v3963
        %v4129 = vunpack.c.l.b16 %v3964
        %v4130 = vunpack.c.l.b16 %v3965
        %v4131 = vunpack.c.l.b16 %v3966
        %v4132 = vunpack.c.l.b16 %v3967
        %v4133 = vunpack.c.l.b16 %v3968
        %v4134 = vunpack.c.l.b16 %v3969
        %v4135 = vunpack.c.l.b16 %v3970
        %v4136 = vunpack.c.l.b16 %v3971
        %v4137 = vunpack.c.l.b16 %v3972
        %v4138 = vunpack.c.l.b16 %v3973
        %v4139 = vunpack.c.l.b16 %v3974
        %v4140 = vunpack.c.l.b16 %v3975
        %v4141 = vunpack.c.l.b16 %v3976
        %v4142 = vunpack.c.l.b16 %v3977
        %v4143 = vunpack.c.l.b16 %v3978
        %v4144 = vunpack.c.l.b16 %v3979
        %v4145 = vunpack.c.l.b16 %v3980
        %v4146 = vunpack.c.l.b16 %v3981
        %v4147 = vunpack.c.l.b16 %v3982
        %v4148 = vunpack.c.l.b16 %v3983
        %v4149 = vunpack.c.l.b16 %v3984
        %v4150 = vunpack.c.l.b16 %v3985
        %v4151 = vunpack.c.l.b16 %v3986
        %v4152 = vunpack.c.l.b16 %v3987
        %v4153 = vunpack.c.l.b16 %v3988
        %v4154 = vunpack.c.l.b16 %v3989
        %v4155 = vunpack.c.l.b16 %v3990
        %v4156 = vunpack.c.l.b16 %v3991
        %v4157 = vunpack.c.l.b16 %v3992
        %v4158 = vunpack.c.l.b16 %v3993
        %v4159 = vunpack.c.l.b16 %v3994
        %v4160 = vunpack.c.l.b16 %v3995
        %v4161 = vunpack.c.l.b16 %v3996
        %v4162 = vunpack.c.l.b16 %v3997
        %v4163 = vunpack.c.l.b16 %v3998
        %v4164 = vunpack.c.l.b16 %v3999
        %v4165 = vunpack.c.l.b16 %v4000
        %v4166 = vunpack.c.l.b16 %v4001
        %v4167 = vpack.c.b16 %v4088, %v4087
        %v4168 = vpack.c.b16 %v4090, %v4089
        %v4169 = vpack.c.b16 %v4092, %v4091
        %v4170 = vpack.c.b16 %v4094, %v4093
        %v4171 = vpack.c.b16 %v4096, %v4095
        %v4172 = vpack.c.b16 %v4098, %v4097
        %v4173 = vpack.c.b16 %v4100, %v4099
        %v4174 = vpack.c.b16 %v4102, %v4101
        %v4175 = vpack.c.b16 %v4104, %v4103
        %v4176 = vpack.c.b16 %v4106, %v4105
        %v4177 = vpack.c.b16 %v4108, %v4107
        %v4178 = vpack.c.b16 %v4110, %v4109
        %v4179 = vpack.c.b16 %v4112, %v4111
        %v4180 = vpack.c.b16 %v4114, %v4113
        %v4181 = vpack.c.b16 %v4116, %v4115
        %v4182 = vpack.c.b16 %v4118, %v4117
        %v4183 = vpack.c.b16 %v4120, %v4119
        %v4184 = vpack.c.b16 %v4122, %v4121
        %v4185 = vpack.c.b16 %v4124, %v4123
        %v4186 = vpack.c.b16 %v4126, %v4125
        %v4187 = vpack.c.b16 %v4128, %v4127
        %v4188 = vpack.c.b16 %v4130, %v4129
        %v4189 = vpack.c.b16 %v4132, %v4131
        %v4190 = vpack.c.b16 %v4134, %v4133
        %v4191 = vpack.c.b16 %v4136, %v4135
        %v4192 = vpack.c.b16 %v4138, %v4137
        %v4193 = vpack.c.b16 %v4140, %v4139
        %v4194 = vpack.c.b16 %v4142, %v4141
        %v4195 = vpack.c.b16 %v4144, %v4143
        %v4196 = vpack.c.b16 %v4146, %v4145
        %v4197 = vpack.c.b16 %v4148, %v4147
        %v4198 = vpack.c.b16 %v4150, %v4149
        %v4199 = vpack.c.b16 %v4152, %v4151
        %v4200 = vpack.c.b16 %v4154, %v4153
        %v4201 = vpack.c.b16 %v4156, %v4155
        %v4202 = vpack.c.b16 %v4158, %v4157
        %v4203 = vpack.c.b16 %v4160, %v4159
        %v4204 = vpack.c.b16 %v4162, %v4161
        %v4205 = vpack.c.b16 %v4164, %v4163
        %v4206 = vpack.c.b16 %v4166, %v4165
        %4247 = vmatprep.subr.bf16.mxu0 0
        %4248 = vmatpush1.bf16.msra.mxu0 %v4174
        %4249 = vmatprep.subr.bf16.mxu0 0
        %4250 = vmatpush1.bf16.msra.mxu0 %v4173
        %4251 = vmatprep.subr.bf16.mxu0 0
        %4252 = vmatpush1.bf16.msra.mxu0 %v4172
        %4253 = vmatprep.subr.bf16.mxu0 0
        %4254 = vmatpush1.bf16.msra.mxu0 %v4171
        %4255 = vmatprep.subr.bf16.mxu0 0
        %4256 = vmatpush1.bf16.msra.mxu0 %v4170
        %4257 = vmatprep.subr.bf16.mxu0 0
        %4258 = vmatpush1.bf16.msra.mxu0 %v4169
        %4259 = vmatprep.subr.bf16.mxu0 0
        %4260 = vmatpush1.bf16.msra.mxu0 %v4168
        %4261 = vmatprep.subr.bf16.mxu0 0
        %4262 = vmatpush1.bf16.msra.mxu0 %v4167
        %4263 = vmatprep.subr.bf16.mxu0 0
        %4264 = vmatpush2.bf16.msra.mxu0 %v4182
        %4265 = vmatprep.subr.bf16.mxu0 0
        %4266 = vmatpush2.bf16.msra.mxu0 %v4181
        %4267 = vmatprep.subr.bf16.mxu0 0
        %4268 = vmatpush2.bf16.msra.mxu0 %v4180
        %4269 = vmatprep.subr.bf16.mxu0 0
        %4270 = vmatpush2.bf16.msra.mxu0 %v4179
        %4271 = vmatprep.subr.bf16.mxu0 0
        %4272 = vmatpush2.bf16.msra.mxu0 %v4178
        %4273 = vmatprep.subr.bf16.mxu0 0
        %4274 = vmatpush2.bf16.msra.mxu0 %v4177
        %4275 = vmatprep.subr.bf16.mxu0 0
        %4276 = vmatpush2.bf16.msra.mxu0 %v4176
        %4277 = vmatprep.subr.bf16.mxu0 0
        %4278 = vmatpush2.bf16.msra.mxu0 %v4175
        %4279 = vmatprep.mubr.bf16.mxu0 %v3918
        %4280 = vmatmul.mubr.bf16.gmra.mxu0 %v3917
        %v4281 = vpop.f32.mrf.mxu0
        %v4282 = vadd.f32 %v4006, %v4281
        %v4283 = vpop.f32.mrf.mxu0
        %v4284 = vpop.f32.mrf.mxu0
        %v4285 = vpop.f32.mrf.mxu0
        %4286 = vdwg.mxu0
        %4287 = vmatprep.subr.bf16.mxu0 0
        %4288 = vmatpush1.bf16.msra.mxu0 %v4190
        %4289 = vmatprep.subr.bf16.mxu0 0
        %4290 = vmatpush1.bf16.msra.mxu0 %v4189
        %4291 = vmatprep.subr.bf16.mxu0 0
        %4292 = vmatpush1.bf16.msra.mxu0 %v4188
        %4293 = vmatprep.subr.bf16.mxu0 0
        %4294 = vmatpush1.bf16.msra.mxu0 %v4187
        %4295 = vmatprep.subr.bf16.mxu0 0
        %4296 = vmatpush1.bf16.msra.mxu0 %v4186
        %4297 = vmatprep.subr.bf16.mxu0 0
        %4298 = vmatpush1.bf16.msra.mxu0 %v4185
        %4299 = vmatprep.subr.bf16.mxu0 0
        %4300 = vmatpush1.bf16.msra.mxu0 %v4184
        %4301 = vmatprep.subr.bf16.mxu0 0
        %4302 = vmatpush1.bf16.msra.mxu0 %v4183
        %4303 = vmatprep.subr.bf16.mxu0 0
        %4304 = vmatpush2.bf16.msra.mxu0 %v4198
        %4305 = vmatprep.subr.bf16.mxu0 0
        %4306 = vmatpush2.bf16.msra.mxu0 %v4197
        %4307 = vmatprep.subr.bf16.mxu0 0
        %4308 = vmatpush2.bf16.msra.mxu0 %v4196
        %4309 = vmatprep.subr.bf16.mxu0 0
        %4310 = vmatpush2.bf16.msra.mxu0 %v4195
        %4311 = vmatprep.subr.bf16.mxu0 0
        %4312 = vmatpush2.bf16.msra.mxu0 %v4194
        %4313 = vmatprep.subr.bf16.mxu0 0
        %4314 = vmatpush2.bf16.msra.mxu0 %v4193
        %4315 = vmatprep.subr.bf16.mxu0 0
        %4316 = vmatpush2.bf16.msra.mxu0 %v4192
        %4317 = vmatprep.subr.bf16.mxu0 0
        %4318 = vmatpush2.bf16.msra.mxu0 %v4191
        %4319 = vmatprep.mubr.bf16.mxu0 %v3920
        %4320 = vmatmul.mubr.bf16.gmra.mxu0 %v3919
        %v4321 = vpop.f32.mrf.mxu0
        %v4322 = vadd.f32 %v4282, %v4321
        %v4323 = vpop.f32.mrf.mxu0
        %v4324 = vpop.f32.mrf.mxu0
        %v4325 = vpop.f32.mrf.mxu0
        %4326 = vdwg.mxu0
        %4327 = vmatprep.subr.bf16.mxu0 0
        %4328 = vmatpush1.bf16.msra.mxu0 %v4206
        %4329 = vmatprep.subr.bf16.mxu0 0
        %4330 = vmatpush1.bf16.msra.mxu0 %v4205
        %4331 = vmatprep.subr.bf16.mxu0 0
        %4332 = vmatpush1.bf16.msra.mxu0 %v4204
        %4333 = vmatprep.subr.bf16.mxu0 0
        %4334 = vmatpush1.bf16.msra.mxu0 %v4203
        %4335 = vmatprep.subr.bf16.mxu0 0
        %4336 = vmatpush1.bf16.msra.mxu0 %v4202
        %4337 = vmatprep.subr.bf16.mxu0 0
        %4338 = vmatpush1.bf16.msra.mxu0 %v4201
        %4339 = vmatprep.subr.bf16.mxu0 0
        %4340 = vmatpush1.bf16.msra.mxu0 %v4200
        %4341 = vmatprep.subr.bf16.mxu0 0
        %4342 = vmatpush1.bf16.msra.mxu0 %v4199
        %4343 = vmatprep.subr.bf16.mxu0 0
        %4344 = vmatpush2.bf16.msra.mxu0 0
        %4345 = vmatprep.subr.bf16.mxu0 0
        %4346 = vmatpush2.bf16.msra.mxu0 0
        %4347 = vmatprep.subr.bf16.mxu0 0
        %4348 = vmatpush2.bf16.msra.mxu0 0
        %4349 = vmatprep.subr.bf16.mxu0 0
        %4350 = vmatpush2.bf16.msra.mxu0 0
        %4351 = vmatprep.subr.bf16.mxu0 0
        %4352 = vmatpush2.bf16.msra.mxu0 0
        %4353 = vmatprep.subr.bf16.mxu0 0
        %4354 = vmatpush2.bf16.msra.mxu0 0
        %4355 = vmatprep.subr.bf16.mxu0 0
        %4356 = vmatpush2.bf16.msra.mxu0 0
        %4357 = vmatprep.subr.bf16.mxu0 0
        %4358 = vmatpush2.bf16.msra.mxu0 0
        %4359 = vmatprep.mubr.bf16.mxu0 0
        %4360 = vmatmul.mubr.bf16.gmra.mxu0 %v3921
        %v4361 = vpop.f32.mrf.mxu0
        %v4362 = vadd.f32 %v4322, %v4361
        %v4363 = vpop.f32.mrf.mxu0
        %v4364 = vpop.f32.mrf.mxu0
        %v4365 = vpop.f32.mrf.mxu0
        %4366 = vdwg.mxu0
        %v4367 = vmax.f32 %v4362, 0.0
        %v4368 = vld [vmem:[#allocation6 + $0x760] sm:$0xf]
        %v4369 = vld [vmem:[#allocation6 + $0x764] sm:$0xf]
        %v4370 = vld [vmem:[#allocation6 + $0x768] sm:$0x3]
        %v4371 = vpack.c.bf16 %v4367, %v4367
        %v4375 = vunpack.c.l.b16 %v4368
        %v4376 = vunpack.c.l.b16 %v4369
        %v4377 = vunpack.c.l.b16 %v4370
        %v4378 = vpack.c.b16 %v4376, %v4375
        %v4379 = vpack.c.b16 %v4377, %v4377
        %v4381 = vsel %vm697, %v4378, 0
        %v4384 = vsel %vm697, %v4379, 0
        %v4387 = vsel %vm564, %v4371, 0
        %4389 = vmatprep.subr.bf16.mxu0 0
        %4390 = vmatpush1.bf16.msra.mxu0 0
        %4391 = vmatprep.subr.bf16.mxu0 0
        %4392 = vmatpush1.bf16.msra.mxu0 0
        %4393 = vmatprep.subr.bf16.mxu0 0
        %4394 = vmatpush1.bf16.msra.mxu0 0
        %4395 = vmatprep.subr.bf16.mxu0 0
        %4396 = vmatpush1.bf16.msra.mxu0 0
        %4397 = vmatprep.subr.bf16.mxu0 0
        %4398 = vmatpush1.bf16.msra.mxu0 0
        %4399 = vmatprep.subr.bf16.mxu0 0
        %4400 = vmatpush1.bf16.msra.mxu0 0
        %4401 = vmatprep.subr.bf16.mxu0 0
        %4402 = vmatpush1.bf16.msra.mxu0 0
        %4403 = vmatprep.subr.bf16.mxu0 0
        %4404 = vmatpush1.bf16.msra.mxu0 %v4387
        %4405 = vmatprep.subr.bf16.mxu0 0
        %4406 = vmatpush2.bf16.msra.mxu0 0
        %4407 = vmatprep.subr.bf16.mxu0 0
        %4408 = vmatpush2.bf16.msra.mxu0 0
        %4409 = vmatprep.subr.bf16.mxu0 0
        %4410 = vmatpush2.bf16.msra.mxu0 0
        %4411 = vmatprep.subr.bf16.mxu0 0
        %4412 = vmatpush2.bf16.msra.mxu0 0
        %4413 = vmatprep.subr.bf16.mxu0 0
        %4414 = vmatpush2.bf16.msra.mxu0 0
        %4415 = vmatprep.subr.bf16.mxu0 0
        %4416 = vmatpush2.bf16.msra.mxu0 0
        %4417 = vmatprep.subr.bf16.mxu0 0
        %4418 = vmatpush2.bf16.msra.mxu0 0
        %4419 = vmatprep.subr.bf16.mxu0 0
        %4420 = vmatpush2.bf16.msra.mxu0 0
        %4421 = vmatprep.mubr.bf16.mxu0 0
        %4422 = vmatmul.mubr.bf16.gmra.mxu0 %v4381
        %v4423 = vpop.f32.mrf.mxu0
        %v4424 = vadd.f32 0.0, %v4423
        %v4425 = vpop.f32.mrf.mxu0
        %v4426 = vpop.f32.mrf.mxu0
        %v4427 = vadd.f32 0.0, %v4426
        %v4428 = vpop.f32.mrf.mxu0
        %4429 = vmatprep.mubr.bf16.mxu0 0
        %4430 = vmatmul.mubr.bf16.gmra.mxu0 %v4384
        %v4431 = vpop.f32.mrf.mxu0
        %v4432 = vadd.f32 0.0, %v4431
        %v4433 = vpop.f32.mrf.mxu0
        %v4434 = vpop.f32.mrf.mxu0
        %v4435 = vpop.f32.mrf.mxu0
        %4436 = vdwg.mxu0
        %4437 = vmatprep.subr.bf16.mxu0 0
        %4438 = vmatpush1.bf16.msra.mxu0 0
        %4439 = vmatprep.subr.bf16.mxu0 0
        %4440 = vmatpush1.bf16.msra.mxu0 0
        %4441 = vmatprep.subr.bf16.mxu0 0
        %4442 = vmatpush1.bf16.msra.mxu0 0
        %4443 = vmatprep.subr.bf16.mxu0 0
        %4444 = vmatpush1.bf16.msra.mxu0 0
        %4445 = vmatprep.subr.bf16.mxu0 0
        %4446 = vmatpush1.bf16.msra.mxu0 0
        %4447 = vmatprep.subr.bf16.mxu0 0
        %4448 = vmatpush1.bf16.msra.mxu0 0
        %4449 = vmatprep.subr.bf16.mxu0 0
        %4450 = vmatpush1.bf16.msra.mxu0 0
        %4451 = vmatprep.subr.bf16.mxu0 0
        %4452 = vmatpush1.bf16.msra.mxu0 %v2812
        %4453 = vmatprep.subr.bf16.mxu0 0
        %4454 = vmatpush2.bf16.msra.mxu0 0
        %4455 = vmatprep.subr.bf16.mxu0 0
        %4456 = vmatpush2.bf16.msra.mxu0 0
        %4457 = vmatprep.subr.bf16.mxu0 0
        %4458 = vmatpush2.bf16.msra.mxu0 0
        %4459 = vmatprep.subr.bf16.mxu0 0
        %4460 = vmatpush2.bf16.msra.mxu0 0
        %4461 = vmatprep.subr.bf16.mxu0 0
        %4462 = vmatpush2.bf16.msra.mxu0 0
        %4463 = vmatprep.subr.bf16.mxu0 0
        %4464 = vmatpush2.bf16.msra.mxu0 0
        %4465 = vmatprep.subr.bf16.mxu0 0
        %4466 = vmatpush2.bf16.msra.mxu0 0
        %4467 = vmatprep.subr.bf16.mxu0 0
        %4468 = vmatpush2.bf16.msra.mxu0 0
        %4469 = vmatprep.mubr.bf16.mxu0 0
        %4470 = vmatmul.mubr.bf16.gmra.mxu0 %v4381
        %v4471 = vpop.f32.mrf.mxu0
        %v4472 = vadd.f32 0.0, %v4471
        %v4473 = vpop.f32.mrf.mxu0
        %v4474 = vpop.f32.mrf.mxu0
        %v4475 = vadd.f32 0.0, %v4474
        %v4476 = vpop.f32.mrf.mxu0
        %4477 = vmatprep.mubr.bf16.mxu0 0
        %4478 = vmatmul.mubr.bf16.gmra.mxu0 %v4384
        %v4479 = vpop.f32.mrf.mxu0
        %v4480 = vadd.f32 0.0, %v4479
        %v4481 = vpop.f32.mrf.mxu0
        %v4482 = vpop.f32.mrf.mxu0
        %v4483 = vpop.f32.mrf.mxu0
        %4484 = vdwg.mxu0
        %v4488 = vrot.slane %v4424, 1
        %v4489 = vrot.slane %v4427, 1
        %v4490 = vsel %vm318, %v4488, %v4489
        %v4491 = vrot.slane %v4432, 1
        %v4492 = vsel %vm318, %v4489, %v4491
        %4493 = vrot.lane.b32.xlu0 %v4490, 64
        %v4494 = vpop.permute.xlu0 %4493
        %4495 = vrot.lane.b32.xlu0 %v4492, 64
        %v4496 = vpop.permute.xlu0 %4495
        %v4499 = vrot.slane %v4424, 2
        %v4500 = vrot.slane %v4427, 2
        %v4501 = vsel %vm400, %v4499, %v4500
        %v4502 = vrot.slane %v4432, 2
        %v4503 = vsel %vm400, %v4500, %v4502
        %v4506 = vrot.slane %v4424, 3
        %v4507 = vrot.slane %v4427, 3
        %v4508 = vsel %vm482, %v4506, %v4507
        %v4509 = vrot.slane %v4432, 3
        %v4510 = vsel %vm482, %v4507, %v4509
        %4511 = vrot.lane.b32.xlu0 %v4508, 64
        %v4512 = vpop.permute.xlu0 %4511
        %4513 = vrot.lane.b32.xlu0 %v4510, 64
        %v4514 = vpop.permute.xlu0 %4513
        %v4517 = vrot.slane %v4424, 4
        %v4518 = vrot.slane %v4427, 4
        %v4519 = vsel %vm564, %v4517, %v4518
        %v4520 = vrot.slane %v4432, 4
        %v4521 = vsel %vm564, %v4518, %v4520
        %4526 = vrot.lane.b32.xlu0 %v4472, 64
        %v4527 = vpop.permute.xlu0 %4526
        %4528 = vrot.lane.b32.xlu0 %v4475, 64
        %v4529 = vpop.permute.xlu0 %4528
        %v4533 = vrot.slane %v4472, 1
        %v4534 = vrot.slane %v4475, 1
        %v4535 = vsel %vm318, %v4533, %v4534
        %v4536 = vrot.slane %v4480, 1
        %v4537 = vsel %vm318, %v4534, %v4536
        %4538 = vrot.lane.b32.xlu0 %v4535, 112
        %v4539 = vpop.permute.xlu0 %4538
        %4540 = vrot.lane.b32.xlu0 %v4537, 112
        %v4541 = vpop.permute.xlu0 %4540
        %v4544 = vrot.slane %v4472, 2
        %v4545 = vrot.slane %v4475, 2
        %v4546 = vsel %vm400, %v4544, %v4545
        %v4547 = vrot.slane %v4480, 2
        %v4548 = vsel %vm400, %v4545, %v4547
        %4549 = vrot.lane.b32.xlu0 %v4546, 32
        %v4550 = vpop.permute.xlu0 %4549
        %4551 = vrot.lane.b32.xlu0 %v4548, 32
        %v4552 = vpop.permute.xlu0 %4551
        %v4555 = vrot.slane %v4472, 3
        %v4556 = vrot.slane %v4475, 3
        %v4557 = vsel %vm482, %v4555, %v4556
        %v4558 = vrot.slane %v4480, 3
        %v4559 = vsel %vm482, %v4556, %v4558
        %4560 = vrot.lane.b32.xlu0 %v4557, 80
        %v4561 = vpop.permute.xlu0 %4560
        %4562 = vrot.lane.b32.xlu0 %v4559, 80
        %v4563 = vpop.permute.xlu0 %4562
        %v4566 = vrot.slane %v4472, 4
        %v4567 = vrot.slane %v4475, 4
        %v4568 = vsel %vm564, %v4566, %v4567
        %v4569 = vrot.slane %v4480, 4
        %v4570 = vsel %vm564, %v4567, %v4569
        %v4573 = vsel %vm1318, %v4424, %v4494
        %v4574 = vsel %vm1318, %v4427, %v4496
        %v4575 = vsel %vm1318, %v4501, %v4512
        %v4576 = vsel %vm1318, %v4503, %v4514
        %v4577 = vsel %vm1318, %v4519, %v4527
        %v4578 = vsel %vm1318, %v4521, %v4529
        %v4579 = vsel %vm2469, %v4577, %v4539
        %v4580 = vsel %vm2469, %v4578, %v4541
        %v4581 = vsel %vm1284, %v4539, %v4550
        %v4582 = vsel %vm1284, %v4541, %v4552
        %v4583 = vsel %vm1388, %v4581, %v4561
        %v4584 = vsel %vm1388, %v4582, %v4563
        %v4585 = vpack.c.bf16 %v4574, %v4573
        %v4586 = vpack.c.bf16 %v4576, %v4575
        %v4587 = vpack.c.bf16 %v4580, %v4579
        %v4588 = vpack.c.bf16 %v4584, %v4583
        %v4589 = vpack.c.bf16 %v4570, %v4568
        %v4590 = vld [vmem:[#allocation6 + $0x488] sm:$0xf]
        %v4591 = vld [vmem:[#allocation6 + $0x48c] sm:$0xf]
        %v4592 = vld [vmem:[#allocation6 + $0x490] sm:$0xf]
        %v4593 = vld [vmem:[#allocation6 + $0x494] sm:$0xf]
        %v4594 = vld [vmem:[#allocation6 + $0x498] sm:$0xf]
        %v4595 = vld [vmem:[#allocation6 + $0x49c] sm:$0xf]
        %v4596 = vld [vmem:[#allocation6 + $0x4a0] sm:$0xf]
        %v4597 = vld [vmem:[#allocation6 + $0x4a4] sm:$0xf]
        %v4598 = vld [vmem:[#allocation6 + $0x4a8] sm:$0xf]
        %v4599 = vld [vmem:[#allocation6 + $0x4ac] sm:$0xf]
        %v4600 = vld [vmem:[#allocation6 + $0x4b0] sm:$0xf]
        %v4601 = vld [vmem:[#allocation6 + $0x4b4] sm:$0xf]
        %v4602 = vld [vmem:[#allocation6 + $0x4b8] sm:$0xf]
        %v4603 = vld [vmem:[#allocation6 + $0x4bc] sm:$0xf]
        %v4604 = vld [vmem:[#allocation6 + $0x4c0] sm:$0xf]
        %v4605 = vld [vmem:[#allocation6 + $0x4c4] sm:$0xf]
        %v4606 = vld [vmem:[#allocation6 + $0x4c8] sm:$0xf]
        %v4607 = vld [vmem:[#allocation6 + $0x4cc] sm:$0xf]
        %v4608 = vld [vmem:[#allocation6 + $0x4d0] sm:$0xf]
        %v4609 = vld [vmem:[#allocation6 + $0x4d4] sm:$0xf]
        %v4610 = vld [vmem:[#allocation6 + $0x4d8] sm:$0xf]
        %v4611 = vld [vmem:[#allocation6 + $0x4dc] sm:$0xf]
        %v4612 = vld [vmem:[#allocation6 + $0x4e0] sm:$0xf]
        %v4613 = vld [vmem:[#allocation6 + $0x4e4] sm:$0xf]
        %v4614 = vld [vmem:[#allocation6 + $0x4e8] sm:$0xf]
        %v4615 = vld [vmem:[#allocation6 + $0x4ec] sm:$0xf]
        %v4616 = vld [vmem:[#allocation6 + $0x4f0] sm:$0xf]
        %v4617 = vld [vmem:[#allocation6 + $0x4f4] sm:$0xf]
        %v4618 = vld [vmem:[#allocation6 + $0x4f8] sm:$0xf]
        %v4619 = vld [vmem:[#allocation6 + $0x4fc] sm:$0xf]
        %v4620 = vld [vmem:[#allocation6 + $0x500] sm:$0xf]
        %v4621 = vld [vmem:[#allocation6 + $0x504] sm:$0xf]
        %v4622 = vld [vmem:[#allocation6 + $0x508] sm:$0xf]
        %v4623 = vld [vmem:[#allocation6 + $0x50c] sm:$0xf]
        %v4624 = vld [vmem:[#allocation6 + $0x510] sm:$0xf]
        %v4625 = vld [vmem:[#allocation6 + $0x514] sm:$0xf]
        %v4626 = vld [vmem:[#allocation6 + $0x518] sm:$0xf]
        %v4627 = vld [vmem:[#allocation6 + $0x51c] sm:$0xf]
        %v4628 = vld [vmem:[#allocation6 + $0x520] sm:$0xf]
        %v4629 = vld [vmem:[#allocation6 + $0x524] sm:$0xf]
        %v4630 = vld [vmem:[#allocation6 + $0x528] sm:$0xf]
        %v4631 = vld [vmem:[#allocation6 + $0x52c] sm:$0xf]
        %v4632 = vld [vmem:[#allocation6 + $0x530] sm:$0xf]
        %v4633 = vld [vmem:[#allocation6 + $0x534] sm:$0xf]
        %v4634 = vld [vmem:[#allocation6 + $0x538] sm:$0xf]
        %v4635 = vld [vmem:[#allocation6 + $0x53c] sm:$0xf]
        %v4636 = vld [vmem:[#allocation6 + $0x540] sm:$0xf]
        %v4637 = vld [vmem:[#allocation6 + $0x544] sm:$0xf]
        %v4638 = vld [vmem:[#allocation6 + $0x548] sm:$0xf]
        %v4639 = vld [vmem:[#allocation6 + $0x54c] sm:$0xf]
        %v4640 = vld [vmem:[#allocation6 + $0x550] sm:$0xf]
        %v4641 = vld [vmem:[#allocation6 + $0x554] sm:$0xf]
        %v4642 = vld [vmem:[#allocation6 + $0x558] sm:$0xf]
        %v4643 = vld [vmem:[#allocation6 + $0x55c] sm:$0xf]
        %v4644 = vld [vmem:[#allocation6 + $0x560] sm:$0xf]
        %v4645 = vld [vmem:[#allocation6 + $0x564] sm:$0xf]
        %v4646 = vld [vmem:[#allocation6 + $0x568] sm:$0xf]
        %v4647 = vld [vmem:[#allocation6 + $0x56c] sm:$0xf]
        %v4648 = vld [vmem:[#allocation6 + $0x570] sm:$0xf]
        %v4649 = vld [vmem:[#allocation6 + $0x574] sm:$0xf]
        %v4650 = vld [vmem:[#allocation6 + $0x578] sm:$0xf]
        %v4651 = vld [vmem:[#allocation6 + $0x57c] sm:$0xf]
        %v4652 = vld [vmem:[#allocation6 + $0x580] sm:$0xf]
        %v4653 = vld [vmem:[#allocation6 + $0x584] sm:$0xf]
        %v4654 = vld [vmem:[#allocation6 + $0x588] sm:$0xf]
        %v4655 = vld [vmem:[#allocation6 + $0x58c] sm:$0xf]
        %v4656 = vld [vmem:[#allocation6 + $0x590] sm:$0xf]
        %v4657 = vld [vmem:[#allocation6 + $0x594] sm:$0xf]
        %v4658 = vld [vmem:[#allocation6 + $0x598] sm:$0xf]
        %v4659 = vld [vmem:[#allocation6 + $0x59c] sm:$0xf]
        %v4660 = vld [vmem:[#allocation8 + $0xa] sm:$0x1]
        %v4661 = vlaneseq
        %v4662 = vshrl.u32 %v4661, 7
        %v4663 = vsub.s32 0, %v4662
        %v4664 = vrot.slane %v4660, %v4663
        %v4735 = vunpack.c.l.b16 %v4590
        %v4736 = vunpack.c.l.b16 %v4591
        %v4737 = vunpack.c.l.b16 %v4592
        %v4738 = vunpack.c.l.b16 %v4593
        %v4739 = vunpack.c.l.b16 %v4594
        %v4740 = vunpack.c.l.b16 %v4595
        %v4741 = vunpack.c.l.b16 %v4596
        %v4742 = vunpack.c.l.b16 %v4597
        %v4743 = vunpack.c.l.b16 %v4598
        %v4744 = vunpack.c.l.b16 %v4599
        %v4745 = vunpack.c.l.b16 %v4600
        %v4746 = vunpack.c.l.b16 %v4601
        %v4747 = vunpack.c.l.b16 %v4602
        %v4748 = vunpack.c.l.b16 %v4603
        %v4749 = vunpack.c.l.b16 %v4604
        %v4750 = vunpack.c.l.b16 %v4605
        %v4751 = vunpack.c.l.b16 %v4606
        %v4752 = vunpack.c.l.b16 %v4607
        %v4753 = vunpack.c.l.b16 %v4608
        %v4754 = vunpack.c.l.b16 %v4609
        %v4755 = vunpack.c.l.b16 %v4610
        %v4756 = vunpack.c.l.b16 %v4611
        %v4757 = vunpack.c.l.b16 %v4612
        %v4758 = vunpack.c.l.b16 %v4613
        %v4759 = vunpack.c.l.b16 %v4614
        %v4760 = vunpack.c.l.b16 %v4615
        %v4761 = vunpack.c.l.b16 %v4616
        %v4762 = vunpack.c.l.b16 %v4617
        %v4763 = vunpack.c.l.b16 %v4618
        %v4764 = vunpack.c.l.b16 %v4619
        %v4765 = vunpack.c.l.b16 %v4620
        %v4766 = vunpack.c.l.b16 %v4621
        %v4767 = vunpack.c.l.b16 %v4622
        %v4768 = vunpack.c.l.b16 %v4623
        %v4769 = vunpack.c.l.b16 %v4624
        %v4770 = vunpack.c.l.b16 %v4625
        %v4771 = vunpack.c.l.b16 %v4626
        %v4772 = vunpack.c.l.b16 %v4627
        %v4773 = vunpack.c.l.b16 %v4628
        %v4774 = vunpack.c.l.b16 %v4629
        %v4775 = vunpack.c.l.b16 %v4630
        %v4776 = vunpack.c.l.b16 %v4631
        %v4777 = vunpack.c.l.b16 %v4632
        %v4778 = vunpack.c.l.b16 %v4633
        %v4779 = vunpack.c.l.b16 %v4634
        %v4780 = vunpack.c.l.b16 %v4635
        %v4781 = vunpack.c.l.b16 %v4636
        %v4782 = vunpack.c.l.b16 %v4637
        %v4783 = vunpack.c.l.b16 %v4638
        %v4784 = vunpack.c.l.b16 %v4639
        %v4785 = vunpack.c.l.b16 %v4640
        %v4786 = vunpack.c.l.b16 %v4641
        %v4787 = vunpack.c.l.b16 %v4642
        %v4788 = vunpack.c.l.b16 %v4643
        %v4789 = vunpack.c.l.b16 %v4644
        %v4790 = vunpack.c.l.b16 %v4645
        %v4791 = vunpack.c.l.b16 %v4646
        %v4792 = vunpack.c.l.b16 %v4647
        %v4793 = vunpack.c.l.b16 %v4648
        %v4794 = vunpack.c.l.b16 %v4649
        %v4795 = vunpack.c.l.b16 %v4650
        %v4796 = vunpack.c.l.b16 %v4651
        %v4797 = vunpack.c.l.b16 %v4652
        %v4798 = vunpack.c.l.b16 %v4653
        %v4799 = vunpack.c.l.b16 %v4654
        %v4800 = vunpack.c.l.b16 %v4655
        %v4801 = vunpack.c.l.b16 %v4656
        %v4802 = vunpack.c.l.b16 %v4657
        %v4803 = vunpack.c.l.b16 %v4658
        %v4804 = vunpack.c.l.b16 %v4659
        %v4805 = vpack.c.b16 %v4736, %v4735
        %v4806 = vpack.c.b16 %v4738, %v4737
        %v4807 = vpack.c.b16 %v4740, %v4739
        %v4808 = vpack.c.b16 %v4742, %v4741
        %v4809 = vpack.c.b16 %v4744, %v4743
        %v4810 = vpack.c.b16 %v4746, %v4745
        %v4811 = vpack.c.b16 %v4748, %v4747
        %v4812 = vpack.c.b16 %v4750, %v4749
        %v4813 = vpack.c.b16 %v4752, %v4751
        %v4814 = vpack.c.b16 %v4754, %v4753
        %v4815 = vpack.c.b16 %v4756, %v4755
        %v4816 = vpack.c.b16 %v4758, %v4757
        %v4817 = vpack.c.b16 %v4760, %v4759
        %v4818 = vpack.c.b16 %v4762, %v4761
        %v4819 = vpack.c.b16 %v4764, %v4763
        %v4820 = vpack.c.b16 %v4766, %v4765
        %v4821 = vpack.c.b16 %v4768, %v4767
        %v4822 = vpack.c.b16 %v4770, %v4769
        %v4823 = vpack.c.b16 %v4772, %v4771
        %v4824 = vpack.c.b16 %v4774, %v4773
        %v4825 = vpack.c.b16 %v4776, %v4775
        %v4826 = vpack.c.b16 %v4778, %v4777
        %v4827 = vpack.c.b16 %v4780, %v4779
        %v4828 = vpack.c.b16 %v4782, %v4781
        %v4829 = vpack.c.b16 %v4784, %v4783
        %v4830 = vpack.c.b16 %v4786, %v4785
        %v4831 = vpack.c.b16 %v4788, %v4787
        %v4832 = vpack.c.b16 %v4790, %v4789
        %v4833 = vpack.c.b16 %v4792, %v4791
        %v4834 = vpack.c.b16 %v4794, %v4793
        %v4835 = vpack.c.b16 %v4796, %v4795
        %v4836 = vpack.c.b16 %v4798, %v4797
        %v4837 = vpack.c.b16 %v4800, %v4799
        %v4838 = vpack.c.b16 %v4802, %v4801
        %v4839 = vpack.c.b16 %v4804, %v4803
        %v4876 = vsel %vm1301, %v4589, 0
        %4878 = vmatprep.subr.bf16.mxu0 0
        %4879 = vmatpush1.bf16.msra.mxu0 %v4812
        %4880 = vmatprep.subr.bf16.mxu0 0
        %4881 = vmatpush1.bf16.msra.mxu0 %v4811
        %4882 = vmatprep.subr.bf16.mxu0 0
        %4883 = vmatpush1.bf16.msra.mxu0 %v4810
        %4884 = vmatprep.subr.bf16.mxu0 0
        %4885 = vmatpush1.bf16.msra.mxu0 %v4809
        %4886 = vmatprep.subr.bf16.mxu0 0
        %4887 = vmatpush1.bf16.msra.mxu0 %v4808
        %4888 = vmatprep.subr.bf16.mxu0 0
        %4889 = vmatpush1.bf16.msra.mxu0 %v4807
        %4890 = vmatprep.subr.bf16.mxu0 0
        %4891 = vmatpush1.bf16.msra.mxu0 %v4806
        %4892 = vmatprep.subr.bf16.mxu0 0
        %4893 = vmatpush1.bf16.msra.mxu0 %v4805
        %4894 = vmatprep.subr.bf16.mxu0 0
        %4895 = vmatpush2.bf16.msra.mxu0 %v4820
        %4896 = vmatprep.subr.bf16.mxu0 0
        %4897 = vmatpush2.bf16.msra.mxu0 %v4819
        %4898 = vmatprep.subr.bf16.mxu0 0
        %4899 = vmatpush2.bf16.msra.mxu0 %v4818
        %4900 = vmatprep.subr.bf16.mxu0 0
        %4901 = vmatpush2.bf16.msra.mxu0 %v4817
        %4902 = vmatprep.subr.bf16.mxu0 0
        %4903 = vmatpush2.bf16.msra.mxu0 %v4816
        %4904 = vmatprep.subr.bf16.mxu0 0
        %4905 = vmatpush2.bf16.msra.mxu0 %v4815
        %4906 = vmatprep.subr.bf16.mxu0 0
        %4907 = vmatpush2.bf16.msra.mxu0 %v4814
        %4908 = vmatprep.subr.bf16.mxu0 0
        %4909 = vmatpush2.bf16.msra.mxu0 %v4813
        %4910 = vmatprep.mubr.bf16.mxu0 %v4586
        %4911 = vmatmul.mubr.bf16.gmra.mxu0 %v4585
        %v4912 = vpop.f32.mrf.mxu0
        %v4913 = vadd.f32 %v4664, %v4912
        %v4914 = vpop.f32.mrf.mxu0
        %v4915 = vpop.f32.mrf.mxu0
        %v4916 = vadd.f32 %v4664, %v4915
        %v4917 = vpop.f32.mrf.mxu0
        %4918 = vdwg.mxu0
        %4919 = vmatprep.subr.bf16.mxu0 0
        %4920 = vmatpush1.bf16.msra.mxu0 %v4828
        %4921 = vmatprep.subr.bf16.mxu0 0
        %4922 = vmatpush1.bf16.msra.mxu0 %v4827
        %4923 = vmatprep.subr.bf16.mxu0 0
        %4924 = vmatpush1.bf16.msra.mxu0 %v4826
        %4925 = vmatprep.subr.bf16.mxu0 0
        %4926 = vmatpush1.bf16.msra.mxu0 %v4825
        %4927 = vmatprep.subr.bf16.mxu0 0
        %4928 = vmatpush1.bf16.msra.mxu0 %v4824
        %4929 = vmatprep.subr.bf16.mxu0 0
        %4930 = vmatpush1.bf16.msra.mxu0 %v4823
        %4931 = vmatprep.subr.bf16.mxu0 0
        %4932 = vmatpush1.bf16.msra.mxu0 %v4822
        %4933 = vmatprep.subr.bf16.mxu0 0
        %4934 = vmatpush1.bf16.msra.mxu0 %v4821
        %4935 = vmatprep.subr.bf16.mxu0 0
        %4936 = vmatpush2.bf16.msra.mxu0 %v4836
        %4937 = vmatprep.subr.bf16.mxu0 0
        %4938 = vmatpush2.bf16.msra.mxu0 %v4835
        %4939 = vmatprep.subr.bf16.mxu0 0
        %4940 = vmatpush2.bf16.msra.mxu0 %v4834
        %4941 = vmatprep.subr.bf16.mxu0 0
        %4942 = vmatpush2.bf16.msra.mxu0 %v4833
        %4943 = vmatprep.subr.bf16.mxu0 0
        %4944 = vmatpush2.bf16.msra.mxu0 %v4832
        %4945 = vmatprep.subr.bf16.mxu0 0
        %4946 = vmatpush2.bf16.msra.mxu0 %v4831
        %4947 = vmatprep.subr.bf16.mxu0 0
        %4948 = vmatpush2.bf16.msra.mxu0 %v4830
        %4949 = vmatprep.subr.bf16.mxu0 0
        %4950 = vmatpush2.bf16.msra.mxu0 %v4829
        %4951 = vmatprep.mubr.bf16.mxu0 %v4588
        %4952 = vmatmul.mubr.bf16.gmra.mxu0 %v4587
        %v4953 = vpop.f32.mrf.mxu0
        %v4954 = vadd.f32 %v4913, %v4953
        %v4955 = vpop.f32.mrf.mxu0
        %v4956 = vpop.f32.mrf.mxu0
        %v4957 = vadd.f32 %v4916, %v4956
        %v4958 = vpop.f32.mrf.mxu0
        %4959 = vdwg.mxu0
        %4960 = vmatprep.subr.bf16.mxu0 0
        %4961 = vmatpush1.bf16.msra.mxu0 0
        %4962 = vmatprep.subr.bf16.mxu0 0
        %4963 = vmatpush1.bf16.msra.mxu0 0
        %4964 = vmatprep.subr.bf16.mxu0 0
        %4965 = vmatpush1.bf16.msra.mxu0 0
        %4966 = vmatprep.subr.bf16.mxu0 0
        %4967 = vmatpush1.bf16.msra.mxu0 0
        %4968 = vmatprep.subr.bf16.mxu0 0
        %4969 = vmatpush1.bf16.msra.mxu0 0
        %4970 = vmatprep.subr.bf16.mxu0 0
        %4971 = vmatpush1.bf16.msra.mxu0 %v4839
        %4972 = vmatprep.subr.bf16.mxu0 0
        %4973 = vmatpush1.bf16.msra.mxu0 %v4838
        %4974 = vmatprep.subr.bf16.mxu0 0
        %4975 = vmatpush1.bf16.msra.mxu0 %v4837
        %4976 = vmatprep.subr.bf16.mxu0 0
        %4977 = vmatpush2.bf16.msra.mxu0 0
        %4978 = vmatprep.subr.bf16.mxu0 0
        %4979 = vmatpush2.bf16.msra.mxu0 0
        %4980 = vmatprep.subr.bf16.mxu0 0
        %4981 = vmatpush2.bf16.msra.mxu0 0
        %4982 = vmatprep.subr.bf16.mxu0 0
        %4983 = vmatpush2.bf16.msra.mxu0 0
        %4984 = vmatprep.subr.bf16.mxu0 0
        %4985 = vmatpush2.bf16.msra.mxu0 0
        %4986 = vmatprep.subr.bf16.mxu0 0
        %4987 = vmatpush2.bf16.msra.mxu0 0
        %4988 = vmatprep.subr.bf16.mxu0 0
        %4989 = vmatpush2.bf16.msra.mxu0 0
        %4990 = vmatprep.subr.bf16.mxu0 0
        %4991 = vmatpush2.bf16.msra.mxu0 0
        %4992 = vmatprep.mubr.bf16.mxu0 0
        %4993 = vmatmul.mubr.bf16.gmra.mxu0 %v4876
        %v4994 = vpop.f32.mrf.mxu0
        %v4995 = vadd.f32 %v4954, %v4994
        %v4996 = vpop.f32.mrf.mxu0
        %v4997 = vpop.f32.mrf.mxu0
        %v4998 = vadd.f32 %v4957, %v4997
        %v4999 = vpop.f32.mrf.mxu0
        %5000 = vdwg.mxu0
        %v5001 = vmax.f32 %v4995, 0.0
        %v5002 = vmax.f32 %v4998, 0.0
        %v5003 = vld [vmem:[#allocation6 + $0x760] sm:$0xf]
        %v5004 = vld [vmem:[#allocation6 + $0x764] sm:$0xf]
        %v5005 = vld [vmem:[#allocation6 + $0x768] sm:$0xf]
        %v5006 = vld [vmem:[#allocation6 + $0x76c] sm:$0xf]
        %v5007 = vld [vmem:[#allocation6 + $0x770] sm:$0x3]
        %v5008 = vpack.c.bf16 %v5002, %v5001
        %v5014 = vunpack.c.l.b16 %v5003
        %v5015 = vunpack.c.l.b16 %v5004
        %v5016 = vunpack.c.l.b16 %v5005
        %v5017 = vunpack.c.l.b16 %v5006
        %v5018 = vunpack.c.l.b16 %v5007
        %v5019 = vpack.c.b16 %v5015, %v5014
        %v5020 = vpack.c.b16 %v5017, %v5016
        %v5021 = vpack.c.b16 %v5018, %v5018
        %v5023 = vsel %vm1267, %v5019, 0
        %v5026 = vsel %vm1267, %v5020, 0
        %v5029 = vsel %vm1267, %v5021, 0
        %5031 = vmatprep.subr.bf16.mxu0 0
        %5032 = vmatpush1.bf16.msra.mxu0 0
        %5033 = vmatprep.subr.bf16.mxu0 0
        %5034 = vmatpush1.bf16.msra.mxu0 0
        %5035 = vmatprep.subr.bf16.mxu0 0
        %5036 = vmatpush1.bf16.msra.mxu0 0
        %5037 = vmatprep.subr.bf16.mxu0 0
        %5038 = vmatpush1.bf16.msra.mxu0 0
        %5039 = vmatprep.subr.bf16.mxu0 0
        %5040 = vmatpush1.bf16.msra.mxu0 0
        %5041 = vmatprep.subr.bf16.mxu0 0
        %5042 = vmatpush1.bf16.msra.mxu0 0
        %5043 = vmatprep.subr.bf16.mxu0 0
        %5044 = vmatpush1.bf16.msra.mxu0 0
        %5045 = vmatprep.subr.bf16.mxu0 0
        %5046 = vmatpush1.bf16.msra.mxu0 %v5008
        %5047 = vmatprep.subr.bf16.mxu0 0
        %5048 = vmatpush2.bf16.msra.mxu0 0
        %5049 = vmatprep.subr.bf16.mxu0 0
        %5050 = vmatpush2.bf16.msra.mxu0 0
        %5051 = vmatprep.subr.bf16.mxu0 0
        %5052 = vmatpush2.bf16.msra.mxu0 0
        %5053 = vmatprep.subr.bf16.mxu0 0
        %5054 = vmatpush2.bf16.msra.mxu0 0
        %5055 = vmatprep.subr.bf16.mxu0 0
        %5056 = vmatpush2.bf16.msra.mxu0 0
        %5057 = vmatprep.subr.bf16.mxu0 0
        %5058 = vmatpush2.bf16.msra.mxu0 0
        %5059 = vmatprep.subr.bf16.mxu0 0
        %5060 = vmatpush2.bf16.msra.mxu0 0
        %5061 = vmatprep.subr.bf16.mxu0 0
        %5062 = vmatpush2.bf16.msra.mxu0 0
        %5063 = vmatprep.mubr.bf16.mxu0 0
        %5064 = vmatmul.mubr.bf16.gmra.mxu0 %v5023
        %v5065 = vpop.f32.mrf.mxu0
        %v5066 = vadd.f32 0.0, %v5065
        %v5067 = vpop.f32.mrf.mxu0
        %v5068 = vpop.f32.mrf.mxu0
        %v5069 = vadd.f32 0.0, %v5068
        %v5070 = vpop.f32.mrf.mxu0
        %5071 = vmatprep.mubr.bf16.mxu0 0
        %5072 = vmatmul.mubr.bf16.gmra.mxu0 %v5026
        %v5073 = vpop.f32.mrf.mxu0
        %v5074 = vadd.f32 0.0, %v5073
        %v5075 = vpop.f32.mrf.mxu0
        %v5076 = vpop.f32.mrf.mxu0
        %v5077 = vadd.f32 0.0, %v5076
        %v5078 = vpop.f32.mrf.mxu0
        %5079 = vmatprep.mubr.bf16.mxu0 0
        %5080 = vmatmul.mubr.bf16.gmra.mxu0 %v5029
        %v5081 = vpop.f32.mrf.mxu0
        %v5082 = vadd.f32 0.0, %v5081
        %v5083 = vpop.f32.mrf.mxu0
        %v5084 = vpop.f32.mrf.mxu0
        %v5085 = vpop.f32.mrf.mxu0
        %5086 = vdwg.mxu0
        %5087 = vmatprep.subr.bf16.mxu0 0
        %5088 = vmatpush1.bf16.msra.mxu0 0
        %5089 = vmatprep.subr.bf16.mxu0 0
        %5090 = vmatpush1.bf16.msra.mxu0 0
        %5091 = vmatprep.subr.bf16.mxu0 0
        %5092 = vmatpush1.bf16.msra.mxu0 0
        %5093 = vmatprep.subr.bf16.mxu0 0
        %5094 = vmatpush1.bf16.msra.mxu0 0
        %5095 = vmatprep.subr.bf16.mxu0 0
        %5096 = vmatpush1.bf16.msra.mxu0 0
        %5097 = vmatprep.subr.bf16.mxu0 0
        %5098 = vmatpush1.bf16.msra.mxu0 0
        %5099 = vmatprep.subr.bf16.mxu0 0
        %5100 = vmatpush1.bf16.msra.mxu0 0
        %5101 = vmatprep.subr.bf16.mxu0 0
        %5102 = vmatpush1.bf16.msra.mxu0 %v2601
        %5103 = vmatprep.subr.bf16.mxu0 0
        %5104 = vmatpush2.bf16.msra.mxu0 0
        %5105 = vmatprep.subr.bf16.mxu0 0
        %5106 = vmatpush2.bf16.msra.mxu0 0
        %5107 = vmatprep.subr.bf16.mxu0 0
        %5108 = vmatpush2.bf16.msra.mxu0 0
        %5109 = vmatprep.subr.bf16.mxu0 0
        %5110 = vmatpush2.bf16.msra.mxu0 0
        %5111 = vmatprep.subr.bf16.mxu0 0
        %5112 = vmatpush2.bf16.msra.mxu0 0
        %5113 = vmatprep.subr.bf16.mxu0 0
        %5114 = vmatpush2.bf16.msra.mxu0 0
        %5115 = vmatprep.subr.bf16.mxu0 0
        %5116 = vmatpush2.bf16.msra.mxu0 0
        %5117 = vmatprep.subr.bf16.mxu0 0
        %5118 = vmatpush2.bf16.msra.mxu0 0
        %5119 = vmatprep.mubr.bf16.mxu0 0
        %5120 = vmatmul.mubr.bf16.gmra.mxu0 %v5023
        %v5121 = vpop.f32.mrf.mxu0
        %v5122 = vadd.f32 0.0, %v5121
        %v5123 = vpop.f32.mrf.mxu0
        %v5124 = vpop.f32.mrf.mxu0
        %v5125 = vadd.f32 0.0, %v5124
        %v5126 = vpop.f32.mrf.mxu0
        %5127 = vmatprep.mubr.bf16.mxu0 0
        %5128 = vmatmul.mubr.bf16.gmra.mxu0 %v5026
        %v5129 = vpop.f32.mrf.mxu0
        %v5130 = vadd.f32 0.0, %v5129
        %v5131 = vpop.f32.mrf.mxu0
        %v5132 = vpop.f32.mrf.mxu0
        %v5133 = vadd.f32 0.0, %v5132
        %v5134 = vpop.f32.mrf.mxu0
        %5135 = vmatprep.mubr.bf16.mxu0 0
        %5136 = vmatmul.mubr.bf16.gmra.mxu0 %v5029
        %v5137 = vpop.f32.mrf.mxu0
        %v5138 = vadd.f32 0.0, %v5137
        %v5139 = vpop.f32.mrf.mxu0
        %v5140 = vpop.f32.mrf.mxu0
        %v5141 = vpop.f32.mrf.mxu0
        %5142 = vdwg.mxu0
        %v5148 = vrot.slane %v5066, 1
        %v5149 = vrot.slane %v5069, 1
        %v5150 = vsel %vm318, %v5148, %v5149
        %v5151 = vrot.slane %v5074, 1
        %v5152 = vsel %vm318, %v5149, %v5151
        %v5153 = vrot.slane %v5077, 1
        %v5154 = vsel %vm318, %v5151, %v5153
        %v5155 = vrot.slane %v5082, 1
        %v5156 = vsel %vm318, %v5153, %v5155
        %5157 = vrot.lane.b32.xlu0 %v5150, 48
        %v5158 = vpop.permute.xlu0 %5157
        %5159 = vrot.lane.b32.xlu0 %v5152, 48
        %v5160 = vpop.permute.xlu0 %5159
        %5161 = vrot.lane.b32.xlu0 %v5154, 48
        %v5162 = vpop.permute.xlu0 %5161
        %5163 = vrot.lane.b32.xlu0 %v5156, 48
        %v5164 = vpop.permute.xlu0 %5163
        %v5169 = vrot.slane %v5066, 2
        %v5170 = vrot.slane %v5069, 2
        %v5171 = vsel %vm400, %v5169, %v5170
        %v5172 = vrot.slane %v5074, 2
        %v5173 = vsel %vm400, %v5170, %v5172
        %v5174 = vrot.slane %v5077, 2
        %v5175 = vsel %vm400, %v5172, %v5174
        %v5176 = vrot.slane %v5082, 2
        %v5177 = vsel %vm400, %v5174, %v5176
        %5178 = vrot.lane.b32.xlu0 %v5171, 96
        %v5179 = vpop.permute.xlu0 %5178
        %5180 = vrot.lane.b32.xlu0 %v5173, 96
        %v5181 = vpop.permute.xlu0 %5180
        %5182 = vrot.lane.b32.xlu0 %v5175, 96
        %v5183 = vpop.permute.xlu0 %5182
        %5184 = vrot.lane.b32.xlu0 %v5177, 96
        %v5185 = vpop.permute.xlu0 %5184
        %v5190 = vrot.slane %v5066, 3
        %v5191 = vrot.slane %v5069, 3
        %v5192 = vsel %vm482, %v5190, %v5191
        %v5193 = vrot.slane %v5074, 3
        %v5194 = vsel %vm482, %v5191, %v5193
        %v5195 = vrot.slane %v5077, 3
        %v5196 = vsel %vm482, %v5193, %v5195
        %v5197 = vrot.slane %v5082, 3
        %v5198 = vsel %vm482, %v5195, %v5197
        %5199 = vrot.lane.b32.xlu0 %v5192, 16
        %v5200 = vpop.permute.xlu0 %5199
        %5201 = vrot.lane.b32.xlu0 %v5194, 16
        %v5202 = vpop.permute.xlu0 %5201
        %5203 = vrot.lane.b32.xlu0 %v5196, 16
        %v5204 = vpop.permute.xlu0 %5203
        %5205 = vrot.lane.b32.xlu0 %v5198, 16
        %v5206 = vpop.permute.xlu0 %5205
        %v5211 = vrot.slane %v5066, 4
        %v5212 = vrot.slane %v5069, 4
        %v5213 = vsel %vm564, %v5211, %v5212
        %v5214 = vrot.slane %v5074, 4
        %v5215 = vsel %vm564, %v5212, %v5214
        %v5216 = vrot.slane %v5077, 4
        %v5217 = vsel %vm564, %v5214, %v5216
        %v5218 = vrot.slane %v5082, 4
        %v5219 = vsel %vm564, %v5216, %v5218
        %5220 = vrot.lane.b32.xlu0 %v5213, 64
        %v5221 = vpop.permute.xlu0 %5220
        %5222 = vrot.lane.b32.xlu0 %v5215, 64
        %v5223 = vpop.permute.xlu0 %5222
        %5224 = vrot.lane.b32.xlu0 %v5217, 64
        %v5225 = vpop.permute.xlu0 %5224
        %5226 = vrot.lane.b32.xlu0 %v5219, 64
        %v5227 = vpop.permute.xlu0 %5226
        %5236 = vrot.lane.b32.xlu0 %v5122, 112
        %v5237 = vpop.permute.xlu0 %5236
        %5238 = vrot.lane.b32.xlu0 %v5125, 112
        %v5239 = vpop.permute.xlu0 %5238
        %5240 = vrot.lane.b32.xlu0 %v5130, 112
        %v5241 = vpop.permute.xlu0 %5240
        %5242 = vrot.lane.b32.xlu0 %v5133, 112
        %v5243 = vpop.permute.xlu0 %5242
        %v5249 = vrot.slane %v5122, 1
        %v5250 = vrot.slane %v5125, 1
        %v5251 = vsel %vm318, %v5249, %v5250
        %v5252 = vrot.slane %v5130, 1
        %v5253 = vsel %vm318, %v5250, %v5252
        %v5254 = vrot.slane %v5133, 1
        %v5255 = vsel %vm318, %v5252, %v5254
        %v5256 = vrot.slane %v5138, 1
        %v5257 = vsel %vm318, %v5254, %v5256
        %5258 = vrot.lane.b32.xlu0 %v5251, 16
        %v5259 = vpop.permute.xlu0 %5258
        %5260 = vrot.lane.b32.xlu0 %v5253, 16
        %v5261 = vpop.permute.xlu0 %5260
        %5262 = vrot.lane.b32.xlu0 %v5255, 16
        %v5263 = vpop.permute.xlu0 %5262
        %5264 = vrot.lane.b32.xlu0 %v5257, 16
        %v5265 = vpop.permute.xlu0 %5264
        %v5270 = vrot.slane %v5122, 2
        %v5271 = vrot.slane %v5125, 2
        %v5272 = vsel %vm400, %v5270, %v5271
        %v5273 = vrot.slane %v5130, 2
        %v5274 = vsel %vm400, %v5271, %v5273
        %v5275 = vrot.slane %v5133, 2
        %v5276 = vsel %vm400, %v5273, %v5275
        %v5277 = vrot.slane %v5138, 2
        %v5278 = vsel %vm400, %v5275, %v5277
        %5279 = vrot.lane.b32.xlu0 %v5272, 48
        %v5280 = vpop.permute.xlu0 %5279
        %5281 = vrot.lane.b32.xlu0 %v5274, 48
        %v5282 = vpop.permute.xlu0 %5281
        %5283 = vrot.lane.b32.xlu0 %v5276, 48
        %v5284 = vpop.permute.xlu0 %5283
        %5285 = vrot.lane.b32.xlu0 %v5278, 48
        %v5286 = vpop.permute.xlu0 %5285
        %v5291 = vrot.slane %v5122, 3
        %v5292 = vrot.slane %v5125, 3
        %v5293 = vsel %vm482, %v5291, %v5292
        %v5294 = vrot.slane %v5130, 3
        %v5295 = vsel %vm482, %v5292, %v5294
        %v5296 = vrot.slane %v5133, 3
        %v5297 = vsel %vm482, %v5294, %v5296
        %v5298 = vrot.slane %v5138, 3
        %v5299 = vsel %vm482, %v5296, %v5298
        %5300 = vrot.lane.b32.xlu0 %v5293, 80
        %v5301 = vpop.permute.xlu0 %5300
        %5302 = vrot.lane.b32.xlu0 %v5295, 80
        %v5303 = vpop.permute.xlu0 %5302
        %5304 = vrot.lane.b32.xlu0 %v5297, 80
        %v5305 = vpop.permute.xlu0 %5304
        %5306 = vrot.lane.b32.xlu0 %v5299, 80
        %v5307 = vpop.permute.xlu0 %5306
        %v5312 = vrot.slane %v5122, 4
        %v5313 = vrot.slane %v5125, 4
        %v5314 = vsel %vm564, %v5312, %v5313
        %v5315 = vrot.slane %v5130, 4
        %v5316 = vsel %vm564, %v5313, %v5315
        %v5317 = vrot.slane %v5133, 4
        %v5318 = vsel %vm564, %v5315, %v5317
        %v5319 = vrot.slane %v5138, 4
        %v5320 = vsel %vm564, %v5317, %v5319
        %5321 = vrot.lane.b32.xlu0 %v5314, 112
        %v5322 = vpop.permute.xlu0 %5321
        %5323 = vrot.lane.b32.xlu0 %v5316, 112
        %v5324 = vpop.permute.xlu0 %5323
        %5325 = vrot.lane.b32.xlu0 %v5318, 112
        %v5326 = vpop.permute.xlu0 %5325
        %5327 = vrot.lane.b32.xlu0 %v5320, 112
        %v5328 = vpop.permute.xlu0 %5327
        %v5333 = vsel %vm1301, %v5066, %v5158
        %v5334 = vsel %vm1301, %v5069, %v5160
        %v5335 = vsel %vm1301, %v5074, %v5162
        %v5336 = vsel %vm1301, %v5077, %v5164
        %v5337 = vsel %vm2224, %v5333, %v5179
        %v5338 = vsel %vm2224, %v5334, %v5181
        %v5339 = vsel %vm2224, %v5335, %v5183
        %v5340 = vsel %vm2224, %v5336, %v5185
        %v5341 = vsel %vm1267, %v5179, %v5200
        %v5342 = vsel %vm1267, %v5181, %v5202
        %v5343 = vsel %vm1267, %v5183, %v5204
        %v5344 = vsel %vm1267, %v5185, %v5206
        %v5345 = vsel %vm1318, %v5341, %v5221
        %v5346 = vsel %vm1318, %v5342, %v5223
        %v5347 = vsel %vm1318, %v5343, %v5225
        %v5348 = vsel %vm1318, %v5344, %v5227
        %v5349 = vsel %vm2469, %v5345, %v5237
        %v5350 = vsel %vm2469, %v5346, %v5239
        %v5351 = vsel %vm2469, %v5347, %v5241
        %v5352 = vsel %vm2469, %v5348, %v5243
        %v5353 = vsel %vm1267, %v5237, %v5259
        %v5354 = vsel %vm1267, %v5239, %v5261
        %v5355 = vsel %vm1267, %v5241, %v5263
        %v5356 = vsel %vm1267, %v5243, %v5265
        %v5357 = vsel %vm1301, %v5353, %v5280
        %v5358 = vsel %vm1301, %v5354, %v5282
        %v5359 = vsel %vm1301, %v5355, %v5284
        %v5360 = vsel %vm1301, %v5356, %v5286
        %v5361 = vsel %vm1388, %v5357, %v5301
        %v5362 = vsel %vm1388, %v5358, %v5303
        %v5363 = vsel %vm1388, %v5359, %v5305
        %v5364 = vsel %vm1388, %v5360, %v5307
        %v5365 = vsel %vm2469, %v5361, %v5322
        %v5366 = vsel %vm2469, %v5362, %v5324
        %v5367 = vsel %vm2469, %v5363, %v5326
        %v5368 = vsel %vm2469, %v5364, %v5328
        %v5369 = vpack.c.bf16 %v5338, %v5337
        %v5370 = vpack.c.bf16 %v5350, %v5349
        %v5371 = vpack.c.bf16 %v5366, %v5365
        %v5372 = vpack.c.bf16 %v5324, %v5322
        %v5373 = vpack.c.bf16 %v5340, %v5339
        %v5374 = vpack.c.bf16 %v5352, %v5351
        %v5375 = vpack.c.bf16 %v5368, %v5367
        %v5376 = vpack.c.bf16 %v5328, %v5326
        %v5377 = vld [vmem:[#allocation6 + $0x5a0] sm:$0xf]
        %v5378 = vld [vmem:[#allocation6 + $0x5a4] sm:$0xf]
        %v5379 = vld [vmem:[#allocation6 + $0x5a8] sm:$0xf]
        %v5380 = vld [vmem:[#allocation6 + $0x5ac] sm:$0xf]
        %v5381 = vld [vmem:[#allocation6 + $0x5b0] sm:$0xf]
        %v5382 = vld [vmem:[#allocation6 + $0x5b4] sm:$0xf]
        %v5383 = vld [vmem:[#allocation6 + $0x5b8] sm:$0xf]
        %v5384 = vld [vmem:[#allocation6 + $0x5bc] sm:$0xf]
        %v5385 = vld [vmem:[#allocation6 + $0x5c0] sm:$0xf]
        %v5386 = vld [vmem:[#allocation6 + $0x5c4] sm:$0xf]
        %v5387 = vld [vmem:[#allocation6 + $0x5c8] sm:$0xf]
        %v5388 = vld [vmem:[#allocation6 + $0x5cc] sm:$0xf]
        %v5389 = vld [vmem:[#allocation6 + $0x5d0] sm:$0xf]
        %v5390 = vld [vmem:[#allocation6 + $0x5d4] sm:$0xf]
        %v5391 = vld [vmem:[#allocation6 + $0x5d8] sm:$0xf]
        %v5392 = vld [vmem:[#allocation6 + $0x5dc] sm:$0xf]
        %v5393 = vld [vmem:[#allocation6 + $0x5e0] sm:$0xf]
        %v5394 = vld [vmem:[#allocation6 + $0x5e4] sm:$0xf]
        %v5395 = vld [vmem:[#allocation6 + $0x5e8] sm:$0xf]
        %v5396 = vld [vmem:[#allocation6 + $0x5ec] sm:$0xf]
        %v5397 = vld [vmem:[#allocation6 + $0x5f0] sm:$0xf]
        %v5398 = vld [vmem:[#allocation6 + $0x5f4] sm:$0xf]
        %v5399 = vld [vmem:[#allocation6 + $0x5f8] sm:$0xf]
        %v5400 = vld [vmem:[#allocation6 + $0x5fc] sm:$0xf]
        %v5401 = vld [vmem:[#allocation6 + $0x600] sm:$0xf]
        %v5402 = vld [vmem:[#allocation6 + $0x604] sm:$0xf]
        %v5403 = vld [vmem:[#allocation6 + $0x608] sm:$0xf]
        %v5404 = vld [vmem:[#allocation6 + $0x60c] sm:$0xf]
        %v5405 = vld [vmem:[#allocation6 + $0x610] sm:$0xf]
        %v5406 = vld [vmem:[#allocation6 + $0x614] sm:$0xf]
        %v5407 = vld [vmem:[#allocation6 + $0x618] sm:$0xf]
        %v5408 = vld [vmem:[#allocation6 + $0x61c] sm:$0xf]
        %v5409 = vld [vmem:[#allocation6 + $0x620] sm:$0xf]
        %v5410 = vld [vmem:[#allocation6 + $0x624] sm:$0xf]
        %v5411 = vld [vmem:[#allocation6 + $0x628] sm:$0xf]
        %v5412 = vld [vmem:[#allocation6 + $0x62c] sm:$0xf]
        %v5413 = vld [vmem:[#allocation6 + $0x630] sm:$0xf]
        %v5414 = vld [vmem:[#allocation6 + $0x634] sm:$0xf]
        %v5415 = vld [vmem:[#allocation6 + $0x638] sm:$0xf]
        %v5416 = vld [vmem:[#allocation6 + $0x63c] sm:$0xf]
        %v5417 = vld [vmem:[#allocation6 + $0x640] sm:$0xf]
        %v5418 = vld [vmem:[#allocation6 + $0x644] sm:$0xf]
        %v5419 = vld [vmem:[#allocation6 + $0x648] sm:$0xf]
        %v5420 = vld [vmem:[#allocation6 + $0x64c] sm:$0xf]
        %v5421 = vld [vmem:[#allocation6 + $0x650] sm:$0xf]
        %v5422 = vld [vmem:[#allocation6 + $0x654] sm:$0xf]
        %v5423 = vld [vmem:[#allocation6 + $0x658] sm:$0xf]
        %v5424 = vld [vmem:[#allocation6 + $0x65c] sm:$0xf]
        %v5425 = vld [vmem:[#allocation6 + $0x660] sm:$0xf]
        %v5426 = vld [vmem:[#allocation6 + $0x664] sm:$0xf]
        %v5427 = vld [vmem:[#allocation8 + $0xb] sm:$0x1]
        %v5428 = vlaneseq
        %v5429 = vshrl.u32 %v5428, 7
        %v5430 = vsub.s32 0, %v5429
        %v5431 = vrot.slane %v5427, %v5430
        %v5482 = vunpack.c.l.b16 %v5377
        %v5483 = vunpack.c.l.b16 %v5378
        %v5484 = vunpack.c.l.b16 %v5379
        %v5485 = vunpack.c.l.b16 %v5380
        %v5486 = vunpack.c.l.b16 %v5381
        %v5487 = vunpack.c.l.b16 %v5382
        %v5488 = vunpack.c.l.b16 %v5383
        %v5489 = vunpack.c.l.b16 %v5384
        %v5490 = vunpack.c.l.b16 %v5385
        %v5491 = vunpack.c.l.b16 %v5386
        %v5492 = vunpack.c.l.b16 %v5387
        %v5493 = vunpack.c.l.b16 %v5388
        %v5494 = vunpack.c.l.b16 %v5389
        %v5495 = vunpack.c.l.b16 %v5390
        %v5496 = vunpack.c.l.b16 %v5391
        %v5497 = vunpack.c.l.b16 %v5392
        %v5498 = vunpack.c.l.b16 %v5393
        %v5499 = vunpack.c.l.b16 %v5394
        %v5500 = vunpack.c.l.b16 %v5395
        %v5501 = vunpack.c.l.b16 %v5396
        %v5502 = vunpack.c.l.b16 %v5397
        %v5503 = vunpack.c.l.b16 %v5398
        %v5504 = vunpack.c.l.b16 %v5399
        %v5505 = vunpack.c.l.b16 %v5400
        %v5506 = vunpack.c.l.b16 %v5401
        %v5507 = vunpack.c.l.b16 %v5402
        %v5508 = vunpack.c.l.b16 %v5403
        %v5509 = vunpack.c.l.b16 %v5404
        %v5510 = vunpack.c.l.b16 %v5405
        %v5511 = vunpack.c.l.b16 %v5406
        %v5512 = vunpack.c.l.b16 %v5407
        %v5513 = vunpack.c.l.b16 %v5408
        %v5514 = vunpack.c.l.b16 %v5409
        %v5515 = vunpack.c.l.b16 %v5410
        %v5516 = vunpack.c.l.b16 %v5411
        %v5517 = vunpack.c.l.b16 %v5412
        %v5518 = vunpack.c.l.b16 %v5413
        %v5519 = vunpack.c.l.b16 %v5414
        %v5520 = vunpack.c.l.b16 %v5415
        %v5521 = vunpack.c.l.b16 %v5416
        %v5522 = vunpack.c.l.b16 %v5417
        %v5523 = vunpack.c.l.b16 %v5418
        %v5524 = vunpack.c.l.b16 %v5419
        %v5525 = vunpack.c.l.b16 %v5420
        %v5526 = vunpack.c.l.b16 %v5421
        %v5527 = vunpack.c.l.b16 %v5422
        %v5528 = vunpack.c.l.b16 %v5423
        %v5529 = vunpack.c.l.b16 %v5424
        %v5530 = vunpack.c.l.b16 %v5425
        %v5531 = vunpack.c.l.b16 %v5426
        %v5532 = vpack.c.b16 %v5483, %v5482
        %v5533 = vpack.c.b16 %v5485, %v5484
        %v5534 = vpack.c.b16 %v5487, %v5486
        %v5535 = vpack.c.b16 %v5489, %v5488
        %v5536 = vpack.c.b16 %v5491, %v5490
        %v5537 = vpack.c.b16 %v5493, %v5492
        %v5538 = vpack.c.b16 %v5495, %v5494
        %v5539 = vpack.c.b16 %v5497, %v5496
        %v5540 = vpack.c.b16 %v5499, %v5498
        %v5541 = vpack.c.b16 %v5501, %v5500
        %v5542 = vpack.c.b16 %v5503, %v5502
        %v5543 = vpack.c.b16 %v5505, %v5504
        %v5544 = vpack.c.b16 %v5507, %v5506
        %v5545 = vpack.c.b16 %v5509, %v5508
        %v5546 = vpack.c.b16 %v5511, %v5510
        %v5547 = vpack.c.b16 %v5513, %v5512
        %v5548 = vpack.c.b16 %v5515, %v5514
        %v5549 = vpack.c.b16 %v5517, %v5516
        %v5550 = vpack.c.b16 %v5519, %v5518
        %v5551 = vpack.c.b16 %v5521, %v5520
        %v5552 = vpack.c.b16 %v5523, %v5522
        %v5553 = vpack.c.b16 %v5525, %v5524
        %v5554 = vpack.c.b16 %v5527, %v5526
        %v5555 = vpack.c.b16 %v5529, %v5528
        %v5556 = vpack.c.b16 %v5531, %v5530
        %v5583 = vsel %vm1267, %v5372, 0
        %v5586 = vsel %vm1267, %v5376, 0
        %5588 = vmatprep.subr.bf16.mxu0 0
        %5589 = vmatpush1.bf16.msra.mxu0 %v5539
        %5590 = vmatprep.subr.bf16.mxu0 0
        %5591 = vmatpush1.bf16.msra.mxu0 %v5538
        %5592 = vmatprep.subr.bf16.mxu0 0
        %5593 = vmatpush1.bf16.msra.mxu0 %v5537
        %5594 = vmatprep.subr.bf16.mxu0 0
        %5595 = vmatpush1.bf16.msra.mxu0 %v5536
        %5596 = vmatprep.subr.bf16.mxu0 0
        %5597 = vmatpush1.bf16.msra.mxu0 %v5535
        %5598 = vmatprep.subr.bf16.mxu0 0
        %5599 = vmatpush1.bf16.msra.mxu0 %v5534
        %5600 = vmatprep.subr.bf16.mxu0 0
        %5601 = vmatpush1.bf16.msra.mxu0 %v5533
        %5602 = vmatprep.subr.bf16.mxu0 0
        %5603 = vmatpush1.bf16.msra.mxu0 %v5532
        %5604 = vmatprep.subr.bf16.mxu0 0
        %5605 = vmatpush2.bf16.msra.mxu0 %v5547
        %5606 = vmatprep.subr.bf16.mxu0 0
        %5607 = vmatpush2.bf16.msra.mxu0 %v5546
        %5608 = vmatprep.subr.bf16.mxu0 0
        %5609 = vmatpush2.bf16.msra.mxu0 %v5545
        %5610 = vmatprep.subr.bf16.mxu0 0
        %5611 = vmatpush2.bf16.msra.mxu0 %v5544
        %5612 = vmatprep.subr.bf16.mxu0 0
        %5613 = vmatpush2.bf16.msra.mxu0 %v5543
        %5614 = vmatprep.subr.bf16.mxu0 0
        %5615 = vmatpush2.bf16.msra.mxu0 %v5542
        %5616 = vmatprep.subr.bf16.mxu0 0
        %5617 = vmatpush2.bf16.msra.mxu0 %v5541
        %5618 = vmatprep.subr.bf16.mxu0 0
        %5619 = vmatpush2.bf16.msra.mxu0 %v5540
        %5620 = vmatprep.mubr.bf16.mxu0 %v5370
        %5621 = vmatmul.mubr.bf16.gmra.mxu0 %v5369
        %v5622 = vpop.f32.mrf.mxu0
        %v5623 = vadd.f32 %v5431, %v5622
        %v5624 = vpop.f32.mrf.mxu0
        %v5625 = vpop.f32.mrf.mxu0
        %v5626 = vadd.f32 %v5431, %v5625
        %v5627 = vpop.f32.mrf.mxu0
        %5628 = vmatprep.mubr.bf16.mxu0 %v5374
        %5629 = vmatmul.mubr.bf16.gmra.mxu0 %v5373
        %v5630 = vpop.f32.mrf.mxu0
        %v5631 = vadd.f32 %v5431, %v5630
        %v5632 = vpop.f32.mrf.mxu0
        %v5633 = vpop.f32.mrf.mxu0
        %v5634 = vadd.f32 %v5431, %v5633
        %v5635 = vpop.f32.mrf.mxu0
        %5636 = vdwg.mxu0
        %5637 = vmatprep.subr.bf16.mxu0 0
        %5638 = vmatpush1.bf16.msra.mxu0 %v5555
        %5639 = vmatprep.subr.bf16.mxu0 0
        %5640 = vmatpush1.bf16.msra.mxu0 %v5554
        %5641 = vmatprep.subr.bf16.mxu0 0
        %5642 = vmatpush1.bf16.msra.mxu0 %v5553
        %5643 = vmatprep.subr.bf16.mxu0 0
        %5644 = vmatpush1.bf16.msra.mxu0 %v5552
        %5645 = vmatprep.subr.bf16.mxu0 0
        %5646 = vmatpush1.bf16.msra.mxu0 %v5551
        %5647 = vmatprep.subr.bf16.mxu0 0
        %5648 = vmatpush1.bf16.msra.mxu0 %v5550
        %5649 = vmatprep.subr.bf16.mxu0 0
        %5650 = vmatpush1.bf16.msra.mxu0 %v5549
        %5651 = vmatprep.subr.bf16.mxu0 0
        %5652 = vmatpush1.bf16.msra.mxu0 %v5548
        %5653 = vmatprep.subr.bf16.mxu0 0
        %5654 = vmatpush2.bf16.msra.mxu0 0
        %5655 = vmatprep.subr.bf16.mxu0 0
        %5656 = vmatpush2.bf16.msra.mxu0 0
        %5657 = vmatprep.subr.bf16.mxu0 0
        %5658 = vmatpush2.bf16.msra.mxu0 0
        %5659 = vmatprep.subr.bf16.mxu0 0
        %5660 = vmatpush2.bf16.msra.mxu0 0
        %5661 = vmatprep.subr.bf16.mxu0 0
        %5662 = vmatpush2.bf16.msra.mxu0 0
        %5663 = vmatprep.subr.bf16.mxu0 0
        %5664 = vmatpush2.bf16.msra.mxu0 0
        %5665 = vmatprep.subr.bf16.mxu0 0
        %5666 = vmatpush2.bf16.msra.mxu0 0
        %5667 = vmatprep.subr.bf16.mxu0 0
        %5668 = vmatpush2.bf16.msra.mxu0 %v5556
        %5669 = vmatprep.mubr.bf16.mxu0 %v5583
        %5670 = vmatmul.mubr.bf16.gmra.mxu0 %v5371
        %v5671 = vpop.f32.mrf.mxu0
        %v5672 = vadd.f32 %v5623, %v5671
        %v5673 = vpop.f32.mrf.mxu0
        %v5674 = vpop.f32.mrf.mxu0
        %v5675 = vadd.f32 %v5626, %v5674
        %v5676 = vpop.f32.mrf.mxu0
        %5677 = vmatprep.mubr.bf16.mxu0 %v5586
        %5678 = vmatmul.mubr.bf16.gmra.mxu0 %v5375
        %v5679 = vpop.f32.mrf.mxu0
        %v5680 = vadd.f32 %v5631, %v5679
        %v5681 = vpop.f32.mrf.mxu0
        %v5682 = vpop.f32.mrf.mxu0
        %v5683 = vadd.f32 %v5634, %v5682
        %v5684 = vpop.f32.mrf.mxu0
        %5685 = vdwg.mxu0
        %v5686 = vmax.f32 %v5672, 0.0
        %v5687 = vmax.f32 %v5675, 0.0
        %v5688 = vmax.f32 %v5680, 0.0
        %v5689 = vmax.f32 %v5683, 0.0
        %v5690 = vld [vmem:[#allocation6 + $0x760] sm:$0xf]
        %v5691 = vld [vmem:[#allocation6 + $0x764] sm:$0xf]
        %v5692 = vld [vmem:[#allocation6 + $0x768] sm:$0xf]
        %v5693 = vld [vmem:[#allocation6 + $0x76c] sm:$0xf]
        %v5694 = vld [vmem:[#allocation6 + $0x770] sm:$0xf]
        %v5695 = vld [vmem:[#allocation6 + $0x774] sm:$0xf]
        %v5696 = vld [vmem:[#allocation6 + $0x778] sm:$0xf]
        %v5697 = vld [vmem:[#allocation6 + $0x77c] sm:$0xf]
        %v5698 = vld [vmem:[#allocation6 + $0x780] sm:$0x3]
        %v5699 = vpack.c.bf16 %v5687, %v5686
        %v5700 = vpack.c.bf16 %v5689, %v5688
        %v5710 = vunpack.c.l.b16 %v5690
        %v5711 = vunpack.c.l.b16 %v5691
        %v5712 = vunpack.c.l.b16 %v5692
        %v5713 = vunpack.c.l.b16 %v5693
        %v5714 = vunpack.c.l.b16 %v5694
        %v5715 = vunpack.c.l.b16 %v5695
        %v5716 = vunpack.c.l.b16 %v5696
        %v5717 = vunpack.c.l.b16 %v5697
        %v5718 = vunpack.c.l.b16 %v5698
        %v5719 = vpack.c.b16 %v5711, %v5710
        %v5720 = vpack.c.b16 %v5713, %v5712
        %v5721 = vpack.c.b16 %v5715, %v5714
        %v5722 = vpack.c.b16 %v5717, %v5716
        %v5723 = vpack.c.b16 %v5718, %v5718
        %v5725 = vsel %vm1284, %v5719, 0
        %v5728 = vsel %vm1284, %v5720, 0
        %v5731 = vsel %vm1284, %v5721, 0
        %v5734 = vsel %vm1284, %v5722, 0
        %v5737 = vsel %vm1284, %v5723, 0
        %5739 = vmatprep.subr.bf16.mxu0 0
        %5740 = vmatpush1.bf16.msra.mxu0 0
        %5741 = vmatprep.subr.bf16.mxu0 0
        %5742 = vmatpush1.bf16.msra.mxu0 0
        %5743 = vmatprep.subr.bf16.mxu0 0
        %5744 = vmatpush1.bf16.msra.mxu0 0
        %5745 = vmatprep.subr.bf16.mxu0 0
        %5746 = vmatpush1.bf16.msra.mxu0 0
        %5747 = vmatprep.subr.bf16.mxu0 0
        %5748 = vmatpush1.bf16.msra.mxu0 0
        %5749 = vmatprep.subr.bf16.mxu0 0
        %5750 = vmatpush1.bf16.msra.mxu0 0
        %5751 = vmatprep.subr.bf16.mxu0 0
        %5752 = vmatpush1.bf16.msra.mxu0 %v5700
        %5753 = vmatprep.subr.bf16.mxu0 0
        %5754 = vmatpush1.bf16.msra.mxu0 %v5699
        %5755 = vmatprep.subr.bf16.mxu0 0
        %5756 = vmatpush2.bf16.msra.mxu0 0
        %5757 = vmatprep.subr.bf16.mxu0 0
        %5758 = vmatpush2.bf16.msra.mxu0 0
        %5759 = vmatprep.subr.bf16.mxu0 0
        %5760 = vmatpush2.bf16.msra.mxu0 0
        %5761 = vmatprep.subr.bf16.mxu0 0
        %5762 = vmatpush2.bf16.msra.mxu0 0
        %5763 = vmatprep.subr.bf16.mxu0 0
        %5764 = vmatpush2.bf16.msra.mxu0 0
        %5765 = vmatprep.subr.bf16.mxu0 0
        %5766 = vmatpush2.bf16.msra.mxu0 0
        %5767 = vmatprep.subr.bf16.mxu0 0
        %5768 = vmatpush2.bf16.msra.mxu0 0
        %5769 = vmatprep.subr.bf16.mxu0 0
        %5770 = vmatpush2.bf16.msra.mxu0 0
        %5771 = vmatprep.mubr.bf16.mxu0 0
        %5772 = vmatmul.mubr.bf16.gmra.mxu0 %v5725
        %v5773 = vpop.f32.mrf.mxu0
        %v5774 = vadd.f32 0.0, %v5773
        %v5775 = vpop.f32.mrf.mxu0
        %v5776 = vpop.f32.mrf.mxu0
        %v5777 = vadd.f32 0.0, %v5776
        %v5778 = vpop.f32.mrf.mxu0
        %5779 = vmatprep.mubr.bf16.mxu0 0
        %5780 = vmatmul.mubr.bf16.gmra.mxu0 %v5728
        %v5781 = vpop.f32.mrf.mxu0
        %v5782 = vadd.f32 0.0, %v5781
        %v5783 = vpop.f32.mrf.mxu0
        %v5784 = vpop.f32.mrf.mxu0
        %v5785 = vadd.f32 0.0, %v5784
        %v5786 = vpop.f32.mrf.mxu0
        %5787 = vmatprep.mubr.bf16.mxu0 0
        %5788 = vmatmul.mubr.bf16.gmra.mxu0 %v5731
        %v5789 = vpop.f32.mrf.mxu0
        %v5790 = vadd.f32 0.0, %v5789
        %v5791 = vpop.f32.mrf.mxu0
        %v5792 = vpop.f32.mrf.mxu0
        %v5793 = vadd.f32 0.0, %v5792
        %v5794 = vpop.f32.mrf.mxu0
        %5795 = vmatprep.mubr.bf16.mxu0 0
        %5796 = vmatmul.mubr.bf16.gmra.mxu0 %v5734
        %v5797 = vpop.f32.mrf.mxu0
        %v5798 = vadd.f32 0.0, %v5797
        %v5799 = vpop.f32.mrf.mxu0
        %v5800 = vpop.f32.mrf.mxu0
        %v5801 = vadd.f32 0.0, %v5800
        %v5802 = vpop.f32.mrf.mxu0
        %5803 = vmatprep.mubr.bf16.mxu0 0
        %5804 = vmatmul.mubr.bf16.gmra.mxu0 %v5737
        %v5805 = vpop.f32.mrf.mxu0
        %v5806 = vadd.f32 0.0, %v5805
        %v5807 = vpop.f32.mrf.mxu0
        %v5808 = vpop.f32.mrf.mxu0
        %v5809 = vpop.f32.mrf.mxu0
        %5810 = vdwg.mxu0
        %v5820 = vrot.slane %v5774, 1
        %v5821 = vrot.slane %v5777, 1
        %v5822 = vsel %vm318, %v5820, %v5821
        %v5823 = vrot.slane %v5782, 1
        %v5824 = vsel %vm318, %v5821, %v5823
        %v5825 = vrot.slane %v5785, 1
        %v5826 = vsel %vm318, %v5823, %v5825
        %v5827 = vrot.slane %v5790, 1
        %v5828 = vsel %vm318, %v5825, %v5827
        %v5829 = vrot.slane %v5793, 1
        %v5830 = vsel %vm318, %v5827, %v5829
        %v5831 = vrot.slane %v5798, 1
        %v5832 = vsel %vm318, %v5829, %v5831
        %v5833 = vrot.slane %v5801, 1
        %v5834 = vsel %vm318, %v5831, %v5833
        %v5835 = vrot.slane %v5806, 1
        %v5836 = vsel %vm318, %v5833, %v5835
        %5837 = vrot.lane.b32.xlu0 %v5822, 64
        %v5838 = vpop.permute.xlu0 %5837
        %5839 = vrot.lane.b32.xlu0 %v5824, 64
        %v5840 = vpop.permute.xlu0 %5839
        %5841 = vrot.lane.b32.xlu0 %v5826, 64
        %v5842 = vpop.permute.xlu0 %5841
        %5843 = vrot.lane.b32.xlu0 %v5828, 64
        %v5844 = vpop.permute.xlu0 %5843
        %5845 = vrot.lane.b32.xlu0 %v5830, 64
        %v5846 = vpop.permute.xlu0 %5845
        %5847 = vrot.lane.b32.xlu0 %v5832, 64
        %v5848 = vpop.permute.xlu0 %5847
        %5849 = vrot.lane.b32.xlu0 %v5834, 64
        %v5850 = vpop.permute.xlu0 %5849
        %5851 = vrot.lane.b32.xlu0 %v5836, 64
        %v5852 = vpop.permute.xlu0 %5851
        %v5861 = vrot.slane %v5774, 2
        %v5862 = vrot.slane %v5777, 2
        %v5863 = vsel %vm400, %v5861, %v5862
        %v5864 = vrot.slane %v5782, 2
        %v5865 = vsel %vm400, %v5862, %v5864
        %v5866 = vrot.slane %v5785, 2
        %v5867 = vsel %vm400, %v5864, %v5866
        %v5868 = vrot.slane %v5790, 2
        %v5869 = vsel %vm400, %v5866, %v5868
        %v5870 = vrot.slane %v5793, 2
        %v5871 = vsel %vm400, %v5868, %v5870
        %v5872 = vrot.slane %v5798, 2
        %v5873 = vsel %vm400, %v5870, %v5872
        %v5874 = vrot.slane %v5801, 2
        %v5875 = vsel %vm400, %v5872, %v5874
        %v5876 = vrot.slane %v5806, 2
        %v5877 = vsel %vm400, %v5874, %v5876
        %v5886 = vrot.slane %v5774, 3
        %v5887 = vrot.slane %v5777, 3
        %v5888 = vsel %vm482, %v5886, %v5887
        %v5889 = vrot.slane %v5782, 3
        %v5890 = vsel %vm482, %v5887, %v5889
        %v5891 = vrot.slane %v5785, 3
        %v5892 = vsel %vm482, %v5889, %v5891
        %v5893 = vrot.slane %v5790, 3
        %v5894 = vsel %vm482, %v5891, %v5893
        %v5895 = vrot.slane %v5793, 3
        %v5896 = vsel %vm482, %v5893, %v5895
        %v5897 = vrot.slane %v5798, 3
        %v5898 = vsel %vm482, %v5895, %v5897
        %v5899 = vrot.slane %v5801, 3
        %v5900 = vsel %vm482, %v5897, %v5899
        %v5901 = vrot.slane %v5806, 3
        %v5902 = vsel %vm482, %v5899, %v5901
        %5903 = vrot.lane.b32.xlu0 %v5888, 64
        %v5904 = vpop.permute.xlu0 %5903
        %5905 = vrot.lane.b32.xlu0 %v5890, 64
        %v5906 = vpop.permute.xlu0 %5905
        %5907 = vrot.lane.b32.xlu0 %v5892, 64
        %v5908 = vpop.permute.xlu0 %5907
        %5909 = vrot.lane.b32.xlu0 %v5894, 64
        %v5910 = vpop.permute.xlu0 %5909
        %5911 = vrot.lane.b32.xlu0 %v5896, 64
        %v5912 = vpop.permute.xlu0 %5911
        %5913 = vrot.lane.b32.xlu0 %v5898, 64
        %v5914 = vpop.permute.xlu0 %5913
        %5915 = vrot.lane.b32.xlu0 %v5900, 64
        %v5916 = vpop.permute.xlu0 %5915
        %5917 = vrot.lane.b32.xlu0 %v5902, 64
        %v5918 = vpop.permute.xlu0 %5917
        %v5927 = vrot.slane %v5774, 4
        %v5928 = vrot.slane %v5777, 4
        %v5929 = vsel %vm564, %v5927, %v5928
        %v5930 = vrot.slane %v5782, 4
        %v5931 = vsel %vm564, %v5928, %v5930
        %v5932 = vrot.slane %v5785, 4
        %v5933 = vsel %vm564, %v5930, %v5932
        %v5934 = vrot.slane %v5790, 4
        %v5935 = vsel %vm564, %v5932, %v5934
        %v5936 = vrot.slane %v5793, 4
        %v5937 = vsel %vm564, %v5934, %v5936
        %v5938 = vrot.slane %v5798, 4
        %v5939 = vsel %vm564, %v5936, %v5938
        %v5940 = vrot.slane %v5801, 4
        %v5941 = vsel %vm564, %v5938, %v5940
        %v5942 = vrot.slane %v5806, 4
        %v5943 = vsel %vm564, %v5940, %v5942
        %v5952 = vsel %vm1318, %v5774, %v5838
        %v5953 = vsel %vm1318, %v5777, %v5840
        %v5954 = vsel %vm1318, %v5782, %v5842
        %v5955 = vsel %vm1318, %v5785, %v5844
        %v5956 = vsel %vm1318, %v5790, %v5846
        %v5957 = vsel %vm1318, %v5793, %v5848
        %v5958 = vsel %vm1318, %v5798, %v5850
        %v5959 = vsel %vm1318, %v5801, %v5852
        %v5960 = vsel %vm1318, %v5863, %v5904
        %v5961 = vsel %vm1318, %v5865, %v5906
        %v5962 = vsel %vm1318, %v5867, %v5908
        %v5963 = vsel %vm1318, %v5869, %v5910
        %v5964 = vsel %vm1318, %v5871, %v5912
        %v5965 = vsel %vm1318, %v5873, %v5914
        %v5966 = vsel %vm1318, %v5875, %v5916
        %v5967 = vsel %vm1318, %v5877, %v5918
        %v5968 = vpack.c.bf16 %v5953, %v5952
        %v5969 = vpack.c.bf16 %v5961, %v5960
        %v5970 = vpack.c.bf16 %v5931, %v5929
        %v5971 = vpack.c.bf16 %v5955, %v5954
        %v5972 = vpack.c.bf16 %v5963, %v5962
        %v5973 = vpack.c.bf16 %v5935, %v5933
        %v5974 = vpack.c.bf16 %v5957, %v5956
        %v5975 = vpack.c.bf16 %v5965, %v5964
        %v5976 = vpack.c.bf16 %v5939, %v5937
        %v5977 = vpack.c.bf16 %v5959, %v5958
        %v5978 = vpack.c.bf16 %v5967, %v5966
        %v5979 = vpack.c.bf16 %v5943, %v5941
        %v5980 = vld [vmem:[#allocation6 + $0x668] sm:$0xf]
        %v5981 = vld [vmem:[#allocation6 + $0x66c] sm:$0xf]
        %v5982 = vld [vmem:[#allocation6 + $0x670] sm:$0xf]
        %v5983 = vld [vmem:[#allocation6 + $0x674] sm:$0xf]
        %v5984 = vld [vmem:[#allocation6 + $0x678] sm:$0xf]
        %v5985 = vld [vmem:[#allocation6 + $0x67c] sm:$0xf]
        %v5986 = vld [vmem:[#allocation6 + $0x680] sm:$0xf]
        %v5987 = vld [vmem:[#allocation6 + $0x684] sm:$0xf]
        %v5988 = vld [vmem:[#allocation6 + $0x688] sm:$0xf]
        %v5989 = vld [vmem:[#allocation6 + $0x68c] sm:$0xf]
        %v5990 = vld [vmem:[#allocation6 + $0x690] sm:$0xf]
        %v5991 = vld [vmem:[#allocation6 + $0x694] sm:$0xf]
        %v5992 = vld [vmem:[#allocation6 + $0x698] sm:$0xf]
        %v5993 = vld [vmem:[#allocation6 + $0x69c] sm:$0xf]
        %v5994 = vld [vmem:[#allocation6 + $0x6a0] sm:$0xf]
        %v5995 = vld [vmem:[#allocation6 + $0x6a4] sm:$0xf]
        %v5996 = vld [vmem:[#allocation6 + $0x6a8] sm:$0xf]
        %v5997 = vld [vmem:[#allocation6 + $0x6ac] sm:$0xf]
        %v5998 = vld [vmem:[#allocation6 + $0x6b0] sm:$0xf]
        %v5999 = vld [vmem:[#allocation6 + $0x6b4] sm:$0xf]
        %v6000 = vld [vmem:[#allocation6 + $0x6b8] sm:$0xf]
        %v6001 = vld [vmem:[#allocation6 + $0x6bc] sm:$0xf]
        %v6002 = vld [vmem:[#allocation6 + $0x6c0] sm:$0xf]
        %v6003 = vld [vmem:[#allocation6 + $0x6c4] sm:$0xf]
        %v6004 = vld [vmem:[#allocation6 + $0x6c8] sm:$0xf]
        %v6005 = vld [vmem:[#allocation6 + $0x6cc] sm:$0xf]
        %v6006 = vld [vmem:[#allocation6 + $0x6d0] sm:$0xf]
        %v6007 = vld [vmem:[#allocation6 + $0x6d4] sm:$0xf]
        %v6008 = vld [vmem:[#allocation6 + $0x6d8] sm:$0xf]
        %v6009 = vld [vmem:[#allocation6 + $0x6dc] sm:$0xf]
        %v6010 = vld [vmem:[#allocation6 + $0x6e0] sm:$0xf]
        %v6011 = vld [vmem:[#allocation6 + $0x6e4] sm:$0xf]
        %v6012 = vld [vmem:[#allocation6 + $0x6e8] sm:$0xf]
        %v6013 = vld [vmem:[#allocation6 + $0x6ec] sm:$0xf]
        %v6014 = vld [vmem:[#allocation6 + $0x6f0] sm:$0xf]
        %v6015 = vld [vmem:[#allocation6 + $0x6f4] sm:$0xf]
        %v6016 = vld [vmem:[#allocation6 + $0x6f8] sm:$0xf]
        %v6017 = vld [vmem:[#allocation6 + $0x6fc] sm:$0xf]
        %v6018 = vld [vmem:[#allocation6 + $0x700] sm:$0xf]
        %v6019 = vld [vmem:[#allocation6 + $0x704] sm:$0xf]
        %v6020 = vld [vmem:[#allocation8 + $0xc] sm:$0x1]
        %v6021 = vlaneseq
        %v6022 = vshrl.u32 %v6021, 7
        %v6023 = vsub.s32 0, %v6022
        %v6024 = vrot.slane %v6020, %v6023
        %v6065 = vunpack.c.l.b16 %v5980
        %v6066 = vunpack.c.l.b16 %v5981
        %v6067 = vunpack.c.l.b16 %v5982
        %v6068 = vunpack.c.l.b16 %v5983
        %v6069 = vunpack.c.l.b16 %v5984
        %v6070 = vunpack.c.l.b16 %v5985
        %v6071 = vunpack.c.l.b16 %v5986
        %v6072 = vunpack.c.l.b16 %v5987
        %v6073 = vunpack.c.l.b16 %v5988
        %v6074 = vunpack.c.l.b16 %v5989
        %v6075 = vunpack.c.l.b16 %v5990
        %v6076 = vunpack.c.l.b16 %v5991
        %v6077 = vunpack.c.l.b16 %v5992
        %v6078 = vunpack.c.l.b16 %v5993
        %v6079 = vunpack.c.l.b16 %v5994
        %v6080 = vunpack.c.l.b16 %v5995
        %v6081 = vunpack.c.l.b16 %v5996
        %v6082 = vunpack.c.l.b16 %v5997
        %v6083 = vunpack.c.l.b16 %v5998
        %v6084 = vunpack.c.l.b16 %v5999
        %v6085 = vunpack.c.l.b16 %v6000
        %v6086 = vunpack.c.l.b16 %v6001
        %v6087 = vunpack.c.l.b16 %v6002
        %v6088 = vunpack.c.l.b16 %v6003
        %v6089 = vunpack.c.l.b16 %v6004
        %v6090 = vunpack.c.l.b16 %v6005
        %v6091 = vunpack.c.l.b16 %v6006
        %v6092 = vunpack.c.l.b16 %v6007
        %v6093 = vunpack.c.l.b16 %v6008
        %v6094 = vunpack.c.l.b16 %v6009
        %v6095 = vunpack.c.l.b16 %v6010
        %v6096 = vunpack.c.l.b16 %v6011
        %v6097 = vunpack.c.l.b16 %v6012
        %v6098 = vunpack.c.l.b16 %v6013
        %v6099 = vunpack.c.l.b16 %v6014
        %v6100 = vunpack.c.l.b16 %v6015
        %v6101 = vunpack.c.l.b16 %v6016
        %v6102 = vunpack.c.l.b16 %v6017
        %v6103 = vunpack.c.l.b16 %v6018
        %v6104 = vunpack.c.l.b16 %v6019
        %v6105 = vpack.c.b16 %v6066, %v6065
        %v6106 = vpack.c.b16 %v6068, %v6067
        %v6107 = vpack.c.b16 %v6070, %v6069
        %v6108 = vpack.c.b16 %v6072, %v6071
        %v6109 = vpack.c.b16 %v6074, %v6073
        %v6110 = vpack.c.b16 %v6076, %v6075
        %v6111 = vpack.c.b16 %v6078, %v6077
        %v6112 = vpack.c.b16 %v6080, %v6079
        %v6113 = vpack.c.b16 %v6082, %v6081
        %v6114 = vpack.c.b16 %v6084, %v6083
        %v6115 = vpack.c.b16 %v6086, %v6085
        %v6116 = vpack.c.b16 %v6088, %v6087
        %v6117 = vpack.c.b16 %v6090, %v6089
        %v6118 = vpack.c.b16 %v6092, %v6091
        %v6119 = vpack.c.b16 %v6094, %v6093
        %v6120 = vpack.c.b16 %v6096, %v6095
        %v6121 = vpack.c.b16 %v6098, %v6097
        %v6122 = vpack.c.b16 %v6100, %v6099
        %v6123 = vpack.c.b16 %v6102, %v6101
        %v6124 = vpack.c.b16 %v6104, %v6103
        %v6146 = vsel %vm1318, %v5970, 0
        %v6149 = vsel %vm1318, %v5973, 0
        %v6152 = vsel %vm1318, %v5976, 0
        %v6155 = vsel %vm1318, %v5979, 0
        %6157 = vmatprep.subr.bf16.mxu0 0
        %6158 = vmatpush1.bf16.msra.mxu0 %v6112
        %6159 = vmatprep.subr.bf16.mxu0 0
        %6160 = vmatpush1.bf16.msra.mxu0 %v6111
        %6161 = vmatprep.subr.bf16.mxu0 0
        %6162 = vmatpush1.bf16.msra.mxu0 %v6110
        %6163 = vmatprep.subr.bf16.mxu0 0
        %6164 = vmatpush1.bf16.msra.mxu0 %v6109
        %6165 = vmatprep.subr.bf16.mxu0 0
        %6166 = vmatpush1.bf16.msra.mxu0 %v6108
        %6167 = vmatprep.subr.bf16.mxu0 0
        %6168 = vmatpush1.bf16.msra.mxu0 %v6107
        %6169 = vmatprep.subr.bf16.mxu0 0
        %6170 = vmatpush1.bf16.msra.mxu0 %v6106
        %6171 = vmatprep.subr.bf16.mxu0 0
        %6172 = vmatpush1.bf16.msra.mxu0 %v6105
        %6173 = vmatprep.subr.bf16.mxu0 0
        %6174 = vmatpush2.bf16.msra.mxu0 %v6120
        %6175 = vmatprep.subr.bf16.mxu0 0
        %6176 = vmatpush2.bf16.msra.mxu0 %v6119
        %6177 = vmatprep.subr.bf16.mxu0 0
        %6178 = vmatpush2.bf16.msra.mxu0 %v6118
        %6179 = vmatprep.subr.bf16.mxu0 0
        %6180 = vmatpush2.bf16.msra.mxu0 %v6117
        %6181 = vmatprep.subr.bf16.mxu0 0
        %6182 = vmatpush2.bf16.msra.mxu0 %v6116
        %6183 = vmatprep.subr.bf16.mxu0 0
        %6184 = vmatpush2.bf16.msra.mxu0 %v6115
        %6185 = vmatprep.subr.bf16.mxu0 0
        %6186 = vmatpush2.bf16.msra.mxu0 %v6114
        %6187 = vmatprep.subr.bf16.mxu0 0
        %6188 = vmatpush2.bf16.msra.mxu0 %v6113
        %6189 = vmatprep.mubr.bf16.mxu0 %v5969
        %6190 = vmatmul.mubr.bf16.gmra.mxu0 %v5968
        %v6191 = vpop.f32.mrf.mxu0
        %v6192 = vadd.f32 %v6024, %v6191
        %v6193 = vpop.f32.mrf.mxu0
        %v6194 = vpop.f32.mrf.mxu0
        %v6195 = vadd.f32 %v6024, %v6194
        %v6196 = vpop.f32.mrf.mxu0
        %6197 = vmatprep.mubr.bf16.mxu0 %v5972
        %6198 = vmatmul.mubr.bf16.gmra.mxu0 %v5971
        %v6199 = vpop.f32.mrf.mxu0
        %v6200 = vadd.f32 %v6024, %v6199
        %v6201 = vpop.f32.mrf.mxu0
        %v6202 = vpop.f32.mrf.mxu0
        %v6203 = vadd.f32 %v6024, %v6202
        %v6204 = vpop.f32.mrf.mxu0
        %6205 = vmatprep.mubr.bf16.mxu0 %v5975
        %6206 = vmatmul.mubr.bf16.gmra.mxu0 %v5974
        %v6207 = vpop.f32.mrf.mxu0
        %v6208 = vadd.f32 %v6024, %v6207
        %v6209 = vpop.f32.mrf.mxu0
        %v6210 = vpop.f32.mrf.mxu0
        %v6211 = vadd.f32 %v6024, %v6210
        %v6212 = vpop.f32.mrf.mxu0
        %6213 = vmatprep.mubr.bf16.mxu0 %v5978
        %6214 = vmatmul.mubr.bf16.gmra.mxu0 %v5977
        %v6215 = vpop.f32.mrf.mxu0
        %v6216 = vadd.f32 %v6024, %v6215
        %v6217 = vpop.f32.mrf.mxu0
        %v6218 = vpop.f32.mrf.mxu0
        %v6219 = vadd.f32 %v6024, %v6218
        %v6220 = vpop.f32.mrf.mxu0
        %6221 = vdwg.mxu0
        %6222 = vmatprep.subr.bf16.mxu0 0
        %6223 = vmatpush1.bf16.msra.mxu0 0
        %6224 = vmatprep.subr.bf16.mxu0 0
        %6225 = vmatpush1.bf16.msra.mxu0 0
        %6226 = vmatprep.subr.bf16.mxu0 0
        %6227 = vmatpush1.bf16.msra.mxu0 0
        %6228 = vmatprep.subr.bf16.mxu0 0
        %6229 = vmatpush1.bf16.msra.mxu0 0
        %6230 = vmatprep.subr.bf16.mxu0 0
        %6231 = vmatpush1.bf16.msra.mxu0 %v6124
        %6232 = vmatprep.subr.bf16.mxu0 0
        %6233 = vmatpush1.bf16.msra.mxu0 %v6123
        %6234 = vmatprep.subr.bf16.mxu0 0
        %6235 = vmatpush1.bf16.msra.mxu0 %v6122
        %6236 = vmatprep.subr.bf16.mxu0 0
        %6237 = vmatpush1.bf16.msra.mxu0 %v6121
        %6238 = vmatprep.subr.bf16.mxu0 0
        %6239 = vmatpush2.bf16.msra.mxu0 0
        %6240 = vmatprep.subr.bf16.mxu0 0
        %6241 = vmatpush2.bf16.msra.mxu0 0
        %6242 = vmatprep.subr.bf16.mxu0 0
        %6243 = vmatpush2.bf16.msra.mxu0 0
        %6244 = vmatprep.subr.bf16.mxu0 0
        %6245 = vmatpush2.bf16.msra.mxu0 0
        %6246 = vmatprep.subr.bf16.mxu0 0
        %6247 = vmatpush2.bf16.msra.mxu0 0
        %6248 = vmatprep.subr.bf16.mxu0 0
        %6249 = vmatpush2.bf16.msra.mxu0 0
        %6250 = vmatprep.subr.bf16.mxu0 0
        %6251 = vmatpush2.bf16.msra.mxu0 0
        %6252 = vmatprep.subr.bf16.mxu0 0
        %6253 = vmatpush2.bf16.msra.mxu0 0
        %6254 = vmatprep.mubr.bf16.mxu0 0
        %6255 = vmatmul.mubr.bf16.gmra.mxu0 %v6146
        %v6256 = vpop.f32.mrf.mxu0
        %v6257 = vadd.f32 %v6192, %v6256
        %v6258 = vpop.f32.mrf.mxu0
        %v6259 = vpop.f32.mrf.mxu0
        %v6260 = vadd.f32 %v6195, %v6259
        %v6261 = vpop.f32.mrf.mxu0
        %6262 = vmatprep.mubr.bf16.mxu0 0
        %6263 = vmatmul.mubr.bf16.gmra.mxu0 %v6149
        %v6264 = vpop.f32.mrf.mxu0
        %v6265 = vadd.f32 %v6200, %v6264
        %v6266 = vpop.f32.mrf.mxu0
        %v6267 = vpop.f32.mrf.mxu0
        %v6268 = vadd.f32 %v6203, %v6267
        %v6269 = vpop.f32.mrf.mxu0
        %6270 = vmatprep.mubr.bf16.mxu0 0
        %6271 = vmatmul.mubr.bf16.gmra.mxu0 %v6152
        %v6272 = vpop.f32.mrf.mxu0
        %v6273 = vadd.f32 %v6208, %v6272
        %v6274 = vpop.f32.mrf.mxu0
        %v6275 = vpop.f32.mrf.mxu0
        %v6276 = vadd.f32 %v6211, %v6275
        %v6277 = vpop.f32.mrf.mxu0
        %6278 = vmatprep.mubr.bf16.mxu0 0
        %6279 = vmatmul.mubr.bf16.gmra.mxu0 %v6155
        %v6280 = vpop.f32.mrf.mxu0
        %v6281 = vadd.f32 %v6216, %v6280
        %v6282 = vpop.f32.mrf.mxu0
        %v6283 = vpop.f32.mrf.mxu0
        %v6284 = vadd.f32 %v6219, %v6283
        %v6285 = vpop.f32.mrf.mxu0
        %6286 = vdwg.mxu0
        %v6287 = vmax.f32 %v6257, 0.0
        %v6288 = vmax.f32 %v6260, 0.0
        %v6289 = vmax.f32 %v6265, 0.0
        %v6290 = vmax.f32 %v6268, 0.0
        %v6291 = vmax.f32 %v6273, 0.0
        %v6292 = vmax.f32 %v6276, 0.0
        %v6293 = vmax.f32 %v6281, 0.0
        %v6294 = vmax.f32 %v6284, 0.0
        %v6295 = vld [vmem:[#allocation6 + $0x760] sm:$0xf]
        %v6296 = vld [vmem:[#allocation6 + $0x764] sm:$0xf]
        %v6297 = vld [vmem:[#allocation6 + $0x768] sm:$0xf]
        %v6298 = vld [vmem:[#allocation6 + $0x76c] sm:$0xf]
        %v6299 = vld [vmem:[#allocation6 + $0x770] sm:$0xf]
        %v6300 = vld [vmem:[#allocation6 + $0x774] sm:$0xf]
        %v6301 = vld [vmem:[#allocation6 + $0x778] sm:$0xf]
        %v6302 = vld [vmem:[#allocation6 + $0x77c] sm:$0xf]
        %v6303 = vld [vmem:[#allocation6 + $0x780] sm:$0xf]
        %v6304 = vld [vmem:[#allocation6 + $0x784] sm:$0xf]
        %v6305 = vld [vmem:[#allocation6 + $0x788] sm:$0xf]
        %v6306 = vld [vmem:[#allocation6 + $0x78c] sm:$0xf]
        %v6307 = vld [vmem:[#allocation6 + $0x790] sm:$0xf]
        %v6308 = vld [vmem:[#allocation6 + $0x794] sm:$0xf]
        %v6309 = vld [vmem:[#allocation6 + $0x798] sm:$0xf]
        %v6310 = vld [vmem:[#allocation6 + $0x79c] sm:$0xf]
        %v6311 = vld [vmem:[#allocation6 + $0x7a0] sm:$0x3]
        %v6312 = vpack.c.bf16 %v6288, %v6287
        %v6313 = vpack.c.bf16 %v6290, %v6289
        %v6314 = vpack.c.bf16 %v6292, %v6291
        %v6315 = vpack.c.bf16 %v6294, %v6293
        %v6333 = vunpack.c.l.b16 %v6295
        %v6334 = vunpack.c.l.b16 %v6296
        %v6335 = vunpack.c.l.b16 %v6297
        %v6336 = vunpack.c.l.b16 %v6298
        %v6337 = vunpack.c.l.b16 %v6299
        %v6338 = vunpack.c.l.b16 %v6300
        %v6339 = vunpack.c.l.b16 %v6301
        %v6340 = vunpack.c.l.b16 %v6302
        %v6341 = vunpack.c.l.b16 %v6303
        %v6342 = vunpack.c.l.b16 %v6304
        %v6343 = vunpack.c.l.b16 %v6305
        %v6344 = vunpack.c.l.b16 %v6306
        %v6345 = vunpack.c.l.b16 %v6307
        %v6346 = vunpack.c.l.b16 %v6308
        %v6347 = vunpack.c.l.b16 %v6309
        %v6348 = vunpack.c.l.b16 %v6310
        %v6349 = vunpack.c.l.b16 %v6311
        %v6350 = vpack.c.b16 %v6334, %v6333
        %v6351 = vpack.c.b16 %v6336, %v6335
        %v6352 = vpack.c.b16 %v6338, %v6337
        %v6353 = vpack.c.b16 %v6340, %v6339
        %v6354 = vpack.c.b16 %v6342, %v6341
        %v6355 = vpack.c.b16 %v6344, %v6343
        %v6356 = vpack.c.b16 %v6346, %v6345
        %v6357 = vpack.c.b16 %v6348, %v6347
        %v6358 = vpack.c.b16 %v6349, %v6349
        %v6360 = vsel %vm1318, %v6350, 0
        %v6363 = vsel %vm1318, %v6351, 0
        %v6366 = vsel %vm1318, %v6352, 0
        %v6369 = vsel %vm1318, %v6353, 0
        %v6372 = vsel %vm1318, %v6354, 0
        %v6375 = vsel %vm1318, %v6355, 0
        %v6378 = vsel %vm1318, %v6356, 0
        %v6381 = vsel %vm1318, %v6357, 0
        %v6384 = vsel %vm1318, %v6358, 0
        %6386 = vmatprep.subr.bf16.mxu0 0
        %6387 = vmatpush1.bf16.msra.mxu0 0
        %6388 = vmatprep.subr.bf16.mxu0 0
        %6389 = vmatpush1.bf16.msra.mxu0 0
        %6390 = vmatprep.subr.bf16.mxu0 0
        %6391 = vmatpush1.bf16.msra.mxu0 0
        %6392 = vmatprep.subr.bf16.mxu0 0
        %6393 = vmatpush1.bf16.msra.mxu0 0
        %6394 = vmatprep.subr.bf16.mxu0 0
        %6395 = vmatpush1.bf16.msra.mxu0 %v6315
        %6396 = vmatprep.subr.bf16.mxu0 0
        %6397 = vmatpush1.bf16.msra.mxu0 %v6314
        %6398 = vmatprep.subr.bf16.mxu0 0
        %6399 = vmatpush1.bf16.msra.mxu0 %v6313
        %6400 = vmatprep.subr.bf16.mxu0 0
        %6401 = vmatpush1.bf16.msra.mxu0 %v6312
        %6402 = vmatprep.subr.bf16.mxu0 0
        %6403 = vmatpush2.bf16.msra.mxu0 0
        %6404 = vmatprep.subr.bf16.mxu0 0
        %6405 = vmatpush2.bf16.msra.mxu0 0
        %6406 = vmatprep.subr.bf16.mxu0 0
        %6407 = vmatpush2.bf16.msra.mxu0 0
        %6408 = vmatprep.subr.bf16.mxu0 0
        %6409 = vmatpush2.bf16.msra.mxu0 0
        %6410 = vmatprep.subr.bf16.mxu0 0
        %6411 = vmatpush2.bf16.msra.mxu0 0
        %6412 = vmatprep.subr.bf16.mxu0 0
        %6413 = vmatpush2.bf16.msra.mxu0 0
        %6414 = vmatprep.subr.bf16.mxu0 0
        %6415 = vmatpush2.bf16.msra.mxu0 0
        %6416 = vmatprep.subr.bf16.mxu0 0
        %6417 = vmatpush2.bf16.msra.mxu0 0
        %6418 = vmatprep.mubr.bf16.mxu0 0
        %6419 = vmatmul.mubr.bf16.gmra.mxu0 %v6360
        %v6420 = vpop.f32.mrf.mxu0
        %v6421 = vadd.f32 0.0, %v6420
        %v6422 = vpop.f32.mrf.mxu0
        %v6423 = vpop.f32.mrf.mxu0
        %v6424 = vadd.f32 0.0, %v6423
        %v6425 = vpop.f32.mrf.mxu0
        %6426 = vmatprep.mubr.bf16.mxu0 0
        %6427 = vmatmul.mubr.bf16.gmra.mxu0 %v6363
        %v6428 = vpop.f32.mrf.mxu0
        %v6429 = vadd.f32 0.0, %v6428
        %v6430 = vpop.f32.mrf.mxu0
        %v6431 = vpop.f32.mrf.mxu0
        %v6432 = vadd.f32 0.0, %v6431
        %v6433 = vpop.f32.mrf.mxu0
        %6434 = vmatprep.mubr.bf16.mxu0 0
        %6435 = vmatmul.mubr.bf16.gmra.mxu0 %v6366
        %v6436 = vpop.f32.mrf.mxu0
        %v6437 = vadd.f32 0.0, %v6436
        %v6438 = vpop.f32.mrf.mxu0
        %v6439 = vpop.f32.mrf.mxu0
        %v6440 = vadd.f32 0.0, %v6439
        %v6441 = vpop.f32.mrf.mxu0
        %6442 = vmatprep.mubr.bf16.mxu0 0
        %6443 = vmatmul.mubr.bf16.gmra.mxu0 %v6369
        %v6444 = vpop.f32.mrf.mxu0
        %v6445 = vadd.f32 0.0, %v6444
        %v6446 = vpop.f32.mrf.mxu0
        %v6447 = vpop.f32.mrf.mxu0
        %v6448 = vadd.f32 0.0, %v6447
        %v6449 = vpop.f32.mrf.mxu0
        %6450 = vmatprep.mubr.bf16.mxu0 0
        %6451 = vmatmul.mubr.bf16.gmra.mxu0 %v6372
        %v6452 = vpop.f32.mrf.mxu0
        %v6453 = vadd.f32 0.0, %v6452
        %v6454 = vpop.f32.mrf.mxu0
        %v6455 = vpop.f32.mrf.mxu0
        %v6456 = vadd.f32 0.0, %v6455
        %v6457 = vpop.f32.mrf.mxu0
        %6458 = vmatprep.mubr.bf16.mxu0 0
        %6459 = vmatmul.mubr.bf16.gmra.mxu0 %v6375
        %v6460 = vpop.f32.mrf.mxu0
        %v6461 = vadd.f32 0.0, %v6460
        %v6462 = vpop.f32.mrf.mxu0
        %v6463 = vpop.f32.mrf.mxu0
        %v6464 = vadd.f32 0.0, %v6463
        %v6465 = vpop.f32.mrf.mxu0
        %6466 = vmatprep.mubr.bf16.mxu0 0
        %6467 = vmatmul.mubr.bf16.gmra.mxu0 %v6378
        %v6468 = vpop.f32.mrf.mxu0
        %v6469 = vadd.f32 0.0, %v6468
        %v6470 = vpop.f32.mrf.mxu0
        %v6471 = vpop.f32.mrf.mxu0
        %v6472 = vadd.f32 0.0, %v6471
        %v6473 = vpop.f32.mrf.mxu0
        %6474 = vmatprep.mubr.bf16.mxu0 0
        %6475 = vmatmul.mubr.bf16.gmra.mxu0 %v6381
        %v6476 = vpop.f32.mrf.mxu0
        %v6477 = vadd.f32 0.0, %v6476
        %v6478 = vpop.f32.mrf.mxu0
        %v6479 = vpop.f32.mrf.mxu0
        %v6480 = vadd.f32 0.0, %v6479
        %v6481 = vpop.f32.mrf.mxu0
        %6482 = vmatprep.mubr.bf16.mxu0 0
        %6483 = vmatmul.mubr.bf16.gmra.mxu0 %v6384
        %v6484 = vpop.f32.mrf.mxu0
        %v6485 = vadd.f32 0.0, %v6484
        %v6486 = vpop.f32.mrf.mxu0
        %v6487 = vpop.f32.mrf.mxu0
        %v6488 = vpop.f32.mrf.mxu0
        %6489 = vdwg.mxu0
        %v6507 = vrot.slane %v6421, 1
        %v6508 = vrot.slane %v6424, 1
        %v6509 = vsel %vm318, %v6507, %v6508
        %v6510 = vrot.slane %v6429, 1
        %v6511 = vsel %vm318, %v6508, %v6510
        %v6512 = vrot.slane %v6432, 1
        %v6513 = vsel %vm318, %v6510, %v6512
        %v6514 = vrot.slane %v6437, 1
        %v6515 = vsel %vm318, %v6512, %v6514
        %v6516 = vrot.slane %v6440, 1
        %v6517 = vsel %vm318, %v6514, %v6516
        %v6518 = vrot.slane %v6445, 1
        %v6519 = vsel %vm318, %v6516, %v6518
        %v6520 = vrot.slane %v6448, 1
        %v6521 = vsel %vm318, %v6518, %v6520
        %v6522 = vrot.slane %v6453, 1
        %v6523 = vsel %vm318, %v6520, %v6522
        %v6524 = vrot.slane %v6456, 1
        %v6525 = vsel %vm318, %v6522, %v6524
        %v6526 = vrot.slane %v6461, 1
        %v6527 = vsel %vm318, %v6524, %v6526
        %v6528 = vrot.slane %v6464, 1
        %v6529 = vsel %vm318, %v6526, %v6528
        %v6530 = vrot.slane %v6469, 1
        %v6531 = vsel %vm318, %v6528, %v6530
        %v6532 = vrot.slane %v6472, 1
        %v6533 = vsel %vm318, %v6530, %v6532
        %v6534 = vrot.slane %v6477, 1
        %v6535 = vsel %vm318, %v6532, %v6534
        %v6536 = vrot.slane %v6480, 1
        %v6537 = vsel %vm318, %v6534, %v6536
        %v6538 = vrot.slane %v6485, 1
        %v6539 = vsel %vm318, %v6536, %v6538
        %6540 = vrot.lane.b32.xlu0 %v6509, 32
        %v6541 = vpop.permute.xlu0 %6540
        %6542 = vrot.lane.b32.xlu0 %v6511, 32
        %v6543 = vpop.permute.xlu0 %6542
        %6544 = vrot.lane.b32.xlu0 %v6513, 32
        %v6545 = vpop.permute.xlu0 %6544
        %6546 = vrot.lane.b32.xlu0 %v6515, 32
        %v6547 = vpop.permute.xlu0 %6546
        %6548 = vrot.lane.b32.xlu0 %v6517, 32
        %v6549 = vpop.permute.xlu0 %6548
        %6550 = vrot.lane.b32.xlu0 %v6519, 32
        %v6551 = vpop.permute.xlu0 %6550
        %6552 = vrot.lane.b32.xlu0 %v6521, 32
        %v6553 = vpop.permute.xlu0 %6552
        %6554 = vrot.lane.b32.xlu0 %v6523, 32
        %v6555 = vpop.permute.xlu0 %6554
        %6556 = vrot.lane.b32.xlu0 %v6525, 32
        %v6557 = vpop.permute.xlu0 %6556
        %6558 = vrot.lane.b32.xlu0 %v6527, 32
        %v6559 = vpop.permute.xlu0 %6558
        %6560 = vrot.lane.b32.xlu0 %v6529, 32
        %v6561 = vpop.permute.xlu0 %6560
        %6562 = vrot.lane.b32.xlu0 %v6531, 32
        %v6563 = vpop.permute.xlu0 %6562
        %6564 = vrot.lane.b32.xlu0 %v6533, 32
        %v6565 = vpop.permute.xlu0 %6564
        %6566 = vrot.lane.b32.xlu0 %v6535, 32
        %v6567 = vpop.permute.xlu0 %6566
        %6568 = vrot.lane.b32.xlu0 %v6537, 32
        %v6569 = vpop.permute.xlu0 %6568
        %6570 = vrot.lane.b32.xlu0 %v6539, 32
        %v6571 = vpop.permute.xlu0 %6570
        %v6588 = vrot.slane %v6421, 2
        %v6589 = vrot.slane %v6424, 2
        %v6590 = vsel %vm400, %v6588, %v6589
        %v6591 = vrot.slane %v6429, 2
        %v6592 = vsel %vm400, %v6589, %v6591
        %v6593 = vrot.slane %v6432, 2
        %v6594 = vsel %vm400, %v6591, %v6593
        %v6595 = vrot.slane %v6437, 2
        %v6596 = vsel %vm400, %v6593, %v6595
        %v6597 = vrot.slane %v6440, 2
        %v6598 = vsel %vm400, %v6595, %v6597
        %v6599 = vrot.slane %v6445, 2
        %v6600 = vsel %vm400, %v6597, %v6599
        %v6601 = vrot.slane %v6448, 2
        %v6602 = vsel %vm400, %v6599, %v6601
        %v6603 = vrot.slane %v6453, 2
        %v6604 = vsel %vm400, %v6601, %v6603
        %v6605 = vrot.slane %v6456, 2
        %v6606 = vsel %vm400, %v6603, %v6605
        %v6607 = vrot.slane %v6461, 2
        %v6608 = vsel %vm400, %v6605, %v6607
        %v6609 = vrot.slane %v6464, 2
        %v6610 = vsel %vm400, %v6607, %v6609
        %v6611 = vrot.slane %v6469, 2
        %v6612 = vsel %vm400, %v6609, %v6611
        %v6613 = vrot.slane %v6472, 2
        %v6614 = vsel %vm400, %v6611, %v6613
        %v6615 = vrot.slane %v6477, 2
        %v6616 = vsel %vm400, %v6613, %v6615
        %v6617 = vrot.slane %v6480, 2
        %v6618 = vsel %vm400, %v6615, %v6617
        %v6619 = vrot.slane %v6485, 2
        %v6620 = vsel %vm400, %v6617, %v6619
        %6621 = vrot.lane.b32.xlu0 %v6590, 64
        %v6622 = vpop.permute.xlu0 %6621
        %6623 = vrot.lane.b32.xlu0 %v6592, 64
        %v6624 = vpop.permute.xlu0 %6623
        %6625 = vrot.lane.b32.xlu0 %v6594, 64
        %v6626 = vpop.permute.xlu0 %6625
        %6627 = vrot.lane.b32.xlu0 %v6596, 64
        %v6628 = vpop.permute.xlu0 %6627
        %6629 = vrot.lane.b32.xlu0 %v6598, 64
        %v6630 = vpop.permute.xlu0 %6629
        %6631 = vrot.lane.b32.xlu0 %v6600, 64
        %v6632 = vpop.permute.xlu0 %6631
        %6633 = vrot.lane.b32.xlu0 %v6602, 64
        %v6634 = vpop.permute.xlu0 %6633
        %6635 = vrot.lane.b32.xlu0 %v6604, 64
        %v6636 = vpop.permute.xlu0 %6635
        %6637 = vrot.lane.b32.xlu0 %v6606, 64
        %v6638 = vpop.permute.xlu0 %6637
        %6639 = vrot.lane.b32.xlu0 %v6608, 64
        %v6640 = vpop.permute.xlu0 %6639
        %6641 = vrot.lane.b32.xlu0 %v6610, 64
        %v6642 = vpop.permute.xlu0 %6641
        %6643 = vrot.lane.b32.xlu0 %v6612, 64
        %v6644 = vpop.permute.xlu0 %6643
        %6645 = vrot.lane.b32.xlu0 %v6614, 64
        %v6646 = vpop.permute.xlu0 %6645
        %6647 = vrot.lane.b32.xlu0 %v6616, 64
        %v6648 = vpop.permute.xlu0 %6647
        %6649 = vrot.lane.b32.xlu0 %v6618, 64
        %v6650 = vpop.permute.xlu0 %6649
        %6651 = vrot.lane.b32.xlu0 %v6620, 64
        %v6652 = vpop.permute.xlu0 %6651
        %v6669 = vrot.slane %v6421, 3
        %v6670 = vrot.slane %v6424, 3
        %v6671 = vsel %vm482, %v6669, %v6670
        %v6672 = vrot.slane %v6429, 3
        %v6673 = vsel %vm482, %v6670, %v6672
        %v6674 = vrot.slane %v6432, 3
        %v6675 = vsel %vm482, %v6672, %v6674
        %v6676 = vrot.slane %v6437, 3
        %v6677 = vsel %vm482, %v6674, %v6676
        %v6678 = vrot.slane %v6440, 3
        %v6679 = vsel %vm482, %v6676, %v6678
        %v6680 = vrot.slane %v6445, 3
        %v6681 = vsel %vm482, %v6678, %v6680
        %v6682 = vrot.slane %v6448, 3
        %v6683 = vsel %vm482, %v6680, %v6682
        %v6684 = vrot.slane %v6453, 3
        %v6685 = vsel %vm482, %v6682, %v6684
        %v6686 = vrot.slane %v6456, 3
        %v6687 = vsel %vm482, %v6684, %v6686
        %v6688 = vrot.slane %v6461, 3
        %v6689 = vsel %vm482, %v6686, %v6688
        %v6690 = vrot.slane %v6464, 3
        %v6691 = vsel %vm482, %v6688, %v6690
        %v6692 = vrot.slane %v6469, 3
        %v6693 = vsel %vm482, %v6690, %v6692
        %v6694 = vrot.slane %v6472, 3
        %v6695 = vsel %vm482, %v6692, %v6694
        %v6696 = vrot.slane %v6477, 3
        %v6697 = vsel %vm482, %v6694, %v6696
        %v6698 = vrot.slane %v6480, 3
        %v6699 = vsel %vm482, %v6696, %v6698
        %v6700 = vrot.slane %v6485, 3
        %v6701 = vsel %vm482, %v6698, %v6700
        %6702 = vrot.lane.b32.xlu0 %v6671, 96
        %v6703 = vpop.permute.xlu0 %6702
        %6704 = vrot.lane.b32.xlu0 %v6673, 96
        %v6705 = vpop.permute.xlu0 %6704
        %6706 = vrot.lane.b32.xlu0 %v6675, 96
        %v6707 = vpop.permute.xlu0 %6706
        %6708 = vrot.lane.b32.xlu0 %v6677, 96
        %v6709 = vpop.permute.xlu0 %6708
        %6710 = vrot.lane.b32.xlu0 %v6679, 96
        %v6711 = vpop.permute.xlu0 %6710
        %6712 = vrot.lane.b32.xlu0 %v6681, 96
        %v6713 = vpop.permute.xlu0 %6712
        %6714 = vrot.lane.b32.xlu0 %v6683, 96
        %v6715 = vpop.permute.xlu0 %6714
        %6716 = vrot.lane.b32.xlu0 %v6685, 96
        %v6717 = vpop.permute.xlu0 %6716
        %6718 = vrot.lane.b32.xlu0 %v6687, 96
        %v6719 = vpop.permute.xlu0 %6718
        %6720 = vrot.lane.b32.xlu0 %v6689, 96
        %v6721 = vpop.permute.xlu0 %6720
        %6722 = vrot.lane.b32.xlu0 %v6691, 96
        %v6723 = vpop.permute.xlu0 %6722
        %6724 = vrot.lane.b32.xlu0 %v6693, 96
        %v6725 = vpop.permute.xlu0 %6724
        %6726 = vrot.lane.b32.xlu0 %v6695, 96
        %v6727 = vpop.permute.xlu0 %6726
        %6728 = vrot.lane.b32.xlu0 %v6697, 96
        %v6729 = vpop.permute.xlu0 %6728
        %6730 = vrot.lane.b32.xlu0 %v6699, 96
        %v6731 = vpop.permute.xlu0 %6730
        %6732 = vrot.lane.b32.xlu0 %v6701, 96
        %v6733 = vpop.permute.xlu0 %6732
        %v6750 = vrot.slane %v6421, 4
        %v6751 = vrot.slane %v6424, 4
        %v6752 = vsel %vm564, %v6750, %v6751
        %v6753 = vrot.slane %v6429, 4
        %v6754 = vsel %vm564, %v6751, %v6753
        %v6755 = vrot.slane %v6432, 4
        %v6756 = vsel %vm564, %v6753, %v6755
        %v6757 = vrot.slane %v6437, 4
        %v6758 = vsel %vm564, %v6755, %v6757
        %v6759 = vrot.slane %v6440, 4
        %v6760 = vsel %vm564, %v6757, %v6759
        %v6761 = vrot.slane %v6445, 4
        %v6762 = vsel %vm564, %v6759, %v6761
        %v6763 = vrot.slane %v6448, 4
        %v6764 = vsel %vm564, %v6761, %v6763
        %v6765 = vrot.slane %v6453, 4
        %v6766 = vsel %vm564, %v6763, %v6765
        %v6767 = vrot.slane %v6456, 4
        %v6768 = vsel %vm564, %v6765, %v6767
        %v6769 = vrot.slane %v6461, 4
        %v6770 = vsel %vm564, %v6767, %v6769
        %v6771 = vrot.slane %v6464, 4
        %v6772 = vsel %vm564, %v6769, %v6771
        %v6773 = vrot.slane %v6469, 4
        %v6774 = vsel %vm564, %v6771, %v6773
        %v6775 = vrot.slane %v6472, 4
        %v6776 = vsel %vm564, %v6773, %v6775
        %v6777 = vrot.slane %v6477, 4
        %v6778 = vsel %vm564, %v6775, %v6777
        %v6779 = vrot.slane %v6480, 4
        %v6780 = vsel %vm564, %v6777, %v6779
        %v6781 = vrot.slane %v6485, 4
        %v6782 = vsel %vm564, %v6779, %v6781
        %v6799 = vsel %vm1284, %v6421, %v6541
        %v6800 = vsel %vm1284, %v6424, %v6543
        %v6801 = vsel %vm1284, %v6429, %v6545
        %v6802 = vsel %vm1284, %v6432, %v6547
        %v6803 = vsel %vm1284, %v6437, %v6549
        %v6804 = vsel %vm1284, %v6440, %v6551
        %v6805 = vsel %vm1284, %v6445, %v6553
        %v6806 = vsel %vm1284, %v6448, %v6555
        %v6807 = vsel %vm1284, %v6453, %v6557
        %v6808 = vsel %vm1284, %v6456, %v6559
        %v6809 = vsel %vm1284, %v6461, %v6561
        %v6810 = vsel %vm1284, %v6464, %v6563
        %v6811 = vsel %vm1284, %v6469, %v6565
        %v6812 = vsel %vm1284, %v6472, %v6567
        %v6813 = vsel %vm1284, %v6477, %v6569
        %v6814 = vsel %vm1284, %v6480, %v6571
        %v6815 = vsel %vm1318, %v6799, %v6622
        %v6816 = vsel %vm1318, %v6800, %v6624
        %v6817 = vsel %vm1318, %v6801, %v6626
        %v6818 = vsel %vm1318, %v6802, %v6628
        %v6819 = vsel %vm1318, %v6803, %v6630
        %v6820 = vsel %vm1318, %v6804, %v6632
        %v6821 = vsel %vm1318, %v6805, %v6634
        %v6822 = vsel %vm1318, %v6806, %v6636
        %v6823 = vsel %vm1318, %v6807, %v6638
        %v6824 = vsel %vm1318, %v6808, %v6640
        %v6825 = vsel %vm1318, %v6809, %v6642
        %v6826 = vsel %vm1318, %v6810, %v6644
        %v6827 = vsel %vm1318, %v6811, %v6646
        %v6828 = vsel %vm1318, %v6812, %v6648
        %v6829 = vsel %vm1318, %v6813, %v6650
        %v6830 = vsel %vm1318, %v6814, %v6652
        %v6831 = vsel %vm2224, %v6815, %v6703
        %v6832 = vsel %vm2224, %v6816, %v6705
        %v6833 = vsel %vm2224, %v6817, %v6707
        %v6834 = vsel %vm2224, %v6818, %v6709
        %v6835 = vsel %vm2224, %v6819, %v6711
        %v6836 = vsel %vm2224, %v6820, %v6713
        %v6837 = vsel %vm2224, %v6821, %v6715
        %v6838 = vsel %vm2224, %v6822, %v6717
        %v6839 = vsel %vm2224, %v6823, %v6719
        %v6840 = vsel %vm2224, %v6824, %v6721
        %v6841 = vsel %vm2224, %v6825, %v6723
        %v6842 = vsel %vm2224, %v6826, %v6725
        %v6843 = vsel %vm2224, %v6827, %v6727
        %v6844 = vsel %vm2224, %v6828, %v6729
        %v6845 = vsel %vm2224, %v6829, %v6731
        %v6846 = vsel %vm2224, %v6830, %v6733
        %v6847 = vpack.c.bf16 %v6832, %v6831
        %v6848 = vpack.c.bf16 %v6754, %v6752
        %v6849 = vpack.c.bf16 %v6834, %v6833
        %v6850 = vpack.c.bf16 %v6758, %v6756
        %v6851 = vpack.c.bf16 %v6836, %v6835
        %v6852 = vpack.c.bf16 %v6762, %v6760
        %v6853 = vpack.c.bf16 %v6838, %v6837
        %v6854 = vpack.c.bf16 %v6766, %v6764
        %v6855 = vpack.c.bf16 %v6840, %v6839
        %v6856 = vpack.c.bf16 %v6770, %v6768
        %v6857 = vpack.c.bf16 %v6842, %v6841
        %v6858 = vpack.c.bf16 %v6774, %v6772
        %v6859 = vpack.c.bf16 %v6844, %v6843
        %v6860 = vpack.c.bf16 %v6778, %v6776
        %v6861 = vpack.c.bf16 %v6846, %v6845
        %v6862 = vpack.c.bf16 %v6782, %v6780
        %v6863 = vld [vmem:[#allocation6 + $0x708] sm:$0xf]
        %v6864 = vld [vmem:[#allocation6 + $0x70c] sm:$0xf]
        %v6865 = vld [vmem:[#allocation6 + $0x710] sm:$0xf]
        %v6866 = vld [vmem:[#allocation6 + $0x714] sm:$0xf]
        %v6867 = vld [vmem:[#allocation6 + $0x718] sm:$0xf]
        %v6868 = vld [vmem:[#allocation6 + $0x71c] sm:$0xf]
        %v6869 = vld [vmem:[#allocation6 + $0x720] sm:$0xf]
        %v6870 = vld [vmem:[#allocation6 + $0x724] sm:$0xf]
        %v6871 = vld [vmem:[#allocation6 + $0x728] sm:$0xf]
        %v6872 = vld [vmem:[#allocation6 + $0x72c] sm:$0xf]
        %v6873 = vld [vmem:[#allocation6 + $0x730] sm:$0xf]
        %v6874 = vld [vmem:[#allocation6 + $0x734] sm:$0xf]
        %v6875 = vld [vmem:[#allocation6 + $0x738] sm:$0xf]
        %v6876 = vld [vmem:[#allocation6 + $0x73c] sm:$0xf]
        %v6877 = vld [vmem:[#allocation6 + $0x740] sm:$0xf]
        %v6878 = vld [vmem:[#allocation6 + $0x744] sm:$0xf]
        %v6879 = vld [vmem:[#allocation6 + $0x748] sm:$0xf]
        %v6880 = vld [vmem:[#allocation6 + $0x74c] sm:$0xf]
        %v6881 = vld [vmem:[#allocation6 + $0x750] sm:$0xf]
        %v6882 = vld [vmem:[#allocation6 + $0x754] sm:$0xf]
        %v6883 = vld [vmem:[#allocation8 + $0xd] sm:$0x1]
        %v6884 = vlaneseq
        %v6885 = vshrl.u32 %v6884, 7
        %v6886 = vsub.s32 0, %v6885
        %v6887 = vrot.slane %v6883, %v6886
        %v6908 = vunpack.c.l.b16 %v6863
        %v6909 = vunpack.c.l.b16 %v6864
        %v6910 = vunpack.c.l.b16 %v6865
        %v6911 = vunpack.c.l.b16 %v6866
        %v6912 = vunpack.c.l.b16 %v6867
        %v6913 = vunpack.c.l.b16 %v6868
        %v6914 = vunpack.c.l.b16 %v6869
        %v6915 = vunpack.c.l.b16 %v6870
        %v6916 = vunpack.c.l.b16 %v6871
        %v6917 = vunpack.c.l.b16 %v6872
        %v6918 = vunpack.c.l.b16 %v6873
        %v6919 = vunpack.c.l.b16 %v6874
        %v6920 = vunpack.c.l.b16 %v6875
        %v6921 = vunpack.c.l.b16 %v6876
        %v6922 = vunpack.c.l.b16 %v6877
        %v6923 = vunpack.c.l.b16 %v6878
        %v6924 = vunpack.c.l.b16 %v6879
        %v6925 = vunpack.c.l.b16 %v6880
        %v6926 = vunpack.c.l.b16 %v6881
        %v6927 = vunpack.c.l.b16 %v6882
        %v6928 = vpack.c.b16 %v6909, %v6908
        %v6929 = vpack.c.b16 %v6911, %v6910
        %v6930 = vpack.c.b16 %v6913, %v6912
        %v6931 = vpack.c.b16 %v6915, %v6914
        %v6932 = vpack.c.b16 %v6917, %v6916
        %v6933 = vpack.c.b16 %v6919, %v6918
        %v6934 = vpack.c.b16 %v6921, %v6920
        %v6935 = vpack.c.b16 %v6923, %v6922
        %v6936 = vpack.c.b16 %v6925, %v6924
        %v6937 = vpack.c.b16 %v6927, %v6926
        %v6949 = vsel %vm1284, %v6848, 0
        %v6952 = vsel %vm1284, %v6850, 0
        %v6955 = vsel %vm1284, %v6852, 0
        %v6958 = vsel %vm1284, %v6854, 0
        %v6961 = vsel %vm1284, %v6856, 0
        %v6964 = vsel %vm1284, %v6858, 0
        %v6967 = vsel %vm1284, %v6860, 0
        %v6970 = vsel %vm1284, %v6862, 0
        %6972 = vmatprep.subr.bf16.mxu0 0
        %6973 = vmatpush1.bf16.msra.mxu0 %v6935
        %6974 = vmatprep.subr.bf16.mxu0 0
        %6975 = vmatpush1.bf16.msra.mxu0 %v6934
        %6976 = vmatprep.subr.bf16.mxu0 0
        %6977 = vmatpush1.bf16.msra.mxu0 %v6933
        %6978 = vmatprep.subr.bf16.mxu0 0
        %6979 = vmatpush1.bf16.msra.mxu0 %v6932
        %6980 = vmatprep.subr.bf16.mxu0 0
        %6981 = vmatpush1.bf16.msra.mxu0 %v6931
        %6982 = vmatprep.subr.bf16.mxu0 0
        %6983 = vmatpush1.bf16.msra.mxu0 %v6930
        %6984 = vmatprep.subr.bf16.mxu0 0
        %6985 = vmatpush1.bf16.msra.mxu0 %v6929
        %6986 = vmatprep.subr.bf16.mxu0 0
        %6987 = vmatpush1.bf16.msra.mxu0 %v6928
        %6988 = vmatprep.subr.bf16.mxu0 0
        %6989 = vmatpush2.bf16.msra.mxu0 0
        %6990 = vmatprep.subr.bf16.mxu0 0
        %6991 = vmatpush2.bf16.msra.mxu0 0
        %6992 = vmatprep.subr.bf16.mxu0 0
        %6993 = vmatpush2.bf16.msra.mxu0 0
        %6994 = vmatprep.subr.bf16.mxu0 0
        %6995 = vmatpush2.bf16.msra.mxu0 0
        %6996 = vmatprep.subr.bf16.mxu0 0
        %6997 = vmatpush2.bf16.msra.mxu0 0
        %6998 = vmatprep.subr.bf16.mxu0 0
        %6999 = vmatpush2.bf16.msra.mxu0 0
        %7000 = vmatprep.subr.bf16.mxu0 0
        %7001 = vmatpush2.bf16.msra.mxu0 %v6937
        %7002 = vmatprep.subr.bf16.mxu0 0
        %7003 = vmatpush2.bf16.msra.mxu0 %v6936
        %7004 = vmatprep.mubr.bf16.mxu0 %v6949
        %7005 = vmatmul.mubr.bf16.gmra.mxu0 %v6847
        %v7006 = vpop.f32.mrf.mxu0
        %v7007 = vadd.f32 %v6887, %v7006
        %v7008 = vpop.f32.mrf.mxu0
        %v7009 = vpop.f32.mrf.mxu0
        %v7010 = vadd.f32 %v6887, %v7009
        %v7011 = vpop.f32.mrf.mxu0
        %7012 = vmatprep.mubr.bf16.mxu0 %v6952
        %7013 = vmatmul.mubr.bf16.gmra.mxu0 %v6849
        %v7014 = vpop.f32.mrf.mxu0
        %v7015 = vadd.f32 %v6887, %v7014
        %v7016 = vpop.f32.mrf.mxu0
        %v7017 = vpop.f32.mrf.mxu0
        %v7018 = vadd.f32 %v6887, %v7017
        %v7019 = vpop.f32.mrf.mxu0
        %7020 = vmatprep.mubr.bf16.mxu0 %v6955
        %7021 = vmatmul.mubr.bf16.gmra.mxu0 %v6851
        %v7022 = vpop.f32.mrf.mxu0
        %v7023 = vadd.f32 %v6887, %v7022
        %v7024 = vpop.f32.mrf.mxu0
        %v7025 = vpop.f32.mrf.mxu0
        %v7026 = vadd.f32 %v6887, %v7025
        %v7027 = vpop.f32.mrf.mxu0
        %7028 = vmatprep.mubr.bf16.mxu0 %v6958
        %7029 = vmatmul.mubr.bf16.gmra.mxu0 %v6853
        %v7030 = vpop.f32.mrf.mxu0
        %v7031 = vadd.f32 %v6887, %v7030
        %v7032 = vpop.f32.mrf.mxu0
        %v7033 = vpop.f32.mrf.mxu0
        %v7034 = vadd.f32 %v6887, %v7033
        %v7035 = vpop.f32.mrf.mxu0
        %7036 = vmatprep.mubr.bf16.mxu0 %v6961
        %7037 = vmatmul.mubr.bf16.gmra.mxu0 %v6855
        %v7038 = vpop.f32.mrf.mxu0
        %v7039 = vadd.f32 %v6887, %v7038
        %v7040 = vpop.f32.mrf.mxu0
        %v7041 = vpop.f32.mrf.mxu0
        %v7042 = vadd.f32 %v6887, %v7041
        %v7043 = vpop.f32.mrf.mxu0
        %7044 = vmatprep.mubr.bf16.mxu0 %v6964
        %7045 = vmatmul.mubr.bf16.gmra.mxu0 %v6857
        %v7046 = vpop.f32.mrf.mxu0
        %v7047 = vadd.f32 %v6887, %v7046
        %v7048 = vpop.f32.mrf.mxu0
        %v7049 = vpop.f32.mrf.mxu0
        %v7050 = vadd.f32 %v6887, %v7049
        %v7051 = vpop.f32.mrf.mxu0
        %7052 = vmatprep.mubr.bf16.mxu0 %v6967
        %7053 = vmatmul.mubr.bf16.gmra.mxu0 %v6859
        %v7054 = vpop.f32.mrf.mxu0
        %v7055 = vadd.f32 %v6887, %v7054
        %v7056 = vpop.f32.mrf.mxu0
        %v7057 = vpop.f32.mrf.mxu0
        %v7058 = vadd.f32 %v6887, %v7057
        %v7059 = vpop.f32.mrf.mxu0
        %7060 = vmatprep.mubr.bf16.mxu0 %v6970
        %7061 = vmatmul.mubr.bf16.gmra.mxu0 %v6861
        %v7062 = vpop.f32.mrf.mxu0
        %v7063 = vadd.f32 %v6887, %v7062
        %v7064 = vpop.f32.mrf.mxu0
        %v7065 = vpop.f32.mrf.mxu0
        %v7066 = vadd.f32 %v6887, %v7065
        %v7067 = vpop.f32.mrf.mxu0
        %7068 = vdwg.mxu0
        %v7069 = vmax.f32 %v7007, 0.0
        %v7070 = vmax.f32 %v7010, 0.0
        %v7071 = vmax.f32 %v7015, 0.0
        %v7072 = vmax.f32 %v7018, 0.0
        %v7073 = vmax.f32 %v7023, 0.0
        %v7074 = vmax.f32 %v7026, 0.0
        %v7075 = vmax.f32 %v7031, 0.0
        %v7076 = vmax.f32 %v7034, 0.0
        %v7077 = vmax.f32 %v7039, 0.0
        %v7078 = vmax.f32 %v7042, 0.0
        %v7079 = vmax.f32 %v7047, 0.0
        %v7080 = vmax.f32 %v7050, 0.0
        %v7081 = vmax.f32 %v7055, 0.0
        %v7082 = vmax.f32 %v7058, 0.0
        %v7083 = vmax.f32 %v7063, 0.0
        %v7084 = vmax.f32 %v7066, 0.0
        %v7085 = vld [vmem:[#allocation6 + $0x758] sm:$0xf]
        %v7086 = vld [vmem:[#allocation6 + $0x75c] sm:$0xf]
        %v7087 = vld [vmem:[#allocation8 + $0xe] sm:$0x1]
        %v7088 = vpack.c.bf16 %v7070, %v7069
        %v7089 = vpack.c.bf16 %v7072, %v7071
        %v7090 = vpack.c.bf16 %v7074, %v7073
        %v7091 = vpack.c.bf16 %v7076, %v7075
        %v7092 = vpack.c.bf16 %v7078, %v7077
        %v7093 = vpack.c.bf16 %v7080, %v7079
        %v7094 = vpack.c.bf16 %v7082, %v7081
        %v7095 = vpack.c.bf16 %v7084, %v7083
        %v7096 = vlaneseq
        %v7097 = vshrl.u32 %v7096, 7
        %v7098 = vsub.s32 0, %v7097
        %v7099 = vrot.slane %v7087, %v7098
        %v7102 = vunpack.c.l.b16 %v7085
        %v7103 = vunpack.c.l.b16 %v7086
        %v7104 = vpack.c.b16 %v7103, %v7102
        %v7107 = vsel %vm1267, %v7088, 0
        %v7110 = vsel %vm1267, %v7089, 0
        %v7113 = vsel %vm1267, %v7090, 0
        %v7116 = vsel %vm1267, %v7091, 0
        %v7119 = vsel %vm1267, %v7092, 0
        %v7122 = vsel %vm1267, %v7093, 0
        %v7125 = vsel %vm1267, %v7094, 0
        %v7128 = vsel %vm1267, %v7095, 0
        %7130 = vmatprep.subr.bf16.mxu0 0
        %7131 = vmatpush1.bf16.msra.mxu0 0
        %7132 = vmatprep.subr.bf16.mxu0 0
        %7133 = vmatpush1.bf16.msra.mxu0 0
        %7134 = vmatprep.subr.bf16.mxu0 0
        %7135 = vmatpush1.bf16.msra.mxu0 0
        %7136 = vmatprep.subr.bf16.mxu0 0
        %7137 = vmatpush1.bf16.msra.mxu0 0
        %7138 = vmatprep.subr.bf16.mxu0 0
        %7139 = vmatpush1.bf16.msra.mxu0 0
        %7140 = vmatprep.subr.bf16.mxu0 0
        %7141 = vmatpush1.bf16.msra.mxu0 0
        %7142 = vmatprep.subr.bf16.mxu0 0
        %7143 = vmatpush1.bf16.msra.mxu0 0
        %7144 = vmatprep.subr.bf16.mxu0 0
        %7145 = vmatpush1.bf16.msra.mxu0 %v7104
        %7146 = vmatprep.subr.bf16.mxu0 0
        %7147 = vmatpush2.bf16.msra.mxu0 0
        %7148 = vmatprep.subr.bf16.mxu0 0
        %7149 = vmatpush2.bf16.msra.mxu0 0
        %7150 = vmatprep.subr.bf16.mxu0 0
        %7151 = vmatpush2.bf16.msra.mxu0 0
        %7152 = vmatprep.subr.bf16.mxu0 0
        %7153 = vmatpush2.bf16.msra.mxu0 0
        %7154 = vmatprep.subr.bf16.mxu0 0
        %7155 = vmatpush2.bf16.msra.mxu0 0
        %7156 = vmatprep.subr.bf16.mxu0 0
        %7157 = vmatpush2.bf16.msra.mxu0 0
        %7158 = vmatprep.subr.bf16.mxu0 0
        %7159 = vmatpush2.bf16.msra.mxu0 0
        %7160 = vmatprep.subr.bf16.mxu0 0
        %7161 = vmatpush2.bf16.msra.mxu0 0
        %7162 = vmatprep.mubr.bf16.mxu0 0
        %7163 = vmatmul.mubr.bf16.gmra.mxu0 %v7107
        %v7164 = vpop.f32.mrf.mxu0
        %v7165 = vadd.f32 %v7099, %v7164
        %v7166 = vpop.f32.mrf.mxu0
        %v7167 = vpop.f32.mrf.mxu0
        %v7168 = vadd.f32 %v7099, %v7167
        %v7169 = vpop.f32.mrf.mxu0
        %7170 = vmatprep.mubr.bf16.mxu0 0
        %7171 = vmatmul.mubr.bf16.gmra.mxu0 %v7110
        %v7172 = vpop.f32.mrf.mxu0
        %v7173 = vadd.f32 %v7099, %v7172
        %v7174 = vpop.f32.mrf.mxu0
        %v7175 = vpop.f32.mrf.mxu0
        %v7176 = vadd.f32 %v7099, %v7175
        %v7177 = vpop.f32.mrf.mxu0
        %7178 = vmatprep.mubr.bf16.mxu0 0
        %7179 = vmatmul.mubr.bf16.gmra.mxu0 %v7113
        %v7180 = vpop.f32.mrf.mxu0
        %v7181 = vadd.f32 %v7099, %v7180
        %v7182 = vpop.f32.mrf.mxu0
        %v7183 = vpop.f32.mrf.mxu0
        %v7184 = vadd.f32 %v7099, %v7183
        %v7185 = vpop.f32.mrf.mxu0
        %7186 = vmatprep.mubr.bf16.mxu0 0
        %7187 = vmatmul.mubr.bf16.gmra.mxu0 %v7116
        %v7188 = vpop.f32.mrf.mxu0
        %v7189 = vadd.f32 %v7099, %v7188
        %v7190 = vpop.f32.mrf.mxu0
        %v7191 = vpop.f32.mrf.mxu0
        %v7192 = vadd.f32 %v7099, %v7191
        %v7193 = vpop.f32.mrf.mxu0
        %7194 = vmatprep.mubr.bf16.mxu0 0
        %7195 = vmatmul.mubr.bf16.gmra.mxu0 %v7119
        %v7196 = vpop.f32.mrf.mxu0
        %v7197 = vadd.f32 %v7099, %v7196
        %v7198 = vpop.f32.mrf.mxu0
        %v7199 = vpop.f32.mrf.mxu0
        %v7200 = vadd.f32 %v7099, %v7199
        %v7201 = vpop.f32.mrf.mxu0
        %7202 = vmatprep.mubr.bf16.mxu0 0
        %7203 = vmatmul.mubr.bf16.gmra.mxu0 %v7122
        %v7204 = vpop.f32.mrf.mxu0
        %v7205 = vadd.f32 %v7099, %v7204
        %v7206 = vpop.f32.mrf.mxu0
        %v7207 = vpop.f32.mrf.mxu0
        %v7208 = vadd.f32 %v7099, %v7207
        %v7209 = vpop.f32.mrf.mxu0
        %7210 = vmatprep.mubr.bf16.mxu0 0
        %7211 = vmatmul.mubr.bf16.gmra.mxu0 %v7125
        %v7212 = vpop.f32.mrf.mxu0
        %v7213 = vadd.f32 %v7099, %v7212
        %v7214 = vpop.f32.mrf.mxu0
        %v7215 = vpop.f32.mrf.mxu0
        %v7216 = vadd.f32 %v7099, %v7215
        %v7217 = vpop.f32.mrf.mxu0
        %7218 = vmatprep.mubr.bf16.mxu0 0
        %7219 = vmatmul.mubr.bf16.gmra.mxu0 %v7128
        %v7220 = vpop.f32.mrf.mxu0
        %v7221 = vadd.f32 %v7099, %v7220
        %v7222 = vpop.f32.mrf.mxu0
        %v7223 = vpop.f32.mrf.mxu0
        %v7224 = vadd.f32 %v7099, %v7223
        %v7225 = vpop.f32.mrf.mxu0
        %7226 = vdwg.mxu0
        %v7227 = vsub.f32 0.0, %v7165
        %v7228 = vsub.f32 0.0, %v7168
        %v7229 = vsub.f32 0.0, %v7173
        %v7230 = vsub.f32 0.0, %v7176
        %v7231 = vsub.f32 0.0, %v7181
        %v7232 = vsub.f32 0.0, %v7184
        %v7233 = vsub.f32 0.0, %v7189
        %v7234 = vsub.f32 0.0, %v7192
        %v7235 = vsub.f32 0.0, %v7197
        %v7236 = vsub.f32 0.0, %v7200
        %v7237 = vsub.f32 0.0, %v7205
        %v7238 = vsub.f32 0.0, %v7208
        %v7239 = vsub.f32 0.0, %v7213
        %v7240 = vsub.f32 0.0, %v7216
        %v7241 = vsub.f32 0.0, %v7221
        %v7242 = vsub.f32 0.0, %v7224
        %v7243 = vmul.f32 %v7227, 1.442695
        %v7244 = vpow.pop %v7243
        %v7245 = vmul.f32 %v7228, 1.442695
        %v7246 = vpow.pop %v7245
        %v7247 = vmul.f32 %v7229, 1.442695
        %v7248 = vpow.pop %v7247
        %v7249 = vmul.f32 %v7230, 1.442695
        %v7250 = vpow.pop %v7249
        %v7251 = vmul.f32 %v7231, 1.442695
        %v7252 = vpow.pop %v7251
        %v7253 = vmul.f32 %v7232, 1.442695
        %v7254 = vpow.pop %v7253
        %v7255 = vmul.f32 %v7233, 1.442695
        %v7256 = vpow.pop %v7255
        %v7257 = vmul.f32 %v7234, 1.442695
        %v7258 = vpow.pop %v7257
        %v7259 = vmul.f32 %v7235, 1.442695
        %v7260 = vpow.pop %v7259
        %v7261 = vmul.f32 %v7236, 1.442695
        %v7262 = vpow.pop %v7261
        %v7263 = vmul.f32 %v7237, 1.442695
        %v7264 = vpow.pop %v7263
        %v7265 = vmul.f32 %v7238, 1.442695
        %v7266 = vpow.pop %v7265
        %v7267 = vmul.f32 %v7239, 1.442695
        %v7268 = vpow.pop %v7267
        %v7269 = vmul.f32 %v7240, 1.442695
        %v7270 = vpow.pop %v7269
        %v7271 = vmul.f32 %v7241, 1.442695
        %v7272 = vpow.pop %v7271
        %v7273 = vmul.f32 %v7242, 1.442695
        %v7274 = vpow.pop %v7273
        %v7275 = vadd.f32 %v7244, 1.0
        %v7276 = vadd.f32 %v7246, 1.0
        %v7277 = vadd.f32 %v7248, 1.0
        %v7278 = vadd.f32 %v7250, 1.0
        %v7279 = vadd.f32 %v7252, 1.0
        %v7280 = vadd.f32 %v7254, 1.0
        %v7281 = vadd.f32 %v7256, 1.0
        %v7282 = vadd.f32 %v7258, 1.0
        %v7283 = vadd.f32 %v7260, 1.0
        %v7284 = vadd.f32 %v7262, 1.0
        %v7285 = vadd.f32 %v7264, 1.0
        %v7286 = vadd.f32 %v7266, 1.0
        %v7287 = vadd.f32 %v7268, 1.0
        %v7288 = vadd.f32 %v7270, 1.0
        %v7289 = vadd.f32 %v7272, 1.0
        %v7290 = vadd.f32 %v7274, 1.0
        %v7291 = vrcp.pop %v7275
        %v7292 = vmul.f32 1.0, %v7291
        %v7293 = vrcp.pop %v7276
        %v7294 = vmul.f32 1.0, %v7293
        %v7295 = vrcp.pop %v7277
        %v7296 = vmul.f32 1.0, %v7295
        %v7297 = vrcp.pop %v7278
        %v7298 = vmul.f32 1.0, %v7297
        %v7299 = vrcp.pop %v7279
        %v7300 = vmul.f32 1.0, %v7299
        %v7301 = vrcp.pop %v7280
        %v7302 = vmul.f32 1.0, %v7301
        %v7303 = vrcp.pop %v7281
        %v7304 = vmul.f32 1.0, %v7303
        %v7305 = vrcp.pop %v7282
        %v7306 = vmul.f32 1.0, %v7305
        %v7307 = vrcp.pop %v7283
        %v7308 = vmul.f32 1.0, %v7307
        %v7309 = vrcp.pop %v7284
        %v7310 = vmul.f32 1.0, %v7309
        %v7311 = vrcp.pop %v7285
        %v7312 = vmul.f32 1.0, %v7311
        %v7313 = vrcp.pop %v7286
        %v7314 = vmul.f32 1.0, %v7313
        %v7315 = vrcp.pop %v7287
        %v7316 = vmul.f32 1.0, %v7315
        %v7317 = vrcp.pop %v7288
        %v7318 = vmul.f32 1.0, %v7317
        %v7319 = vrcp.pop %v7289
        %v7320 = vmul.f32 1.0, %v7319
        %v7321 = vrcp.pop %v7290
        %v7322 = vmul.f32 1.0, %v7321
        %7323 = vxpose.xlu0.b32.start [1/16] %v7292, 128
        %7324 = vxpose.xlu0.b32.cont [2/16] %v7294, 128
        %7325 = vxpose.xlu0.b32.cont [3/16] %v7296, 128
        %7326 = vxpose.xlu0.b32.cont [4/16] %v7298, 128
        %7327 = vxpose.xlu0.b32.cont [5/16] %v7300, 128
        %7328 = vxpose.xlu0.b32.cont [6/16] %v7302, 128
        %7329 = vxpose.xlu0.b32.cont [7/16] %v7304, 128
        %7330 = vxpose.xlu0.b32.cont [8/16] %v7306, 128
        %7331 = vxpose.xlu0.b32.cont [9/16] %v7308, 128
        %7332 = vxpose.xlu0.b32.cont [10/16] %v7310, 128
        %7333 = vxpose.xlu0.b32.cont [11/16] %v7312, 128
        %7334 = vxpose.xlu0.b32.cont [12/16] %v7314, 128
        %7335 = vxpose.xlu0.b32.cont [13/16] %v7316, 128
        %7336 = vxpose.xlu0.b32.cont [14/16] %v7318, 128
        %7337 = vxpose.xlu0.b32.cont [15/16] %v7320, 128
        %7338 = vxpose.xlu0.b32.end [16/16] %v7322, 128
        %v7339 = vpop.trf.xlu0
        %v7340 = vpop.trf.xlu0
        %v7341 = vpop.trf.xlu0
        %v7342 = vpop.trf.xlu0
        %v7343 = vpop.trf.xlu0
        %v7344 = vpop.trf.xlu0
        %v7345 = vpop.trf.xlu0
        %v7346 = vpop.trf.xlu0
        %v7347 = vpop.trf.xlu0
        %v7348 = vpop.trf.xlu0
        %v7349 = vpop.trf.xlu0
        %v7350 = vpop.trf.xlu0
        %v7351 = vpop.trf.xlu0
        %v7352 = vpop.trf.xlu0
        %v7353 = vpop.trf.xlu0
        %v7354 = vpop.trf.xlu0
        %7355 = vst [vmem:[%s214] sm:$0x3] %v7339
        %s7356 = sand.u32 %s97, 1
        %s7357 = scalar_lea.sflag [#allocation5], %s7356
        %s7358 = sand.u32 %s97, 1
        %s7359 = smul.addr %s7358, 2
        %s7360 = scalar_lea.vmem [#allocation9], %s7359
        // Predicated region
        $region45: #{_pallas_fwd.1} parent=31 // pred_check
          %p7361 = pneg %p107
        $region46: #{_pallas_fwd.1} parent=31 // pred_check_branch
          %7363 = sbr.rel (%p7361) target = $region48
        $region47: #{_pallas_fwd.1} parent=31 // pred_region
          %s7365 = ssub.s32 32, 32
          %7366 = vsyncadd %s7357, %s7365
          %s7367 = smul.addr %s21, 32
          %s7368 = scalar_lea.hbm %s3, %s7367
          %s7370 = sshll.u32 %s7360, 4
          %s7371 = int_to_ptr.vmem [resolvable:$true] %s7370
          %7373 = dma.vmem_to_hbm [thread:$0]  %s7371, 32, %s7368, %s7357
        $region48: #{_pallas_fwd.1} parent=31 // pred_fallthru
          _
      $region32: #{_pallas_fwd.1} parent=5 // pred_fallthru
        _
      %p7374 = scmp.le.s32.totalorder 2, %s16
      // Predicated region
      $region49: #{_pallas_fwd.1} parent=5 // pred_check
        %p7375 = pneg %p7374
      $region50: #{_pallas_fwd.1} parent=5 // pred_check_branch
        %7377 = sbr.rel (%p7375) target = $region52
      $region51: #{_pallas_fwd.1} parent=5 // pred_region
        %s7378 = ssub.s32 %s16, 2
        // Predicated region
        $region53: #{_pallas_fwd.1} parent=51 // pred_check
          %p7379 = pneg %p113
        $region54: #{_pallas_fwd.1} parent=51 // pred_check_branch
          %7381 = sbr.rel (%p7379) target = $region56
        $region55: #{_pallas_fwd.1} parent=51 // pred_region
          %s7382 = sand.u32 %s98, 1
          %s7383 = scalar_lea.sflag [#allocation5], %s7382
          %s7384 = sand.u32 %s98, 1
          %s7385 = smul.addr %s7384, 2
          %s7386 = scalar_lea.vmem [#allocation9], %s7385
          %7387 = dma.done %s7383, 32
        $region56: #{_pallas_fwd.1} parent=51 // pred_fallthru
          _
      $region52: #{_pallas_fwd.1} parent=5 // pred_fallthru
        _
    $region6: #{_pallas_fwd.1} parent=1 // loop_footer
      %s20 = sadd.s32 1, %s16
    $region7: #{_pallas_fwd.1} parent=1 // loop_footer_branch
      %15 = sbr.rel target = $region3
    $region8: #{_pallas_fwd.1} parent=1 // loop_exit
      _
    %7388 = vsyncpa [#allocation4], 1
    %s7389 = scalar_lea.sflag [#allocation4], 1
    %7390 = vsyncpa %s7389, 1
    %7391 = vsyncpa [#allocation7], 1
    %7392 = vsyncpa [#allocation5], 1
    %s7393 = scalar_lea.sflag [#allocation5], 1
    %7394 = vsyncpa %s7393, 1

</llo_original>
